<compile_context>
chip_gen: v7x
topology: tpu7x:2x2x1
jax: 0.10.0
libtpu: 0.0.40
codegen_flags: <defaults>
</compile_context>

<pallas_src>
import jax
import jax.numpy as jnp
from jax.experimental import pallas as pl
from jax.experimental.pallas import tpu as pltpu


def _geometric_block_kernel(x_ref, wb_ref, out_ref):
    # x_ref:   (B, C, HW)    activations (NCHW with H*W flattened)
    # wb_ref:  (C + 1, OUT)  transposed nn.Linear weight, bias folded in as
    #                        the last row
    # out_ref: (B, OUT + 1)  concat(u_hat, v) along features
    B = x_ref.shape[0]
    C = x_ref.shape[1]
    OUT = wb_ref.shape[1]

    # Cast in-kernel (not in the wrapper): free VPU work, keeps the HBM->VMEM
    # DMA at the caller's dtype width.
    x = x_ref[...].astype(jnp.float32)
    wb = wb_ref[...].astype(jnp.float32)

    # LeakyReLU(0.2), then adaptive_avg_pool2d(., (1, 1)) == mean over the
    # flattened spatial axis.
    act = jnp.where(x >= 0.0, x, 0.2 * x)
    pooled = jnp.mean(act, axis=-1)                        # (B, C)

    # Linear(dim, 1024) as an unrolled VPU broadcast-FMA over the tiny K=C
    # axis (MXU would be pure latency at M=2, K=4).  y starts from the folded
    # bias row; the broadcast is hoisted out of the loop.
    y = jnp.broadcast_to(wb[C:C + 1, :], (B, OUT))         # bias row, (B, OUT)
    for c in range(C):
        y = y + pooled[:, c:c + 1] * wb[c:c + 1, :]        # (B,1)*(1,OUT)

    # Inverse stereographic projection onto the hypersphere.
    n2 = jnp.sum(y * y, axis=-1, keepdims=True)            # ||u||^2, (B, 1)
    d = n2 + 1.0
    r = pl.reciprocal(d, approx=True)                      # EUP vrcp
    inv = r * (2.0 - d * r)                                # one Newton step
    two_inv = 2.0 * inv                                    # pre-scale on (B,1)

    out_ref[:, :OUT] = y * two_inv                         # u_hat (unmasked)
    out_ref[:, OUT:] = (n2 - 1.0) * inv                    # v (1 masked lane)


def fold_linear_params(weight, bias):
    """One-time parameter prep (amortized across forward calls).

    weight: (1024, dim) in PyTorch nn.Linear layout (out_features, in_features)
    bias:   (1024,)
    Returns a single (dim + 1, 1024) operand: the transposed weight with the
    bias folded in as the last row.
    """
    out_dim, in_dim = weight.shape
    del in_dim
    return jnp.concatenate([weight.T, bias.reshape(1, out_dim)], axis=0)


def geometric_block_forward(u_nchw, wb, *, pool=True):
    """u_nchw: (B, C, H, W); wb: (C + 1, 1024) from fold_linear_params.
    Returns (B, 1025) = concat(u_hat, v) along features (f32)."""
    B, C, H, W = u_nchw.shape
    if not pool:
        # TODO(synk): pool=False (Linear over flattened C*H*W) not implemented.
        raise NotImplementedError("pool=False not implemented")
    assert wb.shape[0] == C + 1, wb.shape
    out_dim = wb.shape[1]

    x = u_nchw.reshape(B, C, H * W)   # contiguous, metadata-only reshape

    return pl.pallas_call(
        _geometric_block_kernel,
        out_shape=jax.ShapeDtypeStruct((B, out_dim + 1), jnp.float32),
        in_specs=[
            pl.BlockSpec(memory_space=pltpu.MemorySpace.VMEM),
            pl.BlockSpec(memory_space=pltpu.MemorySpace.VMEM),
        ],
        out_specs=pl.BlockSpec(memory_space=pltpu.MemorySpace.VMEM),
    )(x, wb)


def _reference_forward(u_nchw, weight, bias):
    """Pure-JAX reference mirroring the PyTorch module (torch weight layout)."""
    x = jnp.where(u_nchw >= 0, u_nchw, 0.2 * u_nchw)
    pooled = jnp.mean(x, axis=(2, 3))                      # (B, C)
    y = pooled @ weight.T + bias                           # (B, 1024)
    n2 = jnp.sum(y * y, axis=1, keepdims=True)
    u_hat = 2.0 * y / (n2 + 1.0)
    v = (n2 - 1.0) / (n2 + 1.0)
    return jnp.concatenate([u_hat, v], axis=1)


if __name__ == "__main__":
    key = jax.random.PRNGKey(0)
    k_x, k_w, k_b = jax.random.split(key, 3)

    # Small shapes consistent with the module (NCHW conv-feature input).
    B, C, H, W = 2, 4, 16, 16
    OUT = 1024

    x = jax.random.normal(k_x, (B, C, H, W), dtype=jnp.float32)

    # Deterministic nn.Linear-style init: U(-1/sqrt(C), 1/sqrt(C)).
    # Weight kept in the raw PyTorch layout (out_features, in_features);
    # fold_linear_params handles the transpose + bias fold once.
    bound = 1.0 / jnp.sqrt(jnp.float32(C))
    weight = jax.random.uniform(k_w, (OUT, C), minval=-bound, maxval=bound,
                                dtype=jnp.float32)
    bias = jax.random.uniform(k_b, (OUT,), minval=-bound, maxval=bound,
                              dtype=jnp.float32)

    wb = fold_linear_params(weight, bias)                  # one-time prep

    out = geometric_block_forward(x, wb, pool=True)
    out = jax.block_until_ready(out)

    ref = _reference_forward(x, weight, bias)
    assert out.shape == (B, OUT + 1), out.shape
    # Tolerance relaxed slightly vs 1e-5: the EUP approximate reciprocal
    # (+ one Newton step) is not bit-identical to an exact f32 divide.
    assert jnp.allclose(out, ref, atol=1e-4, rtol=1e-4), (
        float(jnp.max(jnp.abs(out - ref))))

    print("KERNEL_OK")
</pallas_src>

<mosaic_0001>
module attributes {stable_mosaic.version = 11 : i64} {
  func.func @_geometric_block_kernel(%arg0: memref<2x4x256xf32, #tpu.memory_space<vmem>>, %arg1: memref<5x1024xf32, #tpu.memory_space<vmem>>, %arg2: memref<2x1025xf32, #tpu.memory_space<vmem>>) attributes {dimension_semantics = [], scalar_prefetch = 0 : i64, scratch_operands = 0 : i64, tpu.core_type = #tpu.core_type<tc>} {
    %c0 = arith.constant 0 : index
    %c0_0 = arith.constant 0 : index
    %c0_1 = arith.constant 0 : index
    %0 = vector.load %arg0[%c0, %c0_0, %c0_1] : memref<2x4x256xf32, #tpu.memory_space<vmem>>, vector<2x4x256xf32>
    %c0_2 = arith.constant 0 : index
    %c0_3 = arith.constant 0 : index
    %1 = vector.load %arg1[%c0_2, %c0_3] : memref<5x1024xf32, #tpu.memory_space<vmem>>, vector<5x1024xf32>
    %cst = arith.constant 0.000000e+00 : f32
    %2 = vector.broadcast %cst : f32 to vector<2x4x256xf32>
    %3 = arith.cmpf oge, %0, %2 : vector<2x4x256xf32>
    %cst_4 = arith.constant 2.000000e-01 : f32
    %4 = vector.broadcast %cst_4 : f32 to vector<2x4x256xf32>
    %5 = arith.mulf %4, %0 : vector<2x4x256xf32>
    %6 = arith.select %3, %0, %5 : vector<2x4x256xi1>, vector<2x4x256xf32>
    %cst_5 = arith.constant dense<0.000000e+00> : vector<2x4xf32>
    %7 = vector.multi_reduction <add>, %6, %cst_5 [2] : vector<2x4x256xf32> to vector<2x4xf32>
    %cst_6 = arith.constant 2.560000e+02 : f32
    %8 = vector.broadcast %cst_6 : f32 to vector<2x4xf32>
    %9 = arith.divf %7, %8 : vector<2x4xf32>
    %10 = vector.extract_strided_slice %1 {offsets = [4, 0], sizes = [1, 1024], strides = [1, 1]} : vector<5x1024xf32> to vector<1x1024xf32>
    %11 = vector.shape_cast %10 : vector<1x1024xf32> to vector<1x1024xf32>
    %12 = vector.broadcast %11 : vector<1x1024xf32> to vector<2x1024xf32>
    %13 = vector.extract_strided_slice %9 {offsets = [0, 0], sizes = [2, 1], strides = [1, 1]} : vector<2x4xf32> to vector<2x1xf32>
    %14 = vector.extract_strided_slice %1 {offsets = [0, 0], sizes = [1, 1024], strides = [1, 1]} : vector<5x1024xf32> to vector<1x1024xf32>
    %15 = vector.broadcast %13 : vector<2x1xf32> to vector<2x1024xf32>
    %16 = vector.broadcast %14 : vector<1x1024xf32> to vector<2x1024xf32>
    %17 = arith.mulf %15, %16 : vector<2x1024xf32>
    %18 = arith.addf %12, %17 : vector<2x1024xf32>
    %19 = vector.extract_strided_slice %9 {offsets = [0, 1], sizes = [2, 1], strides = [1, 1]} : vector<2x4xf32> to vector<2x1xf32>
    %20 = vector.extract_strided_slice %1 {offsets = [1, 0], sizes = [1, 1024], strides = [1, 1]} : vector<5x1024xf32> to vector<1x1024xf32>
    %21 = vector.broadcast %19 : vector<2x1xf32> to vector<2x1024xf32>
    %22 = vector.broadcast %20 : vector<1x1024xf32> to vector<2x1024xf32>
    %23 = arith.mulf %21, %22 : vector<2x1024xf32>
    %24 = arith.addf %18, %23 : vector<2x1024xf32>
    %25 = vector.extract_strided_slice %9 {offsets = [0, 2], sizes = [2, 1], strides = [1, 1]} : vector<2x4xf32> to vector<2x1xf32>
    %26 = vector.extract_strided_slice %1 {offsets = [2, 0], sizes = [1, 1024], strides = [1, 1]} : vector<5x1024xf32> to vector<1x1024xf32>
    %27 = vector.broadcast %25 : vector<2x1xf32> to vector<2x1024xf32>
    %28 = vector.broadcast %26 : vector<1x1024xf32> to vector<2x1024xf32>
    %29 = arith.mulf %27, %28 : vector<2x1024xf32>
    %30 = arith.addf %24, %29 : vector<2x1024xf32>
    %31 = vector.extract_strided_slice %9 {offsets = [0, 3], sizes = [2, 1], strides = [1, 1]} : vector<2x4xf32> to vector<2x1xf32>
    %32 = vector.extract_strided_slice %1 {offsets = [3, 0], sizes = [1, 1024], strides = [1, 1]} : vector<5x1024xf32> to vector<1x1024xf32>
    %33 = vector.broadcast %31 : vector<2x1xf32> to vector<2x1024xf32>
    %34 = vector.broadcast %32 : vector<1x1024xf32> to vector<2x1024xf32>
    %35 = arith.mulf %33, %34 : vector<2x1024xf32>
    %36 = arith.addf %30, %35 : vector<2x1024xf32>
    %37 = arith.mulf %36, %36 : vector<2x1024xf32>
    %cst_7 = arith.constant dense<0.000000e+00> : vector<2xf32>
    %38 = vector.multi_reduction <add>, %37, %cst_7 [1] : vector<2x1024xf32> to vector<2xf32>
    %39 = vector.shape_cast %38 : vector<2xf32> to vector<2x1xf32>
    %cst_8 = arith.constant 1.000000e+00 : f32
    %40 = vector.broadcast %cst_8 : f32 to vector<2x1xf32>
    %41 = arith.addf %39, %40 : vector<2x1xf32>
    %42 = tpu.reciprocal %41 {approx = true} : vector<2x1xf32> -> vector<2x1xf32>
    %43 = arith.mulf %41, %42 : vector<2x1xf32>
    %cst_9 = arith.constant 2.000000e+00 : f32
    %44 = vector.broadcast %cst_9 : f32 to vector<2x1xf32>
    %45 = arith.subf %44, %43 : vector<2x1xf32>
    %46 = arith.mulf %42, %45 : vector<2x1xf32>
    %cst_10 = arith.constant 2.000000e+00 : f32
    %47 = vector.broadcast %cst_10 : f32 to vector<2x1xf32>
    %48 = arith.mulf %47, %46 : vector<2x1xf32>
    %49 = vector.broadcast %48 : vector<2x1xf32> to vector<2x1024xf32>
    %50 = arith.mulf %36, %49 : vector<2x1024xf32>
    %c0_11 = arith.constant 0 : index
    %c0_12 = arith.constant 0 : index
    %51 = vector.load %arg2[%c0_11, %c0_12] : memref<2x1025xf32, #tpu.memory_space<vmem>>, vector<2x1024xf32>
    tpu.vector_store %arg2[%c0_11, %c0_12], %50 {strides = array<i32>} : memref<2x1025xf32, #tpu.memory_space<vmem>>, vector<2x1024xf32>,
    %cst_13 = arith.constant 1.000000e+00 : f32
    %52 = vector.broadcast %cst_13 : f32 to vector<2x1xf32>
    %53 = arith.subf %39, %52 : vector<2x1xf32>
    %54 = arith.mulf %53, %46 : vector<2x1xf32>
    %c0_14 = arith.constant 0 : index
    %c1024 = arith.constant 1024 : index
    %55 = vector.load %arg2[%c0_14, %c1024] : memref<2x1025xf32, #tpu.memory_space<vmem>>, vector<2x1xf32>
    tpu.vector_store %arg2[%c0_14, %c1024], %54 {strides = array<i32>} : memref<2x1025xf32, #tpu.memory_space<vmem>>, vector<2x1xf32>,
    return
  }
}

</mosaic_0001>

<llo_original>
// kernel: tpu_custom_call.1
$region0: #{tpu_custom_call.1}
  #allocation0 [shape = 'u32[]', space=smem, size = 0x4, offset = 0x4, fixed_abs, tag = 'smem constant byte address 0x4 - core index']
  #allocation1 [shape = 'u32[144,128]{1,0:T(1,128)}', space=vmem, size = 0x12000, scoped, tag = 'internal scratch']
  %s0 = inlined_call_operand.hbm [shape: f32[2,4,256], index: 0, kind: input, shape index: {}]
  %s1 = inlined_call_operand.hbm [shape: f32[5,1024], index: 1, kind: input, shape index: {}]
  %s2 = inlined_call_operand.hbm [shape: f32[2,1025], index: 2, kind: output, shape index: {}]
  %s3 = sld [smem:[#allocation0]]
  $region26: #{tpu_custom_call.1} parent=0
    _
  %s5 = ssub.s32 1, %s3
  %s6 = scalar_select 0, %s5, %s3
  $region1: #{tpu_custom_call.1} parent=0
    #allocation2 [shape = 'u8[8192]{0}', space=vmem, size = 0x2000, scoped, tag = 'input window, operand 0, single buffered']
    #allocation3 [shape = 's32[1]{0}', space=sflag, size = 0x4, scoped, tag = 'scoped memory for tpu_custom_call.1']
    #allocation4 [shape = 's32[1]{0}', space=sflag, size = 0x4, scoped, tag = 'scoped memory for tpu_custom_call.1']
    #allocation5 [shape = 'u8[32768]{0}', space=vmem, size = 0x8000, scoped, tag = 'input window, operand 1, single buffered']
    #allocation6 [shape = 's32[1]{0}', space=sflag, size = 0x4, scoped, tag = 'scoped memory for tpu_custom_call.1']
    #allocation7 [shape = 'u8[9216]{0}', space=vmem, size = 0x2400, scoped, tag = 'output window, operand 0, single buffered']
    %7 = vsyncpa [#allocation3], 0
    %8 = vsyncpa [#allocation6], 0
    %9 = vsyncpa [#allocation4], 0
    // Predicated region
    $region2: #{tpu_custom_call.1} parent=1 // pred_check
      _
    $region3: #{tpu_custom_call.1} parent=1 // pred_check_branch
      %11 = sbr.rel (0) target = $region5
    $region4: #{tpu_custom_call.1} parent=1 // pred_region
      %s13 = ssub.s32 256, 256
      %14 = vsyncadd [#allocation3], %s13
      %s15 = sshll.u32 [#allocation2], 4
      %s16 = int_to_ptr.vmem [resolvable:$true] %s15
      %21 = dma.hbm_to_vmem [thread:$0]  %s0, 256, %s16, [#allocation3], 128, 128, 8
    $region5: #{tpu_custom_call.1} parent=1 // pred_fallthru
      _
    // Predicated region
    $region6: #{tpu_custom_call.1} parent=1 // pred_check
      _
    $region7: #{tpu_custom_call.1} parent=1 // pred_check_branch
      %23 = sbr.rel (0) target = $region9
    $region8: #{tpu_custom_call.1} parent=1 // pred_region
      %s25 = ssub.s32 1024, 1024
      %26 = vsyncadd [#allocation6], %s25
      %s28 = sshll.u32 [#allocation5], 4
      %s29 = int_to_ptr.vmem [resolvable:$true] %s28
      %31 = dma.hbm_to_vmem [thread:$0]  %s1, 1024, %s29, [#allocation6]
    $region9: #{tpu_custom_call.1} parent=1 // pred_fallthru
      _
    // Predicated region
    $region10: #{tpu_custom_call.1} parent=1 // pred_check
      _
    $region11: #{tpu_custom_call.1} parent=1 // pred_check_branch
      %33 = sbr.rel (0) target = $region13
    $region12: #{tpu_custom_call.1} parent=1 // pred_region
      %34 = dma.done [#allocation3], 256
    $region13: #{tpu_custom_call.1} parent=1 // pred_fallthru
      _
    // Predicated region
    $region14: #{tpu_custom_call.1} parent=1 // pred_check
      _
    $region15: #{tpu_custom_call.1} parent=1 // pred_check_branch
      %36 = sbr.rel (0) target = $region17
    $region16: #{tpu_custom_call.1} parent=1 // pred_region
      %37 = dma.done [#allocation6], 1024
    $region17: #{tpu_custom_call.1} parent=1 // pred_fallthru
      _
    %v38 = vld [vmem:[#allocation2] sm:$0xff]
    %v39 = vld [vmem:[#allocation2 + $0x8] sm:$0xff]
    %v40 = vld [vmem:[#allocation5] sm:$0x1f]
    %v41 = vld [vmem:[#allocation5 + $0x8] sm:$0x1f]
    %v42 = vld [vmem:[#allocation5 + $0x10] sm:$0x1f]
    %v43 = vld [vmem:[#allocation5 + $0x18] sm:$0x1f]
    %v44 = vld [vmem:[#allocation5 + $0x20] sm:$0x1f]
    %v45 = vld [vmem:[#allocation5 + $0x28] sm:$0x1f]
    %v46 = vld [vmem:[#allocation5 + $0x30] sm:$0x1f]
    %v47 = vld [vmem:[#allocation5 + $0x38] sm:$0x1f]
    %vm48 = vcmp.ge.f32.partialorder %v38, 0.0
    %vm49 = vcmp.ge.f32.partialorder %v39, 0.0
    %v50 = vmul.f32 %v38, 0.2
    %v51 = vmul.f32 %v39, 0.2
    %v52 = vsel %vm48, %v38, %v50
    %v53 = vsel %vm49, %v39, %v51
    %v56 = vcombine.high %v52, %v52
    %v57 = vcombine.high %v53, %v53
    %vm60 = vcmask 1043456
    %v61 = vsel %vm60, %v52, 0.0
    %v62 = vsel %vm60, %v56, 0.0
    %v63 = vadd.f32 %v61, %v62
    %64 = vadd.xlane.f32.xlu0 %v63
    %v65 = vpop.xlane.xlu0 %64
    %v66 = vsel %vm60, %v53, 0.0
    %v67 = vsel %vm60, %v57, 0.0
    %v68 = vadd.f32 %v66, %v67
    %69 = vadd.xlane.f32.xlu0 %v68
    %v70 = vpop.xlane.xlu0 %69
    %v71 = vrcp.pop 256.0
    %v72 = vmul.f32 %v65, %v71
    %v73 = vmul.f32 %v70, %v71
    %v74 = vlaneseq
    %v75 = vshrl.u32 %v74, 7
    %v76 = vsub.s32 4, %v75
    %v77 = vrot.slane %v40, %v76
    %v78 = vlaneseq
    %v79 = vshrl.u32 %v78, 7
    %v80 = vsub.s32 4, %v79
    %v81 = vrot.slane %v41, %v80
    %v82 = vlaneseq
    %v83 = vshrl.u32 %v82, 7
    %v84 = vsub.s32 4, %v83
    %v85 = vrot.slane %v42, %v84
    %v86 = vlaneseq
    %v87 = vshrl.u32 %v86, 7
    %v88 = vsub.s32 4, %v87
    %v89 = vrot.slane %v43, %v88
    %v90 = vlaneseq
    %v91 = vshrl.u32 %v90, 7
    %v92 = vsub.s32 4, %v91
    %v93 = vrot.slane %v44, %v92
    %v94 = vlaneseq
    %v95 = vshrl.u32 %v94, 7
    %v96 = vsub.s32 4, %v95
    %v97 = vrot.slane %v45, %v96
    %v98 = vlaneseq
    %v99 = vshrl.u32 %v98, 7
    %v100 = vsub.s32 4, %v99
    %v101 = vrot.slane %v46, %v100
    %v102 = vlaneseq
    %v103 = vshrl.u32 %v102, 7
    %v104 = vsub.s32 4, %v103
    %v105 = vrot.slane %v47, %v104
    %v106 = vlaneseq
    %v107 = vshrl.u32 %v106, 7
    %v108 = vsub.s32 0, %v107
    %v109 = vrot.slane %v72, %v108
    %v110 = vlaneseq
    %v111 = vshrl.u32 %v110, 7
    %v112 = vsub.s32 0, %v111
    %v113 = vrot.slane %v73, %v112
    %v114 = vlaneseq
    %v115 = vshrl.u32 %v114, 7
    %v116 = vsub.s32 0, %v115
    %v117 = vrot.slane %v40, %v116
    %v118 = vlaneseq
    %v119 = vshrl.u32 %v118, 7
    %v120 = vsub.s32 0, %v119
    %v121 = vrot.slane %v41, %v120
    %v122 = vlaneseq
    %v123 = vshrl.u32 %v122, 7
    %v124 = vsub.s32 0, %v123
    %v125 = vrot.slane %v42, %v124
    %v126 = vlaneseq
    %v127 = vshrl.u32 %v126, 7
    %v128 = vsub.s32 0, %v127
    %v129 = vrot.slane %v43, %v128
    %v130 = vlaneseq
    %v131 = vshrl.u32 %v130, 7
    %v132 = vsub.s32 0, %v131
    %v133 = vrot.slane %v44, %v132
    %v134 = vlaneseq
    %v135 = vshrl.u32 %v134, 7
    %v136 = vsub.s32 0, %v135
    %v137 = vrot.slane %v45, %v136
    %v138 = vlaneseq
    %v139 = vshrl.u32 %v138, 7
    %v140 = vsub.s32 0, %v139
    %v141 = vrot.slane %v46, %v140
    %v142 = vlaneseq
    %v143 = vshrl.u32 %v142, 7
    %v144 = vsub.s32 0, %v143
    %v145 = vrot.slane %v47, %v144
    %155 = vbcast.lane.b32.xlu0 %v117, 256
    %v156 = vpop.permute.xlu0 %155
    %s158 = sor.u32 256, 8
    %159 = vbcast.lane.b32.xlu0 %v117, %s158
    %v160 = vpop.permute.xlu0 %159
    %s162 = sor.u32 256, 16
    %163 = vbcast.lane.b32.xlu0 %v117, %s162
    %v164 = vpop.permute.xlu0 %163
    %s166 = sor.u32 256, 24
    %167 = vbcast.lane.b32.xlu0 %v117, %s166
    %v168 = vpop.permute.xlu0 %167
    %s170 = sor.u32 256, 32
    %171 = vbcast.lane.b32.xlu0 %v117, %s170
    %v172 = vpop.permute.xlu0 %171
    %s174 = sor.u32 256, 40
    %175 = vbcast.lane.b32.xlu0 %v117, %s174
    %v176 = vpop.permute.xlu0 %175
    %s178 = sor.u32 256, 48
    %179 = vbcast.lane.b32.xlu0 %v117, %s178
    %v180 = vpop.permute.xlu0 %179
    %s182 = sor.u32 256, 56
    %183 = vbcast.lane.b32.xlu0 %v117, %s182
    %v184 = vpop.permute.xlu0 %183
    %s186 = sor.u32 256, 64
    %187 = vbcast.lane.b32.xlu0 %v117, %s186
    %v188 = vpop.permute.xlu0 %187
    %s190 = sor.u32 256, 72
    %191 = vbcast.lane.b32.xlu0 %v117, %s190
    %v192 = vpop.permute.xlu0 %191
    %s194 = sor.u32 256, 80
    %195 = vbcast.lane.b32.xlu0 %v117, %s194
    %v196 = vpop.permute.xlu0 %195
    %s198 = sor.u32 256, 88
    %199 = vbcast.lane.b32.xlu0 %v117, %s198
    %v200 = vpop.permute.xlu0 %199
    %s202 = sor.u32 256, 96
    %203 = vbcast.lane.b32.xlu0 %v117, %s202
    %v204 = vpop.permute.xlu0 %203
    %s206 = sor.u32 256, 104
    %207 = vbcast.lane.b32.xlu0 %v117, %s206
    %v208 = vpop.permute.xlu0 %207
    %s210 = sor.u32 256, 112
    %211 = vbcast.lane.b32.xlu0 %v117, %s210
    %v212 = vpop.permute.xlu0 %211
    %s214 = sor.u32 256, 120
    %215 = vbcast.lane.b32.xlu0 %v117, %s214
    %v216 = vpop.permute.xlu0 %215
    %218 = vbcast.lane.b32.xlu0 %v121, 256
    %v219 = vpop.permute.xlu0 %218
    %s221 = sor.u32 256, 8
    %222 = vbcast.lane.b32.xlu0 %v121, %s221
    %v223 = vpop.permute.xlu0 %222
    %s225 = sor.u32 256, 16
    %226 = vbcast.lane.b32.xlu0 %v121, %s225
    %v227 = vpop.permute.xlu0 %226
    %s229 = sor.u32 256, 24
    %230 = vbcast.lane.b32.xlu0 %v121, %s229
    %v231 = vpop.permute.xlu0 %230
    %s233 = sor.u32 256, 32
    %234 = vbcast.lane.b32.xlu0 %v121, %s233
    %v235 = vpop.permute.xlu0 %234
    %s237 = sor.u32 256, 40
    %238 = vbcast.lane.b32.xlu0 %v121, %s237
    %v239 = vpop.permute.xlu0 %238
    %s241 = sor.u32 256, 48
    %242 = vbcast.lane.b32.xlu0 %v121, %s241
    %v243 = vpop.permute.xlu0 %242
    %s245 = sor.u32 256, 56
    %246 = vbcast.lane.b32.xlu0 %v121, %s245
    %v247 = vpop.permute.xlu0 %246
    %s249 = sor.u32 256, 64
    %250 = vbcast.lane.b32.xlu0 %v121, %s249
    %v251 = vpop.permute.xlu0 %250
    %s253 = sor.u32 256, 72
    %254 = vbcast.lane.b32.xlu0 %v121, %s253
    %v255 = vpop.permute.xlu0 %254
    %s257 = sor.u32 256, 80
    %258 = vbcast.lane.b32.xlu0 %v121, %s257
    %v259 = vpop.permute.xlu0 %258
    %s261 = sor.u32 256, 88
    %262 = vbcast.lane.b32.xlu0 %v121, %s261
    %v263 = vpop.permute.xlu0 %262
    %s265 = sor.u32 256, 96
    %266 = vbcast.lane.b32.xlu0 %v121, %s265
    %v267 = vpop.permute.xlu0 %266
    %s269 = sor.u32 256, 104
    %270 = vbcast.lane.b32.xlu0 %v121, %s269
    %v271 = vpop.permute.xlu0 %270
    %s273 = sor.u32 256, 112
    %274 = vbcast.lane.b32.xlu0 %v121, %s273
    %v275 = vpop.permute.xlu0 %274
    %s277 = sor.u32 256, 120
    %278 = vbcast.lane.b32.xlu0 %v121, %s277
    %v279 = vpop.permute.xlu0 %278
    %281 = vbcast.lane.b32.xlu0 %v125, 256
    %v282 = vpop.permute.xlu0 %281
    %s284 = sor.u32 256, 8
    %285 = vbcast.lane.b32.xlu0 %v125, %s284
    %v286 = vpop.permute.xlu0 %285
    %s288 = sor.u32 256, 16
    %289 = vbcast.lane.b32.xlu0 %v125, %s288
    %v290 = vpop.permute.xlu0 %289
    %s292 = sor.u32 256, 24
    %293 = vbcast.lane.b32.xlu0 %v125, %s292
    %v294 = vpop.permute.xlu0 %293
    %s296 = sor.u32 256, 32
    %297 = vbcast.lane.b32.xlu0 %v125, %s296
    %v298 = vpop.permute.xlu0 %297
    %s300 = sor.u32 256, 40
    %301 = vbcast.lane.b32.xlu0 %v125, %s300
    %v302 = vpop.permute.xlu0 %301
    %s304 = sor.u32 256, 48
    %305 = vbcast.lane.b32.xlu0 %v125, %s304
    %v306 = vpop.permute.xlu0 %305
    %s308 = sor.u32 256, 56
    %309 = vbcast.lane.b32.xlu0 %v125, %s308
    %v310 = vpop.permute.xlu0 %309
    %s312 = sor.u32 256, 64
    %313 = vbcast.lane.b32.xlu0 %v125, %s312
    %v314 = vpop.permute.xlu0 %313
    %s316 = sor.u32 256, 72
    %317 = vbcast.lane.b32.xlu0 %v125, %s316
    %v318 = vpop.permute.xlu0 %317
    %s320 = sor.u32 256, 80
    %321 = vbcast.lane.b32.xlu0 %v125, %s320
    %v322 = vpop.permute.xlu0 %321
    %s324 = sor.u32 256, 88
    %325 = vbcast.lane.b32.xlu0 %v125, %s324
    %v326 = vpop.permute.xlu0 %325
    %s328 = sor.u32 256, 96
    %329 = vbcast.lane.b32.xlu0 %v125, %s328
    %v330 = vpop.permute.xlu0 %329
    %s332 = sor.u32 256, 104
    %333 = vbcast.lane.b32.xlu0 %v125, %s332
    %v334 = vpop.permute.xlu0 %333
    %s336 = sor.u32 256, 112
    %337 = vbcast.lane.b32.xlu0 %v125, %s336
    %v338 = vpop.permute.xlu0 %337
    %s340 = sor.u32 256, 120
    %341 = vbcast.lane.b32.xlu0 %v125, %s340
    %v342 = vpop.permute.xlu0 %341
    %344 = vbcast.lane.b32.xlu0 %v129, 256
    %v345 = vpop.permute.xlu0 %344
    %s347 = sor.u32 256, 8
    %348 = vbcast.lane.b32.xlu0 %v129, %s347
    %v349 = vpop.permute.xlu0 %348
    %s351 = sor.u32 256, 16
    %352 = vbcast.lane.b32.xlu0 %v129, %s351
    %v353 = vpop.permute.xlu0 %352
    %s355 = sor.u32 256, 24
    %356 = vbcast.lane.b32.xlu0 %v129, %s355
    %v357 = vpop.permute.xlu0 %356
    %s359 = sor.u32 256, 32
    %360 = vbcast.lane.b32.xlu0 %v129, %s359
    %v361 = vpop.permute.xlu0 %360
    %s363 = sor.u32 256, 40
    %364 = vbcast.lane.b32.xlu0 %v129, %s363
    %v365 = vpop.permute.xlu0 %364
    %s367 = sor.u32 256, 48
    %368 = vbcast.lane.b32.xlu0 %v129, %s367
    %v369 = vpop.permute.xlu0 %368
    %s371 = sor.u32 256, 56
    %372 = vbcast.lane.b32.xlu0 %v129, %s371
    %v373 = vpop.permute.xlu0 %372
    %s375 = sor.u32 256, 64
    %376 = vbcast.lane.b32.xlu0 %v129, %s375
    %v377 = vpop.permute.xlu0 %376
    %s379 = sor.u32 256, 72
    %380 = vbcast.lane.b32.xlu0 %v129, %s379
    %v381 = vpop.permute.xlu0 %380
    %s383 = sor.u32 256, 80
    %384 = vbcast.lane.b32.xlu0 %v129, %s383
    %v385 = vpop.permute.xlu0 %384
    %s387 = sor.u32 256, 88
    %388 = vbcast.lane.b32.xlu0 %v129, %s387
    %v389 = vpop.permute.xlu0 %388
    %s391 = sor.u32 256, 96
    %392 = vbcast.lane.b32.xlu0 %v129, %s391
    %v393 = vpop.permute.xlu0 %392
    %s395 = sor.u32 256, 104
    %396 = vbcast.lane.b32.xlu0 %v129, %s395
    %v397 = vpop.permute.xlu0 %396
    %s399 = sor.u32 256, 112
    %400 = vbcast.lane.b32.xlu0 %v129, %s399
    %v401 = vpop.permute.xlu0 %400
    %s403 = sor.u32 256, 120
    %404 = vbcast.lane.b32.xlu0 %v129, %s403
    %v405 = vpop.permute.xlu0 %404
    %407 = vbcast.lane.b32.xlu0 %v133, 256
    %v408 = vpop.permute.xlu0 %407
    %s410 = sor.u32 256, 8
    %411 = vbcast.lane.b32.xlu0 %v133, %s410
    %v412 = vpop.permute.xlu0 %411
    %s414 = sor.u32 256, 16
    %415 = vbcast.lane.b32.xlu0 %v133, %s414
    %v416 = vpop.permute.xlu0 %415
    %s418 = sor.u32 256, 24
    %419 = vbcast.lane.b32.xlu0 %v133, %s418
    %v420 = vpop.permute.xlu0 %419
    %s422 = sor.u32 256, 32
    %423 = vbcast.lane.b32.xlu0 %v133, %s422
    %v424 = vpop.permute.xlu0 %423
    %s426 = sor.u32 256, 40
    %427 = vbcast.lane.b32.xlu0 %v133, %s426
    %v428 = vpop.permute.xlu0 %427
    %s430 = sor.u32 256, 48
    %431 = vbcast.lane.b32.xlu0 %v133, %s430
    %v432 = vpop.permute.xlu0 %431
    %s434 = sor.u32 256, 56
    %435 = vbcast.lane.b32.xlu0 %v133, %s434
    %v436 = vpop.permute.xlu0 %435
    %s438 = sor.u32 256, 64
    %439 = vbcast.lane.b32.xlu0 %v133, %s438
    %v440 = vpop.permute.xlu0 %439
    %s442 = sor.u32 256, 72
    %443 = vbcast.lane.b32.xlu0 %v133, %s442
    %v444 = vpop.permute.xlu0 %443
    %s446 = sor.u32 256, 80
    %447 = vbcast.lane.b32.xlu0 %v133, %s446
    %v448 = vpop.permute.xlu0 %447
    %s450 = sor.u32 256, 88
    %451 = vbcast.lane.b32.xlu0 %v133, %s450
    %v452 = vpop.permute.xlu0 %451
    %s454 = sor.u32 256, 96
    %455 = vbcast.lane.b32.xlu0 %v133, %s454
    %v456 = vpop.permute.xlu0 %455
    %s458 = sor.u32 256, 104
    %459 = vbcast.lane.b32.xlu0 %v133, %s458
    %v460 = vpop.permute.xlu0 %459
    %s462 = sor.u32 256, 112
    %463 = vbcast.lane.b32.xlu0 %v133, %s462
    %v464 = vpop.permute.xlu0 %463
    %s466 = sor.u32 256, 120
    %467 = vbcast.lane.b32.xlu0 %v133, %s466
    %v468 = vpop.permute.xlu0 %467
    %470 = vbcast.lane.b32.xlu0 %v137, 256
    %v471 = vpop.permute.xlu0 %470
    %s473 = sor.u32 256, 8
    %474 = vbcast.lane.b32.xlu0 %v137, %s473
    %v475 = vpop.permute.xlu0 %474
    %s477 = sor.u32 256, 16
    %478 = vbcast.lane.b32.xlu0 %v137, %s477
    %v479 = vpop.permute.xlu0 %478
    %s481 = sor.u32 256, 24
    %482 = vbcast.lane.b32.xlu0 %v137, %s481
    %v483 = vpop.permute.xlu0 %482
    %s485 = sor.u32 256, 32
    %486 = vbcast.lane.b32.xlu0 %v137, %s485
    %v487 = vpop.permute.xlu0 %486
    %s489 = sor.u32 256, 40
    %490 = vbcast.lane.b32.xlu0 %v137, %s489
    %v491 = vpop.permute.xlu0 %490
    %s493 = sor.u32 256, 48
    %494 = vbcast.lane.b32.xlu0 %v137, %s493
    %v495 = vpop.permute.xlu0 %494
    %s497 = sor.u32 256, 56
    %498 = vbcast.lane.b32.xlu0 %v137, %s497
    %v499 = vpop.permute.xlu0 %498
    %s501 = sor.u32 256, 64
    %502 = vbcast.lane.b32.xlu0 %v137, %s501
    %v503 = vpop.permute.xlu0 %502
    %s505 = sor.u32 256, 72
    %506 = vbcast.lane.b32.xlu0 %v137, %s505
    %v507 = vpop.permute.xlu0 %506
    %s509 = sor.u32 256, 80
    %510 = vbcast.lane.b32.xlu0 %v137, %s509
    %v511 = vpop.permute.xlu0 %510
    %s513 = sor.u32 256, 88
    %514 = vbcast.lane.b32.xlu0 %v137, %s513
    %v515 = vpop.permute.xlu0 %514
    %s517 = sor.u32 256, 96
    %518 = vbcast.lane.b32.xlu0 %v137, %s517
    %v519 = vpop.permute.xlu0 %518
    %s521 = sor.u32 256, 104
    %522 = vbcast.lane.b32.xlu0 %v137, %s521
    %v523 = vpop.permute.xlu0 %522
    %s525 = sor.u32 256, 112
    %526 = vbcast.lane.b32.xlu0 %v137, %s525
    %v527 = vpop.permute.xlu0 %526
    %s529 = sor.u32 256, 120
    %530 = vbcast.lane.b32.xlu0 %v137, %s529
    %v531 = vpop.permute.xlu0 %530
    %533 = vbcast.lane.b32.xlu0 %v141, 256
    %v534 = vpop.permute.xlu0 %533
    %s536 = sor.u32 256, 8
    %537 = vbcast.lane.b32.xlu0 %v141, %s536
    %v538 = vpop.permute.xlu0 %537
    %s540 = sor.u32 256, 16
    %541 = vbcast.lane.b32.xlu0 %v141, %s540
    %v542 = vpop.permute.xlu0 %541
    %s544 = sor.u32 256, 24
    %545 = vbcast.lane.b32.xlu0 %v141, %s544
    %v546 = vpop.permute.xlu0 %545
    %s548 = sor.u32 256, 32
    %549 = vbcast.lane.b32.xlu0 %v141, %s548
    %v550 = vpop.permute.xlu0 %549
    %s552 = sor.u32 256, 40
    %553 = vbcast.lane.b32.xlu0 %v141, %s552
    %v554 = vpop.permute.xlu0 %553
    %s556 = sor.u32 256, 48
    %557 = vbcast.lane.b32.xlu0 %v141, %s556
    %v558 = vpop.permute.xlu0 %557
    %s560 = sor.u32 256, 56
    %561 = vbcast.lane.b32.xlu0 %v141, %s560
    %v562 = vpop.permute.xlu0 %561
    %s564 = sor.u32 256, 64
    %565 = vbcast.lane.b32.xlu0 %v141, %s564
    %v566 = vpop.permute.xlu0 %565
    %s568 = sor.u32 256, 72
    %569 = vbcast.lane.b32.xlu0 %v141, %s568
    %v570 = vpop.permute.xlu0 %569
    %s572 = sor.u32 256, 80
    %573 = vbcast.lane.b32.xlu0 %v141, %s572
    %v574 = vpop.permute.xlu0 %573
    %s576 = sor.u32 256, 88
    %577 = vbcast.lane.b32.xlu0 %v141, %s576
    %v578 = vpop.permute.xlu0 %577
    %s580 = sor.u32 256, 96
    %581 = vbcast.lane.b32.xlu0 %v141, %s580
    %v582 = vpop.permute.xlu0 %581
    %s584 = sor.u32 256, 104
    %585 = vbcast.lane.b32.xlu0 %v141, %s584
    %v586 = vpop.permute.xlu0 %585
    %s588 = sor.u32 256, 112
    %589 = vbcast.lane.b32.xlu0 %v141, %s588
    %v590 = vpop.permute.xlu0 %589
    %s592 = sor.u32 256, 120
    %593 = vbcast.lane.b32.xlu0 %v141, %s592
    %v594 = vpop.permute.xlu0 %593
    %596 = vbcast.lane.b32.xlu0 %v145, 256
    %v597 = vpop.permute.xlu0 %596
    %s599 = sor.u32 256, 8
    %600 = vbcast.lane.b32.xlu0 %v145, %s599
    %v601 = vpop.permute.xlu0 %600
    %s603 = sor.u32 256, 16
    %604 = vbcast.lane.b32.xlu0 %v145, %s603
    %v605 = vpop.permute.xlu0 %604
    %s607 = sor.u32 256, 24
    %608 = vbcast.lane.b32.xlu0 %v145, %s607
    %v609 = vpop.permute.xlu0 %608
    %s611 = sor.u32 256, 32
    %612 = vbcast.lane.b32.xlu0 %v145, %s611
    %v613 = vpop.permute.xlu0 %612
    %s615 = sor.u32 256, 40
    %616 = vbcast.lane.b32.xlu0 %v145, %s615
    %v617 = vpop.permute.xlu0 %616
    %s619 = sor.u32 256, 48
    %620 = vbcast.lane.b32.xlu0 %v145, %s619
    %v621 = vpop.permute.xlu0 %620
    %s623 = sor.u32 256, 56
    %624 = vbcast.lane.b32.xlu0 %v145, %s623
    %v625 = vpop.permute.xlu0 %624
    %s627 = sor.u32 256, 64
    %628 = vbcast.lane.b32.xlu0 %v145, %s627
    %v629 = vpop.permute.xlu0 %628
    %s631 = sor.u32 256, 72
    %632 = vbcast.lane.b32.xlu0 %v145, %s631
    %v633 = vpop.permute.xlu0 %632
    %s635 = sor.u32 256, 80
    %636 = vbcast.lane.b32.xlu0 %v145, %s635
    %v637 = vpop.permute.xlu0 %636
    %s639 = sor.u32 256, 88
    %640 = vbcast.lane.b32.xlu0 %v145, %s639
    %v641 = vpop.permute.xlu0 %640
    %s643 = sor.u32 256, 96
    %644 = vbcast.lane.b32.xlu0 %v145, %s643
    %v645 = vpop.permute.xlu0 %644
    %s647 = sor.u32 256, 104
    %648 = vbcast.lane.b32.xlu0 %v145, %s647
    %v649 = vpop.permute.xlu0 %648
    %s651 = sor.u32 256, 112
    %652 = vbcast.lane.b32.xlu0 %v145, %s651
    %v653 = vpop.permute.xlu0 %652
    %s655 = sor.u32 256, 120
    %656 = vbcast.lane.b32.xlu0 %v145, %s655
    %v657 = vpop.permute.xlu0 %656
    %v786 = vmul.f32 %v109, %v156
    %v787 = vmul.f32 %v109, %v160
    %v788 = vmul.f32 %v109, %v164
    %v789 = vmul.f32 %v109, %v168
    %v790 = vmul.f32 %v109, %v172
    %v791 = vmul.f32 %v109, %v176
    %v792 = vmul.f32 %v109, %v180
    %v793 = vmul.f32 %v109, %v184
    %v794 = vmul.f32 %v109, %v188
    %v795 = vmul.f32 %v109, %v192
    %v796 = vmul.f32 %v109, %v196
    %v797 = vmul.f32 %v109, %v200
    %v798 = vmul.f32 %v109, %v204
    %v799 = vmul.f32 %v109, %v208
    %v800 = vmul.f32 %v109, %v212
    %v801 = vmul.f32 %v109, %v216
    %v802 = vmul.f32 %v109, %v219
    %v803 = vmul.f32 %v109, %v223
    %v804 = vmul.f32 %v109, %v227
    %v805 = vmul.f32 %v109, %v231
    %v806 = vmul.f32 %v109, %v235
    %v807 = vmul.f32 %v109, %v239
    %v808 = vmul.f32 %v109, %v243
    %v809 = vmul.f32 %v109, %v247
    %v810 = vmul.f32 %v109, %v251
    %v811 = vmul.f32 %v109, %v255
    %v812 = vmul.f32 %v109, %v259
    %v813 = vmul.f32 %v109, %v263
    %v814 = vmul.f32 %v109, %v267
    %v815 = vmul.f32 %v109, %v271
    %v816 = vmul.f32 %v109, %v275
    %v817 = vmul.f32 %v109, %v279
    %v818 = vmul.f32 %v109, %v282
    %v819 = vmul.f32 %v109, %v286
    %v820 = vmul.f32 %v109, %v290
    %v821 = vmul.f32 %v109, %v294
    %v822 = vmul.f32 %v109, %v298
    %v823 = vmul.f32 %v109, %v302
    %v824 = vmul.f32 %v109, %v306
    %v825 = vmul.f32 %v109, %v310
    %v826 = vmul.f32 %v109, %v314
    %v827 = vmul.f32 %v109, %v318
    %v828 = vmul.f32 %v109, %v322
    %v829 = vmul.f32 %v109, %v326
    %v830 = vmul.f32 %v109, %v330
    %v831 = vmul.f32 %v109, %v334
    %v832 = vmul.f32 %v109, %v338
    %v833 = vmul.f32 %v109, %v342
    %v834 = vmul.f32 %v109, %v345
    %v835 = vmul.f32 %v109, %v349
    %v836 = vmul.f32 %v109, %v353
    %v837 = vmul.f32 %v109, %v357
    %v838 = vmul.f32 %v109, %v361
    %v839 = vmul.f32 %v109, %v365
    %v840 = vmul.f32 %v109, %v369
    %v841 = vmul.f32 %v109, %v373
    %v842 = vmul.f32 %v109, %v377
    %v843 = vmul.f32 %v109, %v381
    %v844 = vmul.f32 %v109, %v385
    %v845 = vmul.f32 %v109, %v389
    %v846 = vmul.f32 %v109, %v393
    %v847 = vmul.f32 %v109, %v397
    %v848 = vmul.f32 %v109, %v401
    %v849 = vmul.f32 %v109, %v405
    %v850 = vmul.f32 %v109, %v408
    %v851 = vmul.f32 %v109, %v412
    %v852 = vmul.f32 %v109, %v416
    %v853 = vmul.f32 %v109, %v420
    %v854 = vmul.f32 %v109, %v424
    %v855 = vmul.f32 %v109, %v428
    %v856 = vmul.f32 %v109, %v432
    %v857 = vmul.f32 %v109, %v436
    %v858 = vmul.f32 %v109, %v440
    %v859 = vmul.f32 %v109, %v444
    %v860 = vmul.f32 %v109, %v448
    %v861 = vmul.f32 %v109, %v452
    %v862 = vmul.f32 %v109, %v456
    %v863 = vmul.f32 %v109, %v460
    %v864 = vmul.f32 %v109, %v464
    %v865 = vmul.f32 %v109, %v468
    %v866 = vmul.f32 %v109, %v471
    %v867 = vmul.f32 %v109, %v475
    %v868 = vmul.f32 %v109, %v479
    %v869 = vmul.f32 %v109, %v483
    %v870 = vmul.f32 %v109, %v487
    %v871 = vmul.f32 %v109, %v491
    %v872 = vmul.f32 %v109, %v495
    %v873 = vmul.f32 %v109, %v499
    %v874 = vmul.f32 %v109, %v503
    %v875 = vmul.f32 %v109, %v507
    %v876 = vmul.f32 %v109, %v511
    %v877 = vmul.f32 %v109, %v515
    %v878 = vmul.f32 %v109, %v519
    %v879 = vmul.f32 %v109, %v523
    %v880 = vmul.f32 %v109, %v527
    %v881 = vmul.f32 %v109, %v531
    %v882 = vmul.f32 %v109, %v534
    %v883 = vmul.f32 %v109, %v538
    %v884 = vmul.f32 %v109, %v542
    %v885 = vmul.f32 %v109, %v546
    %v886 = vmul.f32 %v109, %v550
    %v887 = vmul.f32 %v109, %v554
    %v888 = vmul.f32 %v109, %v558
    %v889 = vmul.f32 %v109, %v562
    %v890 = vmul.f32 %v109, %v566
    %v891 = vmul.f32 %v109, %v570
    %v892 = vmul.f32 %v109, %v574
    %v893 = vmul.f32 %v109, %v578
    %v894 = vmul.f32 %v109, %v582
    %v895 = vmul.f32 %v109, %v586
    %v896 = vmul.f32 %v109, %v590
    %v897 = vmul.f32 %v109, %v594
    %v898 = vmul.f32 %v109, %v597
    %v899 = vmul.f32 %v109, %v601
    %v900 = vmul.f32 %v109, %v605
    %v901 = vmul.f32 %v109, %v609
    %v902 = vmul.f32 %v109, %v613
    %v903 = vmul.f32 %v109, %v617
    %v904 = vmul.f32 %v109, %v621
    %v905 = vmul.f32 %v109, %v625
    %v906 = vmul.f32 %v109, %v629
    %v907 = vmul.f32 %v109, %v633
    %v908 = vmul.f32 %v109, %v637
    %v909 = vmul.f32 %v109, %v641
    %v910 = vmul.f32 %v109, %v645
    %v911 = vmul.f32 %v109, %v649
    %v912 = vmul.f32 %v109, %v653
    %v913 = vmul.f32 %v109, %v657
    %v914 = vmul.f32 %v113, %v156
    %v915 = vmul.f32 %v113, %v160
    %v916 = vmul.f32 %v113, %v164
    %v917 = vmul.f32 %v113, %v168
    %v918 = vmul.f32 %v113, %v172
    %v919 = vmul.f32 %v113, %v176
    %v920 = vmul.f32 %v113, %v180
    %v921 = vmul.f32 %v113, %v184
    %v922 = vmul.f32 %v113, %v188
    %v923 = vmul.f32 %v113, %v192
    %v924 = vmul.f32 %v113, %v196
    %v925 = vmul.f32 %v113, %v200
    %v926 = vmul.f32 %v113, %v204
    %v927 = vmul.f32 %v113, %v208
    %v928 = vmul.f32 %v113, %v212
    %v929 = vmul.f32 %v113, %v216
    %v930 = vmul.f32 %v113, %v219
    %v931 = vmul.f32 %v113, %v223
    %v932 = vmul.f32 %v113, %v227
    %v933 = vmul.f32 %v113, %v231
    %v934 = vmul.f32 %v113, %v235
    %v935 = vmul.f32 %v113, %v239
    %v936 = vmul.f32 %v113, %v243
    %v937 = vmul.f32 %v113, %v247
    %v938 = vmul.f32 %v113, %v251
    %v939 = vmul.f32 %v113, %v255
    %v940 = vmul.f32 %v113, %v259
    %v941 = vmul.f32 %v113, %v263
    %v942 = vmul.f32 %v113, %v267
    %v943 = vmul.f32 %v113, %v271
    %v944 = vmul.f32 %v113, %v275
    %v945 = vmul.f32 %v113, %v279
    %v946 = vmul.f32 %v113, %v282
    %v947 = vmul.f32 %v113, %v286
    %v948 = vmul.f32 %v113, %v290
    %v949 = vmul.f32 %v113, %v294
    %v950 = vmul.f32 %v113, %v298
    %v951 = vmul.f32 %v113, %v302
    %v952 = vmul.f32 %v113, %v306
    %v953 = vmul.f32 %v113, %v310
    %v954 = vmul.f32 %v113, %v314
    %v955 = vmul.f32 %v113, %v318
    %v956 = vmul.f32 %v113, %v322
    %v957 = vmul.f32 %v113, %v326
    %v958 = vmul.f32 %v113, %v330
    %v959 = vmul.f32 %v113, %v334
    %v960 = vmul.f32 %v113, %v338
    %v961 = vmul.f32 %v113, %v342
    %v962 = vmul.f32 %v113, %v345
    %v963 = vmul.f32 %v113, %v349
    %v964 = vmul.f32 %v113, %v353
    %v965 = vmul.f32 %v113, %v357
    %v966 = vmul.f32 %v113, %v361
    %v967 = vmul.f32 %v113, %v365
    %v968 = vmul.f32 %v113, %v369
    %v969 = vmul.f32 %v113, %v373
    %v970 = vmul.f32 %v113, %v377
    %v971 = vmul.f32 %v113, %v381
    %v972 = vmul.f32 %v113, %v385
    %v973 = vmul.f32 %v113, %v389
    %v974 = vmul.f32 %v113, %v393
    %v975 = vmul.f32 %v113, %v397
    %v976 = vmul.f32 %v113, %v401
    %v977 = vmul.f32 %v113, %v405
    %v978 = vmul.f32 %v113, %v408
    %v979 = vmul.f32 %v113, %v412
    %v980 = vmul.f32 %v113, %v416
    %v981 = vmul.f32 %v113, %v420
    %v982 = vmul.f32 %v113, %v424
    %v983 = vmul.f32 %v113, %v428
    %v984 = vmul.f32 %v113, %v432
    %v985 = vmul.f32 %v113, %v436
    %v986 = vmul.f32 %v113, %v440
    %v987 = vmul.f32 %v113, %v444
    %v988 = vmul.f32 %v113, %v448
    %v989 = vmul.f32 %v113, %v452
    %v990 = vmul.f32 %v113, %v456
    %v991 = vmul.f32 %v113, %v460
    %v992 = vmul.f32 %v113, %v464
    %v993 = vmul.f32 %v113, %v468
    %v994 = vmul.f32 %v113, %v471
    %v995 = vmul.f32 %v113, %v475
    %v996 = vmul.f32 %v113, %v479
    %v997 = vmul.f32 %v113, %v483
    %v998 = vmul.f32 %v113, %v487
    %v999 = vmul.f32 %v113, %v491
    %v1000 = vmul.f32 %v113, %v495
    %v1001 = vmul.f32 %v113, %v499
    %v1002 = vmul.f32 %v113, %v503
    %v1003 = vmul.f32 %v113, %v507
    %v1004 = vmul.f32 %v113, %v511
    %v1005 = vmul.f32 %v113, %v515
    %v1006 = vmul.f32 %v113, %v519
    %v1007 = vmul.f32 %v113, %v523
    %v1008 = vmul.f32 %v113, %v527
    %v1009 = vmul.f32 %v113, %v531
    %v1010 = vmul.f32 %v113, %v534
    %v1011 = vmul.f32 %v113, %v538
    %v1012 = vmul.f32 %v113, %v542
    %v1013 = vmul.f32 %v113, %v546
    %v1014 = vmul.f32 %v113, %v550
    %v1015 = vmul.f32 %v113, %v554
    %v1016 = vmul.f32 %v113, %v558
    %v1017 = vmul.f32 %v113, %v562
    %v1018 = vmul.f32 %v113, %v566
    %v1019 = vmul.f32 %v113, %v570
    %v1020 = vmul.f32 %v113, %v574
    %v1021 = vmul.f32 %v113, %v578
    %v1022 = vmul.f32 %v113, %v582
    %v1023 = vmul.f32 %v113, %v586
    %v1024 = vmul.f32 %v113, %v590
    %v1025 = vmul.f32 %v113, %v594
    %v1026 = vmul.f32 %v113, %v597
    %v1027 = vmul.f32 %v113, %v601
    %v1028 = vmul.f32 %v113, %v605
    %v1029 = vmul.f32 %v113, %v609
    %v1030 = vmul.f32 %v113, %v613
    %v1031 = vmul.f32 %v113, %v617
    %v1032 = vmul.f32 %v113, %v621
    %v1033 = vmul.f32 %v113, %v625
    %v1034 = vmul.f32 %v113, %v629
    %v1035 = vmul.f32 %v113, %v633
    %v1036 = vmul.f32 %v113, %v637
    %v1037 = vmul.f32 %v113, %v641
    %v1038 = vmul.f32 %v113, %v645
    %v1039 = vmul.f32 %v113, %v649
    %v1040 = vmul.f32 %v113, %v653
    %v1041 = vmul.f32 %v113, %v657
    %1298 = vset.pattern.permute.xlu0 0
    %1299 = vperm.xlu0 %1298, %v786
    %v1300 = vpop.permute.xlu0 %1299
    %1301 = vset.pattern.permute.xlu0 0
    %1302 = vperm.xlu0 %1301, %v787
    %v1303 = vpop.permute.xlu0 %1302
    %1304 = vset.pattern.permute.xlu0 0
    %1305 = vperm.xlu0 %1304, %v788
    %v1306 = vpop.permute.xlu0 %1305
    %1307 = vset.pattern.permute.xlu0 0
    %1308 = vperm.xlu0 %1307, %v789
    %v1309 = vpop.permute.xlu0 %1308
    %1310 = vset.pattern.permute.xlu0 0
    %1311 = vperm.xlu0 %1310, %v790
    %v1312 = vpop.permute.xlu0 %1311
    %1313 = vset.pattern.permute.xlu0 0
    %1314 = vperm.xlu0 %1313, %v791
    %v1315 = vpop.permute.xlu0 %1314
    %1316 = vset.pattern.permute.xlu0 0
    %1317 = vperm.xlu0 %1316, %v792
    %v1318 = vpop.permute.xlu0 %1317
    %1319 = vset.pattern.permute.xlu0 0
    %1320 = vperm.xlu0 %1319, %v793
    %v1321 = vpop.permute.xlu0 %1320
    %1322 = vset.pattern.permute.xlu0 0
    %1323 = vperm.xlu0 %1322, %v794
    %v1324 = vpop.permute.xlu0 %1323
    %1325 = vset.pattern.permute.xlu0 0
    %1326 = vperm.xlu0 %1325, %v795
    %v1327 = vpop.permute.xlu0 %1326
    %1328 = vset.pattern.permute.xlu0 0
    %1329 = vperm.xlu0 %1328, %v796
    %v1330 = vpop.permute.xlu0 %1329
    %1331 = vset.pattern.permute.xlu0 0
    %1332 = vperm.xlu0 %1331, %v797
    %v1333 = vpop.permute.xlu0 %1332
    %1334 = vset.pattern.permute.xlu0 0
    %1335 = vperm.xlu0 %1334, %v798
    %v1336 = vpop.permute.xlu0 %1335
    %1337 = vset.pattern.permute.xlu0 0
    %1338 = vperm.xlu0 %1337, %v799
    %v1339 = vpop.permute.xlu0 %1338
    %1340 = vset.pattern.permute.xlu0 0
    %1341 = vperm.xlu0 %1340, %v800
    %v1342 = vpop.permute.xlu0 %1341
    %1343 = vset.pattern.permute.xlu0 0
    %1344 = vperm.xlu0 %1343, %v801
    %v1345 = vpop.permute.xlu0 %1344
    %1346 = vset.pattern.permute.xlu0 0
    %1347 = vperm.xlu0 %1346, %v802
    %v1348 = vpop.permute.xlu0 %1347
    %1349 = vset.pattern.permute.xlu0 0
    %1350 = vperm.xlu0 %1349, %v803
    %v1351 = vpop.permute.xlu0 %1350
    %1352 = vset.pattern.permute.xlu0 0
    %1353 = vperm.xlu0 %1352, %v804
    %v1354 = vpop.permute.xlu0 %1353
    %1355 = vset.pattern.permute.xlu0 0
    %1356 = vperm.xlu0 %1355, %v805
    %v1357 = vpop.permute.xlu0 %1356
    %1358 = vset.pattern.permute.xlu0 0
    %1359 = vperm.xlu0 %1358, %v806
    %v1360 = vpop.permute.xlu0 %1359
    %1361 = vset.pattern.permute.xlu0 0
    %1362 = vperm.xlu0 %1361, %v807
    %v1363 = vpop.permute.xlu0 %1362
    %1364 = vset.pattern.permute.xlu0 0
    %1365 = vperm.xlu0 %1364, %v808
    %v1366 = vpop.permute.xlu0 %1365
    %1367 = vset.pattern.permute.xlu0 0
    %1368 = vperm.xlu0 %1367, %v809
    %v1369 = vpop.permute.xlu0 %1368
    %1370 = vset.pattern.permute.xlu0 0
    %1371 = vperm.xlu0 %1370, %v810
    %v1372 = vpop.permute.xlu0 %1371
    %1373 = vset.pattern.permute.xlu0 0
    %1374 = vperm.xlu0 %1373, %v811
    %v1375 = vpop.permute.xlu0 %1374
    %1376 = vset.pattern.permute.xlu0 0
    %1377 = vperm.xlu0 %1376, %v812
    %v1378 = vpop.permute.xlu0 %1377
    %1379 = vset.pattern.permute.xlu0 0
    %1380 = vperm.xlu0 %1379, %v813
    %v1381 = vpop.permute.xlu0 %1380
    %1382 = vset.pattern.permute.xlu0 0
    %1383 = vperm.xlu0 %1382, %v814
    %v1384 = vpop.permute.xlu0 %1383
    %1385 = vset.pattern.permute.xlu0 0
    %1386 = vperm.xlu0 %1385, %v815
    %v1387 = vpop.permute.xlu0 %1386
    %1388 = vset.pattern.permute.xlu0 0
    %1389 = vperm.xlu0 %1388, %v816
    %v1390 = vpop.permute.xlu0 %1389
    %1391 = vset.pattern.permute.xlu0 0
    %1392 = vperm.xlu0 %1391, %v817
    %v1393 = vpop.permute.xlu0 %1392
    %1394 = vset.pattern.permute.xlu0 0
    %1395 = vperm.xlu0 %1394, %v818
    %v1396 = vpop.permute.xlu0 %1395
    %1397 = vset.pattern.permute.xlu0 0
    %1398 = vperm.xlu0 %1397, %v819
    %v1399 = vpop.permute.xlu0 %1398
    %1400 = vset.pattern.permute.xlu0 0
    %1401 = vperm.xlu0 %1400, %v820
    %v1402 = vpop.permute.xlu0 %1401
    %1403 = vset.pattern.permute.xlu0 0
    %1404 = vperm.xlu0 %1403, %v821
    %v1405 = vpop.permute.xlu0 %1404
    %1406 = vset.pattern.permute.xlu0 0
    %1407 = vperm.xlu0 %1406, %v822
    %v1408 = vpop.permute.xlu0 %1407
    %1409 = vset.pattern.permute.xlu0 0
    %1410 = vperm.xlu0 %1409, %v823
    %v1411 = vpop.permute.xlu0 %1410
    %1412 = vset.pattern.permute.xlu0 0
    %1413 = vperm.xlu0 %1412, %v824
    %v1414 = vpop.permute.xlu0 %1413
    %1415 = vset.pattern.permute.xlu0 0
    %1416 = vperm.xlu0 %1415, %v825
    %v1417 = vpop.permute.xlu0 %1416
    %1418 = vset.pattern.permute.xlu0 0
    %1419 = vperm.xlu0 %1418, %v826
    %v1420 = vpop.permute.xlu0 %1419
    %1421 = vset.pattern.permute.xlu0 0
    %1422 = vperm.xlu0 %1421, %v827
    %v1423 = vpop.permute.xlu0 %1422
    %1424 = vset.pattern.permute.xlu0 0
    %1425 = vperm.xlu0 %1424, %v828
    %v1426 = vpop.permute.xlu0 %1425
    %1427 = vset.pattern.permute.xlu0 0
    %1428 = vperm.xlu0 %1427, %v829
    %v1429 = vpop.permute.xlu0 %1428
    %1430 = vset.pattern.permute.xlu0 0
    %1431 = vperm.xlu0 %1430, %v830
    %v1432 = vpop.permute.xlu0 %1431
    %1433 = vset.pattern.permute.xlu0 0
    %1434 = vperm.xlu0 %1433, %v831
    %v1435 = vpop.permute.xlu0 %1434
    %1436 = vset.pattern.permute.xlu0 0
    %1437 = vperm.xlu0 %1436, %v832
    %v1438 = vpop.permute.xlu0 %1437
    %1439 = vset.pattern.permute.xlu0 0
    %1440 = vperm.xlu0 %1439, %v833
    %v1441 = vpop.permute.xlu0 %1440
    %1442 = vset.pattern.permute.xlu0 0
    %1443 = vperm.xlu0 %1442, %v834
    %v1444 = vpop.permute.xlu0 %1443
    %1445 = vset.pattern.permute.xlu0 0
    %1446 = vperm.xlu0 %1445, %v835
    %v1447 = vpop.permute.xlu0 %1446
    %1448 = vset.pattern.permute.xlu0 0
    %1449 = vperm.xlu0 %1448, %v836
    %v1450 = vpop.permute.xlu0 %1449
    %1451 = vset.pattern.permute.xlu0 0
    %1452 = vperm.xlu0 %1451, %v837
    %v1453 = vpop.permute.xlu0 %1452
    %1454 = vset.pattern.permute.xlu0 0
    %1455 = vperm.xlu0 %1454, %v838
    %v1456 = vpop.permute.xlu0 %1455
    %1457 = vset.pattern.permute.xlu0 0
    %1458 = vperm.xlu0 %1457, %v839
    %v1459 = vpop.permute.xlu0 %1458
    %1460 = vset.pattern.permute.xlu0 0
    %1461 = vperm.xlu0 %1460, %v840
    %v1462 = vpop.permute.xlu0 %1461
    %1463 = vset.pattern.permute.xlu0 0
    %1464 = vperm.xlu0 %1463, %v841
    %v1465 = vpop.permute.xlu0 %1464
    %1466 = vset.pattern.permute.xlu0 0
    %1467 = vperm.xlu0 %1466, %v842
    %v1468 = vpop.permute.xlu0 %1467
    %1469 = vset.pattern.permute.xlu0 0
    %1470 = vperm.xlu0 %1469, %v843
    %v1471 = vpop.permute.xlu0 %1470
    %1472 = vset.pattern.permute.xlu0 0
    %1473 = vperm.xlu0 %1472, %v844
    %v1474 = vpop.permute.xlu0 %1473
    %1475 = vset.pattern.permute.xlu0 0
    %1476 = vperm.xlu0 %1475, %v845
    %v1477 = vpop.permute.xlu0 %1476
    %1478 = vset.pattern.permute.xlu0 0
    %1479 = vperm.xlu0 %1478, %v846
    %v1480 = vpop.permute.xlu0 %1479
    %1481 = vset.pattern.permute.xlu0 0
    %1482 = vperm.xlu0 %1481, %v847
    %v1483 = vpop.permute.xlu0 %1482
    %1484 = vset.pattern.permute.xlu0 0
    %1485 = vperm.xlu0 %1484, %v848
    %v1486 = vpop.permute.xlu0 %1485
    %1487 = vset.pattern.permute.xlu0 0
    %1488 = vperm.xlu0 %1487, %v849
    %v1489 = vpop.permute.xlu0 %1488
    %1490 = vset.pattern.permute.xlu0 0
    %1491 = vperm.xlu0 %1490, %v850
    %v1492 = vpop.permute.xlu0 %1491
    %1493 = vset.pattern.permute.xlu0 0
    %1494 = vperm.xlu0 %1493, %v851
    %v1495 = vpop.permute.xlu0 %1494
    %1496 = vset.pattern.permute.xlu0 0
    %1497 = vperm.xlu0 %1496, %v852
    %v1498 = vpop.permute.xlu0 %1497
    %1499 = vset.pattern.permute.xlu0 0
    %1500 = vperm.xlu0 %1499, %v853
    %v1501 = vpop.permute.xlu0 %1500
    %1502 = vset.pattern.permute.xlu0 0
    %1503 = vperm.xlu0 %1502, %v854
    %v1504 = vpop.permute.xlu0 %1503
    %1505 = vset.pattern.permute.xlu0 0
    %1506 = vperm.xlu0 %1505, %v855
    %v1507 = vpop.permute.xlu0 %1506
    %1508 = vset.pattern.permute.xlu0 0
    %1509 = vperm.xlu0 %1508, %v856
    %v1510 = vpop.permute.xlu0 %1509
    %1511 = vset.pattern.permute.xlu0 0
    %1512 = vperm.xlu0 %1511, %v857
    %v1513 = vpop.permute.xlu0 %1512
    %1514 = vset.pattern.permute.xlu0 0
    %1515 = vperm.xlu0 %1514, %v858
    %v1516 = vpop.permute.xlu0 %1515
    %1517 = vset.pattern.permute.xlu0 0
    %1518 = vperm.xlu0 %1517, %v859
    %v1519 = vpop.permute.xlu0 %1518
    %1520 = vset.pattern.permute.xlu0 0
    %1521 = vperm.xlu0 %1520, %v860
    %v1522 = vpop.permute.xlu0 %1521
    %1523 = vset.pattern.permute.xlu0 0
    %1524 = vperm.xlu0 %1523, %v861
    %v1525 = vpop.permute.xlu0 %1524
    %1526 = vset.pattern.permute.xlu0 0
    %1527 = vperm.xlu0 %1526, %v862
    %v1528 = vpop.permute.xlu0 %1527
    %1529 = vset.pattern.permute.xlu0 0
    %1530 = vperm.xlu0 %1529, %v863
    %v1531 = vpop.permute.xlu0 %1530
    %1532 = vset.pattern.permute.xlu0 0
    %1533 = vperm.xlu0 %1532, %v864
    %v1534 = vpop.permute.xlu0 %1533
    %1535 = vset.pattern.permute.xlu0 0
    %1536 = vperm.xlu0 %1535, %v865
    %v1537 = vpop.permute.xlu0 %1536
    %1538 = vset.pattern.permute.xlu0 0
    %1539 = vperm.xlu0 %1538, %v866
    %v1540 = vpop.permute.xlu0 %1539
    %1541 = vset.pattern.permute.xlu0 0
    %1542 = vperm.xlu0 %1541, %v867
    %v1543 = vpop.permute.xlu0 %1542
    %1544 = vset.pattern.permute.xlu0 0
    %1545 = vperm.xlu0 %1544, %v868
    %v1546 = vpop.permute.xlu0 %1545
    %1547 = vset.pattern.permute.xlu0 0
    %1548 = vperm.xlu0 %1547, %v869
    %v1549 = vpop.permute.xlu0 %1548
    %1550 = vset.pattern.permute.xlu0 0
    %1551 = vperm.xlu0 %1550, %v870
    %v1552 = vpop.permute.xlu0 %1551
    %1553 = vset.pattern.permute.xlu0 0
    %1554 = vperm.xlu0 %1553, %v871
    %v1555 = vpop.permute.xlu0 %1554
    %1556 = vset.pattern.permute.xlu0 0
    %1557 = vperm.xlu0 %1556, %v872
    %v1558 = vpop.permute.xlu0 %1557
    %1559 = vset.pattern.permute.xlu0 0
    %1560 = vperm.xlu0 %1559, %v873
    %v1561 = vpop.permute.xlu0 %1560
    %1562 = vset.pattern.permute.xlu0 0
    %1563 = vperm.xlu0 %1562, %v874
    %v1564 = vpop.permute.xlu0 %1563
    %1565 = vset.pattern.permute.xlu0 0
    %1566 = vperm.xlu0 %1565, %v875
    %v1567 = vpop.permute.xlu0 %1566
    %1568 = vset.pattern.permute.xlu0 0
    %1569 = vperm.xlu0 %1568, %v876
    %v1570 = vpop.permute.xlu0 %1569
    %1571 = vset.pattern.permute.xlu0 0
    %1572 = vperm.xlu0 %1571, %v877
    %v1573 = vpop.permute.xlu0 %1572
    %1574 = vset.pattern.permute.xlu0 0
    %1575 = vperm.xlu0 %1574, %v878
    %v1576 = vpop.permute.xlu0 %1575
    %1577 = vset.pattern.permute.xlu0 0
    %1578 = vperm.xlu0 %1577, %v879
    %v1579 = vpop.permute.xlu0 %1578
    %1580 = vset.pattern.permute.xlu0 0
    %1581 = vperm.xlu0 %1580, %v880
    %v1582 = vpop.permute.xlu0 %1581
    %1583 = vset.pattern.permute.xlu0 0
    %1584 = vperm.xlu0 %1583, %v881
    %v1585 = vpop.permute.xlu0 %1584
    %1586 = vset.pattern.permute.xlu0 0
    %1587 = vperm.xlu0 %1586, %v882
    %v1588 = vpop.permute.xlu0 %1587
    %1589 = vset.pattern.permute.xlu0 0
    %1590 = vperm.xlu0 %1589, %v883
    %v1591 = vpop.permute.xlu0 %1590
    %1592 = vset.pattern.permute.xlu0 0
    %1593 = vperm.xlu0 %1592, %v884
    %v1594 = vpop.permute.xlu0 %1593
    %1595 = vset.pattern.permute.xlu0 0
    %1596 = vperm.xlu0 %1595, %v885
    %v1597 = vpop.permute.xlu0 %1596
    %1598 = vset.pattern.permute.xlu0 0
    %1599 = vperm.xlu0 %1598, %v886
    %v1600 = vpop.permute.xlu0 %1599
    %1601 = vset.pattern.permute.xlu0 0
    %1602 = vperm.xlu0 %1601, %v887
    %v1603 = vpop.permute.xlu0 %1602
    %1604 = vset.pattern.permute.xlu0 0
    %1605 = vperm.xlu0 %1604, %v888
    %v1606 = vpop.permute.xlu0 %1605
    %1607 = vset.pattern.permute.xlu0 0
    %1608 = vperm.xlu0 %1607, %v889
    %v1609 = vpop.permute.xlu0 %1608
    %1610 = vset.pattern.permute.xlu0 0
    %1611 = vperm.xlu0 %1610, %v890
    %v1612 = vpop.permute.xlu0 %1611
    %1613 = vset.pattern.permute.xlu0 0
    %1614 = vperm.xlu0 %1613, %v891
    %v1615 = vpop.permute.xlu0 %1614
    %1616 = vset.pattern.permute.xlu0 0
    %1617 = vperm.xlu0 %1616, %v892
    %v1618 = vpop.permute.xlu0 %1617
    %1619 = vset.pattern.permute.xlu0 0
    %1620 = vperm.xlu0 %1619, %v893
    %v1621 = vpop.permute.xlu0 %1620
    %1622 = vset.pattern.permute.xlu0 0
    %1623 = vperm.xlu0 %1622, %v894
    %v1624 = vpop.permute.xlu0 %1623
    %1625 = vset.pattern.permute.xlu0 0
    %1626 = vperm.xlu0 %1625, %v895
    %v1627 = vpop.permute.xlu0 %1626
    %1628 = vset.pattern.permute.xlu0 0
    %1629 = vperm.xlu0 %1628, %v896
    %v1630 = vpop.permute.xlu0 %1629
    %1631 = vset.pattern.permute.xlu0 0
    %1632 = vperm.xlu0 %1631, %v897
    %v1633 = vpop.permute.xlu0 %1632
    %1634 = vset.pattern.permute.xlu0 0
    %1635 = vperm.xlu0 %1634, %v898
    %v1636 = vpop.permute.xlu0 %1635
    %1637 = vset.pattern.permute.xlu0 0
    %1638 = vperm.xlu0 %1637, %v899
    %v1639 = vpop.permute.xlu0 %1638
    %1640 = vset.pattern.permute.xlu0 0
    %1641 = vperm.xlu0 %1640, %v900
    %v1642 = vpop.permute.xlu0 %1641
    %1643 = vset.pattern.permute.xlu0 0
    %1644 = vperm.xlu0 %1643, %v901
    %v1645 = vpop.permute.xlu0 %1644
    %1646 = vset.pattern.permute.xlu0 0
    %1647 = vperm.xlu0 %1646, %v902
    %v1648 = vpop.permute.xlu0 %1647
    %1649 = vset.pattern.permute.xlu0 0
    %1650 = vperm.xlu0 %1649, %v903
    %v1651 = vpop.permute.xlu0 %1650
    %1652 = vset.pattern.permute.xlu0 0
    %1653 = vperm.xlu0 %1652, %v904
    %v1654 = vpop.permute.xlu0 %1653
    %1655 = vset.pattern.permute.xlu0 0
    %1656 = vperm.xlu0 %1655, %v905
    %v1657 = vpop.permute.xlu0 %1656
    %1658 = vset.pattern.permute.xlu0 0
    %1659 = vperm.xlu0 %1658, %v906
    %v1660 = vpop.permute.xlu0 %1659
    %1661 = vset.pattern.permute.xlu0 0
    %1662 = vperm.xlu0 %1661, %v907
    %v1663 = vpop.permute.xlu0 %1662
    %1664 = vset.pattern.permute.xlu0 0
    %1665 = vperm.xlu0 %1664, %v908
    %v1666 = vpop.permute.xlu0 %1665
    %1667 = vset.pattern.permute.xlu0 0
    %1668 = vperm.xlu0 %1667, %v909
    %v1669 = vpop.permute.xlu0 %1668
    %1670 = vset.pattern.permute.xlu0 0
    %1671 = vperm.xlu0 %1670, %v910
    %v1672 = vpop.permute.xlu0 %1671
    %1673 = vset.pattern.permute.xlu0 0
    %1674 = vperm.xlu0 %1673, %v911
    %v1675 = vpop.permute.xlu0 %1674
    %1676 = vset.pattern.permute.xlu0 0
    %1677 = vperm.xlu0 %1676, %v912
    %v1678 = vpop.permute.xlu0 %1677
    %1679 = vset.pattern.permute.xlu0 0
    %1680 = vperm.xlu0 %1679, %v913
    %v1681 = vpop.permute.xlu0 %1680
    %1682 = vset.pattern.permute.xlu0 0
    %1683 = vperm.xlu0 %1682, %v914
    %v1684 = vpop.permute.xlu0 %1683
    %1685 = vset.pattern.permute.xlu0 0
    %1686 = vperm.xlu0 %1685, %v915
    %v1687 = vpop.permute.xlu0 %1686
    %1688 = vset.pattern.permute.xlu0 0
    %1689 = vperm.xlu0 %1688, %v916
    %v1690 = vpop.permute.xlu0 %1689
    %1691 = vset.pattern.permute.xlu0 0
    %1692 = vperm.xlu0 %1691, %v917
    %v1693 = vpop.permute.xlu0 %1692
    %1694 = vset.pattern.permute.xlu0 0
    %1695 = vperm.xlu0 %1694, %v918
    %v1696 = vpop.permute.xlu0 %1695
    %1697 = vset.pattern.permute.xlu0 0
    %1698 = vperm.xlu0 %1697, %v919
    %v1699 = vpop.permute.xlu0 %1698
    %1700 = vset.pattern.permute.xlu0 0
    %1701 = vperm.xlu0 %1700, %v920
    %v1702 = vpop.permute.xlu0 %1701
    %1703 = vset.pattern.permute.xlu0 0
    %1704 = vperm.xlu0 %1703, %v921
    %v1705 = vpop.permute.xlu0 %1704
    %1706 = vset.pattern.permute.xlu0 0
    %1707 = vperm.xlu0 %1706, %v922
    %v1708 = vpop.permute.xlu0 %1707
    %1709 = vset.pattern.permute.xlu0 0
    %1710 = vperm.xlu0 %1709, %v923
    %v1711 = vpop.permute.xlu0 %1710
    %1712 = vset.pattern.permute.xlu0 0
    %1713 = vperm.xlu0 %1712, %v924
    %v1714 = vpop.permute.xlu0 %1713
    %1715 = vset.pattern.permute.xlu0 0
    %1716 = vperm.xlu0 %1715, %v925
    %v1717 = vpop.permute.xlu0 %1716
    %1718 = vset.pattern.permute.xlu0 0
    %1719 = vperm.xlu0 %1718, %v926
    %v1720 = vpop.permute.xlu0 %1719
    %1721 = vset.pattern.permute.xlu0 0
    %1722 = vperm.xlu0 %1721, %v927
    %v1723 = vpop.permute.xlu0 %1722
    %1724 = vset.pattern.permute.xlu0 0
    %1725 = vperm.xlu0 %1724, %v928
    %v1726 = vpop.permute.xlu0 %1725
    %1727 = vset.pattern.permute.xlu0 0
    %1728 = vperm.xlu0 %1727, %v929
    %v1729 = vpop.permute.xlu0 %1728
    %1730 = vset.pattern.permute.xlu0 0
    %1731 = vperm.xlu0 %1730, %v930
    %v1732 = vpop.permute.xlu0 %1731
    %1733 = vset.pattern.permute.xlu0 0
    %1734 = vperm.xlu0 %1733, %v931
    %v1735 = vpop.permute.xlu0 %1734
    %1736 = vset.pattern.permute.xlu0 0
    %1737 = vperm.xlu0 %1736, %v932
    %v1738 = vpop.permute.xlu0 %1737
    %1739 = vset.pattern.permute.xlu0 0
    %1740 = vperm.xlu0 %1739, %v933
    %v1741 = vpop.permute.xlu0 %1740
    %1742 = vset.pattern.permute.xlu0 0
    %1743 = vperm.xlu0 %1742, %v934
    %v1744 = vpop.permute.xlu0 %1743
    %1745 = vset.pattern.permute.xlu0 0
    %1746 = vperm.xlu0 %1745, %v935
    %v1747 = vpop.permute.xlu0 %1746
    %1748 = vset.pattern.permute.xlu0 0
    %1749 = vperm.xlu0 %1748, %v936
    %v1750 = vpop.permute.xlu0 %1749
    %1751 = vset.pattern.permute.xlu0 0
    %1752 = vperm.xlu0 %1751, %v937
    %v1753 = vpop.permute.xlu0 %1752
    %1754 = vset.pattern.permute.xlu0 0
    %1755 = vperm.xlu0 %1754, %v938
    %v1756 = vpop.permute.xlu0 %1755
    %1757 = vset.pattern.permute.xlu0 0
    %1758 = vperm.xlu0 %1757, %v939
    %v1759 = vpop.permute.xlu0 %1758
    %1760 = vset.pattern.permute.xlu0 0
    %1761 = vperm.xlu0 %1760, %v940
    %v1762 = vpop.permute.xlu0 %1761
    %1763 = vset.pattern.permute.xlu0 0
    %1764 = vperm.xlu0 %1763, %v941
    %v1765 = vpop.permute.xlu0 %1764
    %1766 = vset.pattern.permute.xlu0 0
    %1767 = vperm.xlu0 %1766, %v942
    %v1768 = vpop.permute.xlu0 %1767
    %1769 = vset.pattern.permute.xlu0 0
    %1770 = vperm.xlu0 %1769, %v943
    %v1771 = vpop.permute.xlu0 %1770
    %1772 = vset.pattern.permute.xlu0 0
    %1773 = vperm.xlu0 %1772, %v944
    %v1774 = vpop.permute.xlu0 %1773
    %1775 = vset.pattern.permute.xlu0 0
    %1776 = vperm.xlu0 %1775, %v945
    %v1777 = vpop.permute.xlu0 %1776
    %1778 = vset.pattern.permute.xlu0 0
    %1779 = vperm.xlu0 %1778, %v946
    %v1780 = vpop.permute.xlu0 %1779
    %1781 = vset.pattern.permute.xlu0 0
    %1782 = vperm.xlu0 %1781, %v947
    %v1783 = vpop.permute.xlu0 %1782
    %1784 = vset.pattern.permute.xlu0 0
    %1785 = vperm.xlu0 %1784, %v948
    %v1786 = vpop.permute.xlu0 %1785
    %1787 = vset.pattern.permute.xlu0 0
    %1788 = vperm.xlu0 %1787, %v949
    %v1789 = vpop.permute.xlu0 %1788
    %1790 = vset.pattern.permute.xlu0 0
    %1791 = vperm.xlu0 %1790, %v950
    %v1792 = vpop.permute.xlu0 %1791
    %1793 = vset.pattern.permute.xlu0 0
    %1794 = vperm.xlu0 %1793, %v951
    %v1795 = vpop.permute.xlu0 %1794
    %1796 = vset.pattern.permute.xlu0 0
    %1797 = vperm.xlu0 %1796, %v952
    %v1798 = vpop.permute.xlu0 %1797
    %1799 = vset.pattern.permute.xlu0 0
    %1800 = vperm.xlu0 %1799, %v953
    %v1801 = vpop.permute.xlu0 %1800
    %1802 = vset.pattern.permute.xlu0 0
    %1803 = vperm.xlu0 %1802, %v954
    %v1804 = vpop.permute.xlu0 %1803
    %1805 = vset.pattern.permute.xlu0 0
    %1806 = vperm.xlu0 %1805, %v955
    %v1807 = vpop.permute.xlu0 %1806
    %1808 = vset.pattern.permute.xlu0 0
    %1809 = vperm.xlu0 %1808, %v956
    %v1810 = vpop.permute.xlu0 %1809
    %1811 = vset.pattern.permute.xlu0 0
    %1812 = vperm.xlu0 %1811, %v957
    %v1813 = vpop.permute.xlu0 %1812
    %1814 = vset.pattern.permute.xlu0 0
    %1815 = vperm.xlu0 %1814, %v958
    %v1816 = vpop.permute.xlu0 %1815
    %1817 = vset.pattern.permute.xlu0 0
    %1818 = vperm.xlu0 %1817, %v959
    %v1819 = vpop.permute.xlu0 %1818
    %1820 = vset.pattern.permute.xlu0 0
    %1821 = vperm.xlu0 %1820, %v960
    %v1822 = vpop.permute.xlu0 %1821
    %1823 = vset.pattern.permute.xlu0 0
    %1824 = vperm.xlu0 %1823, %v961
    %v1825 = vpop.permute.xlu0 %1824
    %1826 = vset.pattern.permute.xlu0 0
    %1827 = vperm.xlu0 %1826, %v962
    %v1828 = vpop.permute.xlu0 %1827
    %1829 = vset.pattern.permute.xlu0 0
    %1830 = vperm.xlu0 %1829, %v963
    %v1831 = vpop.permute.xlu0 %1830
    %1832 = vset.pattern.permute.xlu0 0
    %1833 = vperm.xlu0 %1832, %v964
    %v1834 = vpop.permute.xlu0 %1833
    %1835 = vset.pattern.permute.xlu0 0
    %1836 = vperm.xlu0 %1835, %v965
    %v1837 = vpop.permute.xlu0 %1836
    %1838 = vset.pattern.permute.xlu0 0
    %1839 = vperm.xlu0 %1838, %v966
    %v1840 = vpop.permute.xlu0 %1839
    %1841 = vset.pattern.permute.xlu0 0
    %1842 = vperm.xlu0 %1841, %v967
    %v1843 = vpop.permute.xlu0 %1842
    %1844 = vset.pattern.permute.xlu0 0
    %1845 = vperm.xlu0 %1844, %v968
    %v1846 = vpop.permute.xlu0 %1845
    %1847 = vset.pattern.permute.xlu0 0
    %1848 = vperm.xlu0 %1847, %v969
    %v1849 = vpop.permute.xlu0 %1848
    %1850 = vset.pattern.permute.xlu0 0
    %1851 = vperm.xlu0 %1850, %v970
    %v1852 = vpop.permute.xlu0 %1851
    %1853 = vset.pattern.permute.xlu0 0
    %1854 = vperm.xlu0 %1853, %v971
    %v1855 = vpop.permute.xlu0 %1854
    %1856 = vset.pattern.permute.xlu0 0
    %1857 = vperm.xlu0 %1856, %v972
    %v1858 = vpop.permute.xlu0 %1857
    %1859 = vset.pattern.permute.xlu0 0
    %1860 = vperm.xlu0 %1859, %v973
    %v1861 = vpop.permute.xlu0 %1860
    %1862 = vset.pattern.permute.xlu0 0
    %1863 = vperm.xlu0 %1862, %v974
    %v1864 = vpop.permute.xlu0 %1863
    %1865 = vset.pattern.permute.xlu0 0
    %1866 = vperm.xlu0 %1865, %v975
    %v1867 = vpop.permute.xlu0 %1866
    %1868 = vset.pattern.permute.xlu0 0
    %1869 = vperm.xlu0 %1868, %v976
    %v1870 = vpop.permute.xlu0 %1869
    %1871 = vset.pattern.permute.xlu0 0
    %1872 = vperm.xlu0 %1871, %v977
    %v1873 = vpop.permute.xlu0 %1872
    %1874 = vset.pattern.permute.xlu0 0
    %1875 = vperm.xlu0 %1874, %v978
    %v1876 = vpop.permute.xlu0 %1875
    %1877 = vset.pattern.permute.xlu0 0
    %1878 = vperm.xlu0 %1877, %v979
    %v1879 = vpop.permute.xlu0 %1878
    %1880 = vset.pattern.permute.xlu0 0
    %1881 = vperm.xlu0 %1880, %v980
    %v1882 = vpop.permute.xlu0 %1881
    %1883 = vset.pattern.permute.xlu0 0
    %1884 = vperm.xlu0 %1883, %v981
    %v1885 = vpop.permute.xlu0 %1884
    %1886 = vset.pattern.permute.xlu0 0
    %1887 = vperm.xlu0 %1886, %v982
    %v1888 = vpop.permute.xlu0 %1887
    %1889 = vset.pattern.permute.xlu0 0
    %1890 = vperm.xlu0 %1889, %v983
    %v1891 = vpop.permute.xlu0 %1890
    %1892 = vset.pattern.permute.xlu0 0
    %1893 = vperm.xlu0 %1892, %v984
    %v1894 = vpop.permute.xlu0 %1893
    %1895 = vset.pattern.permute.xlu0 0
    %1896 = vperm.xlu0 %1895, %v985
    %v1897 = vpop.permute.xlu0 %1896
    %1898 = vset.pattern.permute.xlu0 0
    %1899 = vperm.xlu0 %1898, %v986
    %v1900 = vpop.permute.xlu0 %1899
    %1901 = vset.pattern.permute.xlu0 0
    %1902 = vperm.xlu0 %1901, %v987
    %v1903 = vpop.permute.xlu0 %1902
    %1904 = vset.pattern.permute.xlu0 0
    %1905 = vperm.xlu0 %1904, %v988
    %v1906 = vpop.permute.xlu0 %1905
    %1907 = vset.pattern.permute.xlu0 0
    %1908 = vperm.xlu0 %1907, %v989
    %v1909 = vpop.permute.xlu0 %1908
    %1910 = vset.pattern.permute.xlu0 0
    %1911 = vperm.xlu0 %1910, %v990
    %v1912 = vpop.permute.xlu0 %1911
    %1913 = vset.pattern.permute.xlu0 0
    %1914 = vperm.xlu0 %1913, %v991
    %v1915 = vpop.permute.xlu0 %1914
    %1916 = vset.pattern.permute.xlu0 0
    %1917 = vperm.xlu0 %1916, %v992
    %v1918 = vpop.permute.xlu0 %1917
    %1919 = vset.pattern.permute.xlu0 0
    %1920 = vperm.xlu0 %1919, %v993
    %v1921 = vpop.permute.xlu0 %1920
    %1922 = vset.pattern.permute.xlu0 0
    %1923 = vperm.xlu0 %1922, %v994
    %v1924 = vpop.permute.xlu0 %1923
    %1925 = vset.pattern.permute.xlu0 0
    %1926 = vperm.xlu0 %1925, %v995
    %v1927 = vpop.permute.xlu0 %1926
    %1928 = vset.pattern.permute.xlu0 0
    %1929 = vperm.xlu0 %1928, %v996
    %v1930 = vpop.permute.xlu0 %1929
    %1931 = vset.pattern.permute.xlu0 0
    %1932 = vperm.xlu0 %1931, %v997
    %v1933 = vpop.permute.xlu0 %1932
    %1934 = vset.pattern.permute.xlu0 0
    %1935 = vperm.xlu0 %1934, %v998
    %v1936 = vpop.permute.xlu0 %1935
    %1937 = vset.pattern.permute.xlu0 0
    %1938 = vperm.xlu0 %1937, %v999
    %v1939 = vpop.permute.xlu0 %1938
    %1940 = vset.pattern.permute.xlu0 0
    %1941 = vperm.xlu0 %1940, %v1000
    %v1942 = vpop.permute.xlu0 %1941
    %1943 = vset.pattern.permute.xlu0 0
    %1944 = vperm.xlu0 %1943, %v1001
    %v1945 = vpop.permute.xlu0 %1944
    %1946 = vset.pattern.permute.xlu0 0
    %1947 = vperm.xlu0 %1946, %v1002
    %v1948 = vpop.permute.xlu0 %1947
    %1949 = vset.pattern.permute.xlu0 0
    %1950 = vperm.xlu0 %1949, %v1003
    %v1951 = vpop.permute.xlu0 %1950
    %1952 = vset.pattern.permute.xlu0 0
    %1953 = vperm.xlu0 %1952, %v1004
    %v1954 = vpop.permute.xlu0 %1953
    %1955 = vset.pattern.permute.xlu0 0
    %1956 = vperm.xlu0 %1955, %v1005
    %v1957 = vpop.permute.xlu0 %1956
    %1958 = vset.pattern.permute.xlu0 0
    %1959 = vperm.xlu0 %1958, %v1006
    %v1960 = vpop.permute.xlu0 %1959
    %1961 = vset.pattern.permute.xlu0 0
    %1962 = vperm.xlu0 %1961, %v1007
    %v1963 = vpop.permute.xlu0 %1962
    %1964 = vset.pattern.permute.xlu0 0
    %1965 = vperm.xlu0 %1964, %v1008
    %v1966 = vpop.permute.xlu0 %1965
    %1967 = vset.pattern.permute.xlu0 0
    %1968 = vperm.xlu0 %1967, %v1009
    %v1969 = vpop.permute.xlu0 %1968
    %1970 = vset.pattern.permute.xlu0 0
    %1971 = vperm.xlu0 %1970, %v1010
    %v1972 = vpop.permute.xlu0 %1971
    %1973 = vset.pattern.permute.xlu0 0
    %1974 = vperm.xlu0 %1973, %v1011
    %v1975 = vpop.permute.xlu0 %1974
    %1976 = vset.pattern.permute.xlu0 0
    %1977 = vperm.xlu0 %1976, %v1012
    %v1978 = vpop.permute.xlu0 %1977
    %1979 = vset.pattern.permute.xlu0 0
    %1980 = vperm.xlu0 %1979, %v1013
    %v1981 = vpop.permute.xlu0 %1980
    %1982 = vset.pattern.permute.xlu0 0
    %1983 = vperm.xlu0 %1982, %v1014
    %v1984 = vpop.permute.xlu0 %1983
    %1985 = vset.pattern.permute.xlu0 0
    %1986 = vperm.xlu0 %1985, %v1015
    %v1987 = vpop.permute.xlu0 %1986
    %1988 = vset.pattern.permute.xlu0 0
    %1989 = vperm.xlu0 %1988, %v1016
    %v1990 = vpop.permute.xlu0 %1989
    %1991 = vset.pattern.permute.xlu0 0
    %1992 = vperm.xlu0 %1991, %v1017
    %v1993 = vpop.permute.xlu0 %1992
    %1994 = vset.pattern.permute.xlu0 0
    %1995 = vperm.xlu0 %1994, %v1018
    %v1996 = vpop.permute.xlu0 %1995
    %1997 = vset.pattern.permute.xlu0 0
    %1998 = vperm.xlu0 %1997, %v1019
    %v1999 = vpop.permute.xlu0 %1998
    %2000 = vset.pattern.permute.xlu0 0
    %2001 = vperm.xlu0 %2000, %v1020
    %v2002 = vpop.permute.xlu0 %2001
    %2003 = vset.pattern.permute.xlu0 0
    %2004 = vperm.xlu0 %2003, %v1021
    %v2005 = vpop.permute.xlu0 %2004
    %2006 = vset.pattern.permute.xlu0 0
    %2007 = vperm.xlu0 %2006, %v1022
    %v2008 = vpop.permute.xlu0 %2007
    %2009 = vset.pattern.permute.xlu0 0
    %2010 = vperm.xlu0 %2009, %v1023
    %v2011 = vpop.permute.xlu0 %2010
    %2012 = vset.pattern.permute.xlu0 0
    %2013 = vperm.xlu0 %2012, %v1024
    %v2014 = vpop.permute.xlu0 %2013
    %2015 = vset.pattern.permute.xlu0 0
    %2016 = vperm.xlu0 %2015, %v1025
    %v2017 = vpop.permute.xlu0 %2016
    %2018 = vset.pattern.permute.xlu0 0
    %2019 = vperm.xlu0 %2018, %v1026
    %v2020 = vpop.permute.xlu0 %2019
    %2021 = vset.pattern.permute.xlu0 0
    %2022 = vperm.xlu0 %2021, %v1027
    %v2023 = vpop.permute.xlu0 %2022
    %2024 = vset.pattern.permute.xlu0 0
    %2025 = vperm.xlu0 %2024, %v1028
    %v2026 = vpop.permute.xlu0 %2025
    %2027 = vset.pattern.permute.xlu0 0
    %2028 = vperm.xlu0 %2027, %v1029
    %v2029 = vpop.permute.xlu0 %2028
    %2030 = vset.pattern.permute.xlu0 0
    %2031 = vperm.xlu0 %2030, %v1030
    %v2032 = vpop.permute.xlu0 %2031
    %2033 = vset.pattern.permute.xlu0 0
    %2034 = vperm.xlu0 %2033, %v1031
    %v2035 = vpop.permute.xlu0 %2034
    %2036 = vset.pattern.permute.xlu0 0
    %2037 = vperm.xlu0 %2036, %v1032
    %v2038 = vpop.permute.xlu0 %2037
    %2039 = vset.pattern.permute.xlu0 0
    %2040 = vperm.xlu0 %2039, %v1033
    %v2041 = vpop.permute.xlu0 %2040
    %2042 = vset.pattern.permute.xlu0 0
    %2043 = vperm.xlu0 %2042, %v1034
    %v2044 = vpop.permute.xlu0 %2043
    %2045 = vset.pattern.permute.xlu0 0
    %2046 = vperm.xlu0 %2045, %v1035
    %v2047 = vpop.permute.xlu0 %2046
    %2048 = vset.pattern.permute.xlu0 0
    %2049 = vperm.xlu0 %2048, %v1036
    %v2050 = vpop.permute.xlu0 %2049
    %2051 = vset.pattern.permute.xlu0 0
    %2052 = vperm.xlu0 %2051, %v1037
    %v2053 = vpop.permute.xlu0 %2052
    %2054 = vset.pattern.permute.xlu0 0
    %2055 = vperm.xlu0 %2054, %v1038
    %v2056 = vpop.permute.xlu0 %2055
    %2057 = vset.pattern.permute.xlu0 0
    %2058 = vperm.xlu0 %2057, %v1039
    %v2059 = vpop.permute.xlu0 %2058
    %2060 = vset.pattern.permute.xlu0 0
    %2061 = vperm.xlu0 %2060, %v1040
    %v2062 = vpop.permute.xlu0 %2061
    %2063 = vset.pattern.permute.xlu0 0
    %2064 = vperm.xlu0 %2063, %v1041
    %v2065 = vpop.permute.xlu0 %2064
    %v2066 = vlaneseq
    %v2067 = vand.u32 %v2066, 127
    %v2068 = vlaneseq
    %v2069 = vshrl.u32 %v2068, 7
    %v2070 = vsub.s32 %v2067, %v2069
    %v2071 = vrot.slane %v1300, %v2070
    %v2072 = vadd.s32 %v2067, 4294967288
    %v2073 = vlaneseq
    %v2074 = vshrl.u32 %v2073, 7
    %v2075 = vsub.s32 %v2072, %v2074
    %v2076 = vrot.slane %v1303, %v2075
    %vm2077 = vcmask 130112
    %v2078 = vsel %vm2077, %v2076, %v2071
    %v2079 = vadd.s32 %v2067, 4294967280
    %v2080 = vlaneseq
    %v2081 = vshrl.u32 %v2080, 7
    %v2082 = vsub.s32 %v2079, %v2081
    %v2083 = vrot.slane %v1306, %v2082
    %vm2084 = vcmask 195712
    %v2085 = vsel %vm2084, %v2083, %v2078
    %v2086 = vadd.s32 %v2067, 4294967272
    %v2087 = vlaneseq
    %v2088 = vshrl.u32 %v2087, 7
    %v2089 = vsub.s32 %v2086, %v2088
    %v2090 = vrot.slane %v1309, %v2089
    %vm2091 = vcmask 261312
    %v2092 = vsel %vm2091, %v2090, %v2085
    %v2093 = vadd.s32 %v2067, 4294967264
    %v2094 = vlaneseq
    %v2095 = vshrl.u32 %v2094, 7
    %v2096 = vsub.s32 %v2093, %v2095
    %v2097 = vrot.slane %v1312, %v2096
    %vm2098 = vcmask 326912
    %v2099 = vsel %vm2098, %v2097, %v2092
    %v2100 = vadd.s32 %v2067, 4294967256
    %v2101 = vlaneseq
    %v2102 = vshrl.u32 %v2101, 7
    %v2103 = vsub.s32 %v2100, %v2102
    %v2104 = vrot.slane %v1315, %v2103
    %vm2105 = vcmask 392512
    %v2106 = vsel %vm2105, %v2104, %v2099
    %v2107 = vadd.s32 %v2067, 4294967248
    %v2108 = vlaneseq
    %v2109 = vshrl.u32 %v2108, 7
    %v2110 = vsub.s32 %v2107, %v2109
    %v2111 = vrot.slane %v1318, %v2110
    %vm2112 = vcmask 458112
    %v2113 = vsel %vm2112, %v2111, %v2106
    %v2114 = vadd.s32 %v2067, 4294967240
    %v2115 = vlaneseq
    %v2116 = vshrl.u32 %v2115, 7
    %v2117 = vsub.s32 %v2114, %v2116
    %v2118 = vrot.slane %v1321, %v2117
    %vm2119 = vcmask 523712
    %v2120 = vsel %vm2119, %v2118, %v2113
    %v2121 = vadd.s32 %v2067, 4294967232
    %v2122 = vlaneseq
    %v2123 = vshrl.u32 %v2122, 7
    %v2124 = vsub.s32 %v2121, %v2123
    %v2125 = vrot.slane %v1324, %v2124
    %vm2126 = vcmask 589312
    %v2127 = vsel %vm2126, %v2125, %v2120
    %v2128 = vadd.s32 %v2067, 4294967224
    %v2129 = vlaneseq
    %v2130 = vshrl.u32 %v2129, 7
    %v2131 = vsub.s32 %v2128, %v2130
    %v2132 = vrot.slane %v1327, %v2131
    %vm2133 = vcmask 654912
    %v2134 = vsel %vm2133, %v2132, %v2127
    %v2135 = vadd.s32 %v2067, 4294967216
    %v2136 = vlaneseq
    %v2137 = vshrl.u32 %v2136, 7
    %v2138 = vsub.s32 %v2135, %v2137
    %v2139 = vrot.slane %v1330, %v2138
    %vm2140 = vcmask 720512
    %v2141 = vsel %vm2140, %v2139, %v2134
    %v2142 = vadd.s32 %v2067, 4294967208
    %v2143 = vlaneseq
    %v2144 = vshrl.u32 %v2143, 7
    %v2145 = vsub.s32 %v2142, %v2144
    %v2146 = vrot.slane %v1333, %v2145
    %vm2147 = vcmask 786112
    %v2148 = vsel %vm2147, %v2146, %v2141
    %v2149 = vadd.s32 %v2067, 4294967200
    %v2150 = vlaneseq
    %v2151 = vshrl.u32 %v2150, 7
    %v2152 = vsub.s32 %v2149, %v2151
    %v2153 = vrot.slane %v1336, %v2152
    %vm2154 = vcmask 851712
    %v2155 = vsel %vm2154, %v2153, %v2148
    %v2156 = vadd.s32 %v2067, 4294967192
    %v2157 = vlaneseq
    %v2158 = vshrl.u32 %v2157, 7
    %v2159 = vsub.s32 %v2156, %v2158
    %v2160 = vrot.slane %v1339, %v2159
    %vm2161 = vcmask 917312
    %v2162 = vsel %vm2161, %v2160, %v2155
    %v2163 = vadd.s32 %v2067, 4294967184
    %v2164 = vlaneseq
    %v2165 = vshrl.u32 %v2164, 7
    %v2166 = vsub.s32 %v2163, %v2165
    %v2167 = vrot.slane %v1342, %v2166
    %vm2168 = vcmask 982912
    %v2169 = vsel %vm2168, %v2167, %v2162
    %v2170 = vadd.s32 %v2067, 4294967176
    %v2171 = vlaneseq
    %v2172 = vshrl.u32 %v2171, 7
    %v2173 = vsub.s32 %v2170, %v2172
    %v2174 = vrot.slane %v1345, %v2173
    %vm2175 = vcmask 1048512
    %v2176 = vsel %vm2175, %v2174, %v2169
    %v2177 = vlaneseq
    %v2178 = vshrl.u32 %v2177, 7
    %v2179 = vsub.s32 %v2067, %v2178
    %v2180 = vrot.slane %v1348, %v2179
    %v2181 = vlaneseq
    %v2182 = vshrl.u32 %v2181, 7
    %v2183 = vsub.s32 %v2072, %v2182
    %v2184 = vrot.slane %v1351, %v2183
    %v2185 = vsel %vm2077, %v2184, %v2180
    %v2186 = vlaneseq
    %v2187 = vshrl.u32 %v2186, 7
    %v2188 = vsub.s32 %v2079, %v2187
    %v2189 = vrot.slane %v1354, %v2188
    %v2190 = vsel %vm2084, %v2189, %v2185
    %v2191 = vlaneseq
    %v2192 = vshrl.u32 %v2191, 7
    %v2193 = vsub.s32 %v2086, %v2192
    %v2194 = vrot.slane %v1357, %v2193
    %v2195 = vsel %vm2091, %v2194, %v2190
    %v2196 = vlaneseq
    %v2197 = vshrl.u32 %v2196, 7
    %v2198 = vsub.s32 %v2093, %v2197
    %v2199 = vrot.slane %v1360, %v2198
    %v2200 = vsel %vm2098, %v2199, %v2195
    %v2201 = vlaneseq
    %v2202 = vshrl.u32 %v2201, 7
    %v2203 = vsub.s32 %v2100, %v2202
    %v2204 = vrot.slane %v1363, %v2203
    %v2205 = vsel %vm2105, %v2204, %v2200
    %v2206 = vlaneseq
    %v2207 = vshrl.u32 %v2206, 7
    %v2208 = vsub.s32 %v2107, %v2207
    %v2209 = vrot.slane %v1366, %v2208
    %v2210 = vsel %vm2112, %v2209, %v2205
    %v2211 = vlaneseq
    %v2212 = vshrl.u32 %v2211, 7
    %v2213 = vsub.s32 %v2114, %v2212
    %v2214 = vrot.slane %v1369, %v2213
    %v2215 = vsel %vm2119, %v2214, %v2210
    %v2216 = vlaneseq
    %v2217 = vshrl.u32 %v2216, 7
    %v2218 = vsub.s32 %v2121, %v2217
    %v2219 = vrot.slane %v1372, %v2218
    %v2220 = vsel %vm2126, %v2219, %v2215
    %v2221 = vlaneseq
    %v2222 = vshrl.u32 %v2221, 7
    %v2223 = vsub.s32 %v2128, %v2222
    %v2224 = vrot.slane %v1375, %v2223
    %v2225 = vsel %vm2133, %v2224, %v2220
    %v2226 = vlaneseq
    %v2227 = vshrl.u32 %v2226, 7
    %v2228 = vsub.s32 %v2135, %v2227
    %v2229 = vrot.slane %v1378, %v2228
    %v2230 = vsel %vm2140, %v2229, %v2225
    %v2231 = vlaneseq
    %v2232 = vshrl.u32 %v2231, 7
    %v2233 = vsub.s32 %v2142, %v2232
    %v2234 = vrot.slane %v1381, %v2233
    %v2235 = vsel %vm2147, %v2234, %v2230
    %v2236 = vlaneseq
    %v2237 = vshrl.u32 %v2236, 7
    %v2238 = vsub.s32 %v2149, %v2237
    %v2239 = vrot.slane %v1384, %v2238
    %v2240 = vsel %vm2154, %v2239, %v2235
    %v2241 = vlaneseq
    %v2242 = vshrl.u32 %v2241, 7
    %v2243 = vsub.s32 %v2156, %v2242
    %v2244 = vrot.slane %v1387, %v2243
    %v2245 = vsel %vm2161, %v2244, %v2240
    %v2246 = vlaneseq
    %v2247 = vshrl.u32 %v2246, 7
    %v2248 = vsub.s32 %v2163, %v2247
    %v2249 = vrot.slane %v1390, %v2248
    %v2250 = vsel %vm2168, %v2249, %v2245
    %v2251 = vlaneseq
    %v2252 = vshrl.u32 %v2251, 7
    %v2253 = vsub.s32 %v2170, %v2252
    %v2254 = vrot.slane %v1393, %v2253
    %v2255 = vsel %vm2175, %v2254, %v2250
    %v2256 = vlaneseq
    %v2257 = vshrl.u32 %v2256, 7
    %v2258 = vsub.s32 %v2067, %v2257
    %v2259 = vrot.slane %v1396, %v2258
    %v2260 = vlaneseq
    %v2261 = vshrl.u32 %v2260, 7
    %v2262 = vsub.s32 %v2072, %v2261
    %v2263 = vrot.slane %v1399, %v2262
    %v2264 = vsel %vm2077, %v2263, %v2259
    %v2265 = vlaneseq
    %v2266 = vshrl.u32 %v2265, 7
    %v2267 = vsub.s32 %v2079, %v2266
    %v2268 = vrot.slane %v1402, %v2267
    %v2269 = vsel %vm2084, %v2268, %v2264
    %v2270 = vlaneseq
    %v2271 = vshrl.u32 %v2270, 7
    %v2272 = vsub.s32 %v2086, %v2271
    %v2273 = vrot.slane %v1405, %v2272
    %v2274 = vsel %vm2091, %v2273, %v2269
    %v2275 = vlaneseq
    %v2276 = vshrl.u32 %v2275, 7
    %v2277 = vsub.s32 %v2093, %v2276
    %v2278 = vrot.slane %v1408, %v2277
    %v2279 = vsel %vm2098, %v2278, %v2274
    %v2280 = vlaneseq
    %v2281 = vshrl.u32 %v2280, 7
    %v2282 = vsub.s32 %v2100, %v2281
    %v2283 = vrot.slane %v1411, %v2282
    %v2284 = vsel %vm2105, %v2283, %v2279
    %v2285 = vlaneseq
    %v2286 = vshrl.u32 %v2285, 7
    %v2287 = vsub.s32 %v2107, %v2286
    %v2288 = vrot.slane %v1414, %v2287
    %v2289 = vsel %vm2112, %v2288, %v2284
    %v2290 = vlaneseq
    %v2291 = vshrl.u32 %v2290, 7
    %v2292 = vsub.s32 %v2114, %v2291
    %v2293 = vrot.slane %v1417, %v2292
    %v2294 = vsel %vm2119, %v2293, %v2289
    %v2295 = vlaneseq
    %v2296 = vshrl.u32 %v2295, 7
    %v2297 = vsub.s32 %v2121, %v2296
    %v2298 = vrot.slane %v1420, %v2297
    %v2299 = vsel %vm2126, %v2298, %v2294
    %v2300 = vlaneseq
    %v2301 = vshrl.u32 %v2300, 7
    %v2302 = vsub.s32 %v2128, %v2301
    %v2303 = vrot.slane %v1423, %v2302
    %v2304 = vsel %vm2133, %v2303, %v2299
    %v2305 = vlaneseq
    %v2306 = vshrl.u32 %v2305, 7
    %v2307 = vsub.s32 %v2135, %v2306
    %v2308 = vrot.slane %v1426, %v2307
    %v2309 = vsel %vm2140, %v2308, %v2304
    %v2310 = vlaneseq
    %v2311 = vshrl.u32 %v2310, 7
    %v2312 = vsub.s32 %v2142, %v2311
    %v2313 = vrot.slane %v1429, %v2312
    %v2314 = vsel %vm2147, %v2313, %v2309
    %v2315 = vlaneseq
    %v2316 = vshrl.u32 %v2315, 7
    %v2317 = vsub.s32 %v2149, %v2316
    %v2318 = vrot.slane %v1432, %v2317
    %v2319 = vsel %vm2154, %v2318, %v2314
    %v2320 = vlaneseq
    %v2321 = vshrl.u32 %v2320, 7
    %v2322 = vsub.s32 %v2156, %v2321
    %v2323 = vrot.slane %v1435, %v2322
    %v2324 = vsel %vm2161, %v2323, %v2319
    %v2325 = vlaneseq
    %v2326 = vshrl.u32 %v2325, 7
    %v2327 = vsub.s32 %v2163, %v2326
    %v2328 = vrot.slane %v1438, %v2327
    %v2329 = vsel %vm2168, %v2328, %v2324
    %v2330 = vlaneseq
    %v2331 = vshrl.u32 %v2330, 7
    %v2332 = vsub.s32 %v2170, %v2331
    %v2333 = vrot.slane %v1441, %v2332
    %v2334 = vsel %vm2175, %v2333, %v2329
    %v2335 = vlaneseq
    %v2336 = vshrl.u32 %v2335, 7
    %v2337 = vsub.s32 %v2067, %v2336
    %v2338 = vrot.slane %v1444, %v2337
    %v2339 = vlaneseq
    %v2340 = vshrl.u32 %v2339, 7
    %v2341 = vsub.s32 %v2072, %v2340
    %v2342 = vrot.slane %v1447, %v2341
    %v2343 = vsel %vm2077, %v2342, %v2338
    %v2344 = vlaneseq
    %v2345 = vshrl.u32 %v2344, 7
    %v2346 = vsub.s32 %v2079, %v2345
    %v2347 = vrot.slane %v1450, %v2346
    %v2348 = vsel %vm2084, %v2347, %v2343
    %v2349 = vlaneseq
    %v2350 = vshrl.u32 %v2349, 7
    %v2351 = vsub.s32 %v2086, %v2350
    %v2352 = vrot.slane %v1453, %v2351
    %v2353 = vsel %vm2091, %v2352, %v2348
    %v2354 = vlaneseq
    %v2355 = vshrl.u32 %v2354, 7
    %v2356 = vsub.s32 %v2093, %v2355
    %v2357 = vrot.slane %v1456, %v2356
    %v2358 = vsel %vm2098, %v2357, %v2353
    %v2359 = vlaneseq
    %v2360 = vshrl.u32 %v2359, 7
    %v2361 = vsub.s32 %v2100, %v2360
    %v2362 = vrot.slane %v1459, %v2361
    %v2363 = vsel %vm2105, %v2362, %v2358
    %v2364 = vlaneseq
    %v2365 = vshrl.u32 %v2364, 7
    %v2366 = vsub.s32 %v2107, %v2365
    %v2367 = vrot.slane %v1462, %v2366
    %v2368 = vsel %vm2112, %v2367, %v2363
    %v2369 = vlaneseq
    %v2370 = vshrl.u32 %v2369, 7
    %v2371 = vsub.s32 %v2114, %v2370
    %v2372 = vrot.slane %v1465, %v2371
    %v2373 = vsel %vm2119, %v2372, %v2368
    %v2374 = vlaneseq
    %v2375 = vshrl.u32 %v2374, 7
    %v2376 = vsub.s32 %v2121, %v2375
    %v2377 = vrot.slane %v1468, %v2376
    %v2378 = vsel %vm2126, %v2377, %v2373
    %v2379 = vlaneseq
    %v2380 = vshrl.u32 %v2379, 7
    %v2381 = vsub.s32 %v2128, %v2380
    %v2382 = vrot.slane %v1471, %v2381
    %v2383 = vsel %vm2133, %v2382, %v2378
    %v2384 = vlaneseq
    %v2385 = vshrl.u32 %v2384, 7
    %v2386 = vsub.s32 %v2135, %v2385
    %v2387 = vrot.slane %v1474, %v2386
    %v2388 = vsel %vm2140, %v2387, %v2383
    %v2389 = vlaneseq
    %v2390 = vshrl.u32 %v2389, 7
    %v2391 = vsub.s32 %v2142, %v2390
    %v2392 = vrot.slane %v1477, %v2391
    %v2393 = vsel %vm2147, %v2392, %v2388
    %v2394 = vlaneseq
    %v2395 = vshrl.u32 %v2394, 7
    %v2396 = vsub.s32 %v2149, %v2395
    %v2397 = vrot.slane %v1480, %v2396
    %v2398 = vsel %vm2154, %v2397, %v2393
    %v2399 = vlaneseq
    %v2400 = vshrl.u32 %v2399, 7
    %v2401 = vsub.s32 %v2156, %v2400
    %v2402 = vrot.slane %v1483, %v2401
    %v2403 = vsel %vm2161, %v2402, %v2398
    %v2404 = vlaneseq
    %v2405 = vshrl.u32 %v2404, 7
    %v2406 = vsub.s32 %v2163, %v2405
    %v2407 = vrot.slane %v1486, %v2406
    %v2408 = vsel %vm2168, %v2407, %v2403
    %v2409 = vlaneseq
    %v2410 = vshrl.u32 %v2409, 7
    %v2411 = vsub.s32 %v2170, %v2410
    %v2412 = vrot.slane %v1489, %v2411
    %v2413 = vsel %vm2175, %v2412, %v2408
    %v2414 = vlaneseq
    %v2415 = vshrl.u32 %v2414, 7
    %v2416 = vsub.s32 %v2067, %v2415
    %v2417 = vrot.slane %v1492, %v2416
    %v2418 = vlaneseq
    %v2419 = vshrl.u32 %v2418, 7
    %v2420 = vsub.s32 %v2072, %v2419
    %v2421 = vrot.slane %v1495, %v2420
    %v2422 = vsel %vm2077, %v2421, %v2417
    %v2423 = vlaneseq
    %v2424 = vshrl.u32 %v2423, 7
    %v2425 = vsub.s32 %v2079, %v2424
    %v2426 = vrot.slane %v1498, %v2425
    %v2427 = vsel %vm2084, %v2426, %v2422
    %v2428 = vlaneseq
    %v2429 = vshrl.u32 %v2428, 7
    %v2430 = vsub.s32 %v2086, %v2429
    %v2431 = vrot.slane %v1501, %v2430
    %v2432 = vsel %vm2091, %v2431, %v2427
    %v2433 = vlaneseq
    %v2434 = vshrl.u32 %v2433, 7
    %v2435 = vsub.s32 %v2093, %v2434
    %v2436 = vrot.slane %v1504, %v2435
    %v2437 = vsel %vm2098, %v2436, %v2432
    %v2438 = vlaneseq
    %v2439 = vshrl.u32 %v2438, 7
    %v2440 = vsub.s32 %v2100, %v2439
    %v2441 = vrot.slane %v1507, %v2440
    %v2442 = vsel %vm2105, %v2441, %v2437
    %v2443 = vlaneseq
    %v2444 = vshrl.u32 %v2443, 7
    %v2445 = vsub.s32 %v2107, %v2444
    %v2446 = vrot.slane %v1510, %v2445
    %v2447 = vsel %vm2112, %v2446, %v2442
    %v2448 = vlaneseq
    %v2449 = vshrl.u32 %v2448, 7
    %v2450 = vsub.s32 %v2114, %v2449
    %v2451 = vrot.slane %v1513, %v2450
    %v2452 = vsel %vm2119, %v2451, %v2447
    %v2453 = vlaneseq
    %v2454 = vshrl.u32 %v2453, 7
    %v2455 = vsub.s32 %v2121, %v2454
    %v2456 = vrot.slane %v1516, %v2455
    %v2457 = vsel %vm2126, %v2456, %v2452
    %v2458 = vlaneseq
    %v2459 = vshrl.u32 %v2458, 7
    %v2460 = vsub.s32 %v2128, %v2459
    %v2461 = vrot.slane %v1519, %v2460
    %v2462 = vsel %vm2133, %v2461, %v2457
    %v2463 = vlaneseq
    %v2464 = vshrl.u32 %v2463, 7
    %v2465 = vsub.s32 %v2135, %v2464
    %v2466 = vrot.slane %v1522, %v2465
    %v2467 = vsel %vm2140, %v2466, %v2462
    %v2468 = vlaneseq
    %v2469 = vshrl.u32 %v2468, 7
    %v2470 = vsub.s32 %v2142, %v2469
    %v2471 = vrot.slane %v1525, %v2470
    %v2472 = vsel %vm2147, %v2471, %v2467
    %v2473 = vlaneseq
    %v2474 = vshrl.u32 %v2473, 7
    %v2475 = vsub.s32 %v2149, %v2474
    %v2476 = vrot.slane %v1528, %v2475
    %v2477 = vsel %vm2154, %v2476, %v2472
    %v2478 = vlaneseq
    %v2479 = vshrl.u32 %v2478, 7
    %v2480 = vsub.s32 %v2156, %v2479
    %v2481 = vrot.slane %v1531, %v2480
    %v2482 = vsel %vm2161, %v2481, %v2477
    %v2483 = vlaneseq
    %v2484 = vshrl.u32 %v2483, 7
    %v2485 = vsub.s32 %v2163, %v2484
    %v2486 = vrot.slane %v1534, %v2485
    %v2487 = vsel %vm2168, %v2486, %v2482
    %v2488 = vlaneseq
    %v2489 = vshrl.u32 %v2488, 7
    %v2490 = vsub.s32 %v2170, %v2489
    %v2491 = vrot.slane %v1537, %v2490
    %v2492 = vsel %vm2175, %v2491, %v2487
    %v2493 = vlaneseq
    %v2494 = vshrl.u32 %v2493, 7
    %v2495 = vsub.s32 %v2067, %v2494
    %v2496 = vrot.slane %v1540, %v2495
    %v2497 = vlaneseq
    %v2498 = vshrl.u32 %v2497, 7
    %v2499 = vsub.s32 %v2072, %v2498
    %v2500 = vrot.slane %v1543, %v2499
    %v2501 = vsel %vm2077, %v2500, %v2496
    %v2502 = vlaneseq
    %v2503 = vshrl.u32 %v2502, 7
    %v2504 = vsub.s32 %v2079, %v2503
    %v2505 = vrot.slane %v1546, %v2504
    %v2506 = vsel %vm2084, %v2505, %v2501
    %v2507 = vlaneseq
    %v2508 = vshrl.u32 %v2507, 7
    %v2509 = vsub.s32 %v2086, %v2508
    %v2510 = vrot.slane %v1549, %v2509
    %v2511 = vsel %vm2091, %v2510, %v2506
    %v2512 = vlaneseq
    %v2513 = vshrl.u32 %v2512, 7
    %v2514 = vsub.s32 %v2093, %v2513
    %v2515 = vrot.slane %v1552, %v2514
    %v2516 = vsel %vm2098, %v2515, %v2511
    %v2517 = vlaneseq
    %v2518 = vshrl.u32 %v2517, 7
    %v2519 = vsub.s32 %v2100, %v2518
    %v2520 = vrot.slane %v1555, %v2519
    %v2521 = vsel %vm2105, %v2520, %v2516
    %v2522 = vlaneseq
    %v2523 = vshrl.u32 %v2522, 7
    %v2524 = vsub.s32 %v2107, %v2523
    %v2525 = vrot.slane %v1558, %v2524
    %v2526 = vsel %vm2112, %v2525, %v2521
    %v2527 = vlaneseq
    %v2528 = vshrl.u32 %v2527, 7
    %v2529 = vsub.s32 %v2114, %v2528
    %v2530 = vrot.slane %v1561, %v2529
    %v2531 = vsel %vm2119, %v2530, %v2526
    %v2532 = vlaneseq
    %v2533 = vshrl.u32 %v2532, 7
    %v2534 = vsub.s32 %v2121, %v2533
    %v2535 = vrot.slane %v1564, %v2534
    %v2536 = vsel %vm2126, %v2535, %v2531
    %v2537 = vlaneseq
    %v2538 = vshrl.u32 %v2537, 7
    %v2539 = vsub.s32 %v2128, %v2538
    %v2540 = vrot.slane %v1567, %v2539
    %v2541 = vsel %vm2133, %v2540, %v2536
    %v2542 = vlaneseq
    %v2543 = vshrl.u32 %v2542, 7
    %v2544 = vsub.s32 %v2135, %v2543
    %v2545 = vrot.slane %v1570, %v2544
    %v2546 = vsel %vm2140, %v2545, %v2541
    %v2547 = vlaneseq
    %v2548 = vshrl.u32 %v2547, 7
    %v2549 = vsub.s32 %v2142, %v2548
    %v2550 = vrot.slane %v1573, %v2549
    %v2551 = vsel %vm2147, %v2550, %v2546
    %v2552 = vlaneseq
    %v2553 = vshrl.u32 %v2552, 7
    %v2554 = vsub.s32 %v2149, %v2553
    %v2555 = vrot.slane %v1576, %v2554
    %v2556 = vsel %vm2154, %v2555, %v2551
    %v2557 = vlaneseq
    %v2558 = vshrl.u32 %v2557, 7
    %v2559 = vsub.s32 %v2156, %v2558
    %v2560 = vrot.slane %v1579, %v2559
    %v2561 = vsel %vm2161, %v2560, %v2556
    %v2562 = vlaneseq
    %v2563 = vshrl.u32 %v2562, 7
    %v2564 = vsub.s32 %v2163, %v2563
    %v2565 = vrot.slane %v1582, %v2564
    %v2566 = vsel %vm2168, %v2565, %v2561
    %v2567 = vlaneseq
    %v2568 = vshrl.u32 %v2567, 7
    %v2569 = vsub.s32 %v2170, %v2568
    %v2570 = vrot.slane %v1585, %v2569
    %v2571 = vsel %vm2175, %v2570, %v2566
    %v2572 = vlaneseq
    %v2573 = vshrl.u32 %v2572, 7
    %v2574 = vsub.s32 %v2067, %v2573
    %v2575 = vrot.slane %v1588, %v2574
    %v2576 = vlaneseq
    %v2577 = vshrl.u32 %v2576, 7
    %v2578 = vsub.s32 %v2072, %v2577
    %v2579 = vrot.slane %v1591, %v2578
    %v2580 = vsel %vm2077, %v2579, %v2575
    %v2581 = vlaneseq
    %v2582 = vshrl.u32 %v2581, 7
    %v2583 = vsub.s32 %v2079, %v2582
    %v2584 = vrot.slane %v1594, %v2583
    %v2585 = vsel %vm2084, %v2584, %v2580
    %v2586 = vlaneseq
    %v2587 = vshrl.u32 %v2586, 7
    %v2588 = vsub.s32 %v2086, %v2587
    %v2589 = vrot.slane %v1597, %v2588
    %v2590 = vsel %vm2091, %v2589, %v2585
    %v2591 = vlaneseq
    %v2592 = vshrl.u32 %v2591, 7
    %v2593 = vsub.s32 %v2093, %v2592
    %v2594 = vrot.slane %v1600, %v2593
    %v2595 = vsel %vm2098, %v2594, %v2590
    %v2596 = vlaneseq
    %v2597 = vshrl.u32 %v2596, 7
    %v2598 = vsub.s32 %v2100, %v2597
    %v2599 = vrot.slane %v1603, %v2598
    %v2600 = vsel %vm2105, %v2599, %v2595
    %v2601 = vlaneseq
    %v2602 = vshrl.u32 %v2601, 7
    %v2603 = vsub.s32 %v2107, %v2602
    %v2604 = vrot.slane %v1606, %v2603
    %v2605 = vsel %vm2112, %v2604, %v2600
    %v2606 = vlaneseq
    %v2607 = vshrl.u32 %v2606, 7
    %v2608 = vsub.s32 %v2114, %v2607
    %v2609 = vrot.slane %v1609, %v2608
    %v2610 = vsel %vm2119, %v2609, %v2605
    %v2611 = vlaneseq
    %v2612 = vshrl.u32 %v2611, 7
    %v2613 = vsub.s32 %v2121, %v2612
    %v2614 = vrot.slane %v1612, %v2613
    %v2615 = vsel %vm2126, %v2614, %v2610
    %v2616 = vlaneseq
    %v2617 = vshrl.u32 %v2616, 7
    %v2618 = vsub.s32 %v2128, %v2617
    %v2619 = vrot.slane %v1615, %v2618
    %v2620 = vsel %vm2133, %v2619, %v2615
    %v2621 = vlaneseq
    %v2622 = vshrl.u32 %v2621, 7
    %v2623 = vsub.s32 %v2135, %v2622
    %v2624 = vrot.slane %v1618, %v2623
    %v2625 = vsel %vm2140, %v2624, %v2620
    %v2626 = vlaneseq
    %v2627 = vshrl.u32 %v2626, 7
    %v2628 = vsub.s32 %v2142, %v2627
    %v2629 = vrot.slane %v1621, %v2628
    %v2630 = vsel %vm2147, %v2629, %v2625
    %v2631 = vlaneseq
    %v2632 = vshrl.u32 %v2631, 7
    %v2633 = vsub.s32 %v2149, %v2632
    %v2634 = vrot.slane %v1624, %v2633
    %v2635 = vsel %vm2154, %v2634, %v2630
    %v2636 = vlaneseq
    %v2637 = vshrl.u32 %v2636, 7
    %v2638 = vsub.s32 %v2156, %v2637
    %v2639 = vrot.slane %v1627, %v2638
    %v2640 = vsel %vm2161, %v2639, %v2635
    %v2641 = vlaneseq
    %v2642 = vshrl.u32 %v2641, 7
    %v2643 = vsub.s32 %v2163, %v2642
    %v2644 = vrot.slane %v1630, %v2643
    %v2645 = vsel %vm2168, %v2644, %v2640
    %v2646 = vlaneseq
    %v2647 = vshrl.u32 %v2646, 7
    %v2648 = vsub.s32 %v2170, %v2647
    %v2649 = vrot.slane %v1633, %v2648
    %v2650 = vsel %vm2175, %v2649, %v2645
    %v2651 = vlaneseq
    %v2652 = vshrl.u32 %v2651, 7
    %v2653 = vsub.s32 %v2067, %v2652
    %v2654 = vrot.slane %v1636, %v2653
    %v2655 = vlaneseq
    %v2656 = vshrl.u32 %v2655, 7
    %v2657 = vsub.s32 %v2072, %v2656
    %v2658 = vrot.slane %v1639, %v2657
    %v2659 = vsel %vm2077, %v2658, %v2654
    %v2660 = vlaneseq
    %v2661 = vshrl.u32 %v2660, 7
    %v2662 = vsub.s32 %v2079, %v2661
    %v2663 = vrot.slane %v1642, %v2662
    %v2664 = vsel %vm2084, %v2663, %v2659
    %v2665 = vlaneseq
    %v2666 = vshrl.u32 %v2665, 7
    %v2667 = vsub.s32 %v2086, %v2666
    %v2668 = vrot.slane %v1645, %v2667
    %v2669 = vsel %vm2091, %v2668, %v2664
    %v2670 = vlaneseq
    %v2671 = vshrl.u32 %v2670, 7
    %v2672 = vsub.s32 %v2093, %v2671
    %v2673 = vrot.slane %v1648, %v2672
    %v2674 = vsel %vm2098, %v2673, %v2669
    %v2675 = vlaneseq
    %v2676 = vshrl.u32 %v2675, 7
    %v2677 = vsub.s32 %v2100, %v2676
    %v2678 = vrot.slane %v1651, %v2677
    %v2679 = vsel %vm2105, %v2678, %v2674
    %v2680 = vlaneseq
    %v2681 = vshrl.u32 %v2680, 7
    %v2682 = vsub.s32 %v2107, %v2681
    %v2683 = vrot.slane %v1654, %v2682
    %v2684 = vsel %vm2112, %v2683, %v2679
    %v2685 = vlaneseq
    %v2686 = vshrl.u32 %v2685, 7
    %v2687 = vsub.s32 %v2114, %v2686
    %v2688 = vrot.slane %v1657, %v2687
    %v2689 = vsel %vm2119, %v2688, %v2684
    %v2690 = vlaneseq
    %v2691 = vshrl.u32 %v2690, 7
    %v2692 = vsub.s32 %v2121, %v2691
    %v2693 = vrot.slane %v1660, %v2692
    %v2694 = vsel %vm2126, %v2693, %v2689
    %v2695 = vlaneseq
    %v2696 = vshrl.u32 %v2695, 7
    %v2697 = vsub.s32 %v2128, %v2696
    %v2698 = vrot.slane %v1663, %v2697
    %v2699 = vsel %vm2133, %v2698, %v2694
    %v2700 = vlaneseq
    %v2701 = vshrl.u32 %v2700, 7
    %v2702 = vsub.s32 %v2135, %v2701
    %v2703 = vrot.slane %v1666, %v2702
    %v2704 = vsel %vm2140, %v2703, %v2699
    %v2705 = vlaneseq
    %v2706 = vshrl.u32 %v2705, 7
    %v2707 = vsub.s32 %v2142, %v2706
    %v2708 = vrot.slane %v1669, %v2707
    %v2709 = vsel %vm2147, %v2708, %v2704
    %v2710 = vlaneseq
    %v2711 = vshrl.u32 %v2710, 7
    %v2712 = vsub.s32 %v2149, %v2711
    %v2713 = vrot.slane %v1672, %v2712
    %v2714 = vsel %vm2154, %v2713, %v2709
    %v2715 = vlaneseq
    %v2716 = vshrl.u32 %v2715, 7
    %v2717 = vsub.s32 %v2156, %v2716
    %v2718 = vrot.slane %v1675, %v2717
    %v2719 = vsel %vm2161, %v2718, %v2714
    %v2720 = vlaneseq
    %v2721 = vshrl.u32 %v2720, 7
    %v2722 = vsub.s32 %v2163, %v2721
    %v2723 = vrot.slane %v1678, %v2722
    %v2724 = vsel %vm2168, %v2723, %v2719
    %v2725 = vlaneseq
    %v2726 = vshrl.u32 %v2725, 7
    %v2727 = vsub.s32 %v2170, %v2726
    %v2728 = vrot.slane %v1681, %v2727
    %v2729 = vsel %vm2175, %v2728, %v2724
    %v2730 = vlaneseq
    %v2731 = vshrl.u32 %v2730, 7
    %v2732 = vsub.s32 %v2067, %v2731
    %v2733 = vrot.slane %v1684, %v2732
    %v2734 = vlaneseq
    %v2735 = vshrl.u32 %v2734, 7
    %v2736 = vsub.s32 %v2072, %v2735
    %v2737 = vrot.slane %v1687, %v2736
    %v2738 = vsel %vm2077, %v2737, %v2733
    %v2739 = vlaneseq
    %v2740 = vshrl.u32 %v2739, 7
    %v2741 = vsub.s32 %v2079, %v2740
    %v2742 = vrot.slane %v1690, %v2741
    %v2743 = vsel %vm2084, %v2742, %v2738
    %v2744 = vlaneseq
    %v2745 = vshrl.u32 %v2744, 7
    %v2746 = vsub.s32 %v2086, %v2745
    %v2747 = vrot.slane %v1693, %v2746
    %v2748 = vsel %vm2091, %v2747, %v2743
    %v2749 = vlaneseq
    %v2750 = vshrl.u32 %v2749, 7
    %v2751 = vsub.s32 %v2093, %v2750
    %v2752 = vrot.slane %v1696, %v2751
    %v2753 = vsel %vm2098, %v2752, %v2748
    %v2754 = vlaneseq
    %v2755 = vshrl.u32 %v2754, 7
    %v2756 = vsub.s32 %v2100, %v2755
    %v2757 = vrot.slane %v1699, %v2756
    %v2758 = vsel %vm2105, %v2757, %v2753
    %v2759 = vlaneseq
    %v2760 = vshrl.u32 %v2759, 7
    %v2761 = vsub.s32 %v2107, %v2760
    %v2762 = vrot.slane %v1702, %v2761
    %v2763 = vsel %vm2112, %v2762, %v2758
    %v2764 = vlaneseq
    %v2765 = vshrl.u32 %v2764, 7
    %v2766 = vsub.s32 %v2114, %v2765
    %v2767 = vrot.slane %v1705, %v2766
    %v2768 = vsel %vm2119, %v2767, %v2763
    %v2769 = vlaneseq
    %v2770 = vshrl.u32 %v2769, 7
    %v2771 = vsub.s32 %v2121, %v2770
    %v2772 = vrot.slane %v1708, %v2771
    %v2773 = vsel %vm2126, %v2772, %v2768
    %v2774 = vlaneseq
    %v2775 = vshrl.u32 %v2774, 7
    %v2776 = vsub.s32 %v2128, %v2775
    %v2777 = vrot.slane %v1711, %v2776
    %v2778 = vsel %vm2133, %v2777, %v2773
    %v2779 = vlaneseq
    %v2780 = vshrl.u32 %v2779, 7
    %v2781 = vsub.s32 %v2135, %v2780
    %v2782 = vrot.slane %v1714, %v2781
    %v2783 = vsel %vm2140, %v2782, %v2778
    %v2784 = vlaneseq
    %v2785 = vshrl.u32 %v2784, 7
    %v2786 = vsub.s32 %v2142, %v2785
    %v2787 = vrot.slane %v1717, %v2786
    %v2788 = vsel %vm2147, %v2787, %v2783
    %v2789 = vlaneseq
    %v2790 = vshrl.u32 %v2789, 7
    %v2791 = vsub.s32 %v2149, %v2790
    %v2792 = vrot.slane %v1720, %v2791
    %v2793 = vsel %vm2154, %v2792, %v2788
    %v2794 = vlaneseq
    %v2795 = vshrl.u32 %v2794, 7
    %v2796 = vsub.s32 %v2156, %v2795
    %v2797 = vrot.slane %v1723, %v2796
    %v2798 = vsel %vm2161, %v2797, %v2793
    %v2799 = vlaneseq
    %v2800 = vshrl.u32 %v2799, 7
    %v2801 = vsub.s32 %v2163, %v2800
    %v2802 = vrot.slane %v1726, %v2801
    %v2803 = vsel %vm2168, %v2802, %v2798
    %v2804 = vlaneseq
    %v2805 = vshrl.u32 %v2804, 7
    %v2806 = vsub.s32 %v2170, %v2805
    %v2807 = vrot.slane %v1729, %v2806
    %v2808 = vsel %vm2175, %v2807, %v2803
    %v2809 = vlaneseq
    %v2810 = vshrl.u32 %v2809, 7
    %v2811 = vsub.s32 %v2067, %v2810
    %v2812 = vrot.slane %v1732, %v2811
    %v2813 = vlaneseq
    %v2814 = vshrl.u32 %v2813, 7
    %v2815 = vsub.s32 %v2072, %v2814
    %v2816 = vrot.slane %v1735, %v2815
    %v2817 = vsel %vm2077, %v2816, %v2812
    %v2818 = vlaneseq
    %v2819 = vshrl.u32 %v2818, 7
    %v2820 = vsub.s32 %v2079, %v2819
    %v2821 = vrot.slane %v1738, %v2820
    %v2822 = vsel %vm2084, %v2821, %v2817
    %v2823 = vlaneseq
    %v2824 = vshrl.u32 %v2823, 7
    %v2825 = vsub.s32 %v2086, %v2824
    %v2826 = vrot.slane %v1741, %v2825
    %v2827 = vsel %vm2091, %v2826, %v2822
    %v2828 = vlaneseq
    %v2829 = vshrl.u32 %v2828, 7
    %v2830 = vsub.s32 %v2093, %v2829
    %v2831 = vrot.slane %v1744, %v2830
    %v2832 = vsel %vm2098, %v2831, %v2827
    %v2833 = vlaneseq
    %v2834 = vshrl.u32 %v2833, 7
    %v2835 = vsub.s32 %v2100, %v2834
    %v2836 = vrot.slane %v1747, %v2835
    %v2837 = vsel %vm2105, %v2836, %v2832
    %v2838 = vlaneseq
    %v2839 = vshrl.u32 %v2838, 7
    %v2840 = vsub.s32 %v2107, %v2839
    %v2841 = vrot.slane %v1750, %v2840
    %v2842 = vsel %vm2112, %v2841, %v2837
    %v2843 = vlaneseq
    %v2844 = vshrl.u32 %v2843, 7
    %v2845 = vsub.s32 %v2114, %v2844
    %v2846 = vrot.slane %v1753, %v2845
    %v2847 = vsel %vm2119, %v2846, %v2842
    %v2848 = vlaneseq
    %v2849 = vshrl.u32 %v2848, 7
    %v2850 = vsub.s32 %v2121, %v2849
    %v2851 = vrot.slane %v1756, %v2850
    %v2852 = vsel %vm2126, %v2851, %v2847
    %v2853 = vlaneseq
    %v2854 = vshrl.u32 %v2853, 7
    %v2855 = vsub.s32 %v2128, %v2854
    %v2856 = vrot.slane %v1759, %v2855
    %v2857 = vsel %vm2133, %v2856, %v2852
    %v2858 = vlaneseq
    %v2859 = vshrl.u32 %v2858, 7
    %v2860 = vsub.s32 %v2135, %v2859
    %v2861 = vrot.slane %v1762, %v2860
    %v2862 = vsel %vm2140, %v2861, %v2857
    %v2863 = vlaneseq
    %v2864 = vshrl.u32 %v2863, 7
    %v2865 = vsub.s32 %v2142, %v2864
    %v2866 = vrot.slane %v1765, %v2865
    %v2867 = vsel %vm2147, %v2866, %v2862
    %v2868 = vlaneseq
    %v2869 = vshrl.u32 %v2868, 7
    %v2870 = vsub.s32 %v2149, %v2869
    %v2871 = vrot.slane %v1768, %v2870
    %v2872 = vsel %vm2154, %v2871, %v2867
    %v2873 = vlaneseq
    %v2874 = vshrl.u32 %v2873, 7
    %v2875 = vsub.s32 %v2156, %v2874
    %v2876 = vrot.slane %v1771, %v2875
    %v2877 = vsel %vm2161, %v2876, %v2872
    %v2878 = vlaneseq
    %v2879 = vshrl.u32 %v2878, 7
    %v2880 = vsub.s32 %v2163, %v2879
    %v2881 = vrot.slane %v1774, %v2880
    %v2882 = vsel %vm2168, %v2881, %v2877
    %v2883 = vlaneseq
    %v2884 = vshrl.u32 %v2883, 7
    %v2885 = vsub.s32 %v2170, %v2884
    %v2886 = vrot.slane %v1777, %v2885
    %v2887 = vsel %vm2175, %v2886, %v2882
    %v2888 = vlaneseq
    %v2889 = vshrl.u32 %v2888, 7
    %v2890 = vsub.s32 %v2067, %v2889
    %v2891 = vrot.slane %v1780, %v2890
    %v2892 = vlaneseq
    %v2893 = vshrl.u32 %v2892, 7
    %v2894 = vsub.s32 %v2072, %v2893
    %v2895 = vrot.slane %v1783, %v2894
    %v2896 = vsel %vm2077, %v2895, %v2891
    %v2897 = vlaneseq
    %v2898 = vshrl.u32 %v2897, 7
    %v2899 = vsub.s32 %v2079, %v2898
    %v2900 = vrot.slane %v1786, %v2899
    %v2901 = vsel %vm2084, %v2900, %v2896
    %v2902 = vlaneseq
    %v2903 = vshrl.u32 %v2902, 7
    %v2904 = vsub.s32 %v2086, %v2903
    %v2905 = vrot.slane %v1789, %v2904
    %v2906 = vsel %vm2091, %v2905, %v2901
    %v2907 = vlaneseq
    %v2908 = vshrl.u32 %v2907, 7
    %v2909 = vsub.s32 %v2093, %v2908
    %v2910 = vrot.slane %v1792, %v2909
    %v2911 = vsel %vm2098, %v2910, %v2906
    %v2912 = vlaneseq
    %v2913 = vshrl.u32 %v2912, 7
    %v2914 = vsub.s32 %v2100, %v2913
    %v2915 = vrot.slane %v1795, %v2914
    %v2916 = vsel %vm2105, %v2915, %v2911
    %v2917 = vlaneseq
    %v2918 = vshrl.u32 %v2917, 7
    %v2919 = vsub.s32 %v2107, %v2918
    %v2920 = vrot.slane %v1798, %v2919
    %v2921 = vsel %vm2112, %v2920, %v2916
    %v2922 = vlaneseq
    %v2923 = vshrl.u32 %v2922, 7
    %v2924 = vsub.s32 %v2114, %v2923
    %v2925 = vrot.slane %v1801, %v2924
    %v2926 = vsel %vm2119, %v2925, %v2921
    %v2927 = vlaneseq
    %v2928 = vshrl.u32 %v2927, 7
    %v2929 = vsub.s32 %v2121, %v2928
    %v2930 = vrot.slane %v1804, %v2929
    %v2931 = vsel %vm2126, %v2930, %v2926
    %v2932 = vlaneseq
    %v2933 = vshrl.u32 %v2932, 7
    %v2934 = vsub.s32 %v2128, %v2933
    %v2935 = vrot.slane %v1807, %v2934
    %v2936 = vsel %vm2133, %v2935, %v2931
    %v2937 = vlaneseq
    %v2938 = vshrl.u32 %v2937, 7
    %v2939 = vsub.s32 %v2135, %v2938
    %v2940 = vrot.slane %v1810, %v2939
    %v2941 = vsel %vm2140, %v2940, %v2936
    %v2942 = vlaneseq
    %v2943 = vshrl.u32 %v2942, 7
    %v2944 = vsub.s32 %v2142, %v2943
    %v2945 = vrot.slane %v1813, %v2944
    %v2946 = vsel %vm2147, %v2945, %v2941
    %v2947 = vlaneseq
    %v2948 = vshrl.u32 %v2947, 7
    %v2949 = vsub.s32 %v2149, %v2948
    %v2950 = vrot.slane %v1816, %v2949
    %v2951 = vsel %vm2154, %v2950, %v2946
    %v2952 = vlaneseq
    %v2953 = vshrl.u32 %v2952, 7
    %v2954 = vsub.s32 %v2156, %v2953
    %v2955 = vrot.slane %v1819, %v2954
    %v2956 = vsel %vm2161, %v2955, %v2951
    %v2957 = vlaneseq
    %v2958 = vshrl.u32 %v2957, 7
    %v2959 = vsub.s32 %v2163, %v2958
    %v2960 = vrot.slane %v1822, %v2959
    %v2961 = vsel %vm2168, %v2960, %v2956
    %v2962 = vlaneseq
    %v2963 = vshrl.u32 %v2962, 7
    %v2964 = vsub.s32 %v2170, %v2963
    %v2965 = vrot.slane %v1825, %v2964
    %v2966 = vsel %vm2175, %v2965, %v2961
    %v2967 = vlaneseq
    %v2968 = vshrl.u32 %v2967, 7
    %v2969 = vsub.s32 %v2067, %v2968
    %v2970 = vrot.slane %v1828, %v2969
    %v2971 = vlaneseq
    %v2972 = vshrl.u32 %v2971, 7
    %v2973 = vsub.s32 %v2072, %v2972
    %v2974 = vrot.slane %v1831, %v2973
    %v2975 = vsel %vm2077, %v2974, %v2970
    %v2976 = vlaneseq
    %v2977 = vshrl.u32 %v2976, 7
    %v2978 = vsub.s32 %v2079, %v2977
    %v2979 = vrot.slane %v1834, %v2978
    %v2980 = vsel %vm2084, %v2979, %v2975
    %v2981 = vlaneseq
    %v2982 = vshrl.u32 %v2981, 7
    %v2983 = vsub.s32 %v2086, %v2982
    %v2984 = vrot.slane %v1837, %v2983
    %v2985 = vsel %vm2091, %v2984, %v2980
    %v2986 = vlaneseq
    %v2987 = vshrl.u32 %v2986, 7
    %v2988 = vsub.s32 %v2093, %v2987
    %v2989 = vrot.slane %v1840, %v2988
    %v2990 = vsel %vm2098, %v2989, %v2985
    %v2991 = vlaneseq
    %v2992 = vshrl.u32 %v2991, 7
    %v2993 = vsub.s32 %v2100, %v2992
    %v2994 = vrot.slane %v1843, %v2993
    %v2995 = vsel %vm2105, %v2994, %v2990
    %v2996 = vlaneseq
    %v2997 = vshrl.u32 %v2996, 7
    %v2998 = vsub.s32 %v2107, %v2997
    %v2999 = vrot.slane %v1846, %v2998
    %v3000 = vsel %vm2112, %v2999, %v2995
    %v3001 = vlaneseq
    %v3002 = vshrl.u32 %v3001, 7
    %v3003 = vsub.s32 %v2114, %v3002
    %v3004 = vrot.slane %v1849, %v3003
    %v3005 = vsel %vm2119, %v3004, %v3000
    %v3006 = vlaneseq
    %v3007 = vshrl.u32 %v3006, 7
    %v3008 = vsub.s32 %v2121, %v3007
    %v3009 = vrot.slane %v1852, %v3008
    %v3010 = vsel %vm2126, %v3009, %v3005
    %v3011 = vlaneseq
    %v3012 = vshrl.u32 %v3011, 7
    %v3013 = vsub.s32 %v2128, %v3012
    %v3014 = vrot.slane %v1855, %v3013
    %v3015 = vsel %vm2133, %v3014, %v3010
    %v3016 = vlaneseq
    %v3017 = vshrl.u32 %v3016, 7
    %v3018 = vsub.s32 %v2135, %v3017
    %v3019 = vrot.slane %v1858, %v3018
    %v3020 = vsel %vm2140, %v3019, %v3015
    %v3021 = vlaneseq
    %v3022 = vshrl.u32 %v3021, 7
    %v3023 = vsub.s32 %v2142, %v3022
    %v3024 = vrot.slane %v1861, %v3023
    %v3025 = vsel %vm2147, %v3024, %v3020
    %v3026 = vlaneseq
    %v3027 = vshrl.u32 %v3026, 7
    %v3028 = vsub.s32 %v2149, %v3027
    %v3029 = vrot.slane %v1864, %v3028
    %v3030 = vsel %vm2154, %v3029, %v3025
    %v3031 = vlaneseq
    %v3032 = vshrl.u32 %v3031, 7
    %v3033 = vsub.s32 %v2156, %v3032
    %v3034 = vrot.slane %v1867, %v3033
    %v3035 = vsel %vm2161, %v3034, %v3030
    %v3036 = vlaneseq
    %v3037 = vshrl.u32 %v3036, 7
    %v3038 = vsub.s32 %v2163, %v3037
    %v3039 = vrot.slane %v1870, %v3038
    %v3040 = vsel %vm2168, %v3039, %v3035
    %v3041 = vlaneseq
    %v3042 = vshrl.u32 %v3041, 7
    %v3043 = vsub.s32 %v2170, %v3042
    %v3044 = vrot.slane %v1873, %v3043
    %v3045 = vsel %vm2175, %v3044, %v3040
    %v3046 = vlaneseq
    %v3047 = vshrl.u32 %v3046, 7
    %v3048 = vsub.s32 %v2067, %v3047
    %v3049 = vrot.slane %v1876, %v3048
    %v3050 = vlaneseq
    %v3051 = vshrl.u32 %v3050, 7
    %v3052 = vsub.s32 %v2072, %v3051
    %v3053 = vrot.slane %v1879, %v3052
    %v3054 = vsel %vm2077, %v3053, %v3049
    %v3055 = vlaneseq
    %v3056 = vshrl.u32 %v3055, 7
    %v3057 = vsub.s32 %v2079, %v3056
    %v3058 = vrot.slane %v1882, %v3057
    %v3059 = vsel %vm2084, %v3058, %v3054
    %v3060 = vlaneseq
    %v3061 = vshrl.u32 %v3060, 7
    %v3062 = vsub.s32 %v2086, %v3061
    %v3063 = vrot.slane %v1885, %v3062
    %v3064 = vsel %vm2091, %v3063, %v3059
    %v3065 = vlaneseq
    %v3066 = vshrl.u32 %v3065, 7
    %v3067 = vsub.s32 %v2093, %v3066
    %v3068 = vrot.slane %v1888, %v3067
    %v3069 = vsel %vm2098, %v3068, %v3064
    %v3070 = vlaneseq
    %v3071 = vshrl.u32 %v3070, 7
    %v3072 = vsub.s32 %v2100, %v3071
    %v3073 = vrot.slane %v1891, %v3072
    %v3074 = vsel %vm2105, %v3073, %v3069
    %v3075 = vlaneseq
    %v3076 = vshrl.u32 %v3075, 7
    %v3077 = vsub.s32 %v2107, %v3076
    %v3078 = vrot.slane %v1894, %v3077
    %v3079 = vsel %vm2112, %v3078, %v3074
    %v3080 = vlaneseq
    %v3081 = vshrl.u32 %v3080, 7
    %v3082 = vsub.s32 %v2114, %v3081
    %v3083 = vrot.slane %v1897, %v3082
    %v3084 = vsel %vm2119, %v3083, %v3079
    %v3085 = vlaneseq
    %v3086 = vshrl.u32 %v3085, 7
    %v3087 = vsub.s32 %v2121, %v3086
    %v3088 = vrot.slane %v1900, %v3087
    %v3089 = vsel %vm2126, %v3088, %v3084
    %v3090 = vlaneseq
    %v3091 = vshrl.u32 %v3090, 7
    %v3092 = vsub.s32 %v2128, %v3091
    %v3093 = vrot.slane %v1903, %v3092
    %v3094 = vsel %vm2133, %v3093, %v3089
    %v3095 = vlaneseq
    %v3096 = vshrl.u32 %v3095, 7
    %v3097 = vsub.s32 %v2135, %v3096
    %v3098 = vrot.slane %v1906, %v3097
    %v3099 = vsel %vm2140, %v3098, %v3094
    %v3100 = vlaneseq
    %v3101 = vshrl.u32 %v3100, 7
    %v3102 = vsub.s32 %v2142, %v3101
    %v3103 = vrot.slane %v1909, %v3102
    %v3104 = vsel %vm2147, %v3103, %v3099
    %v3105 = vlaneseq
    %v3106 = vshrl.u32 %v3105, 7
    %v3107 = vsub.s32 %v2149, %v3106
    %v3108 = vrot.slane %v1912, %v3107
    %v3109 = vsel %vm2154, %v3108, %v3104
    %v3110 = vlaneseq
    %v3111 = vshrl.u32 %v3110, 7
    %v3112 = vsub.s32 %v2156, %v3111
    %v3113 = vrot.slane %v1915, %v3112
    %v3114 = vsel %vm2161, %v3113, %v3109
    %v3115 = vlaneseq
    %v3116 = vshrl.u32 %v3115, 7
    %v3117 = vsub.s32 %v2163, %v3116
    %v3118 = vrot.slane %v1918, %v3117
    %v3119 = vsel %vm2168, %v3118, %v3114
    %v3120 = vlaneseq
    %v3121 = vshrl.u32 %v3120, 7
    %v3122 = vsub.s32 %v2170, %v3121
    %v3123 = vrot.slane %v1921, %v3122
    %v3124 = vsel %vm2175, %v3123, %v3119
    %v3125 = vlaneseq
    %v3126 = vshrl.u32 %v3125, 7
    %v3127 = vsub.s32 %v2067, %v3126
    %v3128 = vrot.slane %v1924, %v3127
    %v3129 = vlaneseq
    %v3130 = vshrl.u32 %v3129, 7
    %v3131 = vsub.s32 %v2072, %v3130
    %v3132 = vrot.slane %v1927, %v3131
    %v3133 = vsel %vm2077, %v3132, %v3128
    %v3134 = vlaneseq
    %v3135 = vshrl.u32 %v3134, 7
    %v3136 = vsub.s32 %v2079, %v3135
    %v3137 = vrot.slane %v1930, %v3136
    %v3138 = vsel %vm2084, %v3137, %v3133
    %v3139 = vlaneseq
    %v3140 = vshrl.u32 %v3139, 7
    %v3141 = vsub.s32 %v2086, %v3140
    %v3142 = vrot.slane %v1933, %v3141
    %v3143 = vsel %vm2091, %v3142, %v3138
    %v3144 = vlaneseq
    %v3145 = vshrl.u32 %v3144, 7
    %v3146 = vsub.s32 %v2093, %v3145
    %v3147 = vrot.slane %v1936, %v3146
    %v3148 = vsel %vm2098, %v3147, %v3143
    %v3149 = vlaneseq
    %v3150 = vshrl.u32 %v3149, 7
    %v3151 = vsub.s32 %v2100, %v3150
    %v3152 = vrot.slane %v1939, %v3151
    %v3153 = vsel %vm2105, %v3152, %v3148
    %v3154 = vlaneseq
    %v3155 = vshrl.u32 %v3154, 7
    %v3156 = vsub.s32 %v2107, %v3155
    %v3157 = vrot.slane %v1942, %v3156
    %v3158 = vsel %vm2112, %v3157, %v3153
    %v3159 = vlaneseq
    %v3160 = vshrl.u32 %v3159, 7
    %v3161 = vsub.s32 %v2114, %v3160
    %v3162 = vrot.slane %v1945, %v3161
    %v3163 = vsel %vm2119, %v3162, %v3158
    %v3164 = vlaneseq
    %v3165 = vshrl.u32 %v3164, 7
    %v3166 = vsub.s32 %v2121, %v3165
    %v3167 = vrot.slane %v1948, %v3166
    %v3168 = vsel %vm2126, %v3167, %v3163
    %v3169 = vlaneseq
    %v3170 = vshrl.u32 %v3169, 7
    %v3171 = vsub.s32 %v2128, %v3170
    %v3172 = vrot.slane %v1951, %v3171
    %v3173 = vsel %vm2133, %v3172, %v3168
    %v3174 = vlaneseq
    %v3175 = vshrl.u32 %v3174, 7
    %v3176 = vsub.s32 %v2135, %v3175
    %v3177 = vrot.slane %v1954, %v3176
    %v3178 = vsel %vm2140, %v3177, %v3173
    %v3179 = vlaneseq
    %v3180 = vshrl.u32 %v3179, 7
    %v3181 = vsub.s32 %v2142, %v3180
    %v3182 = vrot.slane %v1957, %v3181
    %v3183 = vsel %vm2147, %v3182, %v3178
    %v3184 = vlaneseq
    %v3185 = vshrl.u32 %v3184, 7
    %v3186 = vsub.s32 %v2149, %v3185
    %v3187 = vrot.slane %v1960, %v3186
    %v3188 = vsel %vm2154, %v3187, %v3183
    %v3189 = vlaneseq
    %v3190 = vshrl.u32 %v3189, 7
    %v3191 = vsub.s32 %v2156, %v3190
    %v3192 = vrot.slane %v1963, %v3191
    %v3193 = vsel %vm2161, %v3192, %v3188
    %v3194 = vlaneseq
    %v3195 = vshrl.u32 %v3194, 7
    %v3196 = vsub.s32 %v2163, %v3195
    %v3197 = vrot.slane %v1966, %v3196
    %v3198 = vsel %vm2168, %v3197, %v3193
    %v3199 = vlaneseq
    %v3200 = vshrl.u32 %v3199, 7
    %v3201 = vsub.s32 %v2170, %v3200
    %v3202 = vrot.slane %v1969, %v3201
    %v3203 = vsel %vm2175, %v3202, %v3198
    %v3204 = vlaneseq
    %v3205 = vshrl.u32 %v3204, 7
    %v3206 = vsub.s32 %v2067, %v3205
    %v3207 = vrot.slane %v1972, %v3206
    %v3208 = vlaneseq
    %v3209 = vshrl.u32 %v3208, 7
    %v3210 = vsub.s32 %v2072, %v3209
    %v3211 = vrot.slane %v1975, %v3210
    %v3212 = vsel %vm2077, %v3211, %v3207
    %v3213 = vlaneseq
    %v3214 = vshrl.u32 %v3213, 7
    %v3215 = vsub.s32 %v2079, %v3214
    %v3216 = vrot.slane %v1978, %v3215
    %v3217 = vsel %vm2084, %v3216, %v3212
    %v3218 = vlaneseq
    %v3219 = vshrl.u32 %v3218, 7
    %v3220 = vsub.s32 %v2086, %v3219
    %v3221 = vrot.slane %v1981, %v3220
    %v3222 = vsel %vm2091, %v3221, %v3217
    %v3223 = vlaneseq
    %v3224 = vshrl.u32 %v3223, 7
    %v3225 = vsub.s32 %v2093, %v3224
    %v3226 = vrot.slane %v1984, %v3225
    %v3227 = vsel %vm2098, %v3226, %v3222
    %v3228 = vlaneseq
    %v3229 = vshrl.u32 %v3228, 7
    %v3230 = vsub.s32 %v2100, %v3229
    %v3231 = vrot.slane %v1987, %v3230
    %v3232 = vsel %vm2105, %v3231, %v3227
    %v3233 = vlaneseq
    %v3234 = vshrl.u32 %v3233, 7
    %v3235 = vsub.s32 %v2107, %v3234
    %v3236 = vrot.slane %v1990, %v3235
    %v3237 = vsel %vm2112, %v3236, %v3232
    %v3238 = vlaneseq
    %v3239 = vshrl.u32 %v3238, 7
    %v3240 = vsub.s32 %v2114, %v3239
    %v3241 = vrot.slane %v1993, %v3240
    %v3242 = vsel %vm2119, %v3241, %v3237
    %v3243 = vlaneseq
    %v3244 = vshrl.u32 %v3243, 7
    %v3245 = vsub.s32 %v2121, %v3244
    %v3246 = vrot.slane %v1996, %v3245
    %v3247 = vsel %vm2126, %v3246, %v3242
    %v3248 = vlaneseq
    %v3249 = vshrl.u32 %v3248, 7
    %v3250 = vsub.s32 %v2128, %v3249
    %v3251 = vrot.slane %v1999, %v3250
    %v3252 = vsel %vm2133, %v3251, %v3247
    %v3253 = vlaneseq
    %v3254 = vshrl.u32 %v3253, 7
    %v3255 = vsub.s32 %v2135, %v3254
    %v3256 = vrot.slane %v2002, %v3255
    %v3257 = vsel %vm2140, %v3256, %v3252
    %v3258 = vlaneseq
    %v3259 = vshrl.u32 %v3258, 7
    %v3260 = vsub.s32 %v2142, %v3259
    %v3261 = vrot.slane %v2005, %v3260
    %v3262 = vsel %vm2147, %v3261, %v3257
    %v3263 = vlaneseq
    %v3264 = vshrl.u32 %v3263, 7
    %v3265 = vsub.s32 %v2149, %v3264
    %v3266 = vrot.slane %v2008, %v3265
    %v3267 = vsel %vm2154, %v3266, %v3262
    %v3268 = vlaneseq
    %v3269 = vshrl.u32 %v3268, 7
    %v3270 = vsub.s32 %v2156, %v3269
    %v3271 = vrot.slane %v2011, %v3270
    %v3272 = vsel %vm2161, %v3271, %v3267
    %v3273 = vlaneseq
    %v3274 = vshrl.u32 %v3273, 7
    %v3275 = vsub.s32 %v2163, %v3274
    %v3276 = vrot.slane %v2014, %v3275
    %v3277 = vsel %vm2168, %v3276, %v3272
    %v3278 = vlaneseq
    %v3279 = vshrl.u32 %v3278, 7
    %v3280 = vsub.s32 %v2170, %v3279
    %v3281 = vrot.slane %v2017, %v3280
    %v3282 = vsel %vm2175, %v3281, %v3277
    %v3283 = vlaneseq
    %v3284 = vshrl.u32 %v3283, 7
    %v3285 = vsub.s32 %v2067, %v3284
    %v3286 = vrot.slane %v2020, %v3285
    %v3287 = vlaneseq
    %v3288 = vshrl.u32 %v3287, 7
    %v3289 = vsub.s32 %v2072, %v3288
    %v3290 = vrot.slane %v2023, %v3289
    %v3291 = vsel %vm2077, %v3290, %v3286
    %v3292 = vlaneseq
    %v3293 = vshrl.u32 %v3292, 7
    %v3294 = vsub.s32 %v2079, %v3293
    %v3295 = vrot.slane %v2026, %v3294
    %v3296 = vsel %vm2084, %v3295, %v3291
    %v3297 = vlaneseq
    %v3298 = vshrl.u32 %v3297, 7
    %v3299 = vsub.s32 %v2086, %v3298
    %v3300 = vrot.slane %v2029, %v3299
    %v3301 = vsel %vm2091, %v3300, %v3296
    %v3302 = vlaneseq
    %v3303 = vshrl.u32 %v3302, 7
    %v3304 = vsub.s32 %v2093, %v3303
    %v3305 = vrot.slane %v2032, %v3304
    %v3306 = vsel %vm2098, %v3305, %v3301
    %v3307 = vlaneseq
    %v3308 = vshrl.u32 %v3307, 7
    %v3309 = vsub.s32 %v2100, %v3308
    %v3310 = vrot.slane %v2035, %v3309
    %v3311 = vsel %vm2105, %v3310, %v3306
    %v3312 = vlaneseq
    %v3313 = vshrl.u32 %v3312, 7
    %v3314 = vsub.s32 %v2107, %v3313
    %v3315 = vrot.slane %v2038, %v3314
    %v3316 = vsel %vm2112, %v3315, %v3311
    %v3317 = vlaneseq
    %v3318 = vshrl.u32 %v3317, 7
    %v3319 = vsub.s32 %v2114, %v3318
    %v3320 = vrot.slane %v2041, %v3319
    %v3321 = vsel %vm2119, %v3320, %v3316
    %v3322 = vlaneseq
    %v3323 = vshrl.u32 %v3322, 7
    %v3324 = vsub.s32 %v2121, %v3323
    %v3325 = vrot.slane %v2044, %v3324
    %v3326 = vsel %vm2126, %v3325, %v3321
    %v3327 = vlaneseq
    %v3328 = vshrl.u32 %v3327, 7
    %v3329 = vsub.s32 %v2128, %v3328
    %v3330 = vrot.slane %v2047, %v3329
    %v3331 = vsel %vm2133, %v3330, %v3326
    %v3332 = vlaneseq
    %v3333 = vshrl.u32 %v3332, 7
    %v3334 = vsub.s32 %v2135, %v3333
    %v3335 = vrot.slane %v2050, %v3334
    %v3336 = vsel %vm2140, %v3335, %v3331
    %v3337 = vlaneseq
    %v3338 = vshrl.u32 %v3337, 7
    %v3339 = vsub.s32 %v2142, %v3338
    %v3340 = vrot.slane %v2053, %v3339
    %v3341 = vsel %vm2147, %v3340, %v3336
    %v3342 = vlaneseq
    %v3343 = vshrl.u32 %v3342, 7
    %v3344 = vsub.s32 %v2149, %v3343
    %v3345 = vrot.slane %v2056, %v3344
    %v3346 = vsel %vm2154, %v3345, %v3341
    %v3347 = vlaneseq
    %v3348 = vshrl.u32 %v3347, 7
    %v3349 = vsub.s32 %v2156, %v3348
    %v3350 = vrot.slane %v2059, %v3349
    %v3351 = vsel %vm2161, %v3350, %v3346
    %v3352 = vlaneseq
    %v3353 = vshrl.u32 %v3352, 7
    %v3354 = vsub.s32 %v2163, %v3353
    %v3355 = vrot.slane %v2062, %v3354
    %v3356 = vsel %vm2168, %v3355, %v3351
    %v3357 = vlaneseq
    %v3358 = vshrl.u32 %v3357, 7
    %v3359 = vsub.s32 %v2170, %v3358
    %v3360 = vrot.slane %v2065, %v3359
    %v3361 = vsel %vm2175, %v3360, %v3356
    %vm3362 = vcmask 1041409
    %v3363 = vsel %vm3362, %v2808, %v2176
    %v3364 = vsel %vm3362, %v2887, %v2255
    %v3365 = vsel %vm3362, %v2966, %v2334
    %v3366 = vsel %vm3362, %v3045, %v2413
    %v3367 = vsel %vm3362, %v3124, %v2492
    %v3368 = vsel %vm3362, %v3203, %v2571
    %v3369 = vsel %vm3362, %v3282, %v2650
    %v3370 = vsel %vm3362, %v3361, %v2729
    %v3379 = vadd.f32 %v77, %v3363
    %v3380 = vadd.f32 %v81, %v3364
    %v3381 = vadd.f32 %v85, %v3365
    %v3382 = vadd.f32 %v89, %v3366
    %v3383 = vadd.f32 %v93, %v3367
    %v3384 = vadd.f32 %v97, %v3368
    %v3385 = vadd.f32 %v101, %v3369
    %v3386 = vadd.f32 %v105, %v3370
    %v3387 = vlaneseq
    %v3388 = vshrl.u32 %v3387, 7
    %v3389 = vsub.s32 1, %v3388
    %v3390 = vrot.slane %v72, %v3389
    %v3391 = vlaneseq
    %v3392 = vshrl.u32 %v3391, 7
    %v3393 = vsub.s32 1, %v3392
    %v3394 = vrot.slane %v73, %v3393
    %v3395 = vlaneseq
    %v3396 = vshrl.u32 %v3395, 7
    %v3397 = vsub.s32 1, %v3396
    %v3398 = vrot.slane %v40, %v3397
    %v3399 = vlaneseq
    %v3400 = vshrl.u32 %v3399, 7
    %v3401 = vsub.s32 1, %v3400
    %v3402 = vrot.slane %v41, %v3401
    %v3403 = vlaneseq
    %v3404 = vshrl.u32 %v3403, 7
    %v3405 = vsub.s32 1, %v3404
    %v3406 = vrot.slane %v42, %v3405
    %v3407 = vlaneseq
    %v3408 = vshrl.u32 %v3407, 7
    %v3409 = vsub.s32 1, %v3408
    %v3410 = vrot.slane %v43, %v3409
    %v3411 = vlaneseq
    %v3412 = vshrl.u32 %v3411, 7
    %v3413 = vsub.s32 1, %v3412
    %v3414 = vrot.slane %v44, %v3413
    %v3415 = vlaneseq
    %v3416 = vshrl.u32 %v3415, 7
    %v3417 = vsub.s32 1, %v3416
    %v3418 = vrot.slane %v45, %v3417
    %v3419 = vlaneseq
    %v3420 = vshrl.u32 %v3419, 7
    %v3421 = vsub.s32 1, %v3420
    %v3422 = vrot.slane %v46, %v3421
    %v3423 = vlaneseq
    %v3424 = vshrl.u32 %v3423, 7
    %v3425 = vsub.s32 1, %v3424
    %v3426 = vrot.slane %v47, %v3425
    %3436 = vbcast.lane.b32.xlu0 %v3398, 256
    %v3437 = vpop.permute.xlu0 %3436
    %s3439 = sor.u32 256, 8
    %3440 = vbcast.lane.b32.xlu0 %v3398, %s3439
    %v3441 = vpop.permute.xlu0 %3440
    %s3443 = sor.u32 256, 16
    %3444 = vbcast.lane.b32.xlu0 %v3398, %s3443
    %v3445 = vpop.permute.xlu0 %3444
    %s3447 = sor.u32 256, 24
    %3448 = vbcast.lane.b32.xlu0 %v3398, %s3447
    %v3449 = vpop.permute.xlu0 %3448
    %s3451 = sor.u32 256, 32
    %3452 = vbcast.lane.b32.xlu0 %v3398, %s3451
    %v3453 = vpop.permute.xlu0 %3452
    %s3455 = sor.u32 256, 40
    %3456 = vbcast.lane.b32.xlu0 %v3398, %s3455
    %v3457 = vpop.permute.xlu0 %3456
    %s3459 = sor.u32 256, 48
    %3460 = vbcast.lane.b32.xlu0 %v3398, %s3459
    %v3461 = vpop.permute.xlu0 %3460
    %s3463 = sor.u32 256, 56
    %3464 = vbcast.lane.b32.xlu0 %v3398, %s3463
    %v3465 = vpop.permute.xlu0 %3464
    %s3467 = sor.u32 256, 64
    %3468 = vbcast.lane.b32.xlu0 %v3398, %s3467
    %v3469 = vpop.permute.xlu0 %3468
    %s3471 = sor.u32 256, 72
    %3472 = vbcast.lane.b32.xlu0 %v3398, %s3471
    %v3473 = vpop.permute.xlu0 %3472
    %s3475 = sor.u32 256, 80
    %3476 = vbcast.lane.b32.xlu0 %v3398, %s3475
    %v3477 = vpop.permute.xlu0 %3476
    %s3479 = sor.u32 256, 88
    %3480 = vbcast.lane.b32.xlu0 %v3398, %s3479
    %v3481 = vpop.permute.xlu0 %3480
    %s3483 = sor.u32 256, 96
    %3484 = vbcast.lane.b32.xlu0 %v3398, %s3483
    %v3485 = vpop.permute.xlu0 %3484
    %s3487 = sor.u32 256, 104
    %3488 = vbcast.lane.b32.xlu0 %v3398, %s3487
    %v3489 = vpop.permute.xlu0 %3488
    %s3491 = sor.u32 256, 112
    %3492 = vbcast.lane.b32.xlu0 %v3398, %s3491
    %v3493 = vpop.permute.xlu0 %3492
    %s3495 = sor.u32 256, 120
    %3496 = vbcast.lane.b32.xlu0 %v3398, %s3495
    %v3497 = vpop.permute.xlu0 %3496
    %3499 = vbcast.lane.b32.xlu0 %v3402, 256
    %v3500 = vpop.permute.xlu0 %3499
    %s3502 = sor.u32 256, 8
    %3503 = vbcast.lane.b32.xlu0 %v3402, %s3502
    %v3504 = vpop.permute.xlu0 %3503
    %s3506 = sor.u32 256, 16
    %3507 = vbcast.lane.b32.xlu0 %v3402, %s3506
    %v3508 = vpop.permute.xlu0 %3507
    %s3510 = sor.u32 256, 24
    %3511 = vbcast.lane.b32.xlu0 %v3402, %s3510
    %v3512 = vpop.permute.xlu0 %3511
    %s3514 = sor.u32 256, 32
    %3515 = vbcast.lane.b32.xlu0 %v3402, %s3514
    %v3516 = vpop.permute.xlu0 %3515
    %s3518 = sor.u32 256, 40
    %3519 = vbcast.lane.b32.xlu0 %v3402, %s3518
    %v3520 = vpop.permute.xlu0 %3519
    %s3522 = sor.u32 256, 48
    %3523 = vbcast.lane.b32.xlu0 %v3402, %s3522
    %v3524 = vpop.permute.xlu0 %3523
    %s3526 = sor.u32 256, 56
    %3527 = vbcast.lane.b32.xlu0 %v3402, %s3526
    %v3528 = vpop.permute.xlu0 %3527
    %s3530 = sor.u32 256, 64
    %3531 = vbcast.lane.b32.xlu0 %v3402, %s3530
    %v3532 = vpop.permute.xlu0 %3531
    %s3534 = sor.u32 256, 72
    %3535 = vbcast.lane.b32.xlu0 %v3402, %s3534
    %v3536 = vpop.permute.xlu0 %3535
    %s3538 = sor.u32 256, 80
    %3539 = vbcast.lane.b32.xlu0 %v3402, %s3538
    %v3540 = vpop.permute.xlu0 %3539
    %s3542 = sor.u32 256, 88
    %3543 = vbcast.lane.b32.xlu0 %v3402, %s3542
    %v3544 = vpop.permute.xlu0 %3543
    %s3546 = sor.u32 256, 96
    %3547 = vbcast.lane.b32.xlu0 %v3402, %s3546
    %v3548 = vpop.permute.xlu0 %3547
    %s3550 = sor.u32 256, 104
    %3551 = vbcast.lane.b32.xlu0 %v3402, %s3550
    %v3552 = vpop.permute.xlu0 %3551
    %s3554 = sor.u32 256, 112
    %3555 = vbcast.lane.b32.xlu0 %v3402, %s3554
    %v3556 = vpop.permute.xlu0 %3555
    %s3558 = sor.u32 256, 120
    %3559 = vbcast.lane.b32.xlu0 %v3402, %s3558
    %v3560 = vpop.permute.xlu0 %3559
    %3562 = vbcast.lane.b32.xlu0 %v3406, 256
    %v3563 = vpop.permute.xlu0 %3562
    %s3565 = sor.u32 256, 8
    %3566 = vbcast.lane.b32.xlu0 %v3406, %s3565
    %v3567 = vpop.permute.xlu0 %3566
    %s3569 = sor.u32 256, 16
    %3570 = vbcast.lane.b32.xlu0 %v3406, %s3569
    %v3571 = vpop.permute.xlu0 %3570
    %s3573 = sor.u32 256, 24
    %3574 = vbcast.lane.b32.xlu0 %v3406, %s3573
    %v3575 = vpop.permute.xlu0 %3574
    %s3577 = sor.u32 256, 32
    %3578 = vbcast.lane.b32.xlu0 %v3406, %s3577
    %v3579 = vpop.permute.xlu0 %3578
    %s3581 = sor.u32 256, 40
    %3582 = vbcast.lane.b32.xlu0 %v3406, %s3581
    %v3583 = vpop.permute.xlu0 %3582
    %s3585 = sor.u32 256, 48
    %3586 = vbcast.lane.b32.xlu0 %v3406, %s3585
    %v3587 = vpop.permute.xlu0 %3586
    %s3589 = sor.u32 256, 56
    %3590 = vbcast.lane.b32.xlu0 %v3406, %s3589
    %v3591 = vpop.permute.xlu0 %3590
    %s3593 = sor.u32 256, 64
    %3594 = vbcast.lane.b32.xlu0 %v3406, %s3593
    %v3595 = vpop.permute.xlu0 %3594
    %s3597 = sor.u32 256, 72
    %3598 = vbcast.lane.b32.xlu0 %v3406, %s3597
    %v3599 = vpop.permute.xlu0 %3598
    %s3601 = sor.u32 256, 80
    %3602 = vbcast.lane.b32.xlu0 %v3406, %s3601
    %v3603 = vpop.permute.xlu0 %3602
    %s3605 = sor.u32 256, 88
    %3606 = vbcast.lane.b32.xlu0 %v3406, %s3605
    %v3607 = vpop.permute.xlu0 %3606
    %s3609 = sor.u32 256, 96
    %3610 = vbcast.lane.b32.xlu0 %v3406, %s3609
    %v3611 = vpop.permute.xlu0 %3610
    %s3613 = sor.u32 256, 104
    %3614 = vbcast.lane.b32.xlu0 %v3406, %s3613
    %v3615 = vpop.permute.xlu0 %3614
    %s3617 = sor.u32 256, 112
    %3618 = vbcast.lane.b32.xlu0 %v3406, %s3617
    %v3619 = vpop.permute.xlu0 %3618
    %s3621 = sor.u32 256, 120
    %3622 = vbcast.lane.b32.xlu0 %v3406, %s3621
    %v3623 = vpop.permute.xlu0 %3622
    %3625 = vbcast.lane.b32.xlu0 %v3410, 256
    %v3626 = vpop.permute.xlu0 %3625
    %s3628 = sor.u32 256, 8
    %3629 = vbcast.lane.b32.xlu0 %v3410, %s3628
    %v3630 = vpop.permute.xlu0 %3629
    %s3632 = sor.u32 256, 16
    %3633 = vbcast.lane.b32.xlu0 %v3410, %s3632
    %v3634 = vpop.permute.xlu0 %3633
    %s3636 = sor.u32 256, 24
    %3637 = vbcast.lane.b32.xlu0 %v3410, %s3636
    %v3638 = vpop.permute.xlu0 %3637
    %s3640 = sor.u32 256, 32
    %3641 = vbcast.lane.b32.xlu0 %v3410, %s3640
    %v3642 = vpop.permute.xlu0 %3641
    %s3644 = sor.u32 256, 40
    %3645 = vbcast.lane.b32.xlu0 %v3410, %s3644
    %v3646 = vpop.permute.xlu0 %3645
    %s3648 = sor.u32 256, 48
    %3649 = vbcast.lane.b32.xlu0 %v3410, %s3648
    %v3650 = vpop.permute.xlu0 %3649
    %s3652 = sor.u32 256, 56
    %3653 = vbcast.lane.b32.xlu0 %v3410, %s3652
    %v3654 = vpop.permute.xlu0 %3653
    %s3656 = sor.u32 256, 64
    %3657 = vbcast.lane.b32.xlu0 %v3410, %s3656
    %v3658 = vpop.permute.xlu0 %3657
    %s3660 = sor.u32 256, 72
    %3661 = vbcast.lane.b32.xlu0 %v3410, %s3660
    %v3662 = vpop.permute.xlu0 %3661
    %s3664 = sor.u32 256, 80
    %3665 = vbcast.lane.b32.xlu0 %v3410, %s3664
    %v3666 = vpop.permute.xlu0 %3665
    %s3668 = sor.u32 256, 88
    %3669 = vbcast.lane.b32.xlu0 %v3410, %s3668
    %v3670 = vpop.permute.xlu0 %3669
    %s3672 = sor.u32 256, 96
    %3673 = vbcast.lane.b32.xlu0 %v3410, %s3672
    %v3674 = vpop.permute.xlu0 %3673
    %s3676 = sor.u32 256, 104
    %3677 = vbcast.lane.b32.xlu0 %v3410, %s3676
    %v3678 = vpop.permute.xlu0 %3677
    %s3680 = sor.u32 256, 112
    %3681 = vbcast.lane.b32.xlu0 %v3410, %s3680
    %v3682 = vpop.permute.xlu0 %3681
    %s3684 = sor.u32 256, 120
    %3685 = vbcast.lane.b32.xlu0 %v3410, %s3684
    %v3686 = vpop.permute.xlu0 %3685
    %3688 = vbcast.lane.b32.xlu0 %v3414, 256
    %v3689 = vpop.permute.xlu0 %3688
    %s3691 = sor.u32 256, 8
    %3692 = vbcast.lane.b32.xlu0 %v3414, %s3691
    %v3693 = vpop.permute.xlu0 %3692
    %s3695 = sor.u32 256, 16
    %3696 = vbcast.lane.b32.xlu0 %v3414, %s3695
    %v3697 = vpop.permute.xlu0 %3696
    %s3699 = sor.u32 256, 24
    %3700 = vbcast.lane.b32.xlu0 %v3414, %s3699
    %v3701 = vpop.permute.xlu0 %3700
    %s3703 = sor.u32 256, 32
    %3704 = vbcast.lane.b32.xlu0 %v3414, %s3703
    %v3705 = vpop.permute.xlu0 %3704
    %s3707 = sor.u32 256, 40
    %3708 = vbcast.lane.b32.xlu0 %v3414, %s3707
    %v3709 = vpop.permute.xlu0 %3708
    %s3711 = sor.u32 256, 48
    %3712 = vbcast.lane.b32.xlu0 %v3414, %s3711
    %v3713 = vpop.permute.xlu0 %3712
    %s3715 = sor.u32 256, 56
    %3716 = vbcast.lane.b32.xlu0 %v3414, %s3715
    %v3717 = vpop.permute.xlu0 %3716
    %s3719 = sor.u32 256, 64
    %3720 = vbcast.lane.b32.xlu0 %v3414, %s3719
    %v3721 = vpop.permute.xlu0 %3720
    %s3723 = sor.u32 256, 72
    %3724 = vbcast.lane.b32.xlu0 %v3414, %s3723
    %v3725 = vpop.permute.xlu0 %3724
    %s3727 = sor.u32 256, 80
    %3728 = vbcast.lane.b32.xlu0 %v3414, %s3727
    %v3729 = vpop.permute.xlu0 %3728
    %s3731 = sor.u32 256, 88
    %3732 = vbcast.lane.b32.xlu0 %v3414, %s3731
    %v3733 = vpop.permute.xlu0 %3732
    %s3735 = sor.u32 256, 96
    %3736 = vbcast.lane.b32.xlu0 %v3414, %s3735
    %v3737 = vpop.permute.xlu0 %3736
    %s3739 = sor.u32 256, 104
    %3740 = vbcast.lane.b32.xlu0 %v3414, %s3739
    %v3741 = vpop.permute.xlu0 %3740
    %s3743 = sor.u32 256, 112
    %3744 = vbcast.lane.b32.xlu0 %v3414, %s3743
    %v3745 = vpop.permute.xlu0 %3744
    %s3747 = sor.u32 256, 120
    %3748 = vbcast.lane.b32.xlu0 %v3414, %s3747
    %v3749 = vpop.permute.xlu0 %3748
    %3751 = vbcast.lane.b32.xlu0 %v3418, 256
    %v3752 = vpop.permute.xlu0 %3751
    %s3754 = sor.u32 256, 8
    %3755 = vbcast.lane.b32.xlu0 %v3418, %s3754
    %v3756 = vpop.permute.xlu0 %3755
    %s3758 = sor.u32 256, 16
    %3759 = vbcast.lane.b32.xlu0 %v3418, %s3758
    %v3760 = vpop.permute.xlu0 %3759
    %s3762 = sor.u32 256, 24
    %3763 = vbcast.lane.b32.xlu0 %v3418, %s3762
    %v3764 = vpop.permute.xlu0 %3763
    %s3766 = sor.u32 256, 32
    %3767 = vbcast.lane.b32.xlu0 %v3418, %s3766
    %v3768 = vpop.permute.xlu0 %3767
    %s3770 = sor.u32 256, 40
    %3771 = vbcast.lane.b32.xlu0 %v3418, %s3770
    %v3772 = vpop.permute.xlu0 %3771
    %s3774 = sor.u32 256, 48
    %3775 = vbcast.lane.b32.xlu0 %v3418, %s3774
    %v3776 = vpop.permute.xlu0 %3775
    %s3778 = sor.u32 256, 56
    %3779 = vbcast.lane.b32.xlu0 %v3418, %s3778
    %v3780 = vpop.permute.xlu0 %3779
    %s3782 = sor.u32 256, 64
    %3783 = vbcast.lane.b32.xlu0 %v3418, %s3782
    %v3784 = vpop.permute.xlu0 %3783
    %s3786 = sor.u32 256, 72
    %3787 = vbcast.lane.b32.xlu0 %v3418, %s3786
    %v3788 = vpop.permute.xlu0 %3787
    %s3790 = sor.u32 256, 80
    %3791 = vbcast.lane.b32.xlu0 %v3418, %s3790
    %v3792 = vpop.permute.xlu0 %3791
    %s3794 = sor.u32 256, 88
    %3795 = vbcast.lane.b32.xlu0 %v3418, %s3794
    %v3796 = vpop.permute.xlu0 %3795
    %s3798 = sor.u32 256, 96
    %3799 = vbcast.lane.b32.xlu0 %v3418, %s3798
    %v3800 = vpop.permute.xlu0 %3799
    %s3802 = sor.u32 256, 104
    %3803 = vbcast.lane.b32.xlu0 %v3418, %s3802
    %v3804 = vpop.permute.xlu0 %3803
    %s3806 = sor.u32 256, 112
    %3807 = vbcast.lane.b32.xlu0 %v3418, %s3806
    %v3808 = vpop.permute.xlu0 %3807
    %s3810 = sor.u32 256, 120
    %3811 = vbcast.lane.b32.xlu0 %v3418, %s3810
    %v3812 = vpop.permute.xlu0 %3811
    %3814 = vbcast.lane.b32.xlu0 %v3422, 256
    %v3815 = vpop.permute.xlu0 %3814
    %s3817 = sor.u32 256, 8
    %3818 = vbcast.lane.b32.xlu0 %v3422, %s3817
    %v3819 = vpop.permute.xlu0 %3818
    %s3821 = sor.u32 256, 16
    %3822 = vbcast.lane.b32.xlu0 %v3422, %s3821
    %v3823 = vpop.permute.xlu0 %3822
    %s3825 = sor.u32 256, 24
    %3826 = vbcast.lane.b32.xlu0 %v3422, %s3825
    %v3827 = vpop.permute.xlu0 %3826
    %s3829 = sor.u32 256, 32
    %3830 = vbcast.lane.b32.xlu0 %v3422, %s3829
    %v3831 = vpop.permute.xlu0 %3830
    %s3833 = sor.u32 256, 40
    %3834 = vbcast.lane.b32.xlu0 %v3422, %s3833
    %v3835 = vpop.permute.xlu0 %3834
    %s3837 = sor.u32 256, 48
    %3838 = vbcast.lane.b32.xlu0 %v3422, %s3837
    %v3839 = vpop.permute.xlu0 %3838
    %s3841 = sor.u32 256, 56
    %3842 = vbcast.lane.b32.xlu0 %v3422, %s3841
    %v3843 = vpop.permute.xlu0 %3842
    %s3845 = sor.u32 256, 64
    %3846 = vbcast.lane.b32.xlu0 %v3422, %s3845
    %v3847 = vpop.permute.xlu0 %3846
    %s3849 = sor.u32 256, 72
    %3850 = vbcast.lane.b32.xlu0 %v3422, %s3849
    %v3851 = vpop.permute.xlu0 %3850
    %s3853 = sor.u32 256, 80
    %3854 = vbcast.lane.b32.xlu0 %v3422, %s3853
    %v3855 = vpop.permute.xlu0 %3854
    %s3857 = sor.u32 256, 88
    %3858 = vbcast.lane.b32.xlu0 %v3422, %s3857
    %v3859 = vpop.permute.xlu0 %3858
    %s3861 = sor.u32 256, 96
    %3862 = vbcast.lane.b32.xlu0 %v3422, %s3861
    %v3863 = vpop.permute.xlu0 %3862
    %s3865 = sor.u32 256, 104
    %3866 = vbcast.lane.b32.xlu0 %v3422, %s3865
    %v3867 = vpop.permute.xlu0 %3866
    %s3869 = sor.u32 256, 112
    %3870 = vbcast.lane.b32.xlu0 %v3422, %s3869
    %v3871 = vpop.permute.xlu0 %3870
    %s3873 = sor.u32 256, 120
    %3874 = vbcast.lane.b32.xlu0 %v3422, %s3873
    %v3875 = vpop.permute.xlu0 %3874
    %3877 = vbcast.lane.b32.xlu0 %v3426, 256
    %v3878 = vpop.permute.xlu0 %3877
    %s3880 = sor.u32 256, 8
    %3881 = vbcast.lane.b32.xlu0 %v3426, %s3880
    %v3882 = vpop.permute.xlu0 %3881
    %s3884 = sor.u32 256, 16
    %3885 = vbcast.lane.b32.xlu0 %v3426, %s3884
    %v3886 = vpop.permute.xlu0 %3885
    %s3888 = sor.u32 256, 24
    %3889 = vbcast.lane.b32.xlu0 %v3426, %s3888
    %v3890 = vpop.permute.xlu0 %3889
    %s3892 = sor.u32 256, 32
    %3893 = vbcast.lane.b32.xlu0 %v3426, %s3892
    %v3894 = vpop.permute.xlu0 %3893
    %s3896 = sor.u32 256, 40
    %3897 = vbcast.lane.b32.xlu0 %v3426, %s3896
    %v3898 = vpop.permute.xlu0 %3897
    %s3900 = sor.u32 256, 48
    %3901 = vbcast.lane.b32.xlu0 %v3426, %s3900
    %v3902 = vpop.permute.xlu0 %3901
    %s3904 = sor.u32 256, 56
    %3905 = vbcast.lane.b32.xlu0 %v3426, %s3904
    %v3906 = vpop.permute.xlu0 %3905
    %s3908 = sor.u32 256, 64
    %3909 = vbcast.lane.b32.xlu0 %v3426, %s3908
    %v3910 = vpop.permute.xlu0 %3909
    %s3912 = sor.u32 256, 72
    %3913 = vbcast.lane.b32.xlu0 %v3426, %s3912
    %v3914 = vpop.permute.xlu0 %3913
    %s3916 = sor.u32 256, 80
    %3917 = vbcast.lane.b32.xlu0 %v3426, %s3916
    %v3918 = vpop.permute.xlu0 %3917
    %s3920 = sor.u32 256, 88
    %3921 = vbcast.lane.b32.xlu0 %v3426, %s3920
    %v3922 = vpop.permute.xlu0 %3921
    %s3924 = sor.u32 256, 96
    %3925 = vbcast.lane.b32.xlu0 %v3426, %s3924
    %v3926 = vpop.permute.xlu0 %3925
    %s3928 = sor.u32 256, 104
    %3929 = vbcast.lane.b32.xlu0 %v3426, %s3928
    %v3930 = vpop.permute.xlu0 %3929
    %s3932 = sor.u32 256, 112
    %3933 = vbcast.lane.b32.xlu0 %v3426, %s3932
    %v3934 = vpop.permute.xlu0 %3933
    %s3936 = sor.u32 256, 120
    %3937 = vbcast.lane.b32.xlu0 %v3426, %s3936
    %v3938 = vpop.permute.xlu0 %3937
    %v4067 = vmul.f32 %v3390, %v3437
    %v4068 = vmul.f32 %v3390, %v3441
    %v4069 = vmul.f32 %v3390, %v3445
    %v4070 = vmul.f32 %v3390, %v3449
    %v4071 = vmul.f32 %v3390, %v3453
    %v4072 = vmul.f32 %v3390, %v3457
    %v4073 = vmul.f32 %v3390, %v3461
    %v4074 = vmul.f32 %v3390, %v3465
    %v4075 = vmul.f32 %v3390, %v3469
    %v4076 = vmul.f32 %v3390, %v3473
    %v4077 = vmul.f32 %v3390, %v3477
    %v4078 = vmul.f32 %v3390, %v3481
    %v4079 = vmul.f32 %v3390, %v3485
    %v4080 = vmul.f32 %v3390, %v3489
    %v4081 = vmul.f32 %v3390, %v3493
    %v4082 = vmul.f32 %v3390, %v3497
    %v4083 = vmul.f32 %v3390, %v3500
    %v4084 = vmul.f32 %v3390, %v3504
    %v4085 = vmul.f32 %v3390, %v3508
    %v4086 = vmul.f32 %v3390, %v3512
    %v4087 = vmul.f32 %v3390, %v3516
    %v4088 = vmul.f32 %v3390, %v3520
    %v4089 = vmul.f32 %v3390, %v3524
    %v4090 = vmul.f32 %v3390, %v3528
    %v4091 = vmul.f32 %v3390, %v3532
    %v4092 = vmul.f32 %v3390, %v3536
    %v4093 = vmul.f32 %v3390, %v3540
    %v4094 = vmul.f32 %v3390, %v3544
    %v4095 = vmul.f32 %v3390, %v3548
    %v4096 = vmul.f32 %v3390, %v3552
    %v4097 = vmul.f32 %v3390, %v3556
    %v4098 = vmul.f32 %v3390, %v3560
    %v4099 = vmul.f32 %v3390, %v3563
    %v4100 = vmul.f32 %v3390, %v3567
    %v4101 = vmul.f32 %v3390, %v3571
    %v4102 = vmul.f32 %v3390, %v3575
    %v4103 = vmul.f32 %v3390, %v3579
    %v4104 = vmul.f32 %v3390, %v3583
    %v4105 = vmul.f32 %v3390, %v3587
    %v4106 = vmul.f32 %v3390, %v3591
    %v4107 = vmul.f32 %v3390, %v3595
    %v4108 = vmul.f32 %v3390, %v3599
    %v4109 = vmul.f32 %v3390, %v3603
    %v4110 = vmul.f32 %v3390, %v3607
    %v4111 = vmul.f32 %v3390, %v3611
    %v4112 = vmul.f32 %v3390, %v3615
    %v4113 = vmul.f32 %v3390, %v3619
    %v4114 = vmul.f32 %v3390, %v3623
    %v4115 = vmul.f32 %v3390, %v3626
    %v4116 = vmul.f32 %v3390, %v3630
    %v4117 = vmul.f32 %v3390, %v3634
    %v4118 = vmul.f32 %v3390, %v3638
    %v4119 = vmul.f32 %v3390, %v3642
    %v4120 = vmul.f32 %v3390, %v3646
    %v4121 = vmul.f32 %v3390, %v3650
    %v4122 = vmul.f32 %v3390, %v3654
    %v4123 = vmul.f32 %v3390, %v3658
    %v4124 = vmul.f32 %v3390, %v3662
    %v4125 = vmul.f32 %v3390, %v3666
    %v4126 = vmul.f32 %v3390, %v3670
    %v4127 = vmul.f32 %v3390, %v3674
    %v4128 = vmul.f32 %v3390, %v3678
    %v4129 = vmul.f32 %v3390, %v3682
    %v4130 = vmul.f32 %v3390, %v3686
    %v4131 = vmul.f32 %v3390, %v3689
    %v4132 = vmul.f32 %v3390, %v3693
    %v4133 = vmul.f32 %v3390, %v3697
    %v4134 = vmul.f32 %v3390, %v3701
    %v4135 = vmul.f32 %v3390, %v3705
    %v4136 = vmul.f32 %v3390, %v3709
    %v4137 = vmul.f32 %v3390, %v3713
    %v4138 = vmul.f32 %v3390, %v3717
    %v4139 = vmul.f32 %v3390, %v3721
    %v4140 = vmul.f32 %v3390, %v3725
    %v4141 = vmul.f32 %v3390, %v3729
    %v4142 = vmul.f32 %v3390, %v3733
    %v4143 = vmul.f32 %v3390, %v3737
    %v4144 = vmul.f32 %v3390, %v3741
    %v4145 = vmul.f32 %v3390, %v3745
    %v4146 = vmul.f32 %v3390, %v3749
    %v4147 = vmul.f32 %v3390, %v3752
    %v4148 = vmul.f32 %v3390, %v3756
    %v4149 = vmul.f32 %v3390, %v3760
    %v4150 = vmul.f32 %v3390, %v3764
    %v4151 = vmul.f32 %v3390, %v3768
    %v4152 = vmul.f32 %v3390, %v3772
    %v4153 = vmul.f32 %v3390, %v3776
    %v4154 = vmul.f32 %v3390, %v3780
    %v4155 = vmul.f32 %v3390, %v3784
    %v4156 = vmul.f32 %v3390, %v3788
    %v4157 = vmul.f32 %v3390, %v3792
    %v4158 = vmul.f32 %v3390, %v3796
    %v4159 = vmul.f32 %v3390, %v3800
    %v4160 = vmul.f32 %v3390, %v3804
    %v4161 = vmul.f32 %v3390, %v3808
    %v4162 = vmul.f32 %v3390, %v3812
    %v4163 = vmul.f32 %v3390, %v3815
    %v4164 = vmul.f32 %v3390, %v3819
    %v4165 = vmul.f32 %v3390, %v3823
    %v4166 = vmul.f32 %v3390, %v3827
    %v4167 = vmul.f32 %v3390, %v3831
    %v4168 = vmul.f32 %v3390, %v3835
    %v4169 = vmul.f32 %v3390, %v3839
    %v4170 = vmul.f32 %v3390, %v3843
    %v4171 = vmul.f32 %v3390, %v3847
    %v4172 = vmul.f32 %v3390, %v3851
    %v4173 = vmul.f32 %v3390, %v3855
    %v4174 = vmul.f32 %v3390, %v3859
    %v4175 = vmul.f32 %v3390, %v3863
    %v4176 = vmul.f32 %v3390, %v3867
    %v4177 = vmul.f32 %v3390, %v3871
    %v4178 = vmul.f32 %v3390, %v3875
    %v4179 = vmul.f32 %v3390, %v3878
    %v4180 = vmul.f32 %v3390, %v3882
    %v4181 = vmul.f32 %v3390, %v3886
    %v4182 = vmul.f32 %v3390, %v3890
    %v4183 = vmul.f32 %v3390, %v3894
    %v4184 = vmul.f32 %v3390, %v3898
    %v4185 = vmul.f32 %v3390, %v3902
    %v4186 = vmul.f32 %v3390, %v3906
    %v4187 = vmul.f32 %v3390, %v3910
    %v4188 = vmul.f32 %v3390, %v3914
    %v4189 = vmul.f32 %v3390, %v3918
    %v4190 = vmul.f32 %v3390, %v3922
    %v4191 = vmul.f32 %v3390, %v3926
    %v4192 = vmul.f32 %v3390, %v3930
    %v4193 = vmul.f32 %v3390, %v3934
    %v4194 = vmul.f32 %v3390, %v3938
    %v4195 = vmul.f32 %v3394, %v3437
    %v4196 = vmul.f32 %v3394, %v3441
    %v4197 = vmul.f32 %v3394, %v3445
    %v4198 = vmul.f32 %v3394, %v3449
    %v4199 = vmul.f32 %v3394, %v3453
    %v4200 = vmul.f32 %v3394, %v3457
    %v4201 = vmul.f32 %v3394, %v3461
    %v4202 = vmul.f32 %v3394, %v3465
    %v4203 = vmul.f32 %v3394, %v3469
    %v4204 = vmul.f32 %v3394, %v3473
    %v4205 = vmul.f32 %v3394, %v3477
    %v4206 = vmul.f32 %v3394, %v3481
    %v4207 = vmul.f32 %v3394, %v3485
    %v4208 = vmul.f32 %v3394, %v3489
    %v4209 = vmul.f32 %v3394, %v3493
    %v4210 = vmul.f32 %v3394, %v3497
    %v4211 = vmul.f32 %v3394, %v3500
    %v4212 = vmul.f32 %v3394, %v3504
    %v4213 = vmul.f32 %v3394, %v3508
    %v4214 = vmul.f32 %v3394, %v3512
    %v4215 = vmul.f32 %v3394, %v3516
    %v4216 = vmul.f32 %v3394, %v3520
    %v4217 = vmul.f32 %v3394, %v3524
    %v4218 = vmul.f32 %v3394, %v3528
    %v4219 = vmul.f32 %v3394, %v3532
    %v4220 = vmul.f32 %v3394, %v3536
    %v4221 = vmul.f32 %v3394, %v3540
    %v4222 = vmul.f32 %v3394, %v3544
    %v4223 = vmul.f32 %v3394, %v3548
    %v4224 = vmul.f32 %v3394, %v3552
    %v4225 = vmul.f32 %v3394, %v3556
    %v4226 = vmul.f32 %v3394, %v3560
    %v4227 = vmul.f32 %v3394, %v3563
    %v4228 = vmul.f32 %v3394, %v3567
    %v4229 = vmul.f32 %v3394, %v3571
    %v4230 = vmul.f32 %v3394, %v3575
    %v4231 = vmul.f32 %v3394, %v3579
    %v4232 = vmul.f32 %v3394, %v3583
    %v4233 = vmul.f32 %v3394, %v3587
    %v4234 = vmul.f32 %v3394, %v3591
    %v4235 = vmul.f32 %v3394, %v3595
    %v4236 = vmul.f32 %v3394, %v3599
    %v4237 = vmul.f32 %v3394, %v3603
    %v4238 = vmul.f32 %v3394, %v3607
    %v4239 = vmul.f32 %v3394, %v3611
    %v4240 = vmul.f32 %v3394, %v3615
    %v4241 = vmul.f32 %v3394, %v3619
    %v4242 = vmul.f32 %v3394, %v3623
    %v4243 = vmul.f32 %v3394, %v3626
    %v4244 = vmul.f32 %v3394, %v3630
    %v4245 = vmul.f32 %v3394, %v3634
    %v4246 = vmul.f32 %v3394, %v3638
    %v4247 = vmul.f32 %v3394, %v3642
    %v4248 = vmul.f32 %v3394, %v3646
    %v4249 = vmul.f32 %v3394, %v3650
    %v4250 = vmul.f32 %v3394, %v3654
    %v4251 = vmul.f32 %v3394, %v3658
    %v4252 = vmul.f32 %v3394, %v3662
    %v4253 = vmul.f32 %v3394, %v3666
    %v4254 = vmul.f32 %v3394, %v3670
    %v4255 = vmul.f32 %v3394, %v3674
    %v4256 = vmul.f32 %v3394, %v3678
    %v4257 = vmul.f32 %v3394, %v3682
    %v4258 = vmul.f32 %v3394, %v3686
    %v4259 = vmul.f32 %v3394, %v3689
    %v4260 = vmul.f32 %v3394, %v3693
    %v4261 = vmul.f32 %v3394, %v3697
    %v4262 = vmul.f32 %v3394, %v3701
    %v4263 = vmul.f32 %v3394, %v3705
    %v4264 = vmul.f32 %v3394, %v3709
    %v4265 = vmul.f32 %v3394, %v3713
    %v4266 = vmul.f32 %v3394, %v3717
    %v4267 = vmul.f32 %v3394, %v3721
    %v4268 = vmul.f32 %v3394, %v3725
    %v4269 = vmul.f32 %v3394, %v3729
    %v4270 = vmul.f32 %v3394, %v3733
    %v4271 = vmul.f32 %v3394, %v3737
    %v4272 = vmul.f32 %v3394, %v3741
    %v4273 = vmul.f32 %v3394, %v3745
    %v4274 = vmul.f32 %v3394, %v3749
    %v4275 = vmul.f32 %v3394, %v3752
    %v4276 = vmul.f32 %v3394, %v3756
    %v4277 = vmul.f32 %v3394, %v3760
    %v4278 = vmul.f32 %v3394, %v3764
    %v4279 = vmul.f32 %v3394, %v3768
    %v4280 = vmul.f32 %v3394, %v3772
    %v4281 = vmul.f32 %v3394, %v3776
    %v4282 = vmul.f32 %v3394, %v3780
    %v4283 = vmul.f32 %v3394, %v3784
    %v4284 = vmul.f32 %v3394, %v3788
    %v4285 = vmul.f32 %v3394, %v3792
    %v4286 = vmul.f32 %v3394, %v3796
    %v4287 = vmul.f32 %v3394, %v3800
    %v4288 = vmul.f32 %v3394, %v3804
    %v4289 = vmul.f32 %v3394, %v3808
    %v4290 = vmul.f32 %v3394, %v3812
    %v4291 = vmul.f32 %v3394, %v3815
    %v4292 = vmul.f32 %v3394, %v3819
    %v4293 = vmul.f32 %v3394, %v3823
    %v4294 = vmul.f32 %v3394, %v3827
    %v4295 = vmul.f32 %v3394, %v3831
    %v4296 = vmul.f32 %v3394, %v3835
    %v4297 = vmul.f32 %v3394, %v3839
    %v4298 = vmul.f32 %v3394, %v3843
    %v4299 = vmul.f32 %v3394, %v3847
    %v4300 = vmul.f32 %v3394, %v3851
    %v4301 = vmul.f32 %v3394, %v3855
    %v4302 = vmul.f32 %v3394, %v3859
    %v4303 = vmul.f32 %v3394, %v3863
    %v4304 = vmul.f32 %v3394, %v3867
    %v4305 = vmul.f32 %v3394, %v3871
    %v4306 = vmul.f32 %v3394, %v3875
    %v4307 = vmul.f32 %v3394, %v3878
    %v4308 = vmul.f32 %v3394, %v3882
    %v4309 = vmul.f32 %v3394, %v3886
    %v4310 = vmul.f32 %v3394, %v3890
    %v4311 = vmul.f32 %v3394, %v3894
    %v4312 = vmul.f32 %v3394, %v3898
    %v4313 = vmul.f32 %v3394, %v3902
    %v4314 = vmul.f32 %v3394, %v3906
    %v4315 = vmul.f32 %v3394, %v3910
    %v4316 = vmul.f32 %v3394, %v3914
    %v4317 = vmul.f32 %v3394, %v3918
    %v4318 = vmul.f32 %v3394, %v3922
    %v4319 = vmul.f32 %v3394, %v3926
    %v4320 = vmul.f32 %v3394, %v3930
    %v4321 = vmul.f32 %v3394, %v3934
    %v4322 = vmul.f32 %v3394, %v3938
    %4579 = vset.pattern.permute.xlu0 0
    %4580 = vperm.xlu0 %4579, %v4067
    %v4581 = vpop.permute.xlu0 %4580
    %4582 = vset.pattern.permute.xlu0 0
    %4583 = vperm.xlu0 %4582, %v4068
    %v4584 = vpop.permute.xlu0 %4583
    %4585 = vset.pattern.permute.xlu0 0
    %4586 = vperm.xlu0 %4585, %v4069
    %v4587 = vpop.permute.xlu0 %4586
    %4588 = vset.pattern.permute.xlu0 0
    %4589 = vperm.xlu0 %4588, %v4070
    %v4590 = vpop.permute.xlu0 %4589
    %4591 = vset.pattern.permute.xlu0 0
    %4592 = vperm.xlu0 %4591, %v4071
    %v4593 = vpop.permute.xlu0 %4592
    %4594 = vset.pattern.permute.xlu0 0
    %4595 = vperm.xlu0 %4594, %v4072
    %v4596 = vpop.permute.xlu0 %4595
    %4597 = vset.pattern.permute.xlu0 0
    %4598 = vperm.xlu0 %4597, %v4073
    %v4599 = vpop.permute.xlu0 %4598
    %4600 = vset.pattern.permute.xlu0 0
    %4601 = vperm.xlu0 %4600, %v4074
    %v4602 = vpop.permute.xlu0 %4601
    %4603 = vset.pattern.permute.xlu0 0
    %4604 = vperm.xlu0 %4603, %v4075
    %v4605 = vpop.permute.xlu0 %4604
    %4606 = vset.pattern.permute.xlu0 0
    %4607 = vperm.xlu0 %4606, %v4076
    %v4608 = vpop.permute.xlu0 %4607
    %4609 = vset.pattern.permute.xlu0 0
    %4610 = vperm.xlu0 %4609, %v4077
    %v4611 = vpop.permute.xlu0 %4610
    %4612 = vset.pattern.permute.xlu0 0
    %4613 = vperm.xlu0 %4612, %v4078
    %v4614 = vpop.permute.xlu0 %4613
    %4615 = vset.pattern.permute.xlu0 0
    %4616 = vperm.xlu0 %4615, %v4079
    %v4617 = vpop.permute.xlu0 %4616
    %4618 = vset.pattern.permute.xlu0 0
    %4619 = vperm.xlu0 %4618, %v4080
    %v4620 = vpop.permute.xlu0 %4619
    %4621 = vset.pattern.permute.xlu0 0
    %4622 = vperm.xlu0 %4621, %v4081
    %v4623 = vpop.permute.xlu0 %4622
    %4624 = vset.pattern.permute.xlu0 0
    %4625 = vperm.xlu0 %4624, %v4082
    %v4626 = vpop.permute.xlu0 %4625
    %4627 = vset.pattern.permute.xlu0 0
    %4628 = vperm.xlu0 %4627, %v4083
    %v4629 = vpop.permute.xlu0 %4628
    %4630 = vset.pattern.permute.xlu0 0
    %4631 = vperm.xlu0 %4630, %v4084
    %v4632 = vpop.permute.xlu0 %4631
    %4633 = vset.pattern.permute.xlu0 0
    %4634 = vperm.xlu0 %4633, %v4085
    %v4635 = vpop.permute.xlu0 %4634
    %4636 = vset.pattern.permute.xlu0 0
    %4637 = vperm.xlu0 %4636, %v4086
    %v4638 = vpop.permute.xlu0 %4637
    %4639 = vset.pattern.permute.xlu0 0
    %4640 = vperm.xlu0 %4639, %v4087
    %v4641 = vpop.permute.xlu0 %4640
    %4642 = vset.pattern.permute.xlu0 0
    %4643 = vperm.xlu0 %4642, %v4088
    %v4644 = vpop.permute.xlu0 %4643
    %4645 = vset.pattern.permute.xlu0 0
    %4646 = vperm.xlu0 %4645, %v4089
    %v4647 = vpop.permute.xlu0 %4646
    %4648 = vset.pattern.permute.xlu0 0
    %4649 = vperm.xlu0 %4648, %v4090
    %v4650 = vpop.permute.xlu0 %4649
    %4651 = vset.pattern.permute.xlu0 0
    %4652 = vperm.xlu0 %4651, %v4091
    %v4653 = vpop.permute.xlu0 %4652
    %4654 = vset.pattern.permute.xlu0 0
    %4655 = vperm.xlu0 %4654, %v4092
    %v4656 = vpop.permute.xlu0 %4655
    %4657 = vset.pattern.permute.xlu0 0
    %4658 = vperm.xlu0 %4657, %v4093
    %v4659 = vpop.permute.xlu0 %4658
    %4660 = vset.pattern.permute.xlu0 0
    %4661 = vperm.xlu0 %4660, %v4094
    %v4662 = vpop.permute.xlu0 %4661
    %4663 = vset.pattern.permute.xlu0 0
    %4664 = vperm.xlu0 %4663, %v4095
    %v4665 = vpop.permute.xlu0 %4664
    %4666 = vset.pattern.permute.xlu0 0
    %4667 = vperm.xlu0 %4666, %v4096
    %v4668 = vpop.permute.xlu0 %4667
    %4669 = vset.pattern.permute.xlu0 0
    %4670 = vperm.xlu0 %4669, %v4097
    %v4671 = vpop.permute.xlu0 %4670
    %4672 = vset.pattern.permute.xlu0 0
    %4673 = vperm.xlu0 %4672, %v4098
    %v4674 = vpop.permute.xlu0 %4673
    %4675 = vset.pattern.permute.xlu0 0
    %4676 = vperm.xlu0 %4675, %v4099
    %v4677 = vpop.permute.xlu0 %4676
    %4678 = vset.pattern.permute.xlu0 0
    %4679 = vperm.xlu0 %4678, %v4100
    %v4680 = vpop.permute.xlu0 %4679
    %4681 = vset.pattern.permute.xlu0 0
    %4682 = vperm.xlu0 %4681, %v4101
    %v4683 = vpop.permute.xlu0 %4682
    %4684 = vset.pattern.permute.xlu0 0
    %4685 = vperm.xlu0 %4684, %v4102
    %v4686 = vpop.permute.xlu0 %4685
    %4687 = vset.pattern.permute.xlu0 0
    %4688 = vperm.xlu0 %4687, %v4103
    %v4689 = vpop.permute.xlu0 %4688
    %4690 = vset.pattern.permute.xlu0 0
    %4691 = vperm.xlu0 %4690, %v4104
    %v4692 = vpop.permute.xlu0 %4691
    %4693 = vset.pattern.permute.xlu0 0
    %4694 = vperm.xlu0 %4693, %v4105
    %v4695 = vpop.permute.xlu0 %4694
    %4696 = vset.pattern.permute.xlu0 0
    %4697 = vperm.xlu0 %4696, %v4106
    %v4698 = vpop.permute.xlu0 %4697
    %4699 = vset.pattern.permute.xlu0 0
    %4700 = vperm.xlu0 %4699, %v4107
    %v4701 = vpop.permute.xlu0 %4700
    %4702 = vset.pattern.permute.xlu0 0
    %4703 = vperm.xlu0 %4702, %v4108
    %v4704 = vpop.permute.xlu0 %4703
    %4705 = vset.pattern.permute.xlu0 0
    %4706 = vperm.xlu0 %4705, %v4109
    %v4707 = vpop.permute.xlu0 %4706
    %4708 = vset.pattern.permute.xlu0 0
    %4709 = vperm.xlu0 %4708, %v4110
    %v4710 = vpop.permute.xlu0 %4709
    %4711 = vset.pattern.permute.xlu0 0
    %4712 = vperm.xlu0 %4711, %v4111
    %v4713 = vpop.permute.xlu0 %4712
    %4714 = vset.pattern.permute.xlu0 0
    %4715 = vperm.xlu0 %4714, %v4112
    %v4716 = vpop.permute.xlu0 %4715
    %4717 = vset.pattern.permute.xlu0 0
    %4718 = vperm.xlu0 %4717, %v4113
    %v4719 = vpop.permute.xlu0 %4718
    %4720 = vset.pattern.permute.xlu0 0
    %4721 = vperm.xlu0 %4720, %v4114
    %v4722 = vpop.permute.xlu0 %4721
    %4723 = vset.pattern.permute.xlu0 0
    %4724 = vperm.xlu0 %4723, %v4115
    %v4725 = vpop.permute.xlu0 %4724
    %4726 = vset.pattern.permute.xlu0 0
    %4727 = vperm.xlu0 %4726, %v4116
    %v4728 = vpop.permute.xlu0 %4727
    %4729 = vset.pattern.permute.xlu0 0
    %4730 = vperm.xlu0 %4729, %v4117
    %v4731 = vpop.permute.xlu0 %4730
    %4732 = vset.pattern.permute.xlu0 0
    %4733 = vperm.xlu0 %4732, %v4118
    %v4734 = vpop.permute.xlu0 %4733
    %4735 = vset.pattern.permute.xlu0 0
    %4736 = vperm.xlu0 %4735, %v4119
    %v4737 = vpop.permute.xlu0 %4736
    %4738 = vset.pattern.permute.xlu0 0
    %4739 = vperm.xlu0 %4738, %v4120
    %v4740 = vpop.permute.xlu0 %4739
    %4741 = vset.pattern.permute.xlu0 0
    %4742 = vperm.xlu0 %4741, %v4121
    %v4743 = vpop.permute.xlu0 %4742
    %4744 = vset.pattern.permute.xlu0 0
    %4745 = vperm.xlu0 %4744, %v4122
    %v4746 = vpop.permute.xlu0 %4745
    %4747 = vset.pattern.permute.xlu0 0
    %4748 = vperm.xlu0 %4747, %v4123
    %v4749 = vpop.permute.xlu0 %4748
    %4750 = vset.pattern.permute.xlu0 0
    %4751 = vperm.xlu0 %4750, %v4124
    %v4752 = vpop.permute.xlu0 %4751
    %4753 = vset.pattern.permute.xlu0 0
    %4754 = vperm.xlu0 %4753, %v4125
    %v4755 = vpop.permute.xlu0 %4754
    %4756 = vset.pattern.permute.xlu0 0
    %4757 = vperm.xlu0 %4756, %v4126
    %v4758 = vpop.permute.xlu0 %4757
    %4759 = vset.pattern.permute.xlu0 0
    %4760 = vperm.xlu0 %4759, %v4127
    %v4761 = vpop.permute.xlu0 %4760
    %4762 = vset.pattern.permute.xlu0 0
    %4763 = vperm.xlu0 %4762, %v4128
    %v4764 = vpop.permute.xlu0 %4763
    %4765 = vset.pattern.permute.xlu0 0
    %4766 = vperm.xlu0 %4765, %v4129
    %v4767 = vpop.permute.xlu0 %4766
    %4768 = vset.pattern.permute.xlu0 0
    %4769 = vperm.xlu0 %4768, %v4130
    %v4770 = vpop.permute.xlu0 %4769
    %4771 = vset.pattern.permute.xlu0 0
    %4772 = vperm.xlu0 %4771, %v4131
    %v4773 = vpop.permute.xlu0 %4772
    %4774 = vset.pattern.permute.xlu0 0
    %4775 = vperm.xlu0 %4774, %v4132
    %v4776 = vpop.permute.xlu0 %4775
    %4777 = vset.pattern.permute.xlu0 0
    %4778 = vperm.xlu0 %4777, %v4133
    %v4779 = vpop.permute.xlu0 %4778
    %4780 = vset.pattern.permute.xlu0 0
    %4781 = vperm.xlu0 %4780, %v4134
    %v4782 = vpop.permute.xlu0 %4781
    %4783 = vset.pattern.permute.xlu0 0
    %4784 = vperm.xlu0 %4783, %v4135
    %v4785 = vpop.permute.xlu0 %4784
    %4786 = vset.pattern.permute.xlu0 0
    %4787 = vperm.xlu0 %4786, %v4136
    %v4788 = vpop.permute.xlu0 %4787
    %4789 = vset.pattern.permute.xlu0 0
    %4790 = vperm.xlu0 %4789, %v4137
    %v4791 = vpop.permute.xlu0 %4790
    %4792 = vset.pattern.permute.xlu0 0
    %4793 = vperm.xlu0 %4792, %v4138
    %v4794 = vpop.permute.xlu0 %4793
    %4795 = vset.pattern.permute.xlu0 0
    %4796 = vperm.xlu0 %4795, %v4139
    %v4797 = vpop.permute.xlu0 %4796
    %4798 = vset.pattern.permute.xlu0 0
    %4799 = vperm.xlu0 %4798, %v4140
    %v4800 = vpop.permute.xlu0 %4799
    %4801 = vset.pattern.permute.xlu0 0
    %4802 = vperm.xlu0 %4801, %v4141
    %v4803 = vpop.permute.xlu0 %4802
    %4804 = vset.pattern.permute.xlu0 0
    %4805 = vperm.xlu0 %4804, %v4142
    %v4806 = vpop.permute.xlu0 %4805
    %4807 = vset.pattern.permute.xlu0 0
    %4808 = vperm.xlu0 %4807, %v4143
    %v4809 = vpop.permute.xlu0 %4808
    %4810 = vset.pattern.permute.xlu0 0
    %4811 = vperm.xlu0 %4810, %v4144
    %v4812 = vpop.permute.xlu0 %4811
    %4813 = vset.pattern.permute.xlu0 0
    %4814 = vperm.xlu0 %4813, %v4145
    %v4815 = vpop.permute.xlu0 %4814
    %4816 = vset.pattern.permute.xlu0 0
    %4817 = vperm.xlu0 %4816, %v4146
    %v4818 = vpop.permute.xlu0 %4817
    %4819 = vset.pattern.permute.xlu0 0
    %4820 = vperm.xlu0 %4819, %v4147
    %v4821 = vpop.permute.xlu0 %4820
    %4822 = vset.pattern.permute.xlu0 0
    %4823 = vperm.xlu0 %4822, %v4148
    %v4824 = vpop.permute.xlu0 %4823
    %4825 = vset.pattern.permute.xlu0 0
    %4826 = vperm.xlu0 %4825, %v4149
    %v4827 = vpop.permute.xlu0 %4826
    %4828 = vset.pattern.permute.xlu0 0
    %4829 = vperm.xlu0 %4828, %v4150
    %v4830 = vpop.permute.xlu0 %4829
    %4831 = vset.pattern.permute.xlu0 0
    %4832 = vperm.xlu0 %4831, %v4151
    %v4833 = vpop.permute.xlu0 %4832
    %4834 = vset.pattern.permute.xlu0 0
    %4835 = vperm.xlu0 %4834, %v4152
    %v4836 = vpop.permute.xlu0 %4835
    %4837 = vset.pattern.permute.xlu0 0
    %4838 = vperm.xlu0 %4837, %v4153
    %v4839 = vpop.permute.xlu0 %4838
    %4840 = vset.pattern.permute.xlu0 0
    %4841 = vperm.xlu0 %4840, %v4154
    %v4842 = vpop.permute.xlu0 %4841
    %4843 = vset.pattern.permute.xlu0 0
    %4844 = vperm.xlu0 %4843, %v4155
    %v4845 = vpop.permute.xlu0 %4844
    %4846 = vset.pattern.permute.xlu0 0
    %4847 = vperm.xlu0 %4846, %v4156
    %v4848 = vpop.permute.xlu0 %4847
    %4849 = vset.pattern.permute.xlu0 0
    %4850 = vperm.xlu0 %4849, %v4157
    %v4851 = vpop.permute.xlu0 %4850
    %4852 = vset.pattern.permute.xlu0 0
    %4853 = vperm.xlu0 %4852, %v4158
    %v4854 = vpop.permute.xlu0 %4853
    %4855 = vset.pattern.permute.xlu0 0
    %4856 = vperm.xlu0 %4855, %v4159
    %v4857 = vpop.permute.xlu0 %4856
    %4858 = vset.pattern.permute.xlu0 0
    %4859 = vperm.xlu0 %4858, %v4160
    %v4860 = vpop.permute.xlu0 %4859
    %4861 = vset.pattern.permute.xlu0 0
    %4862 = vperm.xlu0 %4861, %v4161
    %v4863 = vpop.permute.xlu0 %4862
    %4864 = vset.pattern.permute.xlu0 0
    %4865 = vperm.xlu0 %4864, %v4162
    %v4866 = vpop.permute.xlu0 %4865
    %4867 = vset.pattern.permute.xlu0 0
    %4868 = vperm.xlu0 %4867, %v4163
    %v4869 = vpop.permute.xlu0 %4868
    %4870 = vset.pattern.permute.xlu0 0
    %4871 = vperm.xlu0 %4870, %v4164
    %v4872 = vpop.permute.xlu0 %4871
    %4873 = vset.pattern.permute.xlu0 0
    %4874 = vperm.xlu0 %4873, %v4165
    %v4875 = vpop.permute.xlu0 %4874
    %4876 = vset.pattern.permute.xlu0 0
    %4877 = vperm.xlu0 %4876, %v4166
    %v4878 = vpop.permute.xlu0 %4877
    %4879 = vset.pattern.permute.xlu0 0
    %4880 = vperm.xlu0 %4879, %v4167
    %v4881 = vpop.permute.xlu0 %4880
    %4882 = vset.pattern.permute.xlu0 0
    %4883 = vperm.xlu0 %4882, %v4168
    %v4884 = vpop.permute.xlu0 %4883
    %4885 = vset.pattern.permute.xlu0 0
    %4886 = vperm.xlu0 %4885, %v4169
    %v4887 = vpop.permute.xlu0 %4886
    %4888 = vset.pattern.permute.xlu0 0
    %4889 = vperm.xlu0 %4888, %v4170
    %v4890 = vpop.permute.xlu0 %4889
    %4891 = vset.pattern.permute.xlu0 0
    %4892 = vperm.xlu0 %4891, %v4171
    %v4893 = vpop.permute.xlu0 %4892
    %4894 = vset.pattern.permute.xlu0 0
    %4895 = vperm.xlu0 %4894, %v4172
    %v4896 = vpop.permute.xlu0 %4895
    %4897 = vset.pattern.permute.xlu0 0
    %4898 = vperm.xlu0 %4897, %v4173
    %v4899 = vpop.permute.xlu0 %4898
    %4900 = vset.pattern.permute.xlu0 0
    %4901 = vperm.xlu0 %4900, %v4174
    %v4902 = vpop.permute.xlu0 %4901
    %4903 = vset.pattern.permute.xlu0 0
    %4904 = vperm.xlu0 %4903, %v4175
    %v4905 = vpop.permute.xlu0 %4904
    %4906 = vset.pattern.permute.xlu0 0
    %4907 = vperm.xlu0 %4906, %v4176
    %v4908 = vpop.permute.xlu0 %4907
    %4909 = vset.pattern.permute.xlu0 0
    %4910 = vperm.xlu0 %4909, %v4177
    %v4911 = vpop.permute.xlu0 %4910
    %4912 = vset.pattern.permute.xlu0 0
    %4913 = vperm.xlu0 %4912, %v4178
    %v4914 = vpop.permute.xlu0 %4913
    %4915 = vset.pattern.permute.xlu0 0
    %4916 = vperm.xlu0 %4915, %v4179
    %v4917 = vpop.permute.xlu0 %4916
    %4918 = vset.pattern.permute.xlu0 0
    %4919 = vperm.xlu0 %4918, %v4180
    %v4920 = vpop.permute.xlu0 %4919
    %4921 = vset.pattern.permute.xlu0 0
    %4922 = vperm.xlu0 %4921, %v4181
    %v4923 = vpop.permute.xlu0 %4922
    %4924 = vset.pattern.permute.xlu0 0
    %4925 = vperm.xlu0 %4924, %v4182
    %v4926 = vpop.permute.xlu0 %4925
    %4927 = vset.pattern.permute.xlu0 0
    %4928 = vperm.xlu0 %4927, %v4183
    %v4929 = vpop.permute.xlu0 %4928
    %4930 = vset.pattern.permute.xlu0 0
    %4931 = vperm.xlu0 %4930, %v4184
    %v4932 = vpop.permute.xlu0 %4931
    %4933 = vset.pattern.permute.xlu0 0
    %4934 = vperm.xlu0 %4933, %v4185
    %v4935 = vpop.permute.xlu0 %4934
    %4936 = vset.pattern.permute.xlu0 0
    %4937 = vperm.xlu0 %4936, %v4186
    %v4938 = vpop.permute.xlu0 %4937
    %4939 = vset.pattern.permute.xlu0 0
    %4940 = vperm.xlu0 %4939, %v4187
    %v4941 = vpop.permute.xlu0 %4940
    %4942 = vset.pattern.permute.xlu0 0
    %4943 = vperm.xlu0 %4942, %v4188
    %v4944 = vpop.permute.xlu0 %4943
    %4945 = vset.pattern.permute.xlu0 0
    %4946 = vperm.xlu0 %4945, %v4189
    %v4947 = vpop.permute.xlu0 %4946
    %4948 = vset.pattern.permute.xlu0 0
    %4949 = vperm.xlu0 %4948, %v4190
    %v4950 = vpop.permute.xlu0 %4949
    %4951 = vset.pattern.permute.xlu0 0
    %4952 = vperm.xlu0 %4951, %v4191
    %v4953 = vpop.permute.xlu0 %4952
    %4954 = vset.pattern.permute.xlu0 0
    %4955 = vperm.xlu0 %4954, %v4192
    %v4956 = vpop.permute.xlu0 %4955
    %4957 = vset.pattern.permute.xlu0 0
    %4958 = vperm.xlu0 %4957, %v4193
    %v4959 = vpop.permute.xlu0 %4958
    %4960 = vset.pattern.permute.xlu0 0
    %4961 = vperm.xlu0 %4960, %v4194
    %v4962 = vpop.permute.xlu0 %4961
    %4963 = vset.pattern.permute.xlu0 0
    %4964 = vperm.xlu0 %4963, %v4195
    %v4965 = vpop.permute.xlu0 %4964
    %4966 = vset.pattern.permute.xlu0 0
    %4967 = vperm.xlu0 %4966, %v4196
    %v4968 = vpop.permute.xlu0 %4967
    %4969 = vset.pattern.permute.xlu0 0
    %4970 = vperm.xlu0 %4969, %v4197
    %v4971 = vpop.permute.xlu0 %4970
    %4972 = vset.pattern.permute.xlu0 0
    %4973 = vperm.xlu0 %4972, %v4198
    %v4974 = vpop.permute.xlu0 %4973
    %4975 = vset.pattern.permute.xlu0 0
    %4976 = vperm.xlu0 %4975, %v4199
    %v4977 = vpop.permute.xlu0 %4976
    %4978 = vset.pattern.permute.xlu0 0
    %4979 = vperm.xlu0 %4978, %v4200
    %v4980 = vpop.permute.xlu0 %4979
    %4981 = vset.pattern.permute.xlu0 0
    %4982 = vperm.xlu0 %4981, %v4201
    %v4983 = vpop.permute.xlu0 %4982
    %4984 = vset.pattern.permute.xlu0 0
    %4985 = vperm.xlu0 %4984, %v4202
    %v4986 = vpop.permute.xlu0 %4985
    %4987 = vset.pattern.permute.xlu0 0
    %4988 = vperm.xlu0 %4987, %v4203
    %v4989 = vpop.permute.xlu0 %4988
    %4990 = vset.pattern.permute.xlu0 0
    %4991 = vperm.xlu0 %4990, %v4204
    %v4992 = vpop.permute.xlu0 %4991
    %4993 = vset.pattern.permute.xlu0 0
    %4994 = vperm.xlu0 %4993, %v4205
    %v4995 = vpop.permute.xlu0 %4994
    %4996 = vset.pattern.permute.xlu0 0
    %4997 = vperm.xlu0 %4996, %v4206
    %v4998 = vpop.permute.xlu0 %4997
    %4999 = vset.pattern.permute.xlu0 0
    %5000 = vperm.xlu0 %4999, %v4207
    %v5001 = vpop.permute.xlu0 %5000
    %5002 = vset.pattern.permute.xlu0 0
    %5003 = vperm.xlu0 %5002, %v4208
    %v5004 = vpop.permute.xlu0 %5003
    %5005 = vset.pattern.permute.xlu0 0
    %5006 = vperm.xlu0 %5005, %v4209
    %v5007 = vpop.permute.xlu0 %5006
    %5008 = vset.pattern.permute.xlu0 0
    %5009 = vperm.xlu0 %5008, %v4210
    %v5010 = vpop.permute.xlu0 %5009
    %5011 = vset.pattern.permute.xlu0 0
    %5012 = vperm.xlu0 %5011, %v4211
    %v5013 = vpop.permute.xlu0 %5012
    %5014 = vset.pattern.permute.xlu0 0
    %5015 = vperm.xlu0 %5014, %v4212
    %v5016 = vpop.permute.xlu0 %5015
    %5017 = vset.pattern.permute.xlu0 0
    %5018 = vperm.xlu0 %5017, %v4213
    %v5019 = vpop.permute.xlu0 %5018
    %5020 = vset.pattern.permute.xlu0 0
    %5021 = vperm.xlu0 %5020, %v4214
    %v5022 = vpop.permute.xlu0 %5021
    %5023 = vset.pattern.permute.xlu0 0
    %5024 = vperm.xlu0 %5023, %v4215
    %v5025 = vpop.permute.xlu0 %5024
    %5026 = vset.pattern.permute.xlu0 0
    %5027 = vperm.xlu0 %5026, %v4216
    %v5028 = vpop.permute.xlu0 %5027
    %5029 = vset.pattern.permute.xlu0 0
    %5030 = vperm.xlu0 %5029, %v4217
    %v5031 = vpop.permute.xlu0 %5030
    %5032 = vset.pattern.permute.xlu0 0
    %5033 = vperm.xlu0 %5032, %v4218
    %v5034 = vpop.permute.xlu0 %5033
    %5035 = vset.pattern.permute.xlu0 0
    %5036 = vperm.xlu0 %5035, %v4219
    %v5037 = vpop.permute.xlu0 %5036
    %5038 = vset.pattern.permute.xlu0 0
    %5039 = vperm.xlu0 %5038, %v4220
    %v5040 = vpop.permute.xlu0 %5039
    %5041 = vset.pattern.permute.xlu0 0
    %5042 = vperm.xlu0 %5041, %v4221
    %v5043 = vpop.permute.xlu0 %5042
    %5044 = vset.pattern.permute.xlu0 0
    %5045 = vperm.xlu0 %5044, %v4222
    %v5046 = vpop.permute.xlu0 %5045
    %5047 = vset.pattern.permute.xlu0 0
    %5048 = vperm.xlu0 %5047, %v4223
    %v5049 = vpop.permute.xlu0 %5048
    %5050 = vset.pattern.permute.xlu0 0
    %5051 = vperm.xlu0 %5050, %v4224
    %v5052 = vpop.permute.xlu0 %5051
    %5053 = vset.pattern.permute.xlu0 0
    %5054 = vperm.xlu0 %5053, %v4225
    %v5055 = vpop.permute.xlu0 %5054
    %5056 = vset.pattern.permute.xlu0 0
    %5057 = vperm.xlu0 %5056, %v4226
    %v5058 = vpop.permute.xlu0 %5057
    %5059 = vset.pattern.permute.xlu0 0
    %5060 = vperm.xlu0 %5059, %v4227
    %v5061 = vpop.permute.xlu0 %5060
    %5062 = vset.pattern.permute.xlu0 0
    %5063 = vperm.xlu0 %5062, %v4228
    %v5064 = vpop.permute.xlu0 %5063
    %5065 = vset.pattern.permute.xlu0 0
    %5066 = vperm.xlu0 %5065, %v4229
    %v5067 = vpop.permute.xlu0 %5066
    %5068 = vset.pattern.permute.xlu0 0
    %5069 = vperm.xlu0 %5068, %v4230
    %v5070 = vpop.permute.xlu0 %5069
    %5071 = vset.pattern.permute.xlu0 0
    %5072 = vperm.xlu0 %5071, %v4231
    %v5073 = vpop.permute.xlu0 %5072
    %5074 = vset.pattern.permute.xlu0 0
    %5075 = vperm.xlu0 %5074, %v4232
    %v5076 = vpop.permute.xlu0 %5075
    %5077 = vset.pattern.permute.xlu0 0
    %5078 = vperm.xlu0 %5077, %v4233
    %v5079 = vpop.permute.xlu0 %5078
    %5080 = vset.pattern.permute.xlu0 0
    %5081 = vperm.xlu0 %5080, %v4234
    %v5082 = vpop.permute.xlu0 %5081
    %5083 = vset.pattern.permute.xlu0 0
    %5084 = vperm.xlu0 %5083, %v4235
    %v5085 = vpop.permute.xlu0 %5084
    %5086 = vset.pattern.permute.xlu0 0
    %5087 = vperm.xlu0 %5086, %v4236
    %v5088 = vpop.permute.xlu0 %5087
    %5089 = vset.pattern.permute.xlu0 0
    %5090 = vperm.xlu0 %5089, %v4237
    %v5091 = vpop.permute.xlu0 %5090
    %5092 = vset.pattern.permute.xlu0 0
    %5093 = vperm.xlu0 %5092, %v4238
    %v5094 = vpop.permute.xlu0 %5093
    %5095 = vset.pattern.permute.xlu0 0
    %5096 = vperm.xlu0 %5095, %v4239
    %v5097 = vpop.permute.xlu0 %5096
    %5098 = vset.pattern.permute.xlu0 0
    %5099 = vperm.xlu0 %5098, %v4240
    %v5100 = vpop.permute.xlu0 %5099
    %5101 = vset.pattern.permute.xlu0 0
    %5102 = vperm.xlu0 %5101, %v4241
    %v5103 = vpop.permute.xlu0 %5102
    %5104 = vset.pattern.permute.xlu0 0
    %5105 = vperm.xlu0 %5104, %v4242
    %v5106 = vpop.permute.xlu0 %5105
    %5107 = vset.pattern.permute.xlu0 0
    %5108 = vperm.xlu0 %5107, %v4243
    %v5109 = vpop.permute.xlu0 %5108
    %5110 = vset.pattern.permute.xlu0 0
    %5111 = vperm.xlu0 %5110, %v4244
    %v5112 = vpop.permute.xlu0 %5111
    %5113 = vset.pattern.permute.xlu0 0
    %5114 = vperm.xlu0 %5113, %v4245
    %v5115 = vpop.permute.xlu0 %5114
    %5116 = vset.pattern.permute.xlu0 0
    %5117 = vperm.xlu0 %5116, %v4246
    %v5118 = vpop.permute.xlu0 %5117
    %5119 = vset.pattern.permute.xlu0 0
    %5120 = vperm.xlu0 %5119, %v4247
    %v5121 = vpop.permute.xlu0 %5120
    %5122 = vset.pattern.permute.xlu0 0
    %5123 = vperm.xlu0 %5122, %v4248
    %v5124 = vpop.permute.xlu0 %5123
    %5125 = vset.pattern.permute.xlu0 0
    %5126 = vperm.xlu0 %5125, %v4249
    %v5127 = vpop.permute.xlu0 %5126
    %5128 = vset.pattern.permute.xlu0 0
    %5129 = vperm.xlu0 %5128, %v4250
    %v5130 = vpop.permute.xlu0 %5129
    %5131 = vset.pattern.permute.xlu0 0
    %5132 = vperm.xlu0 %5131, %v4251
    %v5133 = vpop.permute.xlu0 %5132
    %5134 = vset.pattern.permute.xlu0 0
    %5135 = vperm.xlu0 %5134, %v4252
    %v5136 = vpop.permute.xlu0 %5135
    %5137 = vset.pattern.permute.xlu0 0
    %5138 = vperm.xlu0 %5137, %v4253
    %v5139 = vpop.permute.xlu0 %5138
    %5140 = vset.pattern.permute.xlu0 0
    %5141 = vperm.xlu0 %5140, %v4254
    %v5142 = vpop.permute.xlu0 %5141
    %5143 = vset.pattern.permute.xlu0 0
    %5144 = vperm.xlu0 %5143, %v4255
    %v5145 = vpop.permute.xlu0 %5144
    %5146 = vset.pattern.permute.xlu0 0
    %5147 = vperm.xlu0 %5146, %v4256
    %v5148 = vpop.permute.xlu0 %5147
    %5149 = vset.pattern.permute.xlu0 0
    %5150 = vperm.xlu0 %5149, %v4257
    %v5151 = vpop.permute.xlu0 %5150
    %5152 = vset.pattern.permute.xlu0 0
    %5153 = vperm.xlu0 %5152, %v4258
    %v5154 = vpop.permute.xlu0 %5153
    %5155 = vset.pattern.permute.xlu0 0
    %5156 = vperm.xlu0 %5155, %v4259
    %v5157 = vpop.permute.xlu0 %5156
    %5158 = vset.pattern.permute.xlu0 0
    %5159 = vperm.xlu0 %5158, %v4260
    %v5160 = vpop.permute.xlu0 %5159
    %5161 = vset.pattern.permute.xlu0 0
    %5162 = vperm.xlu0 %5161, %v4261
    %v5163 = vpop.permute.xlu0 %5162
    %5164 = vset.pattern.permute.xlu0 0
    %5165 = vperm.xlu0 %5164, %v4262
    %v5166 = vpop.permute.xlu0 %5165
    %5167 = vset.pattern.permute.xlu0 0
    %5168 = vperm.xlu0 %5167, %v4263
    %v5169 = vpop.permute.xlu0 %5168
    %5170 = vset.pattern.permute.xlu0 0
    %5171 = vperm.xlu0 %5170, %v4264
    %v5172 = vpop.permute.xlu0 %5171
    %5173 = vset.pattern.permute.xlu0 0
    %5174 = vperm.xlu0 %5173, %v4265
    %v5175 = vpop.permute.xlu0 %5174
    %5176 = vset.pattern.permute.xlu0 0
    %5177 = vperm.xlu0 %5176, %v4266
    %v5178 = vpop.permute.xlu0 %5177
    %5179 = vset.pattern.permute.xlu0 0
    %5180 = vperm.xlu0 %5179, %v4267
    %v5181 = vpop.permute.xlu0 %5180
    %5182 = vset.pattern.permute.xlu0 0
    %5183 = vperm.xlu0 %5182, %v4268
    %v5184 = vpop.permute.xlu0 %5183
    %5185 = vset.pattern.permute.xlu0 0
    %5186 = vperm.xlu0 %5185, %v4269
    %v5187 = vpop.permute.xlu0 %5186
    %5188 = vset.pattern.permute.xlu0 0
    %5189 = vperm.xlu0 %5188, %v4270
    %v5190 = vpop.permute.xlu0 %5189
    %5191 = vset.pattern.permute.xlu0 0
    %5192 = vperm.xlu0 %5191, %v4271
    %v5193 = vpop.permute.xlu0 %5192
    %5194 = vset.pattern.permute.xlu0 0
    %5195 = vperm.xlu0 %5194, %v4272
    %v5196 = vpop.permute.xlu0 %5195
    %5197 = vset.pattern.permute.xlu0 0
    %5198 = vperm.xlu0 %5197, %v4273
    %v5199 = vpop.permute.xlu0 %5198
    %5200 = vset.pattern.permute.xlu0 0
    %5201 = vperm.xlu0 %5200, %v4274
    %v5202 = vpop.permute.xlu0 %5201
    %5203 = vset.pattern.permute.xlu0 0
    %5204 = vperm.xlu0 %5203, %v4275
    %v5205 = vpop.permute.xlu0 %5204
    %5206 = vset.pattern.permute.xlu0 0
    %5207 = vperm.xlu0 %5206, %v4276
    %v5208 = vpop.permute.xlu0 %5207
    %5209 = vset.pattern.permute.xlu0 0
    %5210 = vperm.xlu0 %5209, %v4277
    %v5211 = vpop.permute.xlu0 %5210
    %5212 = vset.pattern.permute.xlu0 0
    %5213 = vperm.xlu0 %5212, %v4278
    %v5214 = vpop.permute.xlu0 %5213
    %5215 = vset.pattern.permute.xlu0 0
    %5216 = vperm.xlu0 %5215, %v4279
    %v5217 = vpop.permute.xlu0 %5216
    %5218 = vset.pattern.permute.xlu0 0
    %5219 = vperm.xlu0 %5218, %v4280
    %v5220 = vpop.permute.xlu0 %5219
    %5221 = vset.pattern.permute.xlu0 0
    %5222 = vperm.xlu0 %5221, %v4281
    %v5223 = vpop.permute.xlu0 %5222
    %5224 = vset.pattern.permute.xlu0 0
    %5225 = vperm.xlu0 %5224, %v4282
    %v5226 = vpop.permute.xlu0 %5225
    %5227 = vset.pattern.permute.xlu0 0
    %5228 = vperm.xlu0 %5227, %v4283
    %v5229 = vpop.permute.xlu0 %5228
    %5230 = vset.pattern.permute.xlu0 0
    %5231 = vperm.xlu0 %5230, %v4284
    %v5232 = vpop.permute.xlu0 %5231
    %5233 = vset.pattern.permute.xlu0 0
    %5234 = vperm.xlu0 %5233, %v4285
    %v5235 = vpop.permute.xlu0 %5234
    %5236 = vset.pattern.permute.xlu0 0
    %5237 = vperm.xlu0 %5236, %v4286
    %v5238 = vpop.permute.xlu0 %5237
    %5239 = vset.pattern.permute.xlu0 0
    %5240 = vperm.xlu0 %5239, %v4287
    %v5241 = vpop.permute.xlu0 %5240
    %5242 = vset.pattern.permute.xlu0 0
    %5243 = vperm.xlu0 %5242, %v4288
    %v5244 = vpop.permute.xlu0 %5243
    %5245 = vset.pattern.permute.xlu0 0
    %5246 = vperm.xlu0 %5245, %v4289
    %v5247 = vpop.permute.xlu0 %5246
    %5248 = vset.pattern.permute.xlu0 0
    %5249 = vperm.xlu0 %5248, %v4290
    %v5250 = vpop.permute.xlu0 %5249
    %5251 = vset.pattern.permute.xlu0 0
    %5252 = vperm.xlu0 %5251, %v4291
    %v5253 = vpop.permute.xlu0 %5252
    %5254 = vset.pattern.permute.xlu0 0
    %5255 = vperm.xlu0 %5254, %v4292
    %v5256 = vpop.permute.xlu0 %5255
    %5257 = vset.pattern.permute.xlu0 0
    %5258 = vperm.xlu0 %5257, %v4293
    %v5259 = vpop.permute.xlu0 %5258
    %5260 = vset.pattern.permute.xlu0 0
    %5261 = vperm.xlu0 %5260, %v4294
    %v5262 = vpop.permute.xlu0 %5261
    %5263 = vset.pattern.permute.xlu0 0
    %5264 = vperm.xlu0 %5263, %v4295
    %v5265 = vpop.permute.xlu0 %5264
    %5266 = vset.pattern.permute.xlu0 0
    %5267 = vperm.xlu0 %5266, %v4296
    %v5268 = vpop.permute.xlu0 %5267
    %5269 = vset.pattern.permute.xlu0 0
    %5270 = vperm.xlu0 %5269, %v4297
    %v5271 = vpop.permute.xlu0 %5270
    %5272 = vset.pattern.permute.xlu0 0
    %5273 = vperm.xlu0 %5272, %v4298
    %v5274 = vpop.permute.xlu0 %5273
    %5275 = vset.pattern.permute.xlu0 0
    %5276 = vperm.xlu0 %5275, %v4299
    %v5277 = vpop.permute.xlu0 %5276
    %5278 = vset.pattern.permute.xlu0 0
    %5279 = vperm.xlu0 %5278, %v4300
    %v5280 = vpop.permute.xlu0 %5279
    %5281 = vset.pattern.permute.xlu0 0
    %5282 = vperm.xlu0 %5281, %v4301
    %v5283 = vpop.permute.xlu0 %5282
    %5284 = vset.pattern.permute.xlu0 0
    %5285 = vperm.xlu0 %5284, %v4302
    %v5286 = vpop.permute.xlu0 %5285
    %5287 = vset.pattern.permute.xlu0 0
    %5288 = vperm.xlu0 %5287, %v4303
    %v5289 = vpop.permute.xlu0 %5288
    %5290 = vset.pattern.permute.xlu0 0
    %5291 = vperm.xlu0 %5290, %v4304
    %v5292 = vpop.permute.xlu0 %5291
    %5293 = vset.pattern.permute.xlu0 0
    %5294 = vperm.xlu0 %5293, %v4305
    %v5295 = vpop.permute.xlu0 %5294
    %5296 = vset.pattern.permute.xlu0 0
    %5297 = vperm.xlu0 %5296, %v4306
    %v5298 = vpop.permute.xlu0 %5297
    %5299 = vset.pattern.permute.xlu0 0
    %5300 = vperm.xlu0 %5299, %v4307
    %v5301 = vpop.permute.xlu0 %5300
    %5302 = vset.pattern.permute.xlu0 0
    %5303 = vperm.xlu0 %5302, %v4308
    %v5304 = vpop.permute.xlu0 %5303
    %5305 = vset.pattern.permute.xlu0 0
    %5306 = vperm.xlu0 %5305, %v4309
    %v5307 = vpop.permute.xlu0 %5306
    %5308 = vset.pattern.permute.xlu0 0
    %5309 = vperm.xlu0 %5308, %v4310
    %v5310 = vpop.permute.xlu0 %5309
    %5311 = vset.pattern.permute.xlu0 0
    %5312 = vperm.xlu0 %5311, %v4311
    %v5313 = vpop.permute.xlu0 %5312
    %5314 = vset.pattern.permute.xlu0 0
    %5315 = vperm.xlu0 %5314, %v4312
    %v5316 = vpop.permute.xlu0 %5315
    %5317 = vset.pattern.permute.xlu0 0
    %5318 = vperm.xlu0 %5317, %v4313
    %v5319 = vpop.permute.xlu0 %5318
    %5320 = vset.pattern.permute.xlu0 0
    %5321 = vperm.xlu0 %5320, %v4314
    %v5322 = vpop.permute.xlu0 %5321
    %5323 = vset.pattern.permute.xlu0 0
    %5324 = vperm.xlu0 %5323, %v4315
    %v5325 = vpop.permute.xlu0 %5324
    %5326 = vset.pattern.permute.xlu0 0
    %5327 = vperm.xlu0 %5326, %v4316
    %v5328 = vpop.permute.xlu0 %5327
    %5329 = vset.pattern.permute.xlu0 0
    %5330 = vperm.xlu0 %5329, %v4317
    %v5331 = vpop.permute.xlu0 %5330
    %5332 = vset.pattern.permute.xlu0 0
    %5333 = vperm.xlu0 %5332, %v4318
    %v5334 = vpop.permute.xlu0 %5333
    %5335 = vset.pattern.permute.xlu0 0
    %5336 = vperm.xlu0 %5335, %v4319
    %v5337 = vpop.permute.xlu0 %5336
    %5338 = vset.pattern.permute.xlu0 0
    %5339 = vperm.xlu0 %5338, %v4320
    %v5340 = vpop.permute.xlu0 %5339
    %5341 = vset.pattern.permute.xlu0 0
    %5342 = vperm.xlu0 %5341, %v4321
    %v5343 = vpop.permute.xlu0 %5342
    %5344 = vset.pattern.permute.xlu0 0
    %5345 = vperm.xlu0 %5344, %v4322
    %v5346 = vpop.permute.xlu0 %5345
    %v5347 = vlaneseq
    %v5348 = vshrl.u32 %v5347, 7
    %v5349 = vsub.s32 %v2067, %v5348
    %v5350 = vrot.slane %v4581, %v5349
    %v5351 = vlaneseq
    %v5352 = vshrl.u32 %v5351, 7
    %v5353 = vsub.s32 %v2072, %v5352
    %v5354 = vrot.slane %v4584, %v5353
    %v5355 = vsel %vm2077, %v5354, %v5350
    %v5356 = vlaneseq
    %v5357 = vshrl.u32 %v5356, 7
    %v5358 = vsub.s32 %v2079, %v5357
    %v5359 = vrot.slane %v4587, %v5358
    %v5360 = vsel %vm2084, %v5359, %v5355
    %v5361 = vlaneseq
    %v5362 = vshrl.u32 %v5361, 7
    %v5363 = vsub.s32 %v2086, %v5362
    %v5364 = vrot.slane %v4590, %v5363
    %v5365 = vsel %vm2091, %v5364, %v5360
    %v5366 = vlaneseq
    %v5367 = vshrl.u32 %v5366, 7
    %v5368 = vsub.s32 %v2093, %v5367
    %v5369 = vrot.slane %v4593, %v5368
    %v5370 = vsel %vm2098, %v5369, %v5365
    %v5371 = vlaneseq
    %v5372 = vshrl.u32 %v5371, 7
    %v5373 = vsub.s32 %v2100, %v5372
    %v5374 = vrot.slane %v4596, %v5373
    %v5375 = vsel %vm2105, %v5374, %v5370
    %v5376 = vlaneseq
    %v5377 = vshrl.u32 %v5376, 7
    %v5378 = vsub.s32 %v2107, %v5377
    %v5379 = vrot.slane %v4599, %v5378
    %v5380 = vsel %vm2112, %v5379, %v5375
    %v5381 = vlaneseq
    %v5382 = vshrl.u32 %v5381, 7
    %v5383 = vsub.s32 %v2114, %v5382
    %v5384 = vrot.slane %v4602, %v5383
    %v5385 = vsel %vm2119, %v5384, %v5380
    %v5386 = vlaneseq
    %v5387 = vshrl.u32 %v5386, 7
    %v5388 = vsub.s32 %v2121, %v5387
    %v5389 = vrot.slane %v4605, %v5388
    %v5390 = vsel %vm2126, %v5389, %v5385
    %v5391 = vlaneseq
    %v5392 = vshrl.u32 %v5391, 7
    %v5393 = vsub.s32 %v2128, %v5392
    %v5394 = vrot.slane %v4608, %v5393
    %v5395 = vsel %vm2133, %v5394, %v5390
    %v5396 = vlaneseq
    %v5397 = vshrl.u32 %v5396, 7
    %v5398 = vsub.s32 %v2135, %v5397
    %v5399 = vrot.slane %v4611, %v5398
    %v5400 = vsel %vm2140, %v5399, %v5395
    %v5401 = vlaneseq
    %v5402 = vshrl.u32 %v5401, 7
    %v5403 = vsub.s32 %v2142, %v5402
    %v5404 = vrot.slane %v4614, %v5403
    %v5405 = vsel %vm2147, %v5404, %v5400
    %v5406 = vlaneseq
    %v5407 = vshrl.u32 %v5406, 7
    %v5408 = vsub.s32 %v2149, %v5407
    %v5409 = vrot.slane %v4617, %v5408
    %v5410 = vsel %vm2154, %v5409, %v5405
    %v5411 = vlaneseq
    %v5412 = vshrl.u32 %v5411, 7
    %v5413 = vsub.s32 %v2156, %v5412
    %v5414 = vrot.slane %v4620, %v5413
    %v5415 = vsel %vm2161, %v5414, %v5410
    %v5416 = vlaneseq
    %v5417 = vshrl.u32 %v5416, 7
    %v5418 = vsub.s32 %v2163, %v5417
    %v5419 = vrot.slane %v4623, %v5418
    %v5420 = vsel %vm2168, %v5419, %v5415
    %v5421 = vlaneseq
    %v5422 = vshrl.u32 %v5421, 7
    %v5423 = vsub.s32 %v2170, %v5422
    %v5424 = vrot.slane %v4626, %v5423
    %v5425 = vsel %vm2175, %v5424, %v5420
    %v5426 = vlaneseq
    %v5427 = vshrl.u32 %v5426, 7
    %v5428 = vsub.s32 %v2067, %v5427
    %v5429 = vrot.slane %v4629, %v5428
    %v5430 = vlaneseq
    %v5431 = vshrl.u32 %v5430, 7
    %v5432 = vsub.s32 %v2072, %v5431
    %v5433 = vrot.slane %v4632, %v5432
    %v5434 = vsel %vm2077, %v5433, %v5429
    %v5435 = vlaneseq
    %v5436 = vshrl.u32 %v5435, 7
    %v5437 = vsub.s32 %v2079, %v5436
    %v5438 = vrot.slane %v4635, %v5437
    %v5439 = vsel %vm2084, %v5438, %v5434
    %v5440 = vlaneseq
    %v5441 = vshrl.u32 %v5440, 7
    %v5442 = vsub.s32 %v2086, %v5441
    %v5443 = vrot.slane %v4638, %v5442
    %v5444 = vsel %vm2091, %v5443, %v5439
    %v5445 = vlaneseq
    %v5446 = vshrl.u32 %v5445, 7
    %v5447 = vsub.s32 %v2093, %v5446
    %v5448 = vrot.slane %v4641, %v5447
    %v5449 = vsel %vm2098, %v5448, %v5444
    %v5450 = vlaneseq
    %v5451 = vshrl.u32 %v5450, 7
    %v5452 = vsub.s32 %v2100, %v5451
    %v5453 = vrot.slane %v4644, %v5452
    %v5454 = vsel %vm2105, %v5453, %v5449
    %v5455 = vlaneseq
    %v5456 = vshrl.u32 %v5455, 7
    %v5457 = vsub.s32 %v2107, %v5456
    %v5458 = vrot.slane %v4647, %v5457
    %v5459 = vsel %vm2112, %v5458, %v5454
    %v5460 = vlaneseq
    %v5461 = vshrl.u32 %v5460, 7
    %v5462 = vsub.s32 %v2114, %v5461
    %v5463 = vrot.slane %v4650, %v5462
    %v5464 = vsel %vm2119, %v5463, %v5459
    %v5465 = vlaneseq
    %v5466 = vshrl.u32 %v5465, 7
    %v5467 = vsub.s32 %v2121, %v5466
    %v5468 = vrot.slane %v4653, %v5467
    %v5469 = vsel %vm2126, %v5468, %v5464
    %v5470 = vlaneseq
    %v5471 = vshrl.u32 %v5470, 7
    %v5472 = vsub.s32 %v2128, %v5471
    %v5473 = vrot.slane %v4656, %v5472
    %v5474 = vsel %vm2133, %v5473, %v5469
    %v5475 = vlaneseq
    %v5476 = vshrl.u32 %v5475, 7
    %v5477 = vsub.s32 %v2135, %v5476
    %v5478 = vrot.slane %v4659, %v5477
    %v5479 = vsel %vm2140, %v5478, %v5474
    %v5480 = vlaneseq
    %v5481 = vshrl.u32 %v5480, 7
    %v5482 = vsub.s32 %v2142, %v5481
    %v5483 = vrot.slane %v4662, %v5482
    %v5484 = vsel %vm2147, %v5483, %v5479
    %v5485 = vlaneseq
    %v5486 = vshrl.u32 %v5485, 7
    %v5487 = vsub.s32 %v2149, %v5486
    %v5488 = vrot.slane %v4665, %v5487
    %v5489 = vsel %vm2154, %v5488, %v5484
    %v5490 = vlaneseq
    %v5491 = vshrl.u32 %v5490, 7
    %v5492 = vsub.s32 %v2156, %v5491
    %v5493 = vrot.slane %v4668, %v5492
    %v5494 = vsel %vm2161, %v5493, %v5489
    %v5495 = vlaneseq
    %v5496 = vshrl.u32 %v5495, 7
    %v5497 = vsub.s32 %v2163, %v5496
    %v5498 = vrot.slane %v4671, %v5497
    %v5499 = vsel %vm2168, %v5498, %v5494
    %v5500 = vlaneseq
    %v5501 = vshrl.u32 %v5500, 7
    %v5502 = vsub.s32 %v2170, %v5501
    %v5503 = vrot.slane %v4674, %v5502
    %v5504 = vsel %vm2175, %v5503, %v5499
    %v5505 = vlaneseq
    %v5506 = vshrl.u32 %v5505, 7
    %v5507 = vsub.s32 %v2067, %v5506
    %v5508 = vrot.slane %v4677, %v5507
    %v5509 = vlaneseq
    %v5510 = vshrl.u32 %v5509, 7
    %v5511 = vsub.s32 %v2072, %v5510
    %v5512 = vrot.slane %v4680, %v5511
    %v5513 = vsel %vm2077, %v5512, %v5508
    %v5514 = vlaneseq
    %v5515 = vshrl.u32 %v5514, 7
    %v5516 = vsub.s32 %v2079, %v5515
    %v5517 = vrot.slane %v4683, %v5516
    %v5518 = vsel %vm2084, %v5517, %v5513
    %v5519 = vlaneseq
    %v5520 = vshrl.u32 %v5519, 7
    %v5521 = vsub.s32 %v2086, %v5520
    %v5522 = vrot.slane %v4686, %v5521
    %v5523 = vsel %vm2091, %v5522, %v5518
    %v5524 = vlaneseq
    %v5525 = vshrl.u32 %v5524, 7
    %v5526 = vsub.s32 %v2093, %v5525
    %v5527 = vrot.slane %v4689, %v5526
    %v5528 = vsel %vm2098, %v5527, %v5523
    %v5529 = vlaneseq
    %v5530 = vshrl.u32 %v5529, 7
    %v5531 = vsub.s32 %v2100, %v5530
    %v5532 = vrot.slane %v4692, %v5531
    %v5533 = vsel %vm2105, %v5532, %v5528
    %v5534 = vlaneseq
    %v5535 = vshrl.u32 %v5534, 7
    %v5536 = vsub.s32 %v2107, %v5535
    %v5537 = vrot.slane %v4695, %v5536
    %v5538 = vsel %vm2112, %v5537, %v5533
    %v5539 = vlaneseq
    %v5540 = vshrl.u32 %v5539, 7
    %v5541 = vsub.s32 %v2114, %v5540
    %v5542 = vrot.slane %v4698, %v5541
    %v5543 = vsel %vm2119, %v5542, %v5538
    %v5544 = vlaneseq
    %v5545 = vshrl.u32 %v5544, 7
    %v5546 = vsub.s32 %v2121, %v5545
    %v5547 = vrot.slane %v4701, %v5546
    %v5548 = vsel %vm2126, %v5547, %v5543
    %v5549 = vlaneseq
    %v5550 = vshrl.u32 %v5549, 7
    %v5551 = vsub.s32 %v2128, %v5550
    %v5552 = vrot.slane %v4704, %v5551
    %v5553 = vsel %vm2133, %v5552, %v5548
    %v5554 = vlaneseq
    %v5555 = vshrl.u32 %v5554, 7
    %v5556 = vsub.s32 %v2135, %v5555
    %v5557 = vrot.slane %v4707, %v5556
    %v5558 = vsel %vm2140, %v5557, %v5553
    %v5559 = vlaneseq
    %v5560 = vshrl.u32 %v5559, 7
    %v5561 = vsub.s32 %v2142, %v5560
    %v5562 = vrot.slane %v4710, %v5561
    %v5563 = vsel %vm2147, %v5562, %v5558
    %v5564 = vlaneseq
    %v5565 = vshrl.u32 %v5564, 7
    %v5566 = vsub.s32 %v2149, %v5565
    %v5567 = vrot.slane %v4713, %v5566
    %v5568 = vsel %vm2154, %v5567, %v5563
    %v5569 = vlaneseq
    %v5570 = vshrl.u32 %v5569, 7
    %v5571 = vsub.s32 %v2156, %v5570
    %v5572 = vrot.slane %v4716, %v5571
    %v5573 = vsel %vm2161, %v5572, %v5568
    %v5574 = vlaneseq
    %v5575 = vshrl.u32 %v5574, 7
    %v5576 = vsub.s32 %v2163, %v5575
    %v5577 = vrot.slane %v4719, %v5576
    %v5578 = vsel %vm2168, %v5577, %v5573
    %v5579 = vlaneseq
    %v5580 = vshrl.u32 %v5579, 7
    %v5581 = vsub.s32 %v2170, %v5580
    %v5582 = vrot.slane %v4722, %v5581
    %v5583 = vsel %vm2175, %v5582, %v5578
    %v5584 = vlaneseq
    %v5585 = vshrl.u32 %v5584, 7
    %v5586 = vsub.s32 %v2067, %v5585
    %v5587 = vrot.slane %v4725, %v5586
    %v5588 = vlaneseq
    %v5589 = vshrl.u32 %v5588, 7
    %v5590 = vsub.s32 %v2072, %v5589
    %v5591 = vrot.slane %v4728, %v5590
    %v5592 = vsel %vm2077, %v5591, %v5587
    %v5593 = vlaneseq
    %v5594 = vshrl.u32 %v5593, 7
    %v5595 = vsub.s32 %v2079, %v5594
    %v5596 = vrot.slane %v4731, %v5595
    %v5597 = vsel %vm2084, %v5596, %v5592
    %v5598 = vlaneseq
    %v5599 = vshrl.u32 %v5598, 7
    %v5600 = vsub.s32 %v2086, %v5599
    %v5601 = vrot.slane %v4734, %v5600
    %v5602 = vsel %vm2091, %v5601, %v5597
    %v5603 = vlaneseq
    %v5604 = vshrl.u32 %v5603, 7
    %v5605 = vsub.s32 %v2093, %v5604
    %v5606 = vrot.slane %v4737, %v5605
    %v5607 = vsel %vm2098, %v5606, %v5602
    %v5608 = vlaneseq
    %v5609 = vshrl.u32 %v5608, 7
    %v5610 = vsub.s32 %v2100, %v5609
    %v5611 = vrot.slane %v4740, %v5610
    %v5612 = vsel %vm2105, %v5611, %v5607
    %v5613 = vlaneseq
    %v5614 = vshrl.u32 %v5613, 7
    %v5615 = vsub.s32 %v2107, %v5614
    %v5616 = vrot.slane %v4743, %v5615
    %v5617 = vsel %vm2112, %v5616, %v5612
    %v5618 = vlaneseq
    %v5619 = vshrl.u32 %v5618, 7
    %v5620 = vsub.s32 %v2114, %v5619
    %v5621 = vrot.slane %v4746, %v5620
    %v5622 = vsel %vm2119, %v5621, %v5617
    %v5623 = vlaneseq
    %v5624 = vshrl.u32 %v5623, 7
    %v5625 = vsub.s32 %v2121, %v5624
    %v5626 = vrot.slane %v4749, %v5625
    %v5627 = vsel %vm2126, %v5626, %v5622
    %v5628 = vlaneseq
    %v5629 = vshrl.u32 %v5628, 7
    %v5630 = vsub.s32 %v2128, %v5629
    %v5631 = vrot.slane %v4752, %v5630
    %v5632 = vsel %vm2133, %v5631, %v5627
    %v5633 = vlaneseq
    %v5634 = vshrl.u32 %v5633, 7
    %v5635 = vsub.s32 %v2135, %v5634
    %v5636 = vrot.slane %v4755, %v5635
    %v5637 = vsel %vm2140, %v5636, %v5632
    %v5638 = vlaneseq
    %v5639 = vshrl.u32 %v5638, 7
    %v5640 = vsub.s32 %v2142, %v5639
    %v5641 = vrot.slane %v4758, %v5640
    %v5642 = vsel %vm2147, %v5641, %v5637
    %v5643 = vlaneseq
    %v5644 = vshrl.u32 %v5643, 7
    %v5645 = vsub.s32 %v2149, %v5644
    %v5646 = vrot.slane %v4761, %v5645
    %v5647 = vsel %vm2154, %v5646, %v5642
    %v5648 = vlaneseq
    %v5649 = vshrl.u32 %v5648, 7
    %v5650 = vsub.s32 %v2156, %v5649
    %v5651 = vrot.slane %v4764, %v5650
    %v5652 = vsel %vm2161, %v5651, %v5647
    %v5653 = vlaneseq
    %v5654 = vshrl.u32 %v5653, 7
    %v5655 = vsub.s32 %v2163, %v5654
    %v5656 = vrot.slane %v4767, %v5655
    %v5657 = vsel %vm2168, %v5656, %v5652
    %v5658 = vlaneseq
    %v5659 = vshrl.u32 %v5658, 7
    %v5660 = vsub.s32 %v2170, %v5659
    %v5661 = vrot.slane %v4770, %v5660
    %v5662 = vsel %vm2175, %v5661, %v5657
    %v5663 = vlaneseq
    %v5664 = vshrl.u32 %v5663, 7
    %v5665 = vsub.s32 %v2067, %v5664
    %v5666 = vrot.slane %v4773, %v5665
    %v5667 = vlaneseq
    %v5668 = vshrl.u32 %v5667, 7
    %v5669 = vsub.s32 %v2072, %v5668
    %v5670 = vrot.slane %v4776, %v5669
    %v5671 = vsel %vm2077, %v5670, %v5666
    %v5672 = vlaneseq
    %v5673 = vshrl.u32 %v5672, 7
    %v5674 = vsub.s32 %v2079, %v5673
    %v5675 = vrot.slane %v4779, %v5674
    %v5676 = vsel %vm2084, %v5675, %v5671
    %v5677 = vlaneseq
    %v5678 = vshrl.u32 %v5677, 7
    %v5679 = vsub.s32 %v2086, %v5678
    %v5680 = vrot.slane %v4782, %v5679
    %v5681 = vsel %vm2091, %v5680, %v5676
    %v5682 = vlaneseq
    %v5683 = vshrl.u32 %v5682, 7
    %v5684 = vsub.s32 %v2093, %v5683
    %v5685 = vrot.slane %v4785, %v5684
    %v5686 = vsel %vm2098, %v5685, %v5681
    %v5687 = vlaneseq
    %v5688 = vshrl.u32 %v5687, 7
    %v5689 = vsub.s32 %v2100, %v5688
    %v5690 = vrot.slane %v4788, %v5689
    %v5691 = vsel %vm2105, %v5690, %v5686
    %v5692 = vlaneseq
    %v5693 = vshrl.u32 %v5692, 7
    %v5694 = vsub.s32 %v2107, %v5693
    %v5695 = vrot.slane %v4791, %v5694
    %v5696 = vsel %vm2112, %v5695, %v5691
    %v5697 = vlaneseq
    %v5698 = vshrl.u32 %v5697, 7
    %v5699 = vsub.s32 %v2114, %v5698
    %v5700 = vrot.slane %v4794, %v5699
    %v5701 = vsel %vm2119, %v5700, %v5696
    %v5702 = vlaneseq
    %v5703 = vshrl.u32 %v5702, 7
    %v5704 = vsub.s32 %v2121, %v5703
    %v5705 = vrot.slane %v4797, %v5704
    %v5706 = vsel %vm2126, %v5705, %v5701
    %v5707 = vlaneseq
    %v5708 = vshrl.u32 %v5707, 7
    %v5709 = vsub.s32 %v2128, %v5708
    %v5710 = vrot.slane %v4800, %v5709
    %v5711 = vsel %vm2133, %v5710, %v5706
    %v5712 = vlaneseq
    %v5713 = vshrl.u32 %v5712, 7
    %v5714 = vsub.s32 %v2135, %v5713
    %v5715 = vrot.slane %v4803, %v5714
    %v5716 = vsel %vm2140, %v5715, %v5711
    %v5717 = vlaneseq
    %v5718 = vshrl.u32 %v5717, 7
    %v5719 = vsub.s32 %v2142, %v5718
    %v5720 = vrot.slane %v4806, %v5719
    %v5721 = vsel %vm2147, %v5720, %v5716
    %v5722 = vlaneseq
    %v5723 = vshrl.u32 %v5722, 7
    %v5724 = vsub.s32 %v2149, %v5723
    %v5725 = vrot.slane %v4809, %v5724
    %v5726 = vsel %vm2154, %v5725, %v5721
    %v5727 = vlaneseq
    %v5728 = vshrl.u32 %v5727, 7
    %v5729 = vsub.s32 %v2156, %v5728
    %v5730 = vrot.slane %v4812, %v5729
    %v5731 = vsel %vm2161, %v5730, %v5726
    %v5732 = vlaneseq
    %v5733 = vshrl.u32 %v5732, 7
    %v5734 = vsub.s32 %v2163, %v5733
    %v5735 = vrot.slane %v4815, %v5734
    %v5736 = vsel %vm2168, %v5735, %v5731
    %v5737 = vlaneseq
    %v5738 = vshrl.u32 %v5737, 7
    %v5739 = vsub.s32 %v2170, %v5738
    %v5740 = vrot.slane %v4818, %v5739
    %v5741 = vsel %vm2175, %v5740, %v5736
    %v5742 = vlaneseq
    %v5743 = vshrl.u32 %v5742, 7
    %v5744 = vsub.s32 %v2067, %v5743
    %v5745 = vrot.slane %v4821, %v5744
    %v5746 = vlaneseq
    %v5747 = vshrl.u32 %v5746, 7
    %v5748 = vsub.s32 %v2072, %v5747
    %v5749 = vrot.slane %v4824, %v5748
    %v5750 = vsel %vm2077, %v5749, %v5745
    %v5751 = vlaneseq
    %v5752 = vshrl.u32 %v5751, 7
    %v5753 = vsub.s32 %v2079, %v5752
    %v5754 = vrot.slane %v4827, %v5753
    %v5755 = vsel %vm2084, %v5754, %v5750
    %v5756 = vlaneseq
    %v5757 = vshrl.u32 %v5756, 7
    %v5758 = vsub.s32 %v2086, %v5757
    %v5759 = vrot.slane %v4830, %v5758
    %v5760 = vsel %vm2091, %v5759, %v5755
    %v5761 = vlaneseq
    %v5762 = vshrl.u32 %v5761, 7
    %v5763 = vsub.s32 %v2093, %v5762
    %v5764 = vrot.slane %v4833, %v5763
    %v5765 = vsel %vm2098, %v5764, %v5760
    %v5766 = vlaneseq
    %v5767 = vshrl.u32 %v5766, 7
    %v5768 = vsub.s32 %v2100, %v5767
    %v5769 = vrot.slane %v4836, %v5768
    %v5770 = vsel %vm2105, %v5769, %v5765
    %v5771 = vlaneseq
    %v5772 = vshrl.u32 %v5771, 7
    %v5773 = vsub.s32 %v2107, %v5772
    %v5774 = vrot.slane %v4839, %v5773
    %v5775 = vsel %vm2112, %v5774, %v5770
    %v5776 = vlaneseq
    %v5777 = vshrl.u32 %v5776, 7
    %v5778 = vsub.s32 %v2114, %v5777
    %v5779 = vrot.slane %v4842, %v5778
    %v5780 = vsel %vm2119, %v5779, %v5775
    %v5781 = vlaneseq
    %v5782 = vshrl.u32 %v5781, 7
    %v5783 = vsub.s32 %v2121, %v5782
    %v5784 = vrot.slane %v4845, %v5783
    %v5785 = vsel %vm2126, %v5784, %v5780
    %v5786 = vlaneseq
    %v5787 = vshrl.u32 %v5786, 7
    %v5788 = vsub.s32 %v2128, %v5787
    %v5789 = vrot.slane %v4848, %v5788
    %v5790 = vsel %vm2133, %v5789, %v5785
    %v5791 = vlaneseq
    %v5792 = vshrl.u32 %v5791, 7
    %v5793 = vsub.s32 %v2135, %v5792
    %v5794 = vrot.slane %v4851, %v5793
    %v5795 = vsel %vm2140, %v5794, %v5790
    %v5796 = vlaneseq
    %v5797 = vshrl.u32 %v5796, 7
    %v5798 = vsub.s32 %v2142, %v5797
    %v5799 = vrot.slane %v4854, %v5798
    %v5800 = vsel %vm2147, %v5799, %v5795
    %v5801 = vlaneseq
    %v5802 = vshrl.u32 %v5801, 7
    %v5803 = vsub.s32 %v2149, %v5802
    %v5804 = vrot.slane %v4857, %v5803
    %v5805 = vsel %vm2154, %v5804, %v5800
    %v5806 = vlaneseq
    %v5807 = vshrl.u32 %v5806, 7
    %v5808 = vsub.s32 %v2156, %v5807
    %v5809 = vrot.slane %v4860, %v5808
    %v5810 = vsel %vm2161, %v5809, %v5805
    %v5811 = vlaneseq
    %v5812 = vshrl.u32 %v5811, 7
    %v5813 = vsub.s32 %v2163, %v5812
    %v5814 = vrot.slane %v4863, %v5813
    %v5815 = vsel %vm2168, %v5814, %v5810
    %v5816 = vlaneseq
    %v5817 = vshrl.u32 %v5816, 7
    %v5818 = vsub.s32 %v2170, %v5817
    %v5819 = vrot.slane %v4866, %v5818
    %v5820 = vsel %vm2175, %v5819, %v5815
    %v5821 = vlaneseq
    %v5822 = vshrl.u32 %v5821, 7
    %v5823 = vsub.s32 %v2067, %v5822
    %v5824 = vrot.slane %v4869, %v5823
    %v5825 = vlaneseq
    %v5826 = vshrl.u32 %v5825, 7
    %v5827 = vsub.s32 %v2072, %v5826
    %v5828 = vrot.slane %v4872, %v5827
    %v5829 = vsel %vm2077, %v5828, %v5824
    %v5830 = vlaneseq
    %v5831 = vshrl.u32 %v5830, 7
    %v5832 = vsub.s32 %v2079, %v5831
    %v5833 = vrot.slane %v4875, %v5832
    %v5834 = vsel %vm2084, %v5833, %v5829
    %v5835 = vlaneseq
    %v5836 = vshrl.u32 %v5835, 7
    %v5837 = vsub.s32 %v2086, %v5836
    %v5838 = vrot.slane %v4878, %v5837
    %v5839 = vsel %vm2091, %v5838, %v5834
    %v5840 = vlaneseq
    %v5841 = vshrl.u32 %v5840, 7
    %v5842 = vsub.s32 %v2093, %v5841
    %v5843 = vrot.slane %v4881, %v5842
    %v5844 = vsel %vm2098, %v5843, %v5839
    %v5845 = vlaneseq
    %v5846 = vshrl.u32 %v5845, 7
    %v5847 = vsub.s32 %v2100, %v5846
    %v5848 = vrot.slane %v4884, %v5847
    %v5849 = vsel %vm2105, %v5848, %v5844
    %v5850 = vlaneseq
    %v5851 = vshrl.u32 %v5850, 7
    %v5852 = vsub.s32 %v2107, %v5851
    %v5853 = vrot.slane %v4887, %v5852
    %v5854 = vsel %vm2112, %v5853, %v5849
    %v5855 = vlaneseq
    %v5856 = vshrl.u32 %v5855, 7
    %v5857 = vsub.s32 %v2114, %v5856
    %v5858 = vrot.slane %v4890, %v5857
    %v5859 = vsel %vm2119, %v5858, %v5854
    %v5860 = vlaneseq
    %v5861 = vshrl.u32 %v5860, 7
    %v5862 = vsub.s32 %v2121, %v5861
    %v5863 = vrot.slane %v4893, %v5862
    %v5864 = vsel %vm2126, %v5863, %v5859
    %v5865 = vlaneseq
    %v5866 = vshrl.u32 %v5865, 7
    %v5867 = vsub.s32 %v2128, %v5866
    %v5868 = vrot.slane %v4896, %v5867
    %v5869 = vsel %vm2133, %v5868, %v5864
    %v5870 = vlaneseq
    %v5871 = vshrl.u32 %v5870, 7
    %v5872 = vsub.s32 %v2135, %v5871
    %v5873 = vrot.slane %v4899, %v5872
    %v5874 = vsel %vm2140, %v5873, %v5869
    %v5875 = vlaneseq
    %v5876 = vshrl.u32 %v5875, 7
    %v5877 = vsub.s32 %v2142, %v5876
    %v5878 = vrot.slane %v4902, %v5877
    %v5879 = vsel %vm2147, %v5878, %v5874
    %v5880 = vlaneseq
    %v5881 = vshrl.u32 %v5880, 7
    %v5882 = vsub.s32 %v2149, %v5881
    %v5883 = vrot.slane %v4905, %v5882
    %v5884 = vsel %vm2154, %v5883, %v5879
    %v5885 = vlaneseq
    %v5886 = vshrl.u32 %v5885, 7
    %v5887 = vsub.s32 %v2156, %v5886
    %v5888 = vrot.slane %v4908, %v5887
    %v5889 = vsel %vm2161, %v5888, %v5884
    %v5890 = vlaneseq
    %v5891 = vshrl.u32 %v5890, 7
    %v5892 = vsub.s32 %v2163, %v5891
    %v5893 = vrot.slane %v4911, %v5892
    %v5894 = vsel %vm2168, %v5893, %v5889
    %v5895 = vlaneseq
    %v5896 = vshrl.u32 %v5895, 7
    %v5897 = vsub.s32 %v2170, %v5896
    %v5898 = vrot.slane %v4914, %v5897
    %v5899 = vsel %vm2175, %v5898, %v5894
    %v5900 = vlaneseq
    %v5901 = vshrl.u32 %v5900, 7
    %v5902 = vsub.s32 %v2067, %v5901
    %v5903 = vrot.slane %v4917, %v5902
    %v5904 = vlaneseq
    %v5905 = vshrl.u32 %v5904, 7
    %v5906 = vsub.s32 %v2072, %v5905
    %v5907 = vrot.slane %v4920, %v5906
    %v5908 = vsel %vm2077, %v5907, %v5903
    %v5909 = vlaneseq
    %v5910 = vshrl.u32 %v5909, 7
    %v5911 = vsub.s32 %v2079, %v5910
    %v5912 = vrot.slane %v4923, %v5911
    %v5913 = vsel %vm2084, %v5912, %v5908
    %v5914 = vlaneseq
    %v5915 = vshrl.u32 %v5914, 7
    %v5916 = vsub.s32 %v2086, %v5915
    %v5917 = vrot.slane %v4926, %v5916
    %v5918 = vsel %vm2091, %v5917, %v5913
    %v5919 = vlaneseq
    %v5920 = vshrl.u32 %v5919, 7
    %v5921 = vsub.s32 %v2093, %v5920
    %v5922 = vrot.slane %v4929, %v5921
    %v5923 = vsel %vm2098, %v5922, %v5918
    %v5924 = vlaneseq
    %v5925 = vshrl.u32 %v5924, 7
    %v5926 = vsub.s32 %v2100, %v5925
    %v5927 = vrot.slane %v4932, %v5926
    %v5928 = vsel %vm2105, %v5927, %v5923
    %v5929 = vlaneseq
    %v5930 = vshrl.u32 %v5929, 7
    %v5931 = vsub.s32 %v2107, %v5930
    %v5932 = vrot.slane %v4935, %v5931
    %v5933 = vsel %vm2112, %v5932, %v5928
    %v5934 = vlaneseq
    %v5935 = vshrl.u32 %v5934, 7
    %v5936 = vsub.s32 %v2114, %v5935
    %v5937 = vrot.slane %v4938, %v5936
    %v5938 = vsel %vm2119, %v5937, %v5933
    %v5939 = vlaneseq
    %v5940 = vshrl.u32 %v5939, 7
    %v5941 = vsub.s32 %v2121, %v5940
    %v5942 = vrot.slane %v4941, %v5941
    %v5943 = vsel %vm2126, %v5942, %v5938
    %v5944 = vlaneseq
    %v5945 = vshrl.u32 %v5944, 7
    %v5946 = vsub.s32 %v2128, %v5945
    %v5947 = vrot.slane %v4944, %v5946
    %v5948 = vsel %vm2133, %v5947, %v5943
    %v5949 = vlaneseq
    %v5950 = vshrl.u32 %v5949, 7
    %v5951 = vsub.s32 %v2135, %v5950
    %v5952 = vrot.slane %v4947, %v5951
    %v5953 = vsel %vm2140, %v5952, %v5948
    %v5954 = vlaneseq
    %v5955 = vshrl.u32 %v5954, 7
    %v5956 = vsub.s32 %v2142, %v5955
    %v5957 = vrot.slane %v4950, %v5956
    %v5958 = vsel %vm2147, %v5957, %v5953
    %v5959 = vlaneseq
    %v5960 = vshrl.u32 %v5959, 7
    %v5961 = vsub.s32 %v2149, %v5960
    %v5962 = vrot.slane %v4953, %v5961
    %v5963 = vsel %vm2154, %v5962, %v5958
    %v5964 = vlaneseq
    %v5965 = vshrl.u32 %v5964, 7
    %v5966 = vsub.s32 %v2156, %v5965
    %v5967 = vrot.slane %v4956, %v5966
    %v5968 = vsel %vm2161, %v5967, %v5963
    %v5969 = vlaneseq
    %v5970 = vshrl.u32 %v5969, 7
    %v5971 = vsub.s32 %v2163, %v5970
    %v5972 = vrot.slane %v4959, %v5971
    %v5973 = vsel %vm2168, %v5972, %v5968
    %v5974 = vlaneseq
    %v5975 = vshrl.u32 %v5974, 7
    %v5976 = vsub.s32 %v2170, %v5975
    %v5977 = vrot.slane %v4962, %v5976
    %v5978 = vsel %vm2175, %v5977, %v5973
    %v5979 = vlaneseq
    %v5980 = vshrl.u32 %v5979, 7
    %v5981 = vsub.s32 %v2067, %v5980
    %v5982 = vrot.slane %v4965, %v5981
    %v5983 = vlaneseq
    %v5984 = vshrl.u32 %v5983, 7
    %v5985 = vsub.s32 %v2072, %v5984
    %v5986 = vrot.slane %v4968, %v5985
    %v5987 = vsel %vm2077, %v5986, %v5982
    %v5988 = vlaneseq
    %v5989 = vshrl.u32 %v5988, 7
    %v5990 = vsub.s32 %v2079, %v5989
    %v5991 = vrot.slane %v4971, %v5990
    %v5992 = vsel %vm2084, %v5991, %v5987
    %v5993 = vlaneseq
    %v5994 = vshrl.u32 %v5993, 7
    %v5995 = vsub.s32 %v2086, %v5994
    %v5996 = vrot.slane %v4974, %v5995
    %v5997 = vsel %vm2091, %v5996, %v5992
    %v5998 = vlaneseq
    %v5999 = vshrl.u32 %v5998, 7
    %v6000 = vsub.s32 %v2093, %v5999
    %v6001 = vrot.slane %v4977, %v6000
    %v6002 = vsel %vm2098, %v6001, %v5997
    %v6003 = vlaneseq
    %v6004 = vshrl.u32 %v6003, 7
    %v6005 = vsub.s32 %v2100, %v6004
    %v6006 = vrot.slane %v4980, %v6005
    %v6007 = vsel %vm2105, %v6006, %v6002
    %v6008 = vlaneseq
    %v6009 = vshrl.u32 %v6008, 7
    %v6010 = vsub.s32 %v2107, %v6009
    %v6011 = vrot.slane %v4983, %v6010
    %v6012 = vsel %vm2112, %v6011, %v6007
    %v6013 = vlaneseq
    %v6014 = vshrl.u32 %v6013, 7
    %v6015 = vsub.s32 %v2114, %v6014
    %v6016 = vrot.slane %v4986, %v6015
    %v6017 = vsel %vm2119, %v6016, %v6012
    %v6018 = vlaneseq
    %v6019 = vshrl.u32 %v6018, 7
    %v6020 = vsub.s32 %v2121, %v6019
    %v6021 = vrot.slane %v4989, %v6020
    %v6022 = vsel %vm2126, %v6021, %v6017
    %v6023 = vlaneseq
    %v6024 = vshrl.u32 %v6023, 7
    %v6025 = vsub.s32 %v2128, %v6024
    %v6026 = vrot.slane %v4992, %v6025
    %v6027 = vsel %vm2133, %v6026, %v6022
    %v6028 = vlaneseq
    %v6029 = vshrl.u32 %v6028, 7
    %v6030 = vsub.s32 %v2135, %v6029
    %v6031 = vrot.slane %v4995, %v6030
    %v6032 = vsel %vm2140, %v6031, %v6027
    %v6033 = vlaneseq
    %v6034 = vshrl.u32 %v6033, 7
    %v6035 = vsub.s32 %v2142, %v6034
    %v6036 = vrot.slane %v4998, %v6035
    %v6037 = vsel %vm2147, %v6036, %v6032
    %v6038 = vlaneseq
    %v6039 = vshrl.u32 %v6038, 7
    %v6040 = vsub.s32 %v2149, %v6039
    %v6041 = vrot.slane %v5001, %v6040
    %v6042 = vsel %vm2154, %v6041, %v6037
    %v6043 = vlaneseq
    %v6044 = vshrl.u32 %v6043, 7
    %v6045 = vsub.s32 %v2156, %v6044
    %v6046 = vrot.slane %v5004, %v6045
    %v6047 = vsel %vm2161, %v6046, %v6042
    %v6048 = vlaneseq
    %v6049 = vshrl.u32 %v6048, 7
    %v6050 = vsub.s32 %v2163, %v6049
    %v6051 = vrot.slane %v5007, %v6050
    %v6052 = vsel %vm2168, %v6051, %v6047
    %v6053 = vlaneseq
    %v6054 = vshrl.u32 %v6053, 7
    %v6055 = vsub.s32 %v2170, %v6054
    %v6056 = vrot.slane %v5010, %v6055
    %v6057 = vsel %vm2175, %v6056, %v6052
    %v6058 = vlaneseq
    %v6059 = vshrl.u32 %v6058, 7
    %v6060 = vsub.s32 %v2067, %v6059
    %v6061 = vrot.slane %v5013, %v6060
    %v6062 = vlaneseq
    %v6063 = vshrl.u32 %v6062, 7
    %v6064 = vsub.s32 %v2072, %v6063
    %v6065 = vrot.slane %v5016, %v6064
    %v6066 = vsel %vm2077, %v6065, %v6061
    %v6067 = vlaneseq
    %v6068 = vshrl.u32 %v6067, 7
    %v6069 = vsub.s32 %v2079, %v6068
    %v6070 = vrot.slane %v5019, %v6069
    %v6071 = vsel %vm2084, %v6070, %v6066
    %v6072 = vlaneseq
    %v6073 = vshrl.u32 %v6072, 7
    %v6074 = vsub.s32 %v2086, %v6073
    %v6075 = vrot.slane %v5022, %v6074
    %v6076 = vsel %vm2091, %v6075, %v6071
    %v6077 = vlaneseq
    %v6078 = vshrl.u32 %v6077, 7
    %v6079 = vsub.s32 %v2093, %v6078
    %v6080 = vrot.slane %v5025, %v6079
    %v6081 = vsel %vm2098, %v6080, %v6076
    %v6082 = vlaneseq
    %v6083 = vshrl.u32 %v6082, 7
    %v6084 = vsub.s32 %v2100, %v6083
    %v6085 = vrot.slane %v5028, %v6084
    %v6086 = vsel %vm2105, %v6085, %v6081
    %v6087 = vlaneseq
    %v6088 = vshrl.u32 %v6087, 7
    %v6089 = vsub.s32 %v2107, %v6088
    %v6090 = vrot.slane %v5031, %v6089
    %v6091 = vsel %vm2112, %v6090, %v6086
    %v6092 = vlaneseq
    %v6093 = vshrl.u32 %v6092, 7
    %v6094 = vsub.s32 %v2114, %v6093
    %v6095 = vrot.slane %v5034, %v6094
    %v6096 = vsel %vm2119, %v6095, %v6091
    %v6097 = vlaneseq
    %v6098 = vshrl.u32 %v6097, 7
    %v6099 = vsub.s32 %v2121, %v6098
    %v6100 = vrot.slane %v5037, %v6099
    %v6101 = vsel %vm2126, %v6100, %v6096
    %v6102 = vlaneseq
    %v6103 = vshrl.u32 %v6102, 7
    %v6104 = vsub.s32 %v2128, %v6103
    %v6105 = vrot.slane %v5040, %v6104
    %v6106 = vsel %vm2133, %v6105, %v6101
    %v6107 = vlaneseq
    %v6108 = vshrl.u32 %v6107, 7
    %v6109 = vsub.s32 %v2135, %v6108
    %v6110 = vrot.slane %v5043, %v6109
    %v6111 = vsel %vm2140, %v6110, %v6106
    %v6112 = vlaneseq
    %v6113 = vshrl.u32 %v6112, 7
    %v6114 = vsub.s32 %v2142, %v6113
    %v6115 = vrot.slane %v5046, %v6114
    %v6116 = vsel %vm2147, %v6115, %v6111
    %v6117 = vlaneseq
    %v6118 = vshrl.u32 %v6117, 7
    %v6119 = vsub.s32 %v2149, %v6118
    %v6120 = vrot.slane %v5049, %v6119
    %v6121 = vsel %vm2154, %v6120, %v6116
    %v6122 = vlaneseq
    %v6123 = vshrl.u32 %v6122, 7
    %v6124 = vsub.s32 %v2156, %v6123
    %v6125 = vrot.slane %v5052, %v6124
    %v6126 = vsel %vm2161, %v6125, %v6121
    %v6127 = vlaneseq
    %v6128 = vshrl.u32 %v6127, 7
    %v6129 = vsub.s32 %v2163, %v6128
    %v6130 = vrot.slane %v5055, %v6129
    %v6131 = vsel %vm2168, %v6130, %v6126
    %v6132 = vlaneseq
    %v6133 = vshrl.u32 %v6132, 7
    %v6134 = vsub.s32 %v2170, %v6133
    %v6135 = vrot.slane %v5058, %v6134
    %v6136 = vsel %vm2175, %v6135, %v6131
    %v6137 = vlaneseq
    %v6138 = vshrl.u32 %v6137, 7
    %v6139 = vsub.s32 %v2067, %v6138
    %v6140 = vrot.slane %v5061, %v6139
    %v6141 = vlaneseq
    %v6142 = vshrl.u32 %v6141, 7
    %v6143 = vsub.s32 %v2072, %v6142
    %v6144 = vrot.slane %v5064, %v6143
    %v6145 = vsel %vm2077, %v6144, %v6140
    %v6146 = vlaneseq
    %v6147 = vshrl.u32 %v6146, 7
    %v6148 = vsub.s32 %v2079, %v6147
    %v6149 = vrot.slane %v5067, %v6148
    %v6150 = vsel %vm2084, %v6149, %v6145
    %v6151 = vlaneseq
    %v6152 = vshrl.u32 %v6151, 7
    %v6153 = vsub.s32 %v2086, %v6152
    %v6154 = vrot.slane %v5070, %v6153
    %v6155 = vsel %vm2091, %v6154, %v6150
    %v6156 = vlaneseq
    %v6157 = vshrl.u32 %v6156, 7
    %v6158 = vsub.s32 %v2093, %v6157
    %v6159 = vrot.slane %v5073, %v6158
    %v6160 = vsel %vm2098, %v6159, %v6155
    %v6161 = vlaneseq
    %v6162 = vshrl.u32 %v6161, 7
    %v6163 = vsub.s32 %v2100, %v6162
    %v6164 = vrot.slane %v5076, %v6163
    %v6165 = vsel %vm2105, %v6164, %v6160
    %v6166 = vlaneseq
    %v6167 = vshrl.u32 %v6166, 7
    %v6168 = vsub.s32 %v2107, %v6167
    %v6169 = vrot.slane %v5079, %v6168
    %v6170 = vsel %vm2112, %v6169, %v6165
    %v6171 = vlaneseq
    %v6172 = vshrl.u32 %v6171, 7
    %v6173 = vsub.s32 %v2114, %v6172
    %v6174 = vrot.slane %v5082, %v6173
    %v6175 = vsel %vm2119, %v6174, %v6170
    %v6176 = vlaneseq
    %v6177 = vshrl.u32 %v6176, 7
    %v6178 = vsub.s32 %v2121, %v6177
    %v6179 = vrot.slane %v5085, %v6178
    %v6180 = vsel %vm2126, %v6179, %v6175
    %v6181 = vlaneseq
    %v6182 = vshrl.u32 %v6181, 7
    %v6183 = vsub.s32 %v2128, %v6182
    %v6184 = vrot.slane %v5088, %v6183
    %v6185 = vsel %vm2133, %v6184, %v6180
    %v6186 = vlaneseq
    %v6187 = vshrl.u32 %v6186, 7
    %v6188 = vsub.s32 %v2135, %v6187
    %v6189 = vrot.slane %v5091, %v6188
    %v6190 = vsel %vm2140, %v6189, %v6185
    %v6191 = vlaneseq
    %v6192 = vshrl.u32 %v6191, 7
    %v6193 = vsub.s32 %v2142, %v6192
    %v6194 = vrot.slane %v5094, %v6193
    %v6195 = vsel %vm2147, %v6194, %v6190
    %v6196 = vlaneseq
    %v6197 = vshrl.u32 %v6196, 7
    %v6198 = vsub.s32 %v2149, %v6197
    %v6199 = vrot.slane %v5097, %v6198
    %v6200 = vsel %vm2154, %v6199, %v6195
    %v6201 = vlaneseq
    %v6202 = vshrl.u32 %v6201, 7
    %v6203 = vsub.s32 %v2156, %v6202
    %v6204 = vrot.slane %v5100, %v6203
    %v6205 = vsel %vm2161, %v6204, %v6200
    %v6206 = vlaneseq
    %v6207 = vshrl.u32 %v6206, 7
    %v6208 = vsub.s32 %v2163, %v6207
    %v6209 = vrot.slane %v5103, %v6208
    %v6210 = vsel %vm2168, %v6209, %v6205
    %v6211 = vlaneseq
    %v6212 = vshrl.u32 %v6211, 7
    %v6213 = vsub.s32 %v2170, %v6212
    %v6214 = vrot.slane %v5106, %v6213
    %v6215 = vsel %vm2175, %v6214, %v6210
    %v6216 = vlaneseq
    %v6217 = vshrl.u32 %v6216, 7
    %v6218 = vsub.s32 %v2067, %v6217
    %v6219 = vrot.slane %v5109, %v6218
    %v6220 = vlaneseq
    %v6221 = vshrl.u32 %v6220, 7
    %v6222 = vsub.s32 %v2072, %v6221
    %v6223 = vrot.slane %v5112, %v6222
    %v6224 = vsel %vm2077, %v6223, %v6219
    %v6225 = vlaneseq
    %v6226 = vshrl.u32 %v6225, 7
    %v6227 = vsub.s32 %v2079, %v6226
    %v6228 = vrot.slane %v5115, %v6227
    %v6229 = vsel %vm2084, %v6228, %v6224
    %v6230 = vlaneseq
    %v6231 = vshrl.u32 %v6230, 7
    %v6232 = vsub.s32 %v2086, %v6231
    %v6233 = vrot.slane %v5118, %v6232
    %v6234 = vsel %vm2091, %v6233, %v6229
    %v6235 = vlaneseq
    %v6236 = vshrl.u32 %v6235, 7
    %v6237 = vsub.s32 %v2093, %v6236
    %v6238 = vrot.slane %v5121, %v6237
    %v6239 = vsel %vm2098, %v6238, %v6234
    %v6240 = vlaneseq
    %v6241 = vshrl.u32 %v6240, 7
    %v6242 = vsub.s32 %v2100, %v6241
    %v6243 = vrot.slane %v5124, %v6242
    %v6244 = vsel %vm2105, %v6243, %v6239
    %v6245 = vlaneseq
    %v6246 = vshrl.u32 %v6245, 7
    %v6247 = vsub.s32 %v2107, %v6246
    %v6248 = vrot.slane %v5127, %v6247
    %v6249 = vsel %vm2112, %v6248, %v6244
    %v6250 = vlaneseq
    %v6251 = vshrl.u32 %v6250, 7
    %v6252 = vsub.s32 %v2114, %v6251
    %v6253 = vrot.slane %v5130, %v6252
    %v6254 = vsel %vm2119, %v6253, %v6249
    %v6255 = vlaneseq
    %v6256 = vshrl.u32 %v6255, 7
    %v6257 = vsub.s32 %v2121, %v6256
    %v6258 = vrot.slane %v5133, %v6257
    %v6259 = vsel %vm2126, %v6258, %v6254
    %v6260 = vlaneseq
    %v6261 = vshrl.u32 %v6260, 7
    %v6262 = vsub.s32 %v2128, %v6261
    %v6263 = vrot.slane %v5136, %v6262
    %v6264 = vsel %vm2133, %v6263, %v6259
    %v6265 = vlaneseq
    %v6266 = vshrl.u32 %v6265, 7
    %v6267 = vsub.s32 %v2135, %v6266
    %v6268 = vrot.slane %v5139, %v6267
    %v6269 = vsel %vm2140, %v6268, %v6264
    %v6270 = vlaneseq
    %v6271 = vshrl.u32 %v6270, 7
    %v6272 = vsub.s32 %v2142, %v6271
    %v6273 = vrot.slane %v5142, %v6272
    %v6274 = vsel %vm2147, %v6273, %v6269
    %v6275 = vlaneseq
    %v6276 = vshrl.u32 %v6275, 7
    %v6277 = vsub.s32 %v2149, %v6276
    %v6278 = vrot.slane %v5145, %v6277
    %v6279 = vsel %vm2154, %v6278, %v6274
    %v6280 = vlaneseq
    %v6281 = vshrl.u32 %v6280, 7
    %v6282 = vsub.s32 %v2156, %v6281
    %v6283 = vrot.slane %v5148, %v6282
    %v6284 = vsel %vm2161, %v6283, %v6279
    %v6285 = vlaneseq
    %v6286 = vshrl.u32 %v6285, 7
    %v6287 = vsub.s32 %v2163, %v6286
    %v6288 = vrot.slane %v5151, %v6287
    %v6289 = vsel %vm2168, %v6288, %v6284
    %v6290 = vlaneseq
    %v6291 = vshrl.u32 %v6290, 7
    %v6292 = vsub.s32 %v2170, %v6291
    %v6293 = vrot.slane %v5154, %v6292
    %v6294 = vsel %vm2175, %v6293, %v6289
    %v6295 = vlaneseq
    %v6296 = vshrl.u32 %v6295, 7
    %v6297 = vsub.s32 %v2067, %v6296
    %v6298 = vrot.slane %v5157, %v6297
    %v6299 = vlaneseq
    %v6300 = vshrl.u32 %v6299, 7
    %v6301 = vsub.s32 %v2072, %v6300
    %v6302 = vrot.slane %v5160, %v6301
    %v6303 = vsel %vm2077, %v6302, %v6298
    %v6304 = vlaneseq
    %v6305 = vshrl.u32 %v6304, 7
    %v6306 = vsub.s32 %v2079, %v6305
    %v6307 = vrot.slane %v5163, %v6306
    %v6308 = vsel %vm2084, %v6307, %v6303
    %v6309 = vlaneseq
    %v6310 = vshrl.u32 %v6309, 7
    %v6311 = vsub.s32 %v2086, %v6310
    %v6312 = vrot.slane %v5166, %v6311
    %v6313 = vsel %vm2091, %v6312, %v6308
    %v6314 = vlaneseq
    %v6315 = vshrl.u32 %v6314, 7
    %v6316 = vsub.s32 %v2093, %v6315
    %v6317 = vrot.slane %v5169, %v6316
    %v6318 = vsel %vm2098, %v6317, %v6313
    %v6319 = vlaneseq
    %v6320 = vshrl.u32 %v6319, 7
    %v6321 = vsub.s32 %v2100, %v6320
    %v6322 = vrot.slane %v5172, %v6321
    %v6323 = vsel %vm2105, %v6322, %v6318
    %v6324 = vlaneseq
    %v6325 = vshrl.u32 %v6324, 7
    %v6326 = vsub.s32 %v2107, %v6325
    %v6327 = vrot.slane %v5175, %v6326
    %v6328 = vsel %vm2112, %v6327, %v6323
    %v6329 = vlaneseq
    %v6330 = vshrl.u32 %v6329, 7
    %v6331 = vsub.s32 %v2114, %v6330
    %v6332 = vrot.slane %v5178, %v6331
    %v6333 = vsel %vm2119, %v6332, %v6328
    %v6334 = vlaneseq
    %v6335 = vshrl.u32 %v6334, 7
    %v6336 = vsub.s32 %v2121, %v6335
    %v6337 = vrot.slane %v5181, %v6336
    %v6338 = vsel %vm2126, %v6337, %v6333
    %v6339 = vlaneseq
    %v6340 = vshrl.u32 %v6339, 7
    %v6341 = vsub.s32 %v2128, %v6340
    %v6342 = vrot.slane %v5184, %v6341
    %v6343 = vsel %vm2133, %v6342, %v6338
    %v6344 = vlaneseq
    %v6345 = vshrl.u32 %v6344, 7
    %v6346 = vsub.s32 %v2135, %v6345
    %v6347 = vrot.slane %v5187, %v6346
    %v6348 = vsel %vm2140, %v6347, %v6343
    %v6349 = vlaneseq
    %v6350 = vshrl.u32 %v6349, 7
    %v6351 = vsub.s32 %v2142, %v6350
    %v6352 = vrot.slane %v5190, %v6351
    %v6353 = vsel %vm2147, %v6352, %v6348
    %v6354 = vlaneseq
    %v6355 = vshrl.u32 %v6354, 7
    %v6356 = vsub.s32 %v2149, %v6355
    %v6357 = vrot.slane %v5193, %v6356
    %v6358 = vsel %vm2154, %v6357, %v6353
    %v6359 = vlaneseq
    %v6360 = vshrl.u32 %v6359, 7
    %v6361 = vsub.s32 %v2156, %v6360
    %v6362 = vrot.slane %v5196, %v6361
    %v6363 = vsel %vm2161, %v6362, %v6358
    %v6364 = vlaneseq
    %v6365 = vshrl.u32 %v6364, 7
    %v6366 = vsub.s32 %v2163, %v6365
    %v6367 = vrot.slane %v5199, %v6366
    %v6368 = vsel %vm2168, %v6367, %v6363
    %v6369 = vlaneseq
    %v6370 = vshrl.u32 %v6369, 7
    %v6371 = vsub.s32 %v2170, %v6370
    %v6372 = vrot.slane %v5202, %v6371
    %v6373 = vsel %vm2175, %v6372, %v6368
    %v6374 = vlaneseq
    %v6375 = vshrl.u32 %v6374, 7
    %v6376 = vsub.s32 %v2067, %v6375
    %v6377 = vrot.slane %v5205, %v6376
    %v6378 = vlaneseq
    %v6379 = vshrl.u32 %v6378, 7
    %v6380 = vsub.s32 %v2072, %v6379
    %v6381 = vrot.slane %v5208, %v6380
    %v6382 = vsel %vm2077, %v6381, %v6377
    %v6383 = vlaneseq
    %v6384 = vshrl.u32 %v6383, 7
    %v6385 = vsub.s32 %v2079, %v6384
    %v6386 = vrot.slane %v5211, %v6385
    %v6387 = vsel %vm2084, %v6386, %v6382
    %v6388 = vlaneseq
    %v6389 = vshrl.u32 %v6388, 7
    %v6390 = vsub.s32 %v2086, %v6389
    %v6391 = vrot.slane %v5214, %v6390
    %v6392 = vsel %vm2091, %v6391, %v6387
    %v6393 = vlaneseq
    %v6394 = vshrl.u32 %v6393, 7
    %v6395 = vsub.s32 %v2093, %v6394
    %v6396 = vrot.slane %v5217, %v6395
    %v6397 = vsel %vm2098, %v6396, %v6392
    %v6398 = vlaneseq
    %v6399 = vshrl.u32 %v6398, 7
    %v6400 = vsub.s32 %v2100, %v6399
    %v6401 = vrot.slane %v5220, %v6400
    %v6402 = vsel %vm2105, %v6401, %v6397
    %v6403 = vlaneseq
    %v6404 = vshrl.u32 %v6403, 7
    %v6405 = vsub.s32 %v2107, %v6404
    %v6406 = vrot.slane %v5223, %v6405
    %v6407 = vsel %vm2112, %v6406, %v6402
    %v6408 = vlaneseq
    %v6409 = vshrl.u32 %v6408, 7
    %v6410 = vsub.s32 %v2114, %v6409
    %v6411 = vrot.slane %v5226, %v6410
    %v6412 = vsel %vm2119, %v6411, %v6407
    %v6413 = vlaneseq
    %v6414 = vshrl.u32 %v6413, 7
    %v6415 = vsub.s32 %v2121, %v6414
    %v6416 = vrot.slane %v5229, %v6415
    %v6417 = vsel %vm2126, %v6416, %v6412
    %v6418 = vlaneseq
    %v6419 = vshrl.u32 %v6418, 7
    %v6420 = vsub.s32 %v2128, %v6419
    %v6421 = vrot.slane %v5232, %v6420
    %v6422 = vsel %vm2133, %v6421, %v6417
    %v6423 = vlaneseq
    %v6424 = vshrl.u32 %v6423, 7
    %v6425 = vsub.s32 %v2135, %v6424
    %v6426 = vrot.slane %v5235, %v6425
    %v6427 = vsel %vm2140, %v6426, %v6422
    %v6428 = vlaneseq
    %v6429 = vshrl.u32 %v6428, 7
    %v6430 = vsub.s32 %v2142, %v6429
    %v6431 = vrot.slane %v5238, %v6430
    %v6432 = vsel %vm2147, %v6431, %v6427
    %v6433 = vlaneseq
    %v6434 = vshrl.u32 %v6433, 7
    %v6435 = vsub.s32 %v2149, %v6434
    %v6436 = vrot.slane %v5241, %v6435
    %v6437 = vsel %vm2154, %v6436, %v6432
    %v6438 = vlaneseq
    %v6439 = vshrl.u32 %v6438, 7
    %v6440 = vsub.s32 %v2156, %v6439
    %v6441 = vrot.slane %v5244, %v6440
    %v6442 = vsel %vm2161, %v6441, %v6437
    %v6443 = vlaneseq
    %v6444 = vshrl.u32 %v6443, 7
    %v6445 = vsub.s32 %v2163, %v6444
    %v6446 = vrot.slane %v5247, %v6445
    %v6447 = vsel %vm2168, %v6446, %v6442
    %v6448 = vlaneseq
    %v6449 = vshrl.u32 %v6448, 7
    %v6450 = vsub.s32 %v2170, %v6449
    %v6451 = vrot.slane %v5250, %v6450
    %v6452 = vsel %vm2175, %v6451, %v6447
    %v6453 = vlaneseq
    %v6454 = vshrl.u32 %v6453, 7
    %v6455 = vsub.s32 %v2067, %v6454
    %v6456 = vrot.slane %v5253, %v6455
    %v6457 = vlaneseq
    %v6458 = vshrl.u32 %v6457, 7
    %v6459 = vsub.s32 %v2072, %v6458
    %v6460 = vrot.slane %v5256, %v6459
    %v6461 = vsel %vm2077, %v6460, %v6456
    %v6462 = vlaneseq
    %v6463 = vshrl.u32 %v6462, 7
    %v6464 = vsub.s32 %v2079, %v6463
    %v6465 = vrot.slane %v5259, %v6464
    %v6466 = vsel %vm2084, %v6465, %v6461
    %v6467 = vlaneseq
    %v6468 = vshrl.u32 %v6467, 7
    %v6469 = vsub.s32 %v2086, %v6468
    %v6470 = vrot.slane %v5262, %v6469
    %v6471 = vsel %vm2091, %v6470, %v6466
    %v6472 = vlaneseq
    %v6473 = vshrl.u32 %v6472, 7
    %v6474 = vsub.s32 %v2093, %v6473
    %v6475 = vrot.slane %v5265, %v6474
    %v6476 = vsel %vm2098, %v6475, %v6471
    %v6477 = vlaneseq
    %v6478 = vshrl.u32 %v6477, 7
    %v6479 = vsub.s32 %v2100, %v6478
    %v6480 = vrot.slane %v5268, %v6479
    %v6481 = vsel %vm2105, %v6480, %v6476
    %v6482 = vlaneseq
    %v6483 = vshrl.u32 %v6482, 7
    %v6484 = vsub.s32 %v2107, %v6483
    %v6485 = vrot.slane %v5271, %v6484
    %v6486 = vsel %vm2112, %v6485, %v6481
    %v6487 = vlaneseq
    %v6488 = vshrl.u32 %v6487, 7
    %v6489 = vsub.s32 %v2114, %v6488
    %v6490 = vrot.slane %v5274, %v6489
    %v6491 = vsel %vm2119, %v6490, %v6486
    %v6492 = vlaneseq
    %v6493 = vshrl.u32 %v6492, 7
    %v6494 = vsub.s32 %v2121, %v6493
    %v6495 = vrot.slane %v5277, %v6494
    %v6496 = vsel %vm2126, %v6495, %v6491
    %v6497 = vlaneseq
    %v6498 = vshrl.u32 %v6497, 7
    %v6499 = vsub.s32 %v2128, %v6498
    %v6500 = vrot.slane %v5280, %v6499
    %v6501 = vsel %vm2133, %v6500, %v6496
    %v6502 = vlaneseq
    %v6503 = vshrl.u32 %v6502, 7
    %v6504 = vsub.s32 %v2135, %v6503
    %v6505 = vrot.slane %v5283, %v6504
    %v6506 = vsel %vm2140, %v6505, %v6501
    %v6507 = vlaneseq
    %v6508 = vshrl.u32 %v6507, 7
    %v6509 = vsub.s32 %v2142, %v6508
    %v6510 = vrot.slane %v5286, %v6509
    %v6511 = vsel %vm2147, %v6510, %v6506
    %v6512 = vlaneseq
    %v6513 = vshrl.u32 %v6512, 7
    %v6514 = vsub.s32 %v2149, %v6513
    %v6515 = vrot.slane %v5289, %v6514
    %v6516 = vsel %vm2154, %v6515, %v6511
    %v6517 = vlaneseq
    %v6518 = vshrl.u32 %v6517, 7
    %v6519 = vsub.s32 %v2156, %v6518
    %v6520 = vrot.slane %v5292, %v6519
    %v6521 = vsel %vm2161, %v6520, %v6516
    %v6522 = vlaneseq
    %v6523 = vshrl.u32 %v6522, 7
    %v6524 = vsub.s32 %v2163, %v6523
    %v6525 = vrot.slane %v5295, %v6524
    %v6526 = vsel %vm2168, %v6525, %v6521
    %v6527 = vlaneseq
    %v6528 = vshrl.u32 %v6527, 7
    %v6529 = vsub.s32 %v2170, %v6528
    %v6530 = vrot.slane %v5298, %v6529
    %v6531 = vsel %vm2175, %v6530, %v6526
    %v6532 = vlaneseq
    %v6533 = vshrl.u32 %v6532, 7
    %v6534 = vsub.s32 %v2067, %v6533
    %v6535 = vrot.slane %v5301, %v6534
    %v6536 = vlaneseq
    %v6537 = vshrl.u32 %v6536, 7
    %v6538 = vsub.s32 %v2072, %v6537
    %v6539 = vrot.slane %v5304, %v6538
    %v6540 = vsel %vm2077, %v6539, %v6535
    %v6541 = vlaneseq
    %v6542 = vshrl.u32 %v6541, 7
    %v6543 = vsub.s32 %v2079, %v6542
    %v6544 = vrot.slane %v5307, %v6543
    %v6545 = vsel %vm2084, %v6544, %v6540
    %v6546 = vlaneseq
    %v6547 = vshrl.u32 %v6546, 7
    %v6548 = vsub.s32 %v2086, %v6547
    %v6549 = vrot.slane %v5310, %v6548
    %v6550 = vsel %vm2091, %v6549, %v6545
    %v6551 = vlaneseq
    %v6552 = vshrl.u32 %v6551, 7
    %v6553 = vsub.s32 %v2093, %v6552
    %v6554 = vrot.slane %v5313, %v6553
    %v6555 = vsel %vm2098, %v6554, %v6550
    %v6556 = vlaneseq
    %v6557 = vshrl.u32 %v6556, 7
    %v6558 = vsub.s32 %v2100, %v6557
    %v6559 = vrot.slane %v5316, %v6558
    %v6560 = vsel %vm2105, %v6559, %v6555
    %v6561 = vlaneseq
    %v6562 = vshrl.u32 %v6561, 7
    %v6563 = vsub.s32 %v2107, %v6562
    %v6564 = vrot.slane %v5319, %v6563
    %v6565 = vsel %vm2112, %v6564, %v6560
    %v6566 = vlaneseq
    %v6567 = vshrl.u32 %v6566, 7
    %v6568 = vsub.s32 %v2114, %v6567
    %v6569 = vrot.slane %v5322, %v6568
    %v6570 = vsel %vm2119, %v6569, %v6565
    %v6571 = vlaneseq
    %v6572 = vshrl.u32 %v6571, 7
    %v6573 = vsub.s32 %v2121, %v6572
    %v6574 = vrot.slane %v5325, %v6573
    %v6575 = vsel %vm2126, %v6574, %v6570
    %v6576 = vlaneseq
    %v6577 = vshrl.u32 %v6576, 7
    %v6578 = vsub.s32 %v2128, %v6577
    %v6579 = vrot.slane %v5328, %v6578
    %v6580 = vsel %vm2133, %v6579, %v6575
    %v6581 = vlaneseq
    %v6582 = vshrl.u32 %v6581, 7
    %v6583 = vsub.s32 %v2135, %v6582
    %v6584 = vrot.slane %v5331, %v6583
    %v6585 = vsel %vm2140, %v6584, %v6580
    %v6586 = vlaneseq
    %v6587 = vshrl.u32 %v6586, 7
    %v6588 = vsub.s32 %v2142, %v6587
    %v6589 = vrot.slane %v5334, %v6588
    %v6590 = vsel %vm2147, %v6589, %v6585
    %v6591 = vlaneseq
    %v6592 = vshrl.u32 %v6591, 7
    %v6593 = vsub.s32 %v2149, %v6592
    %v6594 = vrot.slane %v5337, %v6593
    %v6595 = vsel %vm2154, %v6594, %v6590
    %v6596 = vlaneseq
    %v6597 = vshrl.u32 %v6596, 7
    %v6598 = vsub.s32 %v2156, %v6597
    %v6599 = vrot.slane %v5340, %v6598
    %v6600 = vsel %vm2161, %v6599, %v6595
    %v6601 = vlaneseq
    %v6602 = vshrl.u32 %v6601, 7
    %v6603 = vsub.s32 %v2163, %v6602
    %v6604 = vrot.slane %v5343, %v6603
    %v6605 = vsel %vm2168, %v6604, %v6600
    %v6606 = vlaneseq
    %v6607 = vshrl.u32 %v6606, 7
    %v6608 = vsub.s32 %v2170, %v6607
    %v6609 = vrot.slane %v5346, %v6608
    %v6610 = vsel %vm2175, %v6609, %v6605
    %v6611 = vsel %vm3362, %v6057, %v5425
    %v6612 = vsel %vm3362, %v6136, %v5504
    %v6613 = vsel %vm3362, %v6215, %v5583
    %v6614 = vsel %vm3362, %v6294, %v5662
    %v6615 = vsel %vm3362, %v6373, %v5741
    %v6616 = vsel %vm3362, %v6452, %v5820
    %v6617 = vsel %vm3362, %v6531, %v5899
    %v6618 = vsel %vm3362, %v6610, %v5978
    %v6627 = vadd.f32 %v3379, %v6611
    %v6628 = vadd.f32 %v3380, %v6612
    %v6629 = vadd.f32 %v3381, %v6613
    %v6630 = vadd.f32 %v3382, %v6614
    %v6631 = vadd.f32 %v3383, %v6615
    %v6632 = vadd.f32 %v3384, %v6616
    %v6633 = vadd.f32 %v3385, %v6617
    %v6634 = vadd.f32 %v3386, %v6618
    %v6635 = vlaneseq
    %v6636 = vshrl.u32 %v6635, 7
    %v6637 = vsub.s32 2, %v6636
    %v6638 = vrot.slane %v72, %v6637
    %v6639 = vlaneseq
    %v6640 = vshrl.u32 %v6639, 7
    %v6641 = vsub.s32 2, %v6640
    %v6642 = vrot.slane %v73, %v6641
    %v6643 = vlaneseq
    %v6644 = vshrl.u32 %v6643, 7
    %v6645 = vsub.s32 2, %v6644
    %v6646 = vrot.slane %v40, %v6645
    %v6647 = vlaneseq
    %v6648 = vshrl.u32 %v6647, 7
    %v6649 = vsub.s32 2, %v6648
    %v6650 = vrot.slane %v41, %v6649
    %v6651 = vlaneseq
    %v6652 = vshrl.u32 %v6651, 7
    %v6653 = vsub.s32 2, %v6652
    %v6654 = vrot.slane %v42, %v6653
    %v6655 = vlaneseq
    %v6656 = vshrl.u32 %v6655, 7
    %v6657 = vsub.s32 2, %v6656
    %v6658 = vrot.slane %v43, %v6657
    %v6659 = vlaneseq
    %v6660 = vshrl.u32 %v6659, 7
    %v6661 = vsub.s32 2, %v6660
    %v6662 = vrot.slane %v44, %v6661
    %v6663 = vlaneseq
    %v6664 = vshrl.u32 %v6663, 7
    %v6665 = vsub.s32 2, %v6664
    %v6666 = vrot.slane %v45, %v6665
    %v6667 = vlaneseq
    %v6668 = vshrl.u32 %v6667, 7
    %v6669 = vsub.s32 2, %v6668
    %v6670 = vrot.slane %v46, %v6669
    %v6671 = vlaneseq
    %v6672 = vshrl.u32 %v6671, 7
    %v6673 = vsub.s32 2, %v6672
    %v6674 = vrot.slane %v47, %v6673
    %6684 = vbcast.lane.b32.xlu0 %v6646, 256
    %v6685 = vpop.permute.xlu0 %6684
    %s6687 = sor.u32 256, 8
    %6688 = vbcast.lane.b32.xlu0 %v6646, %s6687
    %v6689 = vpop.permute.xlu0 %6688
    %s6691 = sor.u32 256, 16
    %6692 = vbcast.lane.b32.xlu0 %v6646, %s6691
    %v6693 = vpop.permute.xlu0 %6692
    %s6695 = sor.u32 256, 24
    %6696 = vbcast.lane.b32.xlu0 %v6646, %s6695
    %v6697 = vpop.permute.xlu0 %6696
    %s6699 = sor.u32 256, 32
    %6700 = vbcast.lane.b32.xlu0 %v6646, %s6699
    %v6701 = vpop.permute.xlu0 %6700
    %s6703 = sor.u32 256, 40
    %6704 = vbcast.lane.b32.xlu0 %v6646, %s6703
    %v6705 = vpop.permute.xlu0 %6704
    %s6707 = sor.u32 256, 48
    %6708 = vbcast.lane.b32.xlu0 %v6646, %s6707
    %v6709 = vpop.permute.xlu0 %6708
    %s6711 = sor.u32 256, 56
    %6712 = vbcast.lane.b32.xlu0 %v6646, %s6711
    %v6713 = vpop.permute.xlu0 %6712
    %s6715 = sor.u32 256, 64
    %6716 = vbcast.lane.b32.xlu0 %v6646, %s6715
    %v6717 = vpop.permute.xlu0 %6716
    %s6719 = sor.u32 256, 72
    %6720 = vbcast.lane.b32.xlu0 %v6646, %s6719
    %v6721 = vpop.permute.xlu0 %6720
    %s6723 = sor.u32 256, 80
    %6724 = vbcast.lane.b32.xlu0 %v6646, %s6723
    %v6725 = vpop.permute.xlu0 %6724
    %s6727 = sor.u32 256, 88
    %6728 = vbcast.lane.b32.xlu0 %v6646, %s6727
    %v6729 = vpop.permute.xlu0 %6728
    %s6731 = sor.u32 256, 96
    %6732 = vbcast.lane.b32.xlu0 %v6646, %s6731
    %v6733 = vpop.permute.xlu0 %6732
    %s6735 = sor.u32 256, 104
    %6736 = vbcast.lane.b32.xlu0 %v6646, %s6735
    %v6737 = vpop.permute.xlu0 %6736
    %s6739 = sor.u32 256, 112
    %6740 = vbcast.lane.b32.xlu0 %v6646, %s6739
    %v6741 = vpop.permute.xlu0 %6740
    %s6743 = sor.u32 256, 120
    %6744 = vbcast.lane.b32.xlu0 %v6646, %s6743
    %v6745 = vpop.permute.xlu0 %6744
    %6747 = vbcast.lane.b32.xlu0 %v6650, 256
    %v6748 = vpop.permute.xlu0 %6747
    %s6750 = sor.u32 256, 8
    %6751 = vbcast.lane.b32.xlu0 %v6650, %s6750
    %v6752 = vpop.permute.xlu0 %6751
    %s6754 = sor.u32 256, 16
    %6755 = vbcast.lane.b32.xlu0 %v6650, %s6754
    %v6756 = vpop.permute.xlu0 %6755
    %s6758 = sor.u32 256, 24
    %6759 = vbcast.lane.b32.xlu0 %v6650, %s6758
    %v6760 = vpop.permute.xlu0 %6759
    %s6762 = sor.u32 256, 32
    %6763 = vbcast.lane.b32.xlu0 %v6650, %s6762
    %v6764 = vpop.permute.xlu0 %6763
    %s6766 = sor.u32 256, 40
    %6767 = vbcast.lane.b32.xlu0 %v6650, %s6766
    %v6768 = vpop.permute.xlu0 %6767
    %s6770 = sor.u32 256, 48
    %6771 = vbcast.lane.b32.xlu0 %v6650, %s6770
    %v6772 = vpop.permute.xlu0 %6771
    %s6774 = sor.u32 256, 56
    %6775 = vbcast.lane.b32.xlu0 %v6650, %s6774
    %v6776 = vpop.permute.xlu0 %6775
    %s6778 = sor.u32 256, 64
    %6779 = vbcast.lane.b32.xlu0 %v6650, %s6778
    %v6780 = vpop.permute.xlu0 %6779
    %s6782 = sor.u32 256, 72
    %6783 = vbcast.lane.b32.xlu0 %v6650, %s6782
    %v6784 = vpop.permute.xlu0 %6783
    %s6786 = sor.u32 256, 80
    %6787 = vbcast.lane.b32.xlu0 %v6650, %s6786
    %v6788 = vpop.permute.xlu0 %6787
    %s6790 = sor.u32 256, 88
    %6791 = vbcast.lane.b32.xlu0 %v6650, %s6790
    %v6792 = vpop.permute.xlu0 %6791
    %s6794 = sor.u32 256, 96
    %6795 = vbcast.lane.b32.xlu0 %v6650, %s6794
    %v6796 = vpop.permute.xlu0 %6795
    %s6798 = sor.u32 256, 104
    %6799 = vbcast.lane.b32.xlu0 %v6650, %s6798
    %v6800 = vpop.permute.xlu0 %6799
    %s6802 = sor.u32 256, 112
    %6803 = vbcast.lane.b32.xlu0 %v6650, %s6802
    %v6804 = vpop.permute.xlu0 %6803
    %s6806 = sor.u32 256, 120
    %6807 = vbcast.lane.b32.xlu0 %v6650, %s6806
    %v6808 = vpop.permute.xlu0 %6807
    %6810 = vbcast.lane.b32.xlu0 %v6654, 256
    %v6811 = vpop.permute.xlu0 %6810
    %s6813 = sor.u32 256, 8
    %6814 = vbcast.lane.b32.xlu0 %v6654, %s6813
    %v6815 = vpop.permute.xlu0 %6814
    %s6817 = sor.u32 256, 16
    %6818 = vbcast.lane.b32.xlu0 %v6654, %s6817
    %v6819 = vpop.permute.xlu0 %6818
    %s6821 = sor.u32 256, 24
    %6822 = vbcast.lane.b32.xlu0 %v6654, %s6821
    %v6823 = vpop.permute.xlu0 %6822
    %s6825 = sor.u32 256, 32
    %6826 = vbcast.lane.b32.xlu0 %v6654, %s6825
    %v6827 = vpop.permute.xlu0 %6826
    %s6829 = sor.u32 256, 40
    %6830 = vbcast.lane.b32.xlu0 %v6654, %s6829
    %v6831 = vpop.permute.xlu0 %6830
    %s6833 = sor.u32 256, 48
    %6834 = vbcast.lane.b32.xlu0 %v6654, %s6833
    %v6835 = vpop.permute.xlu0 %6834
    %s6837 = sor.u32 256, 56
    %6838 = vbcast.lane.b32.xlu0 %v6654, %s6837
    %v6839 = vpop.permute.xlu0 %6838
    %s6841 = sor.u32 256, 64
    %6842 = vbcast.lane.b32.xlu0 %v6654, %s6841
    %v6843 = vpop.permute.xlu0 %6842
    %s6845 = sor.u32 256, 72
    %6846 = vbcast.lane.b32.xlu0 %v6654, %s6845
    %v6847 = vpop.permute.xlu0 %6846
    %s6849 = sor.u32 256, 80
    %6850 = vbcast.lane.b32.xlu0 %v6654, %s6849
    %v6851 = vpop.permute.xlu0 %6850
    %s6853 = sor.u32 256, 88
    %6854 = vbcast.lane.b32.xlu0 %v6654, %s6853
    %v6855 = vpop.permute.xlu0 %6854
    %s6857 = sor.u32 256, 96
    %6858 = vbcast.lane.b32.xlu0 %v6654, %s6857
    %v6859 = vpop.permute.xlu0 %6858
    %s6861 = sor.u32 256, 104
    %6862 = vbcast.lane.b32.xlu0 %v6654, %s6861
    %v6863 = vpop.permute.xlu0 %6862
    %s6865 = sor.u32 256, 112
    %6866 = vbcast.lane.b32.xlu0 %v6654, %s6865
    %v6867 = vpop.permute.xlu0 %6866
    %s6869 = sor.u32 256, 120
    %6870 = vbcast.lane.b32.xlu0 %v6654, %s6869
    %v6871 = vpop.permute.xlu0 %6870
    %6873 = vbcast.lane.b32.xlu0 %v6658, 256
    %v6874 = vpop.permute.xlu0 %6873
    %s6876 = sor.u32 256, 8
    %6877 = vbcast.lane.b32.xlu0 %v6658, %s6876
    %v6878 = vpop.permute.xlu0 %6877
    %s6880 = sor.u32 256, 16
    %6881 = vbcast.lane.b32.xlu0 %v6658, %s6880
    %v6882 = vpop.permute.xlu0 %6881
    %s6884 = sor.u32 256, 24
    %6885 = vbcast.lane.b32.xlu0 %v6658, %s6884
    %v6886 = vpop.permute.xlu0 %6885
    %s6888 = sor.u32 256, 32
    %6889 = vbcast.lane.b32.xlu0 %v6658, %s6888
    %v6890 = vpop.permute.xlu0 %6889
    %s6892 = sor.u32 256, 40
    %6893 = vbcast.lane.b32.xlu0 %v6658, %s6892
    %v6894 = vpop.permute.xlu0 %6893
    %s6896 = sor.u32 256, 48
    %6897 = vbcast.lane.b32.xlu0 %v6658, %s6896
    %v6898 = vpop.permute.xlu0 %6897
    %s6900 = sor.u32 256, 56
    %6901 = vbcast.lane.b32.xlu0 %v6658, %s6900
    %v6902 = vpop.permute.xlu0 %6901
    %s6904 = sor.u32 256, 64
    %6905 = vbcast.lane.b32.xlu0 %v6658, %s6904
    %v6906 = vpop.permute.xlu0 %6905
    %s6908 = sor.u32 256, 72
    %6909 = vbcast.lane.b32.xlu0 %v6658, %s6908
    %v6910 = vpop.permute.xlu0 %6909
    %s6912 = sor.u32 256, 80
    %6913 = vbcast.lane.b32.xlu0 %v6658, %s6912
    %v6914 = vpop.permute.xlu0 %6913
    %s6916 = sor.u32 256, 88
    %6917 = vbcast.lane.b32.xlu0 %v6658, %s6916
    %v6918 = vpop.permute.xlu0 %6917
    %s6920 = sor.u32 256, 96
    %6921 = vbcast.lane.b32.xlu0 %v6658, %s6920
    %v6922 = vpop.permute.xlu0 %6921
    %s6924 = sor.u32 256, 104
    %6925 = vbcast.lane.b32.xlu0 %v6658, %s6924
    %v6926 = vpop.permute.xlu0 %6925
    %s6928 = sor.u32 256, 112
    %6929 = vbcast.lane.b32.xlu0 %v6658, %s6928
    %v6930 = vpop.permute.xlu0 %6929
    %s6932 = sor.u32 256, 120
    %6933 = vbcast.lane.b32.xlu0 %v6658, %s6932
    %v6934 = vpop.permute.xlu0 %6933
    %6936 = vbcast.lane.b32.xlu0 %v6662, 256
    %v6937 = vpop.permute.xlu0 %6936
    %s6939 = sor.u32 256, 8
    %6940 = vbcast.lane.b32.xlu0 %v6662, %s6939
    %v6941 = vpop.permute.xlu0 %6940
    %s6943 = sor.u32 256, 16
    %6944 = vbcast.lane.b32.xlu0 %v6662, %s6943
    %v6945 = vpop.permute.xlu0 %6944
    %s6947 = sor.u32 256, 24
    %6948 = vbcast.lane.b32.xlu0 %v6662, %s6947
    %v6949 = vpop.permute.xlu0 %6948
    %s6951 = sor.u32 256, 32
    %6952 = vbcast.lane.b32.xlu0 %v6662, %s6951
    %v6953 = vpop.permute.xlu0 %6952
    %s6955 = sor.u32 256, 40
    %6956 = vbcast.lane.b32.xlu0 %v6662, %s6955
    %v6957 = vpop.permute.xlu0 %6956
    %s6959 = sor.u32 256, 48
    %6960 = vbcast.lane.b32.xlu0 %v6662, %s6959
    %v6961 = vpop.permute.xlu0 %6960
    %s6963 = sor.u32 256, 56
    %6964 = vbcast.lane.b32.xlu0 %v6662, %s6963
    %v6965 = vpop.permute.xlu0 %6964
    %s6967 = sor.u32 256, 64
    %6968 = vbcast.lane.b32.xlu0 %v6662, %s6967
    %v6969 = vpop.permute.xlu0 %6968
    %s6971 = sor.u32 256, 72
    %6972 = vbcast.lane.b32.xlu0 %v6662, %s6971
    %v6973 = vpop.permute.xlu0 %6972
    %s6975 = sor.u32 256, 80
    %6976 = vbcast.lane.b32.xlu0 %v6662, %s6975
    %v6977 = vpop.permute.xlu0 %6976
    %s6979 = sor.u32 256, 88
    %6980 = vbcast.lane.b32.xlu0 %v6662, %s6979
    %v6981 = vpop.permute.xlu0 %6980
    %s6983 = sor.u32 256, 96
    %6984 = vbcast.lane.b32.xlu0 %v6662, %s6983
    %v6985 = vpop.permute.xlu0 %6984
    %s6987 = sor.u32 256, 104
    %6988 = vbcast.lane.b32.xlu0 %v6662, %s6987
    %v6989 = vpop.permute.xlu0 %6988
    %s6991 = sor.u32 256, 112
    %6992 = vbcast.lane.b32.xlu0 %v6662, %s6991
    %v6993 = vpop.permute.xlu0 %6992
    %s6995 = sor.u32 256, 120
    %6996 = vbcast.lane.b32.xlu0 %v6662, %s6995
    %v6997 = vpop.permute.xlu0 %6996
    %6999 = vbcast.lane.b32.xlu0 %v6666, 256
    %v7000 = vpop.permute.xlu0 %6999
    %s7002 = sor.u32 256, 8
    %7003 = vbcast.lane.b32.xlu0 %v6666, %s7002
    %v7004 = vpop.permute.xlu0 %7003
    %s7006 = sor.u32 256, 16
    %7007 = vbcast.lane.b32.xlu0 %v6666, %s7006
    %v7008 = vpop.permute.xlu0 %7007
    %s7010 = sor.u32 256, 24
    %7011 = vbcast.lane.b32.xlu0 %v6666, %s7010
    %v7012 = vpop.permute.xlu0 %7011
    %s7014 = sor.u32 256, 32
    %7015 = vbcast.lane.b32.xlu0 %v6666, %s7014
    %v7016 = vpop.permute.xlu0 %7015
    %s7018 = sor.u32 256, 40
    %7019 = vbcast.lane.b32.xlu0 %v6666, %s7018
    %v7020 = vpop.permute.xlu0 %7019
    %s7022 = sor.u32 256, 48
    %7023 = vbcast.lane.b32.xlu0 %v6666, %s7022
    %v7024 = vpop.permute.xlu0 %7023
    %s7026 = sor.u32 256, 56
    %7027 = vbcast.lane.b32.xlu0 %v6666, %s7026
    %v7028 = vpop.permute.xlu0 %7027
    %s7030 = sor.u32 256, 64
    %7031 = vbcast.lane.b32.xlu0 %v6666, %s7030
    %v7032 = vpop.permute.xlu0 %7031
    %s7034 = sor.u32 256, 72
    %7035 = vbcast.lane.b32.xlu0 %v6666, %s7034
    %v7036 = vpop.permute.xlu0 %7035
    %s7038 = sor.u32 256, 80
    %7039 = vbcast.lane.b32.xlu0 %v6666, %s7038
    %v7040 = vpop.permute.xlu0 %7039
    %s7042 = sor.u32 256, 88
    %7043 = vbcast.lane.b32.xlu0 %v6666, %s7042
    %v7044 = vpop.permute.xlu0 %7043
    %s7046 = sor.u32 256, 96
    %7047 = vbcast.lane.b32.xlu0 %v6666, %s7046
    %v7048 = vpop.permute.xlu0 %7047
    %s7050 = sor.u32 256, 104
    %7051 = vbcast.lane.b32.xlu0 %v6666, %s7050
    %v7052 = vpop.permute.xlu0 %7051
    %s7054 = sor.u32 256, 112
    %7055 = vbcast.lane.b32.xlu0 %v6666, %s7054
    %v7056 = vpop.permute.xlu0 %7055
    %s7058 = sor.u32 256, 120
    %7059 = vbcast.lane.b32.xlu0 %v6666, %s7058
    %v7060 = vpop.permute.xlu0 %7059
    %7062 = vbcast.lane.b32.xlu0 %v6670, 256
    %v7063 = vpop.permute.xlu0 %7062
    %s7065 = sor.u32 256, 8
    %7066 = vbcast.lane.b32.xlu0 %v6670, %s7065
    %v7067 = vpop.permute.xlu0 %7066
    %s7069 = sor.u32 256, 16
    %7070 = vbcast.lane.b32.xlu0 %v6670, %s7069
    %v7071 = vpop.permute.xlu0 %7070
    %s7073 = sor.u32 256, 24
    %7074 = vbcast.lane.b32.xlu0 %v6670, %s7073
    %v7075 = vpop.permute.xlu0 %7074
    %s7077 = sor.u32 256, 32
    %7078 = vbcast.lane.b32.xlu0 %v6670, %s7077
    %v7079 = vpop.permute.xlu0 %7078
    %s7081 = sor.u32 256, 40
    %7082 = vbcast.lane.b32.xlu0 %v6670, %s7081
    %v7083 = vpop.permute.xlu0 %7082
    %s7085 = sor.u32 256, 48
    %7086 = vbcast.lane.b32.xlu0 %v6670, %s7085
    %v7087 = vpop.permute.xlu0 %7086
    %s7089 = sor.u32 256, 56
    %7090 = vbcast.lane.b32.xlu0 %v6670, %s7089
    %v7091 = vpop.permute.xlu0 %7090
    %s7093 = sor.u32 256, 64
    %7094 = vbcast.lane.b32.xlu0 %v6670, %s7093
    %v7095 = vpop.permute.xlu0 %7094
    %s7097 = sor.u32 256, 72
    %7098 = vbcast.lane.b32.xlu0 %v6670, %s7097
    %v7099 = vpop.permute.xlu0 %7098
    %s7101 = sor.u32 256, 80
    %7102 = vbcast.lane.b32.xlu0 %v6670, %s7101
    %v7103 = vpop.permute.xlu0 %7102
    %s7105 = sor.u32 256, 88
    %7106 = vbcast.lane.b32.xlu0 %v6670, %s7105
    %v7107 = vpop.permute.xlu0 %7106
    %s7109 = sor.u32 256, 96
    %7110 = vbcast.lane.b32.xlu0 %v6670, %s7109
    %v7111 = vpop.permute.xlu0 %7110
    %s7113 = sor.u32 256, 104
    %7114 = vbcast.lane.b32.xlu0 %v6670, %s7113
    %v7115 = vpop.permute.xlu0 %7114
    %s7117 = sor.u32 256, 112
    %7118 = vbcast.lane.b32.xlu0 %v6670, %s7117
    %v7119 = vpop.permute.xlu0 %7118
    %s7121 = sor.u32 256, 120
    %7122 = vbcast.lane.b32.xlu0 %v6670, %s7121
    %v7123 = vpop.permute.xlu0 %7122
    %7125 = vbcast.lane.b32.xlu0 %v6674, 256
    %v7126 = vpop.permute.xlu0 %7125
    %s7128 = sor.u32 256, 8
    %7129 = vbcast.lane.b32.xlu0 %v6674, %s7128
    %v7130 = vpop.permute.xlu0 %7129
    %s7132 = sor.u32 256, 16
    %7133 = vbcast.lane.b32.xlu0 %v6674, %s7132
    %v7134 = vpop.permute.xlu0 %7133
    %s7136 = sor.u32 256, 24
    %7137 = vbcast.lane.b32.xlu0 %v6674, %s7136
    %v7138 = vpop.permute.xlu0 %7137
    %s7140 = sor.u32 256, 32
    %7141 = vbcast.lane.b32.xlu0 %v6674, %s7140
    %v7142 = vpop.permute.xlu0 %7141
    %s7144 = sor.u32 256, 40
    %7145 = vbcast.lane.b32.xlu0 %v6674, %s7144
    %v7146 = vpop.permute.xlu0 %7145
    %s7148 = sor.u32 256, 48
    %7149 = vbcast.lane.b32.xlu0 %v6674, %s7148
    %v7150 = vpop.permute.xlu0 %7149
    %s7152 = sor.u32 256, 56
    %7153 = vbcast.lane.b32.xlu0 %v6674, %s7152
    %v7154 = vpop.permute.xlu0 %7153
    %s7156 = sor.u32 256, 64
    %7157 = vbcast.lane.b32.xlu0 %v6674, %s7156
    %v7158 = vpop.permute.xlu0 %7157
    %s7160 = sor.u32 256, 72
    %7161 = vbcast.lane.b32.xlu0 %v6674, %s7160
    %v7162 = vpop.permute.xlu0 %7161
    %s7164 = sor.u32 256, 80
    %7165 = vbcast.lane.b32.xlu0 %v6674, %s7164
    %v7166 = vpop.permute.xlu0 %7165
    %s7168 = sor.u32 256, 88
    %7169 = vbcast.lane.b32.xlu0 %v6674, %s7168
    %v7170 = vpop.permute.xlu0 %7169
    %s7172 = sor.u32 256, 96
    %7173 = vbcast.lane.b32.xlu0 %v6674, %s7172
    %v7174 = vpop.permute.xlu0 %7173
    %s7176 = sor.u32 256, 104
    %7177 = vbcast.lane.b32.xlu0 %v6674, %s7176
    %v7178 = vpop.permute.xlu0 %7177
    %s7180 = sor.u32 256, 112
    %7181 = vbcast.lane.b32.xlu0 %v6674, %s7180
    %v7182 = vpop.permute.xlu0 %7181
    %s7184 = sor.u32 256, 120
    %7185 = vbcast.lane.b32.xlu0 %v6674, %s7184
    %v7186 = vpop.permute.xlu0 %7185
    %v7315 = vmul.f32 %v6638, %v6685
    %v7316 = vmul.f32 %v6638, %v6689
    %v7317 = vmul.f32 %v6638, %v6693
    %v7318 = vmul.f32 %v6638, %v6697
    %v7319 = vmul.f32 %v6638, %v6701
    %v7320 = vmul.f32 %v6638, %v6705
    %v7321 = vmul.f32 %v6638, %v6709
    %v7322 = vmul.f32 %v6638, %v6713
    %v7323 = vmul.f32 %v6638, %v6717
    %v7324 = vmul.f32 %v6638, %v6721
    %v7325 = vmul.f32 %v6638, %v6725
    %v7326 = vmul.f32 %v6638, %v6729
    %v7327 = vmul.f32 %v6638, %v6733
    %v7328 = vmul.f32 %v6638, %v6737
    %v7329 = vmul.f32 %v6638, %v6741
    %v7330 = vmul.f32 %v6638, %v6745
    %v7331 = vmul.f32 %v6638, %v6748
    %v7332 = vmul.f32 %v6638, %v6752
    %v7333 = vmul.f32 %v6638, %v6756
    %v7334 = vmul.f32 %v6638, %v6760
    %v7335 = vmul.f32 %v6638, %v6764
    %v7336 = vmul.f32 %v6638, %v6768
    %v7337 = vmul.f32 %v6638, %v6772
    %v7338 = vmul.f32 %v6638, %v6776
    %v7339 = vmul.f32 %v6638, %v6780
    %v7340 = vmul.f32 %v6638, %v6784
    %v7341 = vmul.f32 %v6638, %v6788
    %v7342 = vmul.f32 %v6638, %v6792
    %v7343 = vmul.f32 %v6638, %v6796
    %v7344 = vmul.f32 %v6638, %v6800
    %v7345 = vmul.f32 %v6638, %v6804
    %v7346 = vmul.f32 %v6638, %v6808
    %v7347 = vmul.f32 %v6638, %v6811
    %v7348 = vmul.f32 %v6638, %v6815
    %v7349 = vmul.f32 %v6638, %v6819
    %v7350 = vmul.f32 %v6638, %v6823
    %v7351 = vmul.f32 %v6638, %v6827
    %v7352 = vmul.f32 %v6638, %v6831
    %v7353 = vmul.f32 %v6638, %v6835
    %v7354 = vmul.f32 %v6638, %v6839
    %v7355 = vmul.f32 %v6638, %v6843
    %v7356 = vmul.f32 %v6638, %v6847
    %v7357 = vmul.f32 %v6638, %v6851
    %v7358 = vmul.f32 %v6638, %v6855
    %v7359 = vmul.f32 %v6638, %v6859
    %v7360 = vmul.f32 %v6638, %v6863
    %v7361 = vmul.f32 %v6638, %v6867
    %v7362 = vmul.f32 %v6638, %v6871
    %v7363 = vmul.f32 %v6638, %v6874
    %v7364 = vmul.f32 %v6638, %v6878
    %v7365 = vmul.f32 %v6638, %v6882
    %v7366 = vmul.f32 %v6638, %v6886
    %v7367 = vmul.f32 %v6638, %v6890
    %v7368 = vmul.f32 %v6638, %v6894
    %v7369 = vmul.f32 %v6638, %v6898
    %v7370 = vmul.f32 %v6638, %v6902
    %v7371 = vmul.f32 %v6638, %v6906
    %v7372 = vmul.f32 %v6638, %v6910
    %v7373 = vmul.f32 %v6638, %v6914
    %v7374 = vmul.f32 %v6638, %v6918
    %v7375 = vmul.f32 %v6638, %v6922
    %v7376 = vmul.f32 %v6638, %v6926
    %v7377 = vmul.f32 %v6638, %v6930
    %v7378 = vmul.f32 %v6638, %v6934
    %v7379 = vmul.f32 %v6638, %v6937
    %v7380 = vmul.f32 %v6638, %v6941
    %v7381 = vmul.f32 %v6638, %v6945
    %v7382 = vmul.f32 %v6638, %v6949
    %v7383 = vmul.f32 %v6638, %v6953
    %v7384 = vmul.f32 %v6638, %v6957
    %v7385 = vmul.f32 %v6638, %v6961
    %v7386 = vmul.f32 %v6638, %v6965
    %v7387 = vmul.f32 %v6638, %v6969
    %v7388 = vmul.f32 %v6638, %v6973
    %v7389 = vmul.f32 %v6638, %v6977
    %v7390 = vmul.f32 %v6638, %v6981
    %v7391 = vmul.f32 %v6638, %v6985
    %v7392 = vmul.f32 %v6638, %v6989
    %v7393 = vmul.f32 %v6638, %v6993
    %v7394 = vmul.f32 %v6638, %v6997
    %v7395 = vmul.f32 %v6638, %v7000
    %v7396 = vmul.f32 %v6638, %v7004
    %v7397 = vmul.f32 %v6638, %v7008
    %v7398 = vmul.f32 %v6638, %v7012
    %v7399 = vmul.f32 %v6638, %v7016
    %v7400 = vmul.f32 %v6638, %v7020
    %v7401 = vmul.f32 %v6638, %v7024
    %v7402 = vmul.f32 %v6638, %v7028
    %v7403 = vmul.f32 %v6638, %v7032
    %v7404 = vmul.f32 %v6638, %v7036
    %v7405 = vmul.f32 %v6638, %v7040
    %v7406 = vmul.f32 %v6638, %v7044
    %v7407 = vmul.f32 %v6638, %v7048
    %v7408 = vmul.f32 %v6638, %v7052
    %v7409 = vmul.f32 %v6638, %v7056
    %v7410 = vmul.f32 %v6638, %v7060
    %v7411 = vmul.f32 %v6638, %v7063
    %v7412 = vmul.f32 %v6638, %v7067
    %v7413 = vmul.f32 %v6638, %v7071
    %v7414 = vmul.f32 %v6638, %v7075
    %v7415 = vmul.f32 %v6638, %v7079
    %v7416 = vmul.f32 %v6638, %v7083
    %v7417 = vmul.f32 %v6638, %v7087
    %v7418 = vmul.f32 %v6638, %v7091
    %v7419 = vmul.f32 %v6638, %v7095
    %v7420 = vmul.f32 %v6638, %v7099
    %v7421 = vmul.f32 %v6638, %v7103
    %v7422 = vmul.f32 %v6638, %v7107
    %v7423 = vmul.f32 %v6638, %v7111
    %v7424 = vmul.f32 %v6638, %v7115
    %v7425 = vmul.f32 %v6638, %v7119
    %v7426 = vmul.f32 %v6638, %v7123
    %v7427 = vmul.f32 %v6638, %v7126
    %v7428 = vmul.f32 %v6638, %v7130
    %v7429 = vmul.f32 %v6638, %v7134
    %v7430 = vmul.f32 %v6638, %v7138
    %v7431 = vmul.f32 %v6638, %v7142
    %v7432 = vmul.f32 %v6638, %v7146
    %v7433 = vmul.f32 %v6638, %v7150
    %v7434 = vmul.f32 %v6638, %v7154
    %v7435 = vmul.f32 %v6638, %v7158
    %v7436 = vmul.f32 %v6638, %v7162
    %v7437 = vmul.f32 %v6638, %v7166
    %v7438 = vmul.f32 %v6638, %v7170
    %v7439 = vmul.f32 %v6638, %v7174
    %v7440 = vmul.f32 %v6638, %v7178
    %v7441 = vmul.f32 %v6638, %v7182
    %v7442 = vmul.f32 %v6638, %v7186
    %v7443 = vmul.f32 %v6642, %v6685
    %v7444 = vmul.f32 %v6642, %v6689
    %v7445 = vmul.f32 %v6642, %v6693
    %v7446 = vmul.f32 %v6642, %v6697
    %v7447 = vmul.f32 %v6642, %v6701
    %v7448 = vmul.f32 %v6642, %v6705
    %v7449 = vmul.f32 %v6642, %v6709
    %v7450 = vmul.f32 %v6642, %v6713
    %v7451 = vmul.f32 %v6642, %v6717
    %v7452 = vmul.f32 %v6642, %v6721
    %v7453 = vmul.f32 %v6642, %v6725
    %v7454 = vmul.f32 %v6642, %v6729
    %v7455 = vmul.f32 %v6642, %v6733
    %v7456 = vmul.f32 %v6642, %v6737
    %v7457 = vmul.f32 %v6642, %v6741
    %v7458 = vmul.f32 %v6642, %v6745
    %v7459 = vmul.f32 %v6642, %v6748
    %v7460 = vmul.f32 %v6642, %v6752
    %v7461 = vmul.f32 %v6642, %v6756
    %v7462 = vmul.f32 %v6642, %v6760
    %v7463 = vmul.f32 %v6642, %v6764
    %v7464 = vmul.f32 %v6642, %v6768
    %v7465 = vmul.f32 %v6642, %v6772
    %v7466 = vmul.f32 %v6642, %v6776
    %v7467 = vmul.f32 %v6642, %v6780
    %v7468 = vmul.f32 %v6642, %v6784
    %v7469 = vmul.f32 %v6642, %v6788
    %v7470 = vmul.f32 %v6642, %v6792
    %v7471 = vmul.f32 %v6642, %v6796
    %v7472 = vmul.f32 %v6642, %v6800
    %v7473 = vmul.f32 %v6642, %v6804
    %v7474 = vmul.f32 %v6642, %v6808
    %v7475 = vmul.f32 %v6642, %v6811
    %v7476 = vmul.f32 %v6642, %v6815
    %v7477 = vmul.f32 %v6642, %v6819
    %v7478 = vmul.f32 %v6642, %v6823
    %v7479 = vmul.f32 %v6642, %v6827
    %v7480 = vmul.f32 %v6642, %v6831
    %v7481 = vmul.f32 %v6642, %v6835
    %v7482 = vmul.f32 %v6642, %v6839
    %v7483 = vmul.f32 %v6642, %v6843
    %v7484 = vmul.f32 %v6642, %v6847
    %v7485 = vmul.f32 %v6642, %v6851
    %v7486 = vmul.f32 %v6642, %v6855
    %v7487 = vmul.f32 %v6642, %v6859
    %v7488 = vmul.f32 %v6642, %v6863
    %v7489 = vmul.f32 %v6642, %v6867
    %v7490 = vmul.f32 %v6642, %v6871
    %v7491 = vmul.f32 %v6642, %v6874
    %v7492 = vmul.f32 %v6642, %v6878
    %v7493 = vmul.f32 %v6642, %v6882
    %v7494 = vmul.f32 %v6642, %v6886
    %v7495 = vmul.f32 %v6642, %v6890
    %v7496 = vmul.f32 %v6642, %v6894
    %v7497 = vmul.f32 %v6642, %v6898
    %v7498 = vmul.f32 %v6642, %v6902
    %v7499 = vmul.f32 %v6642, %v6906
    %v7500 = vmul.f32 %v6642, %v6910
    %v7501 = vmul.f32 %v6642, %v6914
    %v7502 = vmul.f32 %v6642, %v6918
    %v7503 = vmul.f32 %v6642, %v6922
    %v7504 = vmul.f32 %v6642, %v6926
    %v7505 = vmul.f32 %v6642, %v6930
    %v7506 = vmul.f32 %v6642, %v6934
    %v7507 = vmul.f32 %v6642, %v6937
    %v7508 = vmul.f32 %v6642, %v6941
    %v7509 = vmul.f32 %v6642, %v6945
    %v7510 = vmul.f32 %v6642, %v6949
    %v7511 = vmul.f32 %v6642, %v6953
    %v7512 = vmul.f32 %v6642, %v6957
    %v7513 = vmul.f32 %v6642, %v6961
    %v7514 = vmul.f32 %v6642, %v6965
    %v7515 = vmul.f32 %v6642, %v6969
    %v7516 = vmul.f32 %v6642, %v6973
    %v7517 = vmul.f32 %v6642, %v6977
    %v7518 = vmul.f32 %v6642, %v6981
    %v7519 = vmul.f32 %v6642, %v6985
    %v7520 = vmul.f32 %v6642, %v6989
    %v7521 = vmul.f32 %v6642, %v6993
    %v7522 = vmul.f32 %v6642, %v6997
    %v7523 = vmul.f32 %v6642, %v7000
    %v7524 = vmul.f32 %v6642, %v7004
    %v7525 = vmul.f32 %v6642, %v7008
    %v7526 = vmul.f32 %v6642, %v7012
    %v7527 = vmul.f32 %v6642, %v7016
    %v7528 = vmul.f32 %v6642, %v7020
    %v7529 = vmul.f32 %v6642, %v7024
    %v7530 = vmul.f32 %v6642, %v7028
    %v7531 = vmul.f32 %v6642, %v7032
    %v7532 = vmul.f32 %v6642, %v7036
    %v7533 = vmul.f32 %v6642, %v7040
    %v7534 = vmul.f32 %v6642, %v7044
    %v7535 = vmul.f32 %v6642, %v7048
    %v7536 = vmul.f32 %v6642, %v7052
    %v7537 = vmul.f32 %v6642, %v7056
    %v7538 = vmul.f32 %v6642, %v7060
    %v7539 = vmul.f32 %v6642, %v7063
    %v7540 = vmul.f32 %v6642, %v7067
    %v7541 = vmul.f32 %v6642, %v7071
    %v7542 = vmul.f32 %v6642, %v7075
    %v7543 = vmul.f32 %v6642, %v7079
    %v7544 = vmul.f32 %v6642, %v7083
    %v7545 = vmul.f32 %v6642, %v7087
    %v7546 = vmul.f32 %v6642, %v7091
    %v7547 = vmul.f32 %v6642, %v7095
    %v7548 = vmul.f32 %v6642, %v7099
    %v7549 = vmul.f32 %v6642, %v7103
    %v7550 = vmul.f32 %v6642, %v7107
    %v7551 = vmul.f32 %v6642, %v7111
    %v7552 = vmul.f32 %v6642, %v7115
    %v7553 = vmul.f32 %v6642, %v7119
    %v7554 = vmul.f32 %v6642, %v7123
    %v7555 = vmul.f32 %v6642, %v7126
    %v7556 = vmul.f32 %v6642, %v7130
    %v7557 = vmul.f32 %v6642, %v7134
    %v7558 = vmul.f32 %v6642, %v7138
    %v7559 = vmul.f32 %v6642, %v7142
    %v7560 = vmul.f32 %v6642, %v7146
    %v7561 = vmul.f32 %v6642, %v7150
    %v7562 = vmul.f32 %v6642, %v7154
    %v7563 = vmul.f32 %v6642, %v7158
    %v7564 = vmul.f32 %v6642, %v7162
    %v7565 = vmul.f32 %v6642, %v7166
    %v7566 = vmul.f32 %v6642, %v7170
    %v7567 = vmul.f32 %v6642, %v7174
    %v7568 = vmul.f32 %v6642, %v7178
    %v7569 = vmul.f32 %v6642, %v7182
    %v7570 = vmul.f32 %v6642, %v7186
    %7827 = vset.pattern.permute.xlu0 0
    %7828 = vperm.xlu0 %7827, %v7315
    %v7829 = vpop.permute.xlu0 %7828
    %7830 = vset.pattern.permute.xlu0 0
    %7831 = vperm.xlu0 %7830, %v7316
    %v7832 = vpop.permute.xlu0 %7831
    %7833 = vset.pattern.permute.xlu0 0
    %7834 = vperm.xlu0 %7833, %v7317
    %v7835 = vpop.permute.xlu0 %7834
    %7836 = vset.pattern.permute.xlu0 0
    %7837 = vperm.xlu0 %7836, %v7318
    %v7838 = vpop.permute.xlu0 %7837
    %7839 = vset.pattern.permute.xlu0 0
    %7840 = vperm.xlu0 %7839, %v7319
    %v7841 = vpop.permute.xlu0 %7840
    %7842 = vset.pattern.permute.xlu0 0
    %7843 = vperm.xlu0 %7842, %v7320
    %v7844 = vpop.permute.xlu0 %7843
    %7845 = vset.pattern.permute.xlu0 0
    %7846 = vperm.xlu0 %7845, %v7321
    %v7847 = vpop.permute.xlu0 %7846
    %7848 = vset.pattern.permute.xlu0 0
    %7849 = vperm.xlu0 %7848, %v7322
    %v7850 = vpop.permute.xlu0 %7849
    %7851 = vset.pattern.permute.xlu0 0
    %7852 = vperm.xlu0 %7851, %v7323
    %v7853 = vpop.permute.xlu0 %7852
    %7854 = vset.pattern.permute.xlu0 0
    %7855 = vperm.xlu0 %7854, %v7324
    %v7856 = vpop.permute.xlu0 %7855
    %7857 = vset.pattern.permute.xlu0 0
    %7858 = vperm.xlu0 %7857, %v7325
    %v7859 = vpop.permute.xlu0 %7858
    %7860 = vset.pattern.permute.xlu0 0
    %7861 = vperm.xlu0 %7860, %v7326
    %v7862 = vpop.permute.xlu0 %7861
    %7863 = vset.pattern.permute.xlu0 0
    %7864 = vperm.xlu0 %7863, %v7327
    %v7865 = vpop.permute.xlu0 %7864
    %7866 = vset.pattern.permute.xlu0 0
    %7867 = vperm.xlu0 %7866, %v7328
    %v7868 = vpop.permute.xlu0 %7867
    %7869 = vset.pattern.permute.xlu0 0
    %7870 = vperm.xlu0 %7869, %v7329
    %v7871 = vpop.permute.xlu0 %7870
    %7872 = vset.pattern.permute.xlu0 0
    %7873 = vperm.xlu0 %7872, %v7330
    %v7874 = vpop.permute.xlu0 %7873
    %7875 = vset.pattern.permute.xlu0 0
    %7876 = vperm.xlu0 %7875, %v7331
    %v7877 = vpop.permute.xlu0 %7876
    %7878 = vset.pattern.permute.xlu0 0
    %7879 = vperm.xlu0 %7878, %v7332
    %v7880 = vpop.permute.xlu0 %7879
    %7881 = vset.pattern.permute.xlu0 0
    %7882 = vperm.xlu0 %7881, %v7333
    %v7883 = vpop.permute.xlu0 %7882
    %7884 = vset.pattern.permute.xlu0 0
    %7885 = vperm.xlu0 %7884, %v7334
    %v7886 = vpop.permute.xlu0 %7885
    %7887 = vset.pattern.permute.xlu0 0
    %7888 = vperm.xlu0 %7887, %v7335
    %v7889 = vpop.permute.xlu0 %7888
    %7890 = vset.pattern.permute.xlu0 0
    %7891 = vperm.xlu0 %7890, %v7336
    %v7892 = vpop.permute.xlu0 %7891
    %7893 = vset.pattern.permute.xlu0 0
    %7894 = vperm.xlu0 %7893, %v7337
    %v7895 = vpop.permute.xlu0 %7894
    %7896 = vset.pattern.permute.xlu0 0
    %7897 = vperm.xlu0 %7896, %v7338
    %v7898 = vpop.permute.xlu0 %7897
    %7899 = vset.pattern.permute.xlu0 0
    %7900 = vperm.xlu0 %7899, %v7339
    %v7901 = vpop.permute.xlu0 %7900
    %7902 = vset.pattern.permute.xlu0 0
    %7903 = vperm.xlu0 %7902, %v7340
    %v7904 = vpop.permute.xlu0 %7903
    %7905 = vset.pattern.permute.xlu0 0
    %7906 = vperm.xlu0 %7905, %v7341
    %v7907 = vpop.permute.xlu0 %7906
    %7908 = vset.pattern.permute.xlu0 0
    %7909 = vperm.xlu0 %7908, %v7342
    %v7910 = vpop.permute.xlu0 %7909
    %7911 = vset.pattern.permute.xlu0 0
    %7912 = vperm.xlu0 %7911, %v7343
    %v7913 = vpop.permute.xlu0 %7912
    %7914 = vset.pattern.permute.xlu0 0
    %7915 = vperm.xlu0 %7914, %v7344
    %v7916 = vpop.permute.xlu0 %7915
    %7917 = vset.pattern.permute.xlu0 0
    %7918 = vperm.xlu0 %7917, %v7345
    %v7919 = vpop.permute.xlu0 %7918
    %7920 = vset.pattern.permute.xlu0 0
    %7921 = vperm.xlu0 %7920, %v7346
    %v7922 = vpop.permute.xlu0 %7921
    %7923 = vset.pattern.permute.xlu0 0
    %7924 = vperm.xlu0 %7923, %v7347
    %v7925 = vpop.permute.xlu0 %7924
    %7926 = vset.pattern.permute.xlu0 0
    %7927 = vperm.xlu0 %7926, %v7348
    %v7928 = vpop.permute.xlu0 %7927
    %7929 = vset.pattern.permute.xlu0 0
    %7930 = vperm.xlu0 %7929, %v7349
    %v7931 = vpop.permute.xlu0 %7930
    %7932 = vset.pattern.permute.xlu0 0
    %7933 = vperm.xlu0 %7932, %v7350
    %v7934 = vpop.permute.xlu0 %7933
    %7935 = vset.pattern.permute.xlu0 0
    %7936 = vperm.xlu0 %7935, %v7351
    %v7937 = vpop.permute.xlu0 %7936
    %7938 = vset.pattern.permute.xlu0 0
    %7939 = vperm.xlu0 %7938, %v7352
    %v7940 = vpop.permute.xlu0 %7939
    %7941 = vset.pattern.permute.xlu0 0
    %7942 = vperm.xlu0 %7941, %v7353
    %v7943 = vpop.permute.xlu0 %7942
    %7944 = vset.pattern.permute.xlu0 0
    %7945 = vperm.xlu0 %7944, %v7354
    %v7946 = vpop.permute.xlu0 %7945
    %7947 = vset.pattern.permute.xlu0 0
    %7948 = vperm.xlu0 %7947, %v7355
    %v7949 = vpop.permute.xlu0 %7948
    %7950 = vset.pattern.permute.xlu0 0
    %7951 = vperm.xlu0 %7950, %v7356
    %v7952 = vpop.permute.xlu0 %7951
    %7953 = vset.pattern.permute.xlu0 0
    %7954 = vperm.xlu0 %7953, %v7357
    %v7955 = vpop.permute.xlu0 %7954
    %7956 = vset.pattern.permute.xlu0 0
    %7957 = vperm.xlu0 %7956, %v7358
    %v7958 = vpop.permute.xlu0 %7957
    %7959 = vset.pattern.permute.xlu0 0
    %7960 = vperm.xlu0 %7959, %v7359
    %v7961 = vpop.permute.xlu0 %7960
    %7962 = vset.pattern.permute.xlu0 0
    %7963 = vperm.xlu0 %7962, %v7360
    %v7964 = vpop.permute.xlu0 %7963
    %7965 = vset.pattern.permute.xlu0 0
    %7966 = vperm.xlu0 %7965, %v7361
    %v7967 = vpop.permute.xlu0 %7966
    %7968 = vset.pattern.permute.xlu0 0
    %7969 = vperm.xlu0 %7968, %v7362
    %v7970 = vpop.permute.xlu0 %7969
    %7971 = vset.pattern.permute.xlu0 0
    %7972 = vperm.xlu0 %7971, %v7363
    %v7973 = vpop.permute.xlu0 %7972
    %7974 = vset.pattern.permute.xlu0 0
    %7975 = vperm.xlu0 %7974, %v7364
    %v7976 = vpop.permute.xlu0 %7975
    %7977 = vset.pattern.permute.xlu0 0
    %7978 = vperm.xlu0 %7977, %v7365
    %v7979 = vpop.permute.xlu0 %7978
    %7980 = vset.pattern.permute.xlu0 0
    %7981 = vperm.xlu0 %7980, %v7366
    %v7982 = vpop.permute.xlu0 %7981
    %7983 = vset.pattern.permute.xlu0 0
    %7984 = vperm.xlu0 %7983, %v7367
    %v7985 = vpop.permute.xlu0 %7984
    %7986 = vset.pattern.permute.xlu0 0
    %7987 = vperm.xlu0 %7986, %v7368
    %v7988 = vpop.permute.xlu0 %7987
    %7989 = vset.pattern.permute.xlu0 0
    %7990 = vperm.xlu0 %7989, %v7369
    %v7991 = vpop.permute.xlu0 %7990
    %7992 = vset.pattern.permute.xlu0 0
    %7993 = vperm.xlu0 %7992, %v7370
    %v7994 = vpop.permute.xlu0 %7993
    %7995 = vset.pattern.permute.xlu0 0
    %7996 = vperm.xlu0 %7995, %v7371
    %v7997 = vpop.permute.xlu0 %7996
    %7998 = vset.pattern.permute.xlu0 0
    %7999 = vperm.xlu0 %7998, %v7372
    %v8000 = vpop.permute.xlu0 %7999
    %8001 = vset.pattern.permute.xlu0 0
    %8002 = vperm.xlu0 %8001, %v7373
    %v8003 = vpop.permute.xlu0 %8002
    %8004 = vset.pattern.permute.xlu0 0
    %8005 = vperm.xlu0 %8004, %v7374
    %v8006 = vpop.permute.xlu0 %8005
    %8007 = vset.pattern.permute.xlu0 0
    %8008 = vperm.xlu0 %8007, %v7375
    %v8009 = vpop.permute.xlu0 %8008
    %8010 = vset.pattern.permute.xlu0 0
    %8011 = vperm.xlu0 %8010, %v7376
    %v8012 = vpop.permute.xlu0 %8011
    %8013 = vset.pattern.permute.xlu0 0
    %8014 = vperm.xlu0 %8013, %v7377
    %v8015 = vpop.permute.xlu0 %8014
    %8016 = vset.pattern.permute.xlu0 0
    %8017 = vperm.xlu0 %8016, %v7378
    %v8018 = vpop.permute.xlu0 %8017
    %8019 = vset.pattern.permute.xlu0 0
    %8020 = vperm.xlu0 %8019, %v7379
    %v8021 = vpop.permute.xlu0 %8020
    %8022 = vset.pattern.permute.xlu0 0
    %8023 = vperm.xlu0 %8022, %v7380
    %v8024 = vpop.permute.xlu0 %8023
    %8025 = vset.pattern.permute.xlu0 0
    %8026 = vperm.xlu0 %8025, %v7381
    %v8027 = vpop.permute.xlu0 %8026
    %8028 = vset.pattern.permute.xlu0 0
    %8029 = vperm.xlu0 %8028, %v7382
    %v8030 = vpop.permute.xlu0 %8029
    %8031 = vset.pattern.permute.xlu0 0
    %8032 = vperm.xlu0 %8031, %v7383
    %v8033 = vpop.permute.xlu0 %8032
    %8034 = vset.pattern.permute.xlu0 0
    %8035 = vperm.xlu0 %8034, %v7384
    %v8036 = vpop.permute.xlu0 %8035
    %8037 = vset.pattern.permute.xlu0 0
    %8038 = vperm.xlu0 %8037, %v7385
    %v8039 = vpop.permute.xlu0 %8038
    %8040 = vset.pattern.permute.xlu0 0
    %8041 = vperm.xlu0 %8040, %v7386
    %v8042 = vpop.permute.xlu0 %8041
    %8043 = vset.pattern.permute.xlu0 0
    %8044 = vperm.xlu0 %8043, %v7387
    %v8045 = vpop.permute.xlu0 %8044
    %8046 = vset.pattern.permute.xlu0 0
    %8047 = vperm.xlu0 %8046, %v7388
    %v8048 = vpop.permute.xlu0 %8047
    %8049 = vset.pattern.permute.xlu0 0
    %8050 = vperm.xlu0 %8049, %v7389
    %v8051 = vpop.permute.xlu0 %8050
    %8052 = vset.pattern.permute.xlu0 0
    %8053 = vperm.xlu0 %8052, %v7390
    %v8054 = vpop.permute.xlu0 %8053
    %8055 = vset.pattern.permute.xlu0 0
    %8056 = vperm.xlu0 %8055, %v7391
    %v8057 = vpop.permute.xlu0 %8056
    %8058 = vset.pattern.permute.xlu0 0
    %8059 = vperm.xlu0 %8058, %v7392
    %v8060 = vpop.permute.xlu0 %8059
    %8061 = vset.pattern.permute.xlu0 0
    %8062 = vperm.xlu0 %8061, %v7393
    %v8063 = vpop.permute.xlu0 %8062
    %8064 = vset.pattern.permute.xlu0 0
    %8065 = vperm.xlu0 %8064, %v7394
    %v8066 = vpop.permute.xlu0 %8065
    %8067 = vset.pattern.permute.xlu0 0
    %8068 = vperm.xlu0 %8067, %v7395
    %v8069 = vpop.permute.xlu0 %8068
    %8070 = vset.pattern.permute.xlu0 0
    %8071 = vperm.xlu0 %8070, %v7396
    %v8072 = vpop.permute.xlu0 %8071
    %8073 = vset.pattern.permute.xlu0 0
    %8074 = vperm.xlu0 %8073, %v7397
    %v8075 = vpop.permute.xlu0 %8074
    %8076 = vset.pattern.permute.xlu0 0
    %8077 = vperm.xlu0 %8076, %v7398
    %v8078 = vpop.permute.xlu0 %8077
    %8079 = vset.pattern.permute.xlu0 0
    %8080 = vperm.xlu0 %8079, %v7399
    %v8081 = vpop.permute.xlu0 %8080
    %8082 = vset.pattern.permute.xlu0 0
    %8083 = vperm.xlu0 %8082, %v7400
    %v8084 = vpop.permute.xlu0 %8083
    %8085 = vset.pattern.permute.xlu0 0
    %8086 = vperm.xlu0 %8085, %v7401
    %v8087 = vpop.permute.xlu0 %8086
    %8088 = vset.pattern.permute.xlu0 0
    %8089 = vperm.xlu0 %8088, %v7402
    %v8090 = vpop.permute.xlu0 %8089
    %8091 = vset.pattern.permute.xlu0 0
    %8092 = vperm.xlu0 %8091, %v7403
    %v8093 = vpop.permute.xlu0 %8092
    %8094 = vset.pattern.permute.xlu0 0
    %8095 = vperm.xlu0 %8094, %v7404
    %v8096 = vpop.permute.xlu0 %8095
    %8097 = vset.pattern.permute.xlu0 0
    %8098 = vperm.xlu0 %8097, %v7405
    %v8099 = vpop.permute.xlu0 %8098
    %8100 = vset.pattern.permute.xlu0 0
    %8101 = vperm.xlu0 %8100, %v7406
    %v8102 = vpop.permute.xlu0 %8101
    %8103 = vset.pattern.permute.xlu0 0
    %8104 = vperm.xlu0 %8103, %v7407
    %v8105 = vpop.permute.xlu0 %8104
    %8106 = vset.pattern.permute.xlu0 0
    %8107 = vperm.xlu0 %8106, %v7408
    %v8108 = vpop.permute.xlu0 %8107
    %8109 = vset.pattern.permute.xlu0 0
    %8110 = vperm.xlu0 %8109, %v7409
    %v8111 = vpop.permute.xlu0 %8110
    %8112 = vset.pattern.permute.xlu0 0
    %8113 = vperm.xlu0 %8112, %v7410
    %v8114 = vpop.permute.xlu0 %8113
    %8115 = vset.pattern.permute.xlu0 0
    %8116 = vperm.xlu0 %8115, %v7411
    %v8117 = vpop.permute.xlu0 %8116
    %8118 = vset.pattern.permute.xlu0 0
    %8119 = vperm.xlu0 %8118, %v7412
    %v8120 = vpop.permute.xlu0 %8119
    %8121 = vset.pattern.permute.xlu0 0
    %8122 = vperm.xlu0 %8121, %v7413
    %v8123 = vpop.permute.xlu0 %8122
    %8124 = vset.pattern.permute.xlu0 0
    %8125 = vperm.xlu0 %8124, %v7414
    %v8126 = vpop.permute.xlu0 %8125
    %8127 = vset.pattern.permute.xlu0 0
    %8128 = vperm.xlu0 %8127, %v7415
    %v8129 = vpop.permute.xlu0 %8128
    %8130 = vset.pattern.permute.xlu0 0
    %8131 = vperm.xlu0 %8130, %v7416
    %v8132 = vpop.permute.xlu0 %8131
    %8133 = vset.pattern.permute.xlu0 0
    %8134 = vperm.xlu0 %8133, %v7417
    %v8135 = vpop.permute.xlu0 %8134
    %8136 = vset.pattern.permute.xlu0 0
    %8137 = vperm.xlu0 %8136, %v7418
    %v8138 = vpop.permute.xlu0 %8137
    %8139 = vset.pattern.permute.xlu0 0
    %8140 = vperm.xlu0 %8139, %v7419
    %v8141 = vpop.permute.xlu0 %8140
    %8142 = vset.pattern.permute.xlu0 0
    %8143 = vperm.xlu0 %8142, %v7420
    %v8144 = vpop.permute.xlu0 %8143
    %8145 = vset.pattern.permute.xlu0 0
    %8146 = vperm.xlu0 %8145, %v7421
    %v8147 = vpop.permute.xlu0 %8146
    %8148 = vset.pattern.permute.xlu0 0
    %8149 = vperm.xlu0 %8148, %v7422
    %v8150 = vpop.permute.xlu0 %8149
    %8151 = vset.pattern.permute.xlu0 0
    %8152 = vperm.xlu0 %8151, %v7423
    %v8153 = vpop.permute.xlu0 %8152
    %8154 = vset.pattern.permute.xlu0 0
    %8155 = vperm.xlu0 %8154, %v7424
    %v8156 = vpop.permute.xlu0 %8155
    %8157 = vset.pattern.permute.xlu0 0
    %8158 = vperm.xlu0 %8157, %v7425
    %v8159 = vpop.permute.xlu0 %8158
    %8160 = vset.pattern.permute.xlu0 0
    %8161 = vperm.xlu0 %8160, %v7426
    %v8162 = vpop.permute.xlu0 %8161
    %8163 = vset.pattern.permute.xlu0 0
    %8164 = vperm.xlu0 %8163, %v7427
    %v8165 = vpop.permute.xlu0 %8164
    %8166 = vset.pattern.permute.xlu0 0
    %8167 = vperm.xlu0 %8166, %v7428
    %v8168 = vpop.permute.xlu0 %8167
    %8169 = vset.pattern.permute.xlu0 0
    %8170 = vperm.xlu0 %8169, %v7429
    %v8171 = vpop.permute.xlu0 %8170
    %8172 = vset.pattern.permute.xlu0 0
    %8173 = vperm.xlu0 %8172, %v7430
    %v8174 = vpop.permute.xlu0 %8173
    %8175 = vset.pattern.permute.xlu0 0
    %8176 = vperm.xlu0 %8175, %v7431
    %v8177 = vpop.permute.xlu0 %8176
    %8178 = vset.pattern.permute.xlu0 0
    %8179 = vperm.xlu0 %8178, %v7432
    %v8180 = vpop.permute.xlu0 %8179
    %8181 = vset.pattern.permute.xlu0 0
    %8182 = vperm.xlu0 %8181, %v7433
    %v8183 = vpop.permute.xlu0 %8182
    %8184 = vset.pattern.permute.xlu0 0
    %8185 = vperm.xlu0 %8184, %v7434
    %v8186 = vpop.permute.xlu0 %8185
    %8187 = vset.pattern.permute.xlu0 0
    %8188 = vperm.xlu0 %8187, %v7435
    %v8189 = vpop.permute.xlu0 %8188
    %8190 = vset.pattern.permute.xlu0 0
    %8191 = vperm.xlu0 %8190, %v7436
    %v8192 = vpop.permute.xlu0 %8191
    %8193 = vset.pattern.permute.xlu0 0
    %8194 = vperm.xlu0 %8193, %v7437
    %v8195 = vpop.permute.xlu0 %8194
    %8196 = vset.pattern.permute.xlu0 0
    %8197 = vperm.xlu0 %8196, %v7438
    %v8198 = vpop.permute.xlu0 %8197
    %8199 = vset.pattern.permute.xlu0 0
    %8200 = vperm.xlu0 %8199, %v7439
    %v8201 = vpop.permute.xlu0 %8200
    %8202 = vset.pattern.permute.xlu0 0
    %8203 = vperm.xlu0 %8202, %v7440
    %v8204 = vpop.permute.xlu0 %8203
    %8205 = vset.pattern.permute.xlu0 0
    %8206 = vperm.xlu0 %8205, %v7441
    %v8207 = vpop.permute.xlu0 %8206
    %8208 = vset.pattern.permute.xlu0 0
    %8209 = vperm.xlu0 %8208, %v7442
    %v8210 = vpop.permute.xlu0 %8209
    %8211 = vset.pattern.permute.xlu0 0
    %8212 = vperm.xlu0 %8211, %v7443
    %v8213 = vpop.permute.xlu0 %8212
    %8214 = vset.pattern.permute.xlu0 0
    %8215 = vperm.xlu0 %8214, %v7444
    %v8216 = vpop.permute.xlu0 %8215
    %8217 = vset.pattern.permute.xlu0 0
    %8218 = vperm.xlu0 %8217, %v7445
    %v8219 = vpop.permute.xlu0 %8218
    %8220 = vset.pattern.permute.xlu0 0
    %8221 = vperm.xlu0 %8220, %v7446
    %v8222 = vpop.permute.xlu0 %8221
    %8223 = vset.pattern.permute.xlu0 0
    %8224 = vperm.xlu0 %8223, %v7447
    %v8225 = vpop.permute.xlu0 %8224
    %8226 = vset.pattern.permute.xlu0 0
    %8227 = vperm.xlu0 %8226, %v7448
    %v8228 = vpop.permute.xlu0 %8227
    %8229 = vset.pattern.permute.xlu0 0
    %8230 = vperm.xlu0 %8229, %v7449
    %v8231 = vpop.permute.xlu0 %8230
    %8232 = vset.pattern.permute.xlu0 0
    %8233 = vperm.xlu0 %8232, %v7450
    %v8234 = vpop.permute.xlu0 %8233
    %8235 = vset.pattern.permute.xlu0 0
    %8236 = vperm.xlu0 %8235, %v7451
    %v8237 = vpop.permute.xlu0 %8236
    %8238 = vset.pattern.permute.xlu0 0
    %8239 = vperm.xlu0 %8238, %v7452
    %v8240 = vpop.permute.xlu0 %8239
    %8241 = vset.pattern.permute.xlu0 0
    %8242 = vperm.xlu0 %8241, %v7453
    %v8243 = vpop.permute.xlu0 %8242
    %8244 = vset.pattern.permute.xlu0 0
    %8245 = vperm.xlu0 %8244, %v7454
    %v8246 = vpop.permute.xlu0 %8245
    %8247 = vset.pattern.permute.xlu0 0
    %8248 = vperm.xlu0 %8247, %v7455
    %v8249 = vpop.permute.xlu0 %8248
    %8250 = vset.pattern.permute.xlu0 0
    %8251 = vperm.xlu0 %8250, %v7456
    %v8252 = vpop.permute.xlu0 %8251
    %8253 = vset.pattern.permute.xlu0 0
    %8254 = vperm.xlu0 %8253, %v7457
    %v8255 = vpop.permute.xlu0 %8254
    %8256 = vset.pattern.permute.xlu0 0
    %8257 = vperm.xlu0 %8256, %v7458
    %v8258 = vpop.permute.xlu0 %8257
    %8259 = vset.pattern.permute.xlu0 0
    %8260 = vperm.xlu0 %8259, %v7459
    %v8261 = vpop.permute.xlu0 %8260
    %8262 = vset.pattern.permute.xlu0 0
    %8263 = vperm.xlu0 %8262, %v7460
    %v8264 = vpop.permute.xlu0 %8263
    %8265 = vset.pattern.permute.xlu0 0
    %8266 = vperm.xlu0 %8265, %v7461
    %v8267 = vpop.permute.xlu0 %8266
    %8268 = vset.pattern.permute.xlu0 0
    %8269 = vperm.xlu0 %8268, %v7462
    %v8270 = vpop.permute.xlu0 %8269
    %8271 = vset.pattern.permute.xlu0 0
    %8272 = vperm.xlu0 %8271, %v7463
    %v8273 = vpop.permute.xlu0 %8272
    %8274 = vset.pattern.permute.xlu0 0
    %8275 = vperm.xlu0 %8274, %v7464
    %v8276 = vpop.permute.xlu0 %8275
    %8277 = vset.pattern.permute.xlu0 0
    %8278 = vperm.xlu0 %8277, %v7465
    %v8279 = vpop.permute.xlu0 %8278
    %8280 = vset.pattern.permute.xlu0 0
    %8281 = vperm.xlu0 %8280, %v7466
    %v8282 = vpop.permute.xlu0 %8281
    %8283 = vset.pattern.permute.xlu0 0
    %8284 = vperm.xlu0 %8283, %v7467
    %v8285 = vpop.permute.xlu0 %8284
    %8286 = vset.pattern.permute.xlu0 0
    %8287 = vperm.xlu0 %8286, %v7468
    %v8288 = vpop.permute.xlu0 %8287
    %8289 = vset.pattern.permute.xlu0 0
    %8290 = vperm.xlu0 %8289, %v7469
    %v8291 = vpop.permute.xlu0 %8290
    %8292 = vset.pattern.permute.xlu0 0
    %8293 = vperm.xlu0 %8292, %v7470
    %v8294 = vpop.permute.xlu0 %8293
    %8295 = vset.pattern.permute.xlu0 0
    %8296 = vperm.xlu0 %8295, %v7471
    %v8297 = vpop.permute.xlu0 %8296
    %8298 = vset.pattern.permute.xlu0 0
    %8299 = vperm.xlu0 %8298, %v7472
    %v8300 = vpop.permute.xlu0 %8299
    %8301 = vset.pattern.permute.xlu0 0
    %8302 = vperm.xlu0 %8301, %v7473
    %v8303 = vpop.permute.xlu0 %8302
    %8304 = vset.pattern.permute.xlu0 0
    %8305 = vperm.xlu0 %8304, %v7474
    %v8306 = vpop.permute.xlu0 %8305
    %8307 = vset.pattern.permute.xlu0 0
    %8308 = vperm.xlu0 %8307, %v7475
    %v8309 = vpop.permute.xlu0 %8308
    %8310 = vset.pattern.permute.xlu0 0
    %8311 = vperm.xlu0 %8310, %v7476
    %v8312 = vpop.permute.xlu0 %8311
    %8313 = vset.pattern.permute.xlu0 0
    %8314 = vperm.xlu0 %8313, %v7477
    %v8315 = vpop.permute.xlu0 %8314
    %8316 = vset.pattern.permute.xlu0 0
    %8317 = vperm.xlu0 %8316, %v7478
    %v8318 = vpop.permute.xlu0 %8317
    %8319 = vset.pattern.permute.xlu0 0
    %8320 = vperm.xlu0 %8319, %v7479
    %v8321 = vpop.permute.xlu0 %8320
    %8322 = vset.pattern.permute.xlu0 0
    %8323 = vperm.xlu0 %8322, %v7480
    %v8324 = vpop.permute.xlu0 %8323
    %8325 = vset.pattern.permute.xlu0 0
    %8326 = vperm.xlu0 %8325, %v7481
    %v8327 = vpop.permute.xlu0 %8326
    %8328 = vset.pattern.permute.xlu0 0
    %8329 = vperm.xlu0 %8328, %v7482
    %v8330 = vpop.permute.xlu0 %8329
    %8331 = vset.pattern.permute.xlu0 0
    %8332 = vperm.xlu0 %8331, %v7483
    %v8333 = vpop.permute.xlu0 %8332
    %8334 = vset.pattern.permute.xlu0 0
    %8335 = vperm.xlu0 %8334, %v7484
    %v8336 = vpop.permute.xlu0 %8335
    %8337 = vset.pattern.permute.xlu0 0
    %8338 = vperm.xlu0 %8337, %v7485
    %v8339 = vpop.permute.xlu0 %8338
    %8340 = vset.pattern.permute.xlu0 0
    %8341 = vperm.xlu0 %8340, %v7486
    %v8342 = vpop.permute.xlu0 %8341
    %8343 = vset.pattern.permute.xlu0 0
    %8344 = vperm.xlu0 %8343, %v7487
    %v8345 = vpop.permute.xlu0 %8344
    %8346 = vset.pattern.permute.xlu0 0
    %8347 = vperm.xlu0 %8346, %v7488
    %v8348 = vpop.permute.xlu0 %8347
    %8349 = vset.pattern.permute.xlu0 0
    %8350 = vperm.xlu0 %8349, %v7489
    %v8351 = vpop.permute.xlu0 %8350
    %8352 = vset.pattern.permute.xlu0 0
    %8353 = vperm.xlu0 %8352, %v7490
    %v8354 = vpop.permute.xlu0 %8353
    %8355 = vset.pattern.permute.xlu0 0
    %8356 = vperm.xlu0 %8355, %v7491
    %v8357 = vpop.permute.xlu0 %8356
    %8358 = vset.pattern.permute.xlu0 0
    %8359 = vperm.xlu0 %8358, %v7492
    %v8360 = vpop.permute.xlu0 %8359
    %8361 = vset.pattern.permute.xlu0 0
    %8362 = vperm.xlu0 %8361, %v7493
    %v8363 = vpop.permute.xlu0 %8362
    %8364 = vset.pattern.permute.xlu0 0
    %8365 = vperm.xlu0 %8364, %v7494
    %v8366 = vpop.permute.xlu0 %8365
    %8367 = vset.pattern.permute.xlu0 0
    %8368 = vperm.xlu0 %8367, %v7495
    %v8369 = vpop.permute.xlu0 %8368
    %8370 = vset.pattern.permute.xlu0 0
    %8371 = vperm.xlu0 %8370, %v7496
    %v8372 = vpop.permute.xlu0 %8371
    %8373 = vset.pattern.permute.xlu0 0
    %8374 = vperm.xlu0 %8373, %v7497
    %v8375 = vpop.permute.xlu0 %8374
    %8376 = vset.pattern.permute.xlu0 0
    %8377 = vperm.xlu0 %8376, %v7498
    %v8378 = vpop.permute.xlu0 %8377
    %8379 = vset.pattern.permute.xlu0 0
    %8380 = vperm.xlu0 %8379, %v7499
    %v8381 = vpop.permute.xlu0 %8380
    %8382 = vset.pattern.permute.xlu0 0
    %8383 = vperm.xlu0 %8382, %v7500
    %v8384 = vpop.permute.xlu0 %8383
    %8385 = vset.pattern.permute.xlu0 0
    %8386 = vperm.xlu0 %8385, %v7501
    %v8387 = vpop.permute.xlu0 %8386
    %8388 = vset.pattern.permute.xlu0 0
    %8389 = vperm.xlu0 %8388, %v7502
    %v8390 = vpop.permute.xlu0 %8389
    %8391 = vset.pattern.permute.xlu0 0
    %8392 = vperm.xlu0 %8391, %v7503
    %v8393 = vpop.permute.xlu0 %8392
    %8394 = vset.pattern.permute.xlu0 0
    %8395 = vperm.xlu0 %8394, %v7504
    %v8396 = vpop.permute.xlu0 %8395
    %8397 = vset.pattern.permute.xlu0 0
    %8398 = vperm.xlu0 %8397, %v7505
    %v8399 = vpop.permute.xlu0 %8398
    %8400 = vset.pattern.permute.xlu0 0
    %8401 = vperm.xlu0 %8400, %v7506
    %v8402 = vpop.permute.xlu0 %8401
    %8403 = vset.pattern.permute.xlu0 0
    %8404 = vperm.xlu0 %8403, %v7507
    %v8405 = vpop.permute.xlu0 %8404
    %8406 = vset.pattern.permute.xlu0 0
    %8407 = vperm.xlu0 %8406, %v7508
    %v8408 = vpop.permute.xlu0 %8407
    %8409 = vset.pattern.permute.xlu0 0
    %8410 = vperm.xlu0 %8409, %v7509
    %v8411 = vpop.permute.xlu0 %8410
    %8412 = vset.pattern.permute.xlu0 0
    %8413 = vperm.xlu0 %8412, %v7510
    %v8414 = vpop.permute.xlu0 %8413
    %8415 = vset.pattern.permute.xlu0 0
    %8416 = vperm.xlu0 %8415, %v7511
    %v8417 = vpop.permute.xlu0 %8416
    %8418 = vset.pattern.permute.xlu0 0
    %8419 = vperm.xlu0 %8418, %v7512
    %v8420 = vpop.permute.xlu0 %8419
    %8421 = vset.pattern.permute.xlu0 0
    %8422 = vperm.xlu0 %8421, %v7513
    %v8423 = vpop.permute.xlu0 %8422
    %8424 = vset.pattern.permute.xlu0 0
    %8425 = vperm.xlu0 %8424, %v7514
    %v8426 = vpop.permute.xlu0 %8425
    %8427 = vset.pattern.permute.xlu0 0
    %8428 = vperm.xlu0 %8427, %v7515
    %v8429 = vpop.permute.xlu0 %8428
    %8430 = vset.pattern.permute.xlu0 0
    %8431 = vperm.xlu0 %8430, %v7516
    %v8432 = vpop.permute.xlu0 %8431
    %8433 = vset.pattern.permute.xlu0 0
    %8434 = vperm.xlu0 %8433, %v7517
    %v8435 = vpop.permute.xlu0 %8434
    %8436 = vset.pattern.permute.xlu0 0
    %8437 = vperm.xlu0 %8436, %v7518
    %v8438 = vpop.permute.xlu0 %8437
    %8439 = vset.pattern.permute.xlu0 0
    %8440 = vperm.xlu0 %8439, %v7519
    %v8441 = vpop.permute.xlu0 %8440
    %8442 = vset.pattern.permute.xlu0 0
    %8443 = vperm.xlu0 %8442, %v7520
    %v8444 = vpop.permute.xlu0 %8443
    %8445 = vset.pattern.permute.xlu0 0
    %8446 = vperm.xlu0 %8445, %v7521
    %v8447 = vpop.permute.xlu0 %8446
    %8448 = vset.pattern.permute.xlu0 0
    %8449 = vperm.xlu0 %8448, %v7522
    %v8450 = vpop.permute.xlu0 %8449
    %8451 = vset.pattern.permute.xlu0 0
    %8452 = vperm.xlu0 %8451, %v7523
    %v8453 = vpop.permute.xlu0 %8452
    %8454 = vset.pattern.permute.xlu0 0
    %8455 = vperm.xlu0 %8454, %v7524
    %v8456 = vpop.permute.xlu0 %8455
    %8457 = vset.pattern.permute.xlu0 0
    %8458 = vperm.xlu0 %8457, %v7525
    %v8459 = vpop.permute.xlu0 %8458
    %8460 = vset.pattern.permute.xlu0 0
    %8461 = vperm.xlu0 %8460, %v7526
    %v8462 = vpop.permute.xlu0 %8461
    %8463 = vset.pattern.permute.xlu0 0
    %8464 = vperm.xlu0 %8463, %v7527
    %v8465 = vpop.permute.xlu0 %8464
    %8466 = vset.pattern.permute.xlu0 0
    %8467 = vperm.xlu0 %8466, %v7528
    %v8468 = vpop.permute.xlu0 %8467
    %8469 = vset.pattern.permute.xlu0 0
    %8470 = vperm.xlu0 %8469, %v7529
    %v8471 = vpop.permute.xlu0 %8470
    %8472 = vset.pattern.permute.xlu0 0
    %8473 = vperm.xlu0 %8472, %v7530
    %v8474 = vpop.permute.xlu0 %8473
    %8475 = vset.pattern.permute.xlu0 0
    %8476 = vperm.xlu0 %8475, %v7531
    %v8477 = vpop.permute.xlu0 %8476
    %8478 = vset.pattern.permute.xlu0 0
    %8479 = vperm.xlu0 %8478, %v7532
    %v8480 = vpop.permute.xlu0 %8479
    %8481 = vset.pattern.permute.xlu0 0
    %8482 = vperm.xlu0 %8481, %v7533
    %v8483 = vpop.permute.xlu0 %8482
    %8484 = vset.pattern.permute.xlu0 0
    %8485 = vperm.xlu0 %8484, %v7534
    %v8486 = vpop.permute.xlu0 %8485
    %8487 = vset.pattern.permute.xlu0 0
    %8488 = vperm.xlu0 %8487, %v7535
    %v8489 = vpop.permute.xlu0 %8488
    %8490 = vset.pattern.permute.xlu0 0
    %8491 = vperm.xlu0 %8490, %v7536
    %v8492 = vpop.permute.xlu0 %8491
    %8493 = vset.pattern.permute.xlu0 0
    %8494 = vperm.xlu0 %8493, %v7537
    %v8495 = vpop.permute.xlu0 %8494
    %8496 = vset.pattern.permute.xlu0 0
    %8497 = vperm.xlu0 %8496, %v7538
    %v8498 = vpop.permute.xlu0 %8497
    %8499 = vset.pattern.permute.xlu0 0
    %8500 = vperm.xlu0 %8499, %v7539
    %v8501 = vpop.permute.xlu0 %8500
    %8502 = vset.pattern.permute.xlu0 0
    %8503 = vperm.xlu0 %8502, %v7540
    %v8504 = vpop.permute.xlu0 %8503
    %8505 = vset.pattern.permute.xlu0 0
    %8506 = vperm.xlu0 %8505, %v7541
    %v8507 = vpop.permute.xlu0 %8506
    %8508 = vset.pattern.permute.xlu0 0
    %8509 = vperm.xlu0 %8508, %v7542
    %v8510 = vpop.permute.xlu0 %8509
    %8511 = vset.pattern.permute.xlu0 0
    %8512 = vperm.xlu0 %8511, %v7543
    %v8513 = vpop.permute.xlu0 %8512
    %8514 = vset.pattern.permute.xlu0 0
    %8515 = vperm.xlu0 %8514, %v7544
    %v8516 = vpop.permute.xlu0 %8515
    %8517 = vset.pattern.permute.xlu0 0
    %8518 = vperm.xlu0 %8517, %v7545
    %v8519 = vpop.permute.xlu0 %8518
    %8520 = vset.pattern.permute.xlu0 0
    %8521 = vperm.xlu0 %8520, %v7546
    %v8522 = vpop.permute.xlu0 %8521
    %8523 = vset.pattern.permute.xlu0 0
    %8524 = vperm.xlu0 %8523, %v7547
    %v8525 = vpop.permute.xlu0 %8524
    %8526 = vset.pattern.permute.xlu0 0
    %8527 = vperm.xlu0 %8526, %v7548
    %v8528 = vpop.permute.xlu0 %8527
    %8529 = vset.pattern.permute.xlu0 0
    %8530 = vperm.xlu0 %8529, %v7549
    %v8531 = vpop.permute.xlu0 %8530
    %8532 = vset.pattern.permute.xlu0 0
    %8533 = vperm.xlu0 %8532, %v7550
    %v8534 = vpop.permute.xlu0 %8533
    %8535 = vset.pattern.permute.xlu0 0
    %8536 = vperm.xlu0 %8535, %v7551
    %v8537 = vpop.permute.xlu0 %8536
    %8538 = vset.pattern.permute.xlu0 0
    %8539 = vperm.xlu0 %8538, %v7552
    %v8540 = vpop.permute.xlu0 %8539
    %8541 = vset.pattern.permute.xlu0 0
    %8542 = vperm.xlu0 %8541, %v7553
    %v8543 = vpop.permute.xlu0 %8542
    %8544 = vset.pattern.permute.xlu0 0
    %8545 = vperm.xlu0 %8544, %v7554
    %v8546 = vpop.permute.xlu0 %8545
    %8547 = vset.pattern.permute.xlu0 0
    %8548 = vperm.xlu0 %8547, %v7555
    %v8549 = vpop.permute.xlu0 %8548
    %8550 = vset.pattern.permute.xlu0 0
    %8551 = vperm.xlu0 %8550, %v7556
    %v8552 = vpop.permute.xlu0 %8551
    %8553 = vset.pattern.permute.xlu0 0
    %8554 = vperm.xlu0 %8553, %v7557
    %v8555 = vpop.permute.xlu0 %8554
    %8556 = vset.pattern.permute.xlu0 0
    %8557 = vperm.xlu0 %8556, %v7558
    %v8558 = vpop.permute.xlu0 %8557
    %8559 = vset.pattern.permute.xlu0 0
    %8560 = vperm.xlu0 %8559, %v7559
    %v8561 = vpop.permute.xlu0 %8560
    %8562 = vset.pattern.permute.xlu0 0
    %8563 = vperm.xlu0 %8562, %v7560
    %v8564 = vpop.permute.xlu0 %8563
    %8565 = vset.pattern.permute.xlu0 0
    %8566 = vperm.xlu0 %8565, %v7561
    %v8567 = vpop.permute.xlu0 %8566
    %8568 = vset.pattern.permute.xlu0 0
    %8569 = vperm.xlu0 %8568, %v7562
    %v8570 = vpop.permute.xlu0 %8569
    %8571 = vset.pattern.permute.xlu0 0
    %8572 = vperm.xlu0 %8571, %v7563
    %v8573 = vpop.permute.xlu0 %8572
    %8574 = vset.pattern.permute.xlu0 0
    %8575 = vperm.xlu0 %8574, %v7564
    %v8576 = vpop.permute.xlu0 %8575
    %8577 = vset.pattern.permute.xlu0 0
    %8578 = vperm.xlu0 %8577, %v7565
    %v8579 = vpop.permute.xlu0 %8578
    %8580 = vset.pattern.permute.xlu0 0
    %8581 = vperm.xlu0 %8580, %v7566
    %v8582 = vpop.permute.xlu0 %8581
    %8583 = vset.pattern.permute.xlu0 0
    %8584 = vperm.xlu0 %8583, %v7567
    %v8585 = vpop.permute.xlu0 %8584
    %8586 = vset.pattern.permute.xlu0 0
    %8587 = vperm.xlu0 %8586, %v7568
    %v8588 = vpop.permute.xlu0 %8587
    %8589 = vset.pattern.permute.xlu0 0
    %8590 = vperm.xlu0 %8589, %v7569
    %v8591 = vpop.permute.xlu0 %8590
    %8592 = vset.pattern.permute.xlu0 0
    %8593 = vperm.xlu0 %8592, %v7570
    %v8594 = vpop.permute.xlu0 %8593
    %v8595 = vlaneseq
    %v8596 = vshrl.u32 %v8595, 7
    %v8597 = vsub.s32 %v2067, %v8596
    %v8598 = vrot.slane %v7829, %v8597
    %v8599 = vlaneseq
    %v8600 = vshrl.u32 %v8599, 7
    %v8601 = vsub.s32 %v2072, %v8600
    %v8602 = vrot.slane %v7832, %v8601
    %v8603 = vsel %vm2077, %v8602, %v8598
    %v8604 = vlaneseq
    %v8605 = vshrl.u32 %v8604, 7
    %v8606 = vsub.s32 %v2079, %v8605
    %v8607 = vrot.slane %v7835, %v8606
    %v8608 = vsel %vm2084, %v8607, %v8603
    %v8609 = vlaneseq
    %v8610 = vshrl.u32 %v8609, 7
    %v8611 = vsub.s32 %v2086, %v8610
    %v8612 = vrot.slane %v7838, %v8611
    %v8613 = vsel %vm2091, %v8612, %v8608
    %v8614 = vlaneseq
    %v8615 = vshrl.u32 %v8614, 7
    %v8616 = vsub.s32 %v2093, %v8615
    %v8617 = vrot.slane %v7841, %v8616
    %v8618 = vsel %vm2098, %v8617, %v8613
    %v8619 = vlaneseq
    %v8620 = vshrl.u32 %v8619, 7
    %v8621 = vsub.s32 %v2100, %v8620
    %v8622 = vrot.slane %v7844, %v8621
    %v8623 = vsel %vm2105, %v8622, %v8618
    %v8624 = vlaneseq
    %v8625 = vshrl.u32 %v8624, 7
    %v8626 = vsub.s32 %v2107, %v8625
    %v8627 = vrot.slane %v7847, %v8626
    %v8628 = vsel %vm2112, %v8627, %v8623
    %v8629 = vlaneseq
    %v8630 = vshrl.u32 %v8629, 7
    %v8631 = vsub.s32 %v2114, %v8630
    %v8632 = vrot.slane %v7850, %v8631
    %v8633 = vsel %vm2119, %v8632, %v8628
    %v8634 = vlaneseq
    %v8635 = vshrl.u32 %v8634, 7
    %v8636 = vsub.s32 %v2121, %v8635
    %v8637 = vrot.slane %v7853, %v8636
    %v8638 = vsel %vm2126, %v8637, %v8633
    %v8639 = vlaneseq
    %v8640 = vshrl.u32 %v8639, 7
    %v8641 = vsub.s32 %v2128, %v8640
    %v8642 = vrot.slane %v7856, %v8641
    %v8643 = vsel %vm2133, %v8642, %v8638
    %v8644 = vlaneseq
    %v8645 = vshrl.u32 %v8644, 7
    %v8646 = vsub.s32 %v2135, %v8645
    %v8647 = vrot.slane %v7859, %v8646
    %v8648 = vsel %vm2140, %v8647, %v8643
    %v8649 = vlaneseq
    %v8650 = vshrl.u32 %v8649, 7
    %v8651 = vsub.s32 %v2142, %v8650
    %v8652 = vrot.slane %v7862, %v8651
    %v8653 = vsel %vm2147, %v8652, %v8648
    %v8654 = vlaneseq
    %v8655 = vshrl.u32 %v8654, 7
    %v8656 = vsub.s32 %v2149, %v8655
    %v8657 = vrot.slane %v7865, %v8656
    %v8658 = vsel %vm2154, %v8657, %v8653
    %v8659 = vlaneseq
    %v8660 = vshrl.u32 %v8659, 7
    %v8661 = vsub.s32 %v2156, %v8660
    %v8662 = vrot.slane %v7868, %v8661
    %v8663 = vsel %vm2161, %v8662, %v8658
    %v8664 = vlaneseq
    %v8665 = vshrl.u32 %v8664, 7
    %v8666 = vsub.s32 %v2163, %v8665
    %v8667 = vrot.slane %v7871, %v8666
    %v8668 = vsel %vm2168, %v8667, %v8663
    %v8669 = vlaneseq
    %v8670 = vshrl.u32 %v8669, 7
    %v8671 = vsub.s32 %v2170, %v8670
    %v8672 = vrot.slane %v7874, %v8671
    %v8673 = vsel %vm2175, %v8672, %v8668
    %v8674 = vlaneseq
    %v8675 = vshrl.u32 %v8674, 7
    %v8676 = vsub.s32 %v2067, %v8675
    %v8677 = vrot.slane %v7877, %v8676
    %v8678 = vlaneseq
    %v8679 = vshrl.u32 %v8678, 7
    %v8680 = vsub.s32 %v2072, %v8679
    %v8681 = vrot.slane %v7880, %v8680
    %v8682 = vsel %vm2077, %v8681, %v8677
    %v8683 = vlaneseq
    %v8684 = vshrl.u32 %v8683, 7
    %v8685 = vsub.s32 %v2079, %v8684
    %v8686 = vrot.slane %v7883, %v8685
    %v8687 = vsel %vm2084, %v8686, %v8682
    %v8688 = vlaneseq
    %v8689 = vshrl.u32 %v8688, 7
    %v8690 = vsub.s32 %v2086, %v8689
    %v8691 = vrot.slane %v7886, %v8690
    %v8692 = vsel %vm2091, %v8691, %v8687
    %v8693 = vlaneseq
    %v8694 = vshrl.u32 %v8693, 7
    %v8695 = vsub.s32 %v2093, %v8694
    %v8696 = vrot.slane %v7889, %v8695
    %v8697 = vsel %vm2098, %v8696, %v8692
    %v8698 = vlaneseq
    %v8699 = vshrl.u32 %v8698, 7
    %v8700 = vsub.s32 %v2100, %v8699
    %v8701 = vrot.slane %v7892, %v8700
    %v8702 = vsel %vm2105, %v8701, %v8697
    %v8703 = vlaneseq
    %v8704 = vshrl.u32 %v8703, 7
    %v8705 = vsub.s32 %v2107, %v8704
    %v8706 = vrot.slane %v7895, %v8705
    %v8707 = vsel %vm2112, %v8706, %v8702
    %v8708 = vlaneseq
    %v8709 = vshrl.u32 %v8708, 7
    %v8710 = vsub.s32 %v2114, %v8709
    %v8711 = vrot.slane %v7898, %v8710
    %v8712 = vsel %vm2119, %v8711, %v8707
    %v8713 = vlaneseq
    %v8714 = vshrl.u32 %v8713, 7
    %v8715 = vsub.s32 %v2121, %v8714
    %v8716 = vrot.slane %v7901, %v8715
    %v8717 = vsel %vm2126, %v8716, %v8712
    %v8718 = vlaneseq
    %v8719 = vshrl.u32 %v8718, 7
    %v8720 = vsub.s32 %v2128, %v8719
    %v8721 = vrot.slane %v7904, %v8720
    %v8722 = vsel %vm2133, %v8721, %v8717
    %v8723 = vlaneseq
    %v8724 = vshrl.u32 %v8723, 7
    %v8725 = vsub.s32 %v2135, %v8724
    %v8726 = vrot.slane %v7907, %v8725
    %v8727 = vsel %vm2140, %v8726, %v8722
    %v8728 = vlaneseq
    %v8729 = vshrl.u32 %v8728, 7
    %v8730 = vsub.s32 %v2142, %v8729
    %v8731 = vrot.slane %v7910, %v8730
    %v8732 = vsel %vm2147, %v8731, %v8727
    %v8733 = vlaneseq
    %v8734 = vshrl.u32 %v8733, 7
    %v8735 = vsub.s32 %v2149, %v8734
    %v8736 = vrot.slane %v7913, %v8735
    %v8737 = vsel %vm2154, %v8736, %v8732
    %v8738 = vlaneseq
    %v8739 = vshrl.u32 %v8738, 7
    %v8740 = vsub.s32 %v2156, %v8739
    %v8741 = vrot.slane %v7916, %v8740
    %v8742 = vsel %vm2161, %v8741, %v8737
    %v8743 = vlaneseq
    %v8744 = vshrl.u32 %v8743, 7
    %v8745 = vsub.s32 %v2163, %v8744
    %v8746 = vrot.slane %v7919, %v8745
    %v8747 = vsel %vm2168, %v8746, %v8742
    %v8748 = vlaneseq
    %v8749 = vshrl.u32 %v8748, 7
    %v8750 = vsub.s32 %v2170, %v8749
    %v8751 = vrot.slane %v7922, %v8750
    %v8752 = vsel %vm2175, %v8751, %v8747
    %v8753 = vlaneseq
    %v8754 = vshrl.u32 %v8753, 7
    %v8755 = vsub.s32 %v2067, %v8754
    %v8756 = vrot.slane %v7925, %v8755
    %v8757 = vlaneseq
    %v8758 = vshrl.u32 %v8757, 7
    %v8759 = vsub.s32 %v2072, %v8758
    %v8760 = vrot.slane %v7928, %v8759
    %v8761 = vsel %vm2077, %v8760, %v8756
    %v8762 = vlaneseq
    %v8763 = vshrl.u32 %v8762, 7
    %v8764 = vsub.s32 %v2079, %v8763
    %v8765 = vrot.slane %v7931, %v8764
    %v8766 = vsel %vm2084, %v8765, %v8761
    %v8767 = vlaneseq
    %v8768 = vshrl.u32 %v8767, 7
    %v8769 = vsub.s32 %v2086, %v8768
    %v8770 = vrot.slane %v7934, %v8769
    %v8771 = vsel %vm2091, %v8770, %v8766
    %v8772 = vlaneseq
    %v8773 = vshrl.u32 %v8772, 7
    %v8774 = vsub.s32 %v2093, %v8773
    %v8775 = vrot.slane %v7937, %v8774
    %v8776 = vsel %vm2098, %v8775, %v8771
    %v8777 = vlaneseq
    %v8778 = vshrl.u32 %v8777, 7
    %v8779 = vsub.s32 %v2100, %v8778
    %v8780 = vrot.slane %v7940, %v8779
    %v8781 = vsel %vm2105, %v8780, %v8776
    %v8782 = vlaneseq
    %v8783 = vshrl.u32 %v8782, 7
    %v8784 = vsub.s32 %v2107, %v8783
    %v8785 = vrot.slane %v7943, %v8784
    %v8786 = vsel %vm2112, %v8785, %v8781
    %v8787 = vlaneseq
    %v8788 = vshrl.u32 %v8787, 7
    %v8789 = vsub.s32 %v2114, %v8788
    %v8790 = vrot.slane %v7946, %v8789
    %v8791 = vsel %vm2119, %v8790, %v8786
    %v8792 = vlaneseq
    %v8793 = vshrl.u32 %v8792, 7
    %v8794 = vsub.s32 %v2121, %v8793
    %v8795 = vrot.slane %v7949, %v8794
    %v8796 = vsel %vm2126, %v8795, %v8791
    %v8797 = vlaneseq
    %v8798 = vshrl.u32 %v8797, 7
    %v8799 = vsub.s32 %v2128, %v8798
    %v8800 = vrot.slane %v7952, %v8799
    %v8801 = vsel %vm2133, %v8800, %v8796
    %v8802 = vlaneseq
    %v8803 = vshrl.u32 %v8802, 7
    %v8804 = vsub.s32 %v2135, %v8803
    %v8805 = vrot.slane %v7955, %v8804
    %v8806 = vsel %vm2140, %v8805, %v8801
    %v8807 = vlaneseq
    %v8808 = vshrl.u32 %v8807, 7
    %v8809 = vsub.s32 %v2142, %v8808
    %v8810 = vrot.slane %v7958, %v8809
    %v8811 = vsel %vm2147, %v8810, %v8806
    %v8812 = vlaneseq
    %v8813 = vshrl.u32 %v8812, 7
    %v8814 = vsub.s32 %v2149, %v8813
    %v8815 = vrot.slane %v7961, %v8814
    %v8816 = vsel %vm2154, %v8815, %v8811
    %v8817 = vlaneseq
    %v8818 = vshrl.u32 %v8817, 7
    %v8819 = vsub.s32 %v2156, %v8818
    %v8820 = vrot.slane %v7964, %v8819
    %v8821 = vsel %vm2161, %v8820, %v8816
    %v8822 = vlaneseq
    %v8823 = vshrl.u32 %v8822, 7
    %v8824 = vsub.s32 %v2163, %v8823
    %v8825 = vrot.slane %v7967, %v8824
    %v8826 = vsel %vm2168, %v8825, %v8821
    %v8827 = vlaneseq
    %v8828 = vshrl.u32 %v8827, 7
    %v8829 = vsub.s32 %v2170, %v8828
    %v8830 = vrot.slane %v7970, %v8829
    %v8831 = vsel %vm2175, %v8830, %v8826
    %v8832 = vlaneseq
    %v8833 = vshrl.u32 %v8832, 7
    %v8834 = vsub.s32 %v2067, %v8833
    %v8835 = vrot.slane %v7973, %v8834
    %v8836 = vlaneseq
    %v8837 = vshrl.u32 %v8836, 7
    %v8838 = vsub.s32 %v2072, %v8837
    %v8839 = vrot.slane %v7976, %v8838
    %v8840 = vsel %vm2077, %v8839, %v8835
    %v8841 = vlaneseq
    %v8842 = vshrl.u32 %v8841, 7
    %v8843 = vsub.s32 %v2079, %v8842
    %v8844 = vrot.slane %v7979, %v8843
    %v8845 = vsel %vm2084, %v8844, %v8840
    %v8846 = vlaneseq
    %v8847 = vshrl.u32 %v8846, 7
    %v8848 = vsub.s32 %v2086, %v8847
    %v8849 = vrot.slane %v7982, %v8848
    %v8850 = vsel %vm2091, %v8849, %v8845
    %v8851 = vlaneseq
    %v8852 = vshrl.u32 %v8851, 7
    %v8853 = vsub.s32 %v2093, %v8852
    %v8854 = vrot.slane %v7985, %v8853
    %v8855 = vsel %vm2098, %v8854, %v8850
    %v8856 = vlaneseq
    %v8857 = vshrl.u32 %v8856, 7
    %v8858 = vsub.s32 %v2100, %v8857
    %v8859 = vrot.slane %v7988, %v8858
    %v8860 = vsel %vm2105, %v8859, %v8855
    %v8861 = vlaneseq
    %v8862 = vshrl.u32 %v8861, 7
    %v8863 = vsub.s32 %v2107, %v8862
    %v8864 = vrot.slane %v7991, %v8863
    %v8865 = vsel %vm2112, %v8864, %v8860
    %v8866 = vlaneseq
    %v8867 = vshrl.u32 %v8866, 7
    %v8868 = vsub.s32 %v2114, %v8867
    %v8869 = vrot.slane %v7994, %v8868
    %v8870 = vsel %vm2119, %v8869, %v8865
    %v8871 = vlaneseq
    %v8872 = vshrl.u32 %v8871, 7
    %v8873 = vsub.s32 %v2121, %v8872
    %v8874 = vrot.slane %v7997, %v8873
    %v8875 = vsel %vm2126, %v8874, %v8870
    %v8876 = vlaneseq
    %v8877 = vshrl.u32 %v8876, 7
    %v8878 = vsub.s32 %v2128, %v8877
    %v8879 = vrot.slane %v8000, %v8878
    %v8880 = vsel %vm2133, %v8879, %v8875
    %v8881 = vlaneseq
    %v8882 = vshrl.u32 %v8881, 7
    %v8883 = vsub.s32 %v2135, %v8882
    %v8884 = vrot.slane %v8003, %v8883
    %v8885 = vsel %vm2140, %v8884, %v8880
    %v8886 = vlaneseq
    %v8887 = vshrl.u32 %v8886, 7
    %v8888 = vsub.s32 %v2142, %v8887
    %v8889 = vrot.slane %v8006, %v8888
    %v8890 = vsel %vm2147, %v8889, %v8885
    %v8891 = vlaneseq
    %v8892 = vshrl.u32 %v8891, 7
    %v8893 = vsub.s32 %v2149, %v8892
    %v8894 = vrot.slane %v8009, %v8893
    %v8895 = vsel %vm2154, %v8894, %v8890
    %v8896 = vlaneseq
    %v8897 = vshrl.u32 %v8896, 7
    %v8898 = vsub.s32 %v2156, %v8897
    %v8899 = vrot.slane %v8012, %v8898
    %v8900 = vsel %vm2161, %v8899, %v8895
    %v8901 = vlaneseq
    %v8902 = vshrl.u32 %v8901, 7
    %v8903 = vsub.s32 %v2163, %v8902
    %v8904 = vrot.slane %v8015, %v8903
    %v8905 = vsel %vm2168, %v8904, %v8900
    %v8906 = vlaneseq
    %v8907 = vshrl.u32 %v8906, 7
    %v8908 = vsub.s32 %v2170, %v8907
    %v8909 = vrot.slane %v8018, %v8908
    %v8910 = vsel %vm2175, %v8909, %v8905
    %v8911 = vlaneseq
    %v8912 = vshrl.u32 %v8911, 7
    %v8913 = vsub.s32 %v2067, %v8912
    %v8914 = vrot.slane %v8021, %v8913
    %v8915 = vlaneseq
    %v8916 = vshrl.u32 %v8915, 7
    %v8917 = vsub.s32 %v2072, %v8916
    %v8918 = vrot.slane %v8024, %v8917
    %v8919 = vsel %vm2077, %v8918, %v8914
    %v8920 = vlaneseq
    %v8921 = vshrl.u32 %v8920, 7
    %v8922 = vsub.s32 %v2079, %v8921
    %v8923 = vrot.slane %v8027, %v8922
    %v8924 = vsel %vm2084, %v8923, %v8919
    %v8925 = vlaneseq
    %v8926 = vshrl.u32 %v8925, 7
    %v8927 = vsub.s32 %v2086, %v8926
    %v8928 = vrot.slane %v8030, %v8927
    %v8929 = vsel %vm2091, %v8928, %v8924
    %v8930 = vlaneseq
    %v8931 = vshrl.u32 %v8930, 7
    %v8932 = vsub.s32 %v2093, %v8931
    %v8933 = vrot.slane %v8033, %v8932
    %v8934 = vsel %vm2098, %v8933, %v8929
    %v8935 = vlaneseq
    %v8936 = vshrl.u32 %v8935, 7
    %v8937 = vsub.s32 %v2100, %v8936
    %v8938 = vrot.slane %v8036, %v8937
    %v8939 = vsel %vm2105, %v8938, %v8934
    %v8940 = vlaneseq
    %v8941 = vshrl.u32 %v8940, 7
    %v8942 = vsub.s32 %v2107, %v8941
    %v8943 = vrot.slane %v8039, %v8942
    %v8944 = vsel %vm2112, %v8943, %v8939
    %v8945 = vlaneseq
    %v8946 = vshrl.u32 %v8945, 7
    %v8947 = vsub.s32 %v2114, %v8946
    %v8948 = vrot.slane %v8042, %v8947
    %v8949 = vsel %vm2119, %v8948, %v8944
    %v8950 = vlaneseq
    %v8951 = vshrl.u32 %v8950, 7
    %v8952 = vsub.s32 %v2121, %v8951
    %v8953 = vrot.slane %v8045, %v8952
    %v8954 = vsel %vm2126, %v8953, %v8949
    %v8955 = vlaneseq
    %v8956 = vshrl.u32 %v8955, 7
    %v8957 = vsub.s32 %v2128, %v8956
    %v8958 = vrot.slane %v8048, %v8957
    %v8959 = vsel %vm2133, %v8958, %v8954
    %v8960 = vlaneseq
    %v8961 = vshrl.u32 %v8960, 7
    %v8962 = vsub.s32 %v2135, %v8961
    %v8963 = vrot.slane %v8051, %v8962
    %v8964 = vsel %vm2140, %v8963, %v8959
    %v8965 = vlaneseq
    %v8966 = vshrl.u32 %v8965, 7
    %v8967 = vsub.s32 %v2142, %v8966
    %v8968 = vrot.slane %v8054, %v8967
    %v8969 = vsel %vm2147, %v8968, %v8964
    %v8970 = vlaneseq
    %v8971 = vshrl.u32 %v8970, 7
    %v8972 = vsub.s32 %v2149, %v8971
    %v8973 = vrot.slane %v8057, %v8972
    %v8974 = vsel %vm2154, %v8973, %v8969
    %v8975 = vlaneseq
    %v8976 = vshrl.u32 %v8975, 7
    %v8977 = vsub.s32 %v2156, %v8976
    %v8978 = vrot.slane %v8060, %v8977
    %v8979 = vsel %vm2161, %v8978, %v8974
    %v8980 = vlaneseq
    %v8981 = vshrl.u32 %v8980, 7
    %v8982 = vsub.s32 %v2163, %v8981
    %v8983 = vrot.slane %v8063, %v8982
    %v8984 = vsel %vm2168, %v8983, %v8979
    %v8985 = vlaneseq
    %v8986 = vshrl.u32 %v8985, 7
    %v8987 = vsub.s32 %v2170, %v8986
    %v8988 = vrot.slane %v8066, %v8987
    %v8989 = vsel %vm2175, %v8988, %v8984
    %v8990 = vlaneseq
    %v8991 = vshrl.u32 %v8990, 7
    %v8992 = vsub.s32 %v2067, %v8991
    %v8993 = vrot.slane %v8069, %v8992
    %v8994 = vlaneseq
    %v8995 = vshrl.u32 %v8994, 7
    %v8996 = vsub.s32 %v2072, %v8995
    %v8997 = vrot.slane %v8072, %v8996
    %v8998 = vsel %vm2077, %v8997, %v8993
    %v8999 = vlaneseq
    %v9000 = vshrl.u32 %v8999, 7
    %v9001 = vsub.s32 %v2079, %v9000
    %v9002 = vrot.slane %v8075, %v9001
    %v9003 = vsel %vm2084, %v9002, %v8998
    %v9004 = vlaneseq
    %v9005 = vshrl.u32 %v9004, 7
    %v9006 = vsub.s32 %v2086, %v9005
    %v9007 = vrot.slane %v8078, %v9006
    %v9008 = vsel %vm2091, %v9007, %v9003
    %v9009 = vlaneseq
    %v9010 = vshrl.u32 %v9009, 7
    %v9011 = vsub.s32 %v2093, %v9010
    %v9012 = vrot.slane %v8081, %v9011
    %v9013 = vsel %vm2098, %v9012, %v9008
    %v9014 = vlaneseq
    %v9015 = vshrl.u32 %v9014, 7
    %v9016 = vsub.s32 %v2100, %v9015
    %v9017 = vrot.slane %v8084, %v9016
    %v9018 = vsel %vm2105, %v9017, %v9013
    %v9019 = vlaneseq
    %v9020 = vshrl.u32 %v9019, 7
    %v9021 = vsub.s32 %v2107, %v9020
    %v9022 = vrot.slane %v8087, %v9021
    %v9023 = vsel %vm2112, %v9022, %v9018
    %v9024 = vlaneseq
    %v9025 = vshrl.u32 %v9024, 7
    %v9026 = vsub.s32 %v2114, %v9025
    %v9027 = vrot.slane %v8090, %v9026
    %v9028 = vsel %vm2119, %v9027, %v9023
    %v9029 = vlaneseq
    %v9030 = vshrl.u32 %v9029, 7
    %v9031 = vsub.s32 %v2121, %v9030
    %v9032 = vrot.slane %v8093, %v9031
    %v9033 = vsel %vm2126, %v9032, %v9028
    %v9034 = vlaneseq
    %v9035 = vshrl.u32 %v9034, 7
    %v9036 = vsub.s32 %v2128, %v9035
    %v9037 = vrot.slane %v8096, %v9036
    %v9038 = vsel %vm2133, %v9037, %v9033
    %v9039 = vlaneseq
    %v9040 = vshrl.u32 %v9039, 7
    %v9041 = vsub.s32 %v2135, %v9040
    %v9042 = vrot.slane %v8099, %v9041
    %v9043 = vsel %vm2140, %v9042, %v9038
    %v9044 = vlaneseq
    %v9045 = vshrl.u32 %v9044, 7
    %v9046 = vsub.s32 %v2142, %v9045
    %v9047 = vrot.slane %v8102, %v9046
    %v9048 = vsel %vm2147, %v9047, %v9043
    %v9049 = vlaneseq
    %v9050 = vshrl.u32 %v9049, 7
    %v9051 = vsub.s32 %v2149, %v9050
    %v9052 = vrot.slane %v8105, %v9051
    %v9053 = vsel %vm2154, %v9052, %v9048
    %v9054 = vlaneseq
    %v9055 = vshrl.u32 %v9054, 7
    %v9056 = vsub.s32 %v2156, %v9055
    %v9057 = vrot.slane %v8108, %v9056
    %v9058 = vsel %vm2161, %v9057, %v9053
    %v9059 = vlaneseq
    %v9060 = vshrl.u32 %v9059, 7
    %v9061 = vsub.s32 %v2163, %v9060
    %v9062 = vrot.slane %v8111, %v9061
    %v9063 = vsel %vm2168, %v9062, %v9058
    %v9064 = vlaneseq
    %v9065 = vshrl.u32 %v9064, 7
    %v9066 = vsub.s32 %v2170, %v9065
    %v9067 = vrot.slane %v8114, %v9066
    %v9068 = vsel %vm2175, %v9067, %v9063
    %v9069 = vlaneseq
    %v9070 = vshrl.u32 %v9069, 7
    %v9071 = vsub.s32 %v2067, %v9070
    %v9072 = vrot.slane %v8117, %v9071
    %v9073 = vlaneseq
    %v9074 = vshrl.u32 %v9073, 7
    %v9075 = vsub.s32 %v2072, %v9074
    %v9076 = vrot.slane %v8120, %v9075
    %v9077 = vsel %vm2077, %v9076, %v9072
    %v9078 = vlaneseq
    %v9079 = vshrl.u32 %v9078, 7
    %v9080 = vsub.s32 %v2079, %v9079
    %v9081 = vrot.slane %v8123, %v9080
    %v9082 = vsel %vm2084, %v9081, %v9077
    %v9083 = vlaneseq
    %v9084 = vshrl.u32 %v9083, 7
    %v9085 = vsub.s32 %v2086, %v9084
    %v9086 = vrot.slane %v8126, %v9085
    %v9087 = vsel %vm2091, %v9086, %v9082
    %v9088 = vlaneseq
    %v9089 = vshrl.u32 %v9088, 7
    %v9090 = vsub.s32 %v2093, %v9089
    %v9091 = vrot.slane %v8129, %v9090
    %v9092 = vsel %vm2098, %v9091, %v9087
    %v9093 = vlaneseq
    %v9094 = vshrl.u32 %v9093, 7
    %v9095 = vsub.s32 %v2100, %v9094
    %v9096 = vrot.slane %v8132, %v9095
    %v9097 = vsel %vm2105, %v9096, %v9092
    %v9098 = vlaneseq
    %v9099 = vshrl.u32 %v9098, 7
    %v9100 = vsub.s32 %v2107, %v9099
    %v9101 = vrot.slane %v8135, %v9100
    %v9102 = vsel %vm2112, %v9101, %v9097
    %v9103 = vlaneseq
    %v9104 = vshrl.u32 %v9103, 7
    %v9105 = vsub.s32 %v2114, %v9104
    %v9106 = vrot.slane %v8138, %v9105
    %v9107 = vsel %vm2119, %v9106, %v9102
    %v9108 = vlaneseq
    %v9109 = vshrl.u32 %v9108, 7
    %v9110 = vsub.s32 %v2121, %v9109
    %v9111 = vrot.slane %v8141, %v9110
    %v9112 = vsel %vm2126, %v9111, %v9107
    %v9113 = vlaneseq
    %v9114 = vshrl.u32 %v9113, 7
    %v9115 = vsub.s32 %v2128, %v9114
    %v9116 = vrot.slane %v8144, %v9115
    %v9117 = vsel %vm2133, %v9116, %v9112
    %v9118 = vlaneseq
    %v9119 = vshrl.u32 %v9118, 7
    %v9120 = vsub.s32 %v2135, %v9119
    %v9121 = vrot.slane %v8147, %v9120
    %v9122 = vsel %vm2140, %v9121, %v9117
    %v9123 = vlaneseq
    %v9124 = vshrl.u32 %v9123, 7
    %v9125 = vsub.s32 %v2142, %v9124
    %v9126 = vrot.slane %v8150, %v9125
    %v9127 = vsel %vm2147, %v9126, %v9122
    %v9128 = vlaneseq
    %v9129 = vshrl.u32 %v9128, 7
    %v9130 = vsub.s32 %v2149, %v9129
    %v9131 = vrot.slane %v8153, %v9130
    %v9132 = vsel %vm2154, %v9131, %v9127
    %v9133 = vlaneseq
    %v9134 = vshrl.u32 %v9133, 7
    %v9135 = vsub.s32 %v2156, %v9134
    %v9136 = vrot.slane %v8156, %v9135
    %v9137 = vsel %vm2161, %v9136, %v9132
    %v9138 = vlaneseq
    %v9139 = vshrl.u32 %v9138, 7
    %v9140 = vsub.s32 %v2163, %v9139
    %v9141 = vrot.slane %v8159, %v9140
    %v9142 = vsel %vm2168, %v9141, %v9137
    %v9143 = vlaneseq
    %v9144 = vshrl.u32 %v9143, 7
    %v9145 = vsub.s32 %v2170, %v9144
    %v9146 = vrot.slane %v8162, %v9145
    %v9147 = vsel %vm2175, %v9146, %v9142
    %v9148 = vlaneseq
    %v9149 = vshrl.u32 %v9148, 7
    %v9150 = vsub.s32 %v2067, %v9149
    %v9151 = vrot.slane %v8165, %v9150
    %v9152 = vlaneseq
    %v9153 = vshrl.u32 %v9152, 7
    %v9154 = vsub.s32 %v2072, %v9153
    %v9155 = vrot.slane %v8168, %v9154
    %v9156 = vsel %vm2077, %v9155, %v9151
    %v9157 = vlaneseq
    %v9158 = vshrl.u32 %v9157, 7
    %v9159 = vsub.s32 %v2079, %v9158
    %v9160 = vrot.slane %v8171, %v9159
    %v9161 = vsel %vm2084, %v9160, %v9156
    %v9162 = vlaneseq
    %v9163 = vshrl.u32 %v9162, 7
    %v9164 = vsub.s32 %v2086, %v9163
    %v9165 = vrot.slane %v8174, %v9164
    %v9166 = vsel %vm2091, %v9165, %v9161
    %v9167 = vlaneseq
    %v9168 = vshrl.u32 %v9167, 7
    %v9169 = vsub.s32 %v2093, %v9168
    %v9170 = vrot.slane %v8177, %v9169
    %v9171 = vsel %vm2098, %v9170, %v9166
    %v9172 = vlaneseq
    %v9173 = vshrl.u32 %v9172, 7
    %v9174 = vsub.s32 %v2100, %v9173
    %v9175 = vrot.slane %v8180, %v9174
    %v9176 = vsel %vm2105, %v9175, %v9171
    %v9177 = vlaneseq
    %v9178 = vshrl.u32 %v9177, 7
    %v9179 = vsub.s32 %v2107, %v9178
    %v9180 = vrot.slane %v8183, %v9179
    %v9181 = vsel %vm2112, %v9180, %v9176
    %v9182 = vlaneseq
    %v9183 = vshrl.u32 %v9182, 7
    %v9184 = vsub.s32 %v2114, %v9183
    %v9185 = vrot.slane %v8186, %v9184
    %v9186 = vsel %vm2119, %v9185, %v9181
    %v9187 = vlaneseq
    %v9188 = vshrl.u32 %v9187, 7
    %v9189 = vsub.s32 %v2121, %v9188
    %v9190 = vrot.slane %v8189, %v9189
    %v9191 = vsel %vm2126, %v9190, %v9186
    %v9192 = vlaneseq
    %v9193 = vshrl.u32 %v9192, 7
    %v9194 = vsub.s32 %v2128, %v9193
    %v9195 = vrot.slane %v8192, %v9194
    %v9196 = vsel %vm2133, %v9195, %v9191
    %v9197 = vlaneseq
    %v9198 = vshrl.u32 %v9197, 7
    %v9199 = vsub.s32 %v2135, %v9198
    %v9200 = vrot.slane %v8195, %v9199
    %v9201 = vsel %vm2140, %v9200, %v9196
    %v9202 = vlaneseq
    %v9203 = vshrl.u32 %v9202, 7
    %v9204 = vsub.s32 %v2142, %v9203
    %v9205 = vrot.slane %v8198, %v9204
    %v9206 = vsel %vm2147, %v9205, %v9201
    %v9207 = vlaneseq
    %v9208 = vshrl.u32 %v9207, 7
    %v9209 = vsub.s32 %v2149, %v9208
    %v9210 = vrot.slane %v8201, %v9209
    %v9211 = vsel %vm2154, %v9210, %v9206
    %v9212 = vlaneseq
    %v9213 = vshrl.u32 %v9212, 7
    %v9214 = vsub.s32 %v2156, %v9213
    %v9215 = vrot.slane %v8204, %v9214
    %v9216 = vsel %vm2161, %v9215, %v9211
    %v9217 = vlaneseq
    %v9218 = vshrl.u32 %v9217, 7
    %v9219 = vsub.s32 %v2163, %v9218
    %v9220 = vrot.slane %v8207, %v9219
    %v9221 = vsel %vm2168, %v9220, %v9216
    %v9222 = vlaneseq
    %v9223 = vshrl.u32 %v9222, 7
    %v9224 = vsub.s32 %v2170, %v9223
    %v9225 = vrot.slane %v8210, %v9224
    %v9226 = vsel %vm2175, %v9225, %v9221
    %v9227 = vlaneseq
    %v9228 = vshrl.u32 %v9227, 7
    %v9229 = vsub.s32 %v2067, %v9228
    %v9230 = vrot.slane %v8213, %v9229
    %v9231 = vlaneseq
    %v9232 = vshrl.u32 %v9231, 7
    %v9233 = vsub.s32 %v2072, %v9232
    %v9234 = vrot.slane %v8216, %v9233
    %v9235 = vsel %vm2077, %v9234, %v9230
    %v9236 = vlaneseq
    %v9237 = vshrl.u32 %v9236, 7
    %v9238 = vsub.s32 %v2079, %v9237
    %v9239 = vrot.slane %v8219, %v9238
    %v9240 = vsel %vm2084, %v9239, %v9235
    %v9241 = vlaneseq
    %v9242 = vshrl.u32 %v9241, 7
    %v9243 = vsub.s32 %v2086, %v9242
    %v9244 = vrot.slane %v8222, %v9243
    %v9245 = vsel %vm2091, %v9244, %v9240
    %v9246 = vlaneseq
    %v9247 = vshrl.u32 %v9246, 7
    %v9248 = vsub.s32 %v2093, %v9247
    %v9249 = vrot.slane %v8225, %v9248
    %v9250 = vsel %vm2098, %v9249, %v9245
    %v9251 = vlaneseq
    %v9252 = vshrl.u32 %v9251, 7
    %v9253 = vsub.s32 %v2100, %v9252
    %v9254 = vrot.slane %v8228, %v9253
    %v9255 = vsel %vm2105, %v9254, %v9250
    %v9256 = vlaneseq
    %v9257 = vshrl.u32 %v9256, 7
    %v9258 = vsub.s32 %v2107, %v9257
    %v9259 = vrot.slane %v8231, %v9258
    %v9260 = vsel %vm2112, %v9259, %v9255
    %v9261 = vlaneseq
    %v9262 = vshrl.u32 %v9261, 7
    %v9263 = vsub.s32 %v2114, %v9262
    %v9264 = vrot.slane %v8234, %v9263
    %v9265 = vsel %vm2119, %v9264, %v9260
    %v9266 = vlaneseq
    %v9267 = vshrl.u32 %v9266, 7
    %v9268 = vsub.s32 %v2121, %v9267
    %v9269 = vrot.slane %v8237, %v9268
    %v9270 = vsel %vm2126, %v9269, %v9265
    %v9271 = vlaneseq
    %v9272 = vshrl.u32 %v9271, 7
    %v9273 = vsub.s32 %v2128, %v9272
    %v9274 = vrot.slane %v8240, %v9273
    %v9275 = vsel %vm2133, %v9274, %v9270
    %v9276 = vlaneseq
    %v9277 = vshrl.u32 %v9276, 7
    %v9278 = vsub.s32 %v2135, %v9277
    %v9279 = vrot.slane %v8243, %v9278
    %v9280 = vsel %vm2140, %v9279, %v9275
    %v9281 = vlaneseq
    %v9282 = vshrl.u32 %v9281, 7
    %v9283 = vsub.s32 %v2142, %v9282
    %v9284 = vrot.slane %v8246, %v9283
    %v9285 = vsel %vm2147, %v9284, %v9280
    %v9286 = vlaneseq
    %v9287 = vshrl.u32 %v9286, 7
    %v9288 = vsub.s32 %v2149, %v9287
    %v9289 = vrot.slane %v8249, %v9288
    %v9290 = vsel %vm2154, %v9289, %v9285
    %v9291 = vlaneseq
    %v9292 = vshrl.u32 %v9291, 7
    %v9293 = vsub.s32 %v2156, %v9292
    %v9294 = vrot.slane %v8252, %v9293
    %v9295 = vsel %vm2161, %v9294, %v9290
    %v9296 = vlaneseq
    %v9297 = vshrl.u32 %v9296, 7
    %v9298 = vsub.s32 %v2163, %v9297
    %v9299 = vrot.slane %v8255, %v9298
    %v9300 = vsel %vm2168, %v9299, %v9295
    %v9301 = vlaneseq
    %v9302 = vshrl.u32 %v9301, 7
    %v9303 = vsub.s32 %v2170, %v9302
    %v9304 = vrot.slane %v8258, %v9303
    %v9305 = vsel %vm2175, %v9304, %v9300
    %v9306 = vlaneseq
    %v9307 = vshrl.u32 %v9306, 7
    %v9308 = vsub.s32 %v2067, %v9307
    %v9309 = vrot.slane %v8261, %v9308
    %v9310 = vlaneseq
    %v9311 = vshrl.u32 %v9310, 7
    %v9312 = vsub.s32 %v2072, %v9311
    %v9313 = vrot.slane %v8264, %v9312
    %v9314 = vsel %vm2077, %v9313, %v9309
    %v9315 = vlaneseq
    %v9316 = vshrl.u32 %v9315, 7
    %v9317 = vsub.s32 %v2079, %v9316
    %v9318 = vrot.slane %v8267, %v9317
    %v9319 = vsel %vm2084, %v9318, %v9314
    %v9320 = vlaneseq
    %v9321 = vshrl.u32 %v9320, 7
    %v9322 = vsub.s32 %v2086, %v9321
    %v9323 = vrot.slane %v8270, %v9322
    %v9324 = vsel %vm2091, %v9323, %v9319
    %v9325 = vlaneseq
    %v9326 = vshrl.u32 %v9325, 7
    %v9327 = vsub.s32 %v2093, %v9326
    %v9328 = vrot.slane %v8273, %v9327
    %v9329 = vsel %vm2098, %v9328, %v9324
    %v9330 = vlaneseq
    %v9331 = vshrl.u32 %v9330, 7
    %v9332 = vsub.s32 %v2100, %v9331
    %v9333 = vrot.slane %v8276, %v9332
    %v9334 = vsel %vm2105, %v9333, %v9329
    %v9335 = vlaneseq
    %v9336 = vshrl.u32 %v9335, 7
    %v9337 = vsub.s32 %v2107, %v9336
    %v9338 = vrot.slane %v8279, %v9337
    %v9339 = vsel %vm2112, %v9338, %v9334
    %v9340 = vlaneseq
    %v9341 = vshrl.u32 %v9340, 7
    %v9342 = vsub.s32 %v2114, %v9341
    %v9343 = vrot.slane %v8282, %v9342
    %v9344 = vsel %vm2119, %v9343, %v9339
    %v9345 = vlaneseq
    %v9346 = vshrl.u32 %v9345, 7
    %v9347 = vsub.s32 %v2121, %v9346
    %v9348 = vrot.slane %v8285, %v9347
    %v9349 = vsel %vm2126, %v9348, %v9344
    %v9350 = vlaneseq
    %v9351 = vshrl.u32 %v9350, 7
    %v9352 = vsub.s32 %v2128, %v9351
    %v9353 = vrot.slane %v8288, %v9352
    %v9354 = vsel %vm2133, %v9353, %v9349
    %v9355 = vlaneseq
    %v9356 = vshrl.u32 %v9355, 7
    %v9357 = vsub.s32 %v2135, %v9356
    %v9358 = vrot.slane %v8291, %v9357
    %v9359 = vsel %vm2140, %v9358, %v9354
    %v9360 = vlaneseq
    %v9361 = vshrl.u32 %v9360, 7
    %v9362 = vsub.s32 %v2142, %v9361
    %v9363 = vrot.slane %v8294, %v9362
    %v9364 = vsel %vm2147, %v9363, %v9359
    %v9365 = vlaneseq
    %v9366 = vshrl.u32 %v9365, 7
    %v9367 = vsub.s32 %v2149, %v9366
    %v9368 = vrot.slane %v8297, %v9367
    %v9369 = vsel %vm2154, %v9368, %v9364
    %v9370 = vlaneseq
    %v9371 = vshrl.u32 %v9370, 7
    %v9372 = vsub.s32 %v2156, %v9371
    %v9373 = vrot.slane %v8300, %v9372
    %v9374 = vsel %vm2161, %v9373, %v9369
    %v9375 = vlaneseq
    %v9376 = vshrl.u32 %v9375, 7
    %v9377 = vsub.s32 %v2163, %v9376
    %v9378 = vrot.slane %v8303, %v9377
    %v9379 = vsel %vm2168, %v9378, %v9374
    %v9380 = vlaneseq
    %v9381 = vshrl.u32 %v9380, 7
    %v9382 = vsub.s32 %v2170, %v9381
    %v9383 = vrot.slane %v8306, %v9382
    %v9384 = vsel %vm2175, %v9383, %v9379
    %v9385 = vlaneseq
    %v9386 = vshrl.u32 %v9385, 7
    %v9387 = vsub.s32 %v2067, %v9386
    %v9388 = vrot.slane %v8309, %v9387
    %v9389 = vlaneseq
    %v9390 = vshrl.u32 %v9389, 7
    %v9391 = vsub.s32 %v2072, %v9390
    %v9392 = vrot.slane %v8312, %v9391
    %v9393 = vsel %vm2077, %v9392, %v9388
    %v9394 = vlaneseq
    %v9395 = vshrl.u32 %v9394, 7
    %v9396 = vsub.s32 %v2079, %v9395
    %v9397 = vrot.slane %v8315, %v9396
    %v9398 = vsel %vm2084, %v9397, %v9393
    %v9399 = vlaneseq
    %v9400 = vshrl.u32 %v9399, 7
    %v9401 = vsub.s32 %v2086, %v9400
    %v9402 = vrot.slane %v8318, %v9401
    %v9403 = vsel %vm2091, %v9402, %v9398
    %v9404 = vlaneseq
    %v9405 = vshrl.u32 %v9404, 7
    %v9406 = vsub.s32 %v2093, %v9405
    %v9407 = vrot.slane %v8321, %v9406
    %v9408 = vsel %vm2098, %v9407, %v9403
    %v9409 = vlaneseq
    %v9410 = vshrl.u32 %v9409, 7
    %v9411 = vsub.s32 %v2100, %v9410
    %v9412 = vrot.slane %v8324, %v9411
    %v9413 = vsel %vm2105, %v9412, %v9408
    %v9414 = vlaneseq
    %v9415 = vshrl.u32 %v9414, 7
    %v9416 = vsub.s32 %v2107, %v9415
    %v9417 = vrot.slane %v8327, %v9416
    %v9418 = vsel %vm2112, %v9417, %v9413
    %v9419 = vlaneseq
    %v9420 = vshrl.u32 %v9419, 7
    %v9421 = vsub.s32 %v2114, %v9420
    %v9422 = vrot.slane %v8330, %v9421
    %v9423 = vsel %vm2119, %v9422, %v9418
    %v9424 = vlaneseq
    %v9425 = vshrl.u32 %v9424, 7
    %v9426 = vsub.s32 %v2121, %v9425
    %v9427 = vrot.slane %v8333, %v9426
    %v9428 = vsel %vm2126, %v9427, %v9423
    %v9429 = vlaneseq
    %v9430 = vshrl.u32 %v9429, 7
    %v9431 = vsub.s32 %v2128, %v9430
    %v9432 = vrot.slane %v8336, %v9431
    %v9433 = vsel %vm2133, %v9432, %v9428
    %v9434 = vlaneseq
    %v9435 = vshrl.u32 %v9434, 7
    %v9436 = vsub.s32 %v2135, %v9435
    %v9437 = vrot.slane %v8339, %v9436
    %v9438 = vsel %vm2140, %v9437, %v9433
    %v9439 = vlaneseq
    %v9440 = vshrl.u32 %v9439, 7
    %v9441 = vsub.s32 %v2142, %v9440
    %v9442 = vrot.slane %v8342, %v9441
    %v9443 = vsel %vm2147, %v9442, %v9438
    %v9444 = vlaneseq
    %v9445 = vshrl.u32 %v9444, 7
    %v9446 = vsub.s32 %v2149, %v9445
    %v9447 = vrot.slane %v8345, %v9446
    %v9448 = vsel %vm2154, %v9447, %v9443
    %v9449 = vlaneseq
    %v9450 = vshrl.u32 %v9449, 7
    %v9451 = vsub.s32 %v2156, %v9450
    %v9452 = vrot.slane %v8348, %v9451
    %v9453 = vsel %vm2161, %v9452, %v9448
    %v9454 = vlaneseq
    %v9455 = vshrl.u32 %v9454, 7
    %v9456 = vsub.s32 %v2163, %v9455
    %v9457 = vrot.slane %v8351, %v9456
    %v9458 = vsel %vm2168, %v9457, %v9453
    %v9459 = vlaneseq
    %v9460 = vshrl.u32 %v9459, 7
    %v9461 = vsub.s32 %v2170, %v9460
    %v9462 = vrot.slane %v8354, %v9461
    %v9463 = vsel %vm2175, %v9462, %v9458
    %v9464 = vlaneseq
    %v9465 = vshrl.u32 %v9464, 7
    %v9466 = vsub.s32 %v2067, %v9465
    %v9467 = vrot.slane %v8357, %v9466
    %v9468 = vlaneseq
    %v9469 = vshrl.u32 %v9468, 7
    %v9470 = vsub.s32 %v2072, %v9469
    %v9471 = vrot.slane %v8360, %v9470
    %v9472 = vsel %vm2077, %v9471, %v9467
    %v9473 = vlaneseq
    %v9474 = vshrl.u32 %v9473, 7
    %v9475 = vsub.s32 %v2079, %v9474
    %v9476 = vrot.slane %v8363, %v9475
    %v9477 = vsel %vm2084, %v9476, %v9472
    %v9478 = vlaneseq
    %v9479 = vshrl.u32 %v9478, 7
    %v9480 = vsub.s32 %v2086, %v9479
    %v9481 = vrot.slane %v8366, %v9480
    %v9482 = vsel %vm2091, %v9481, %v9477
    %v9483 = vlaneseq
    %v9484 = vshrl.u32 %v9483, 7
    %v9485 = vsub.s32 %v2093, %v9484
    %v9486 = vrot.slane %v8369, %v9485
    %v9487 = vsel %vm2098, %v9486, %v9482
    %v9488 = vlaneseq
    %v9489 = vshrl.u32 %v9488, 7
    %v9490 = vsub.s32 %v2100, %v9489
    %v9491 = vrot.slane %v8372, %v9490
    %v9492 = vsel %vm2105, %v9491, %v9487
    %v9493 = vlaneseq
    %v9494 = vshrl.u32 %v9493, 7
    %v9495 = vsub.s32 %v2107, %v9494
    %v9496 = vrot.slane %v8375, %v9495
    %v9497 = vsel %vm2112, %v9496, %v9492
    %v9498 = vlaneseq
    %v9499 = vshrl.u32 %v9498, 7
    %v9500 = vsub.s32 %v2114, %v9499
    %v9501 = vrot.slane %v8378, %v9500
    %v9502 = vsel %vm2119, %v9501, %v9497
    %v9503 = vlaneseq
    %v9504 = vshrl.u32 %v9503, 7
    %v9505 = vsub.s32 %v2121, %v9504
    %v9506 = vrot.slane %v8381, %v9505
    %v9507 = vsel %vm2126, %v9506, %v9502
    %v9508 = vlaneseq
    %v9509 = vshrl.u32 %v9508, 7
    %v9510 = vsub.s32 %v2128, %v9509
    %v9511 = vrot.slane %v8384, %v9510
    %v9512 = vsel %vm2133, %v9511, %v9507
    %v9513 = vlaneseq
    %v9514 = vshrl.u32 %v9513, 7
    %v9515 = vsub.s32 %v2135, %v9514
    %v9516 = vrot.slane %v8387, %v9515
    %v9517 = vsel %vm2140, %v9516, %v9512
    %v9518 = vlaneseq
    %v9519 = vshrl.u32 %v9518, 7
    %v9520 = vsub.s32 %v2142, %v9519
    %v9521 = vrot.slane %v8390, %v9520
    %v9522 = vsel %vm2147, %v9521, %v9517
    %v9523 = vlaneseq
    %v9524 = vshrl.u32 %v9523, 7
    %v9525 = vsub.s32 %v2149, %v9524
    %v9526 = vrot.slane %v8393, %v9525
    %v9527 = vsel %vm2154, %v9526, %v9522
    %v9528 = vlaneseq
    %v9529 = vshrl.u32 %v9528, 7
    %v9530 = vsub.s32 %v2156, %v9529
    %v9531 = vrot.slane %v8396, %v9530
    %v9532 = vsel %vm2161, %v9531, %v9527
    %v9533 = vlaneseq
    %v9534 = vshrl.u32 %v9533, 7
    %v9535 = vsub.s32 %v2163, %v9534
    %v9536 = vrot.slane %v8399, %v9535
    %v9537 = vsel %vm2168, %v9536, %v9532
    %v9538 = vlaneseq
    %v9539 = vshrl.u32 %v9538, 7
    %v9540 = vsub.s32 %v2170, %v9539
    %v9541 = vrot.slane %v8402, %v9540
    %v9542 = vsel %vm2175, %v9541, %v9537
    %v9543 = vlaneseq
    %v9544 = vshrl.u32 %v9543, 7
    %v9545 = vsub.s32 %v2067, %v9544
    %v9546 = vrot.slane %v8405, %v9545
    %v9547 = vlaneseq
    %v9548 = vshrl.u32 %v9547, 7
    %v9549 = vsub.s32 %v2072, %v9548
    %v9550 = vrot.slane %v8408, %v9549
    %v9551 = vsel %vm2077, %v9550, %v9546
    %v9552 = vlaneseq
    %v9553 = vshrl.u32 %v9552, 7
    %v9554 = vsub.s32 %v2079, %v9553
    %v9555 = vrot.slane %v8411, %v9554
    %v9556 = vsel %vm2084, %v9555, %v9551
    %v9557 = vlaneseq
    %v9558 = vshrl.u32 %v9557, 7
    %v9559 = vsub.s32 %v2086, %v9558
    %v9560 = vrot.slane %v8414, %v9559
    %v9561 = vsel %vm2091, %v9560, %v9556
    %v9562 = vlaneseq
    %v9563 = vshrl.u32 %v9562, 7
    %v9564 = vsub.s32 %v2093, %v9563
    %v9565 = vrot.slane %v8417, %v9564
    %v9566 = vsel %vm2098, %v9565, %v9561
    %v9567 = vlaneseq
    %v9568 = vshrl.u32 %v9567, 7
    %v9569 = vsub.s32 %v2100, %v9568
    %v9570 = vrot.slane %v8420, %v9569
    %v9571 = vsel %vm2105, %v9570, %v9566
    %v9572 = vlaneseq
    %v9573 = vshrl.u32 %v9572, 7
    %v9574 = vsub.s32 %v2107, %v9573
    %v9575 = vrot.slane %v8423, %v9574
    %v9576 = vsel %vm2112, %v9575, %v9571
    %v9577 = vlaneseq
    %v9578 = vshrl.u32 %v9577, 7
    %v9579 = vsub.s32 %v2114, %v9578
    %v9580 = vrot.slane %v8426, %v9579
    %v9581 = vsel %vm2119, %v9580, %v9576
    %v9582 = vlaneseq
    %v9583 = vshrl.u32 %v9582, 7
    %v9584 = vsub.s32 %v2121, %v9583
    %v9585 = vrot.slane %v8429, %v9584
    %v9586 = vsel %vm2126, %v9585, %v9581
    %v9587 = vlaneseq
    %v9588 = vshrl.u32 %v9587, 7
    %v9589 = vsub.s32 %v2128, %v9588
    %v9590 = vrot.slane %v8432, %v9589
    %v9591 = vsel %vm2133, %v9590, %v9586
    %v9592 = vlaneseq
    %v9593 = vshrl.u32 %v9592, 7
    %v9594 = vsub.s32 %v2135, %v9593
    %v9595 = vrot.slane %v8435, %v9594
    %v9596 = vsel %vm2140, %v9595, %v9591
    %v9597 = vlaneseq
    %v9598 = vshrl.u32 %v9597, 7
    %v9599 = vsub.s32 %v2142, %v9598
    %v9600 = vrot.slane %v8438, %v9599
    %v9601 = vsel %vm2147, %v9600, %v9596
    %v9602 = vlaneseq
    %v9603 = vshrl.u32 %v9602, 7
    %v9604 = vsub.s32 %v2149, %v9603
    %v9605 = vrot.slane %v8441, %v9604
    %v9606 = vsel %vm2154, %v9605, %v9601
    %v9607 = vlaneseq
    %v9608 = vshrl.u32 %v9607, 7
    %v9609 = vsub.s32 %v2156, %v9608
    %v9610 = vrot.slane %v8444, %v9609
    %v9611 = vsel %vm2161, %v9610, %v9606
    %v9612 = vlaneseq
    %v9613 = vshrl.u32 %v9612, 7
    %v9614 = vsub.s32 %v2163, %v9613
    %v9615 = vrot.slane %v8447, %v9614
    %v9616 = vsel %vm2168, %v9615, %v9611
    %v9617 = vlaneseq
    %v9618 = vshrl.u32 %v9617, 7
    %v9619 = vsub.s32 %v2170, %v9618
    %v9620 = vrot.slane %v8450, %v9619
    %v9621 = vsel %vm2175, %v9620, %v9616
    %v9622 = vlaneseq
    %v9623 = vshrl.u32 %v9622, 7
    %v9624 = vsub.s32 %v2067, %v9623
    %v9625 = vrot.slane %v8453, %v9624
    %v9626 = vlaneseq
    %v9627 = vshrl.u32 %v9626, 7
    %v9628 = vsub.s32 %v2072, %v9627
    %v9629 = vrot.slane %v8456, %v9628
    %v9630 = vsel %vm2077, %v9629, %v9625
    %v9631 = vlaneseq
    %v9632 = vshrl.u32 %v9631, 7
    %v9633 = vsub.s32 %v2079, %v9632
    %v9634 = vrot.slane %v8459, %v9633
    %v9635 = vsel %vm2084, %v9634, %v9630
    %v9636 = vlaneseq
    %v9637 = vshrl.u32 %v9636, 7
    %v9638 = vsub.s32 %v2086, %v9637
    %v9639 = vrot.slane %v8462, %v9638
    %v9640 = vsel %vm2091, %v9639, %v9635
    %v9641 = vlaneseq
    %v9642 = vshrl.u32 %v9641, 7
    %v9643 = vsub.s32 %v2093, %v9642
    %v9644 = vrot.slane %v8465, %v9643
    %v9645 = vsel %vm2098, %v9644, %v9640
    %v9646 = vlaneseq
    %v9647 = vshrl.u32 %v9646, 7
    %v9648 = vsub.s32 %v2100, %v9647
    %v9649 = vrot.slane %v8468, %v9648
    %v9650 = vsel %vm2105, %v9649, %v9645
    %v9651 = vlaneseq
    %v9652 = vshrl.u32 %v9651, 7
    %v9653 = vsub.s32 %v2107, %v9652
    %v9654 = vrot.slane %v8471, %v9653
    %v9655 = vsel %vm2112, %v9654, %v9650
    %v9656 = vlaneseq
    %v9657 = vshrl.u32 %v9656, 7
    %v9658 = vsub.s32 %v2114, %v9657
    %v9659 = vrot.slane %v8474, %v9658
    %v9660 = vsel %vm2119, %v9659, %v9655
    %v9661 = vlaneseq
    %v9662 = vshrl.u32 %v9661, 7
    %v9663 = vsub.s32 %v2121, %v9662
    %v9664 = vrot.slane %v8477, %v9663
    %v9665 = vsel %vm2126, %v9664, %v9660
    %v9666 = vlaneseq
    %v9667 = vshrl.u32 %v9666, 7
    %v9668 = vsub.s32 %v2128, %v9667
    %v9669 = vrot.slane %v8480, %v9668
    %v9670 = vsel %vm2133, %v9669, %v9665
    %v9671 = vlaneseq
    %v9672 = vshrl.u32 %v9671, 7
    %v9673 = vsub.s32 %v2135, %v9672
    %v9674 = vrot.slane %v8483, %v9673
    %v9675 = vsel %vm2140, %v9674, %v9670
    %v9676 = vlaneseq
    %v9677 = vshrl.u32 %v9676, 7
    %v9678 = vsub.s32 %v2142, %v9677
    %v9679 = vrot.slane %v8486, %v9678
    %v9680 = vsel %vm2147, %v9679, %v9675
    %v9681 = vlaneseq
    %v9682 = vshrl.u32 %v9681, 7
    %v9683 = vsub.s32 %v2149, %v9682
    %v9684 = vrot.slane %v8489, %v9683
    %v9685 = vsel %vm2154, %v9684, %v9680
    %v9686 = vlaneseq
    %v9687 = vshrl.u32 %v9686, 7
    %v9688 = vsub.s32 %v2156, %v9687
    %v9689 = vrot.slane %v8492, %v9688
    %v9690 = vsel %vm2161, %v9689, %v9685
    %v9691 = vlaneseq
    %v9692 = vshrl.u32 %v9691, 7
    %v9693 = vsub.s32 %v2163, %v9692
    %v9694 = vrot.slane %v8495, %v9693
    %v9695 = vsel %vm2168, %v9694, %v9690
    %v9696 = vlaneseq
    %v9697 = vshrl.u32 %v9696, 7
    %v9698 = vsub.s32 %v2170, %v9697
    %v9699 = vrot.slane %v8498, %v9698
    %v9700 = vsel %vm2175, %v9699, %v9695
    %v9701 = vlaneseq
    %v9702 = vshrl.u32 %v9701, 7
    %v9703 = vsub.s32 %v2067, %v9702
    %v9704 = vrot.slane %v8501, %v9703
    %v9705 = vlaneseq
    %v9706 = vshrl.u32 %v9705, 7
    %v9707 = vsub.s32 %v2072, %v9706
    %v9708 = vrot.slane %v8504, %v9707
    %v9709 = vsel %vm2077, %v9708, %v9704
    %v9710 = vlaneseq
    %v9711 = vshrl.u32 %v9710, 7
    %v9712 = vsub.s32 %v2079, %v9711
    %v9713 = vrot.slane %v8507, %v9712
    %v9714 = vsel %vm2084, %v9713, %v9709
    %v9715 = vlaneseq
    %v9716 = vshrl.u32 %v9715, 7
    %v9717 = vsub.s32 %v2086, %v9716
    %v9718 = vrot.slane %v8510, %v9717
    %v9719 = vsel %vm2091, %v9718, %v9714
    %v9720 = vlaneseq
    %v9721 = vshrl.u32 %v9720, 7
    %v9722 = vsub.s32 %v2093, %v9721
    %v9723 = vrot.slane %v8513, %v9722
    %v9724 = vsel %vm2098, %v9723, %v9719
    %v9725 = vlaneseq
    %v9726 = vshrl.u32 %v9725, 7
    %v9727 = vsub.s32 %v2100, %v9726
    %v9728 = vrot.slane %v8516, %v9727
    %v9729 = vsel %vm2105, %v9728, %v9724
    %v9730 = vlaneseq
    %v9731 = vshrl.u32 %v9730, 7
    %v9732 = vsub.s32 %v2107, %v9731
    %v9733 = vrot.slane %v8519, %v9732
    %v9734 = vsel %vm2112, %v9733, %v9729
    %v9735 = vlaneseq
    %v9736 = vshrl.u32 %v9735, 7
    %v9737 = vsub.s32 %v2114, %v9736
    %v9738 = vrot.slane %v8522, %v9737
    %v9739 = vsel %vm2119, %v9738, %v9734
    %v9740 = vlaneseq
    %v9741 = vshrl.u32 %v9740, 7
    %v9742 = vsub.s32 %v2121, %v9741
    %v9743 = vrot.slane %v8525, %v9742
    %v9744 = vsel %vm2126, %v9743, %v9739
    %v9745 = vlaneseq
    %v9746 = vshrl.u32 %v9745, 7
    %v9747 = vsub.s32 %v2128, %v9746
    %v9748 = vrot.slane %v8528, %v9747
    %v9749 = vsel %vm2133, %v9748, %v9744
    %v9750 = vlaneseq
    %v9751 = vshrl.u32 %v9750, 7
    %v9752 = vsub.s32 %v2135, %v9751
    %v9753 = vrot.slane %v8531, %v9752
    %v9754 = vsel %vm2140, %v9753, %v9749
    %v9755 = vlaneseq
    %v9756 = vshrl.u32 %v9755, 7
    %v9757 = vsub.s32 %v2142, %v9756
    %v9758 = vrot.slane %v8534, %v9757
    %v9759 = vsel %vm2147, %v9758, %v9754
    %v9760 = vlaneseq
    %v9761 = vshrl.u32 %v9760, 7
    %v9762 = vsub.s32 %v2149, %v9761
    %v9763 = vrot.slane %v8537, %v9762
    %v9764 = vsel %vm2154, %v9763, %v9759
    %v9765 = vlaneseq
    %v9766 = vshrl.u32 %v9765, 7
    %v9767 = vsub.s32 %v2156, %v9766
    %v9768 = vrot.slane %v8540, %v9767
    %v9769 = vsel %vm2161, %v9768, %v9764
    %v9770 = vlaneseq
    %v9771 = vshrl.u32 %v9770, 7
    %v9772 = vsub.s32 %v2163, %v9771
    %v9773 = vrot.slane %v8543, %v9772
    %v9774 = vsel %vm2168, %v9773, %v9769
    %v9775 = vlaneseq
    %v9776 = vshrl.u32 %v9775, 7
    %v9777 = vsub.s32 %v2170, %v9776
    %v9778 = vrot.slane %v8546, %v9777
    %v9779 = vsel %vm2175, %v9778, %v9774
    %v9780 = vlaneseq
    %v9781 = vshrl.u32 %v9780, 7
    %v9782 = vsub.s32 %v2067, %v9781
    %v9783 = vrot.slane %v8549, %v9782
    %v9784 = vlaneseq
    %v9785 = vshrl.u32 %v9784, 7
    %v9786 = vsub.s32 %v2072, %v9785
    %v9787 = vrot.slane %v8552, %v9786
    %v9788 = vsel %vm2077, %v9787, %v9783
    %v9789 = vlaneseq
    %v9790 = vshrl.u32 %v9789, 7
    %v9791 = vsub.s32 %v2079, %v9790
    %v9792 = vrot.slane %v8555, %v9791
    %v9793 = vsel %vm2084, %v9792, %v9788
    %v9794 = vlaneseq
    %v9795 = vshrl.u32 %v9794, 7
    %v9796 = vsub.s32 %v2086, %v9795
    %v9797 = vrot.slane %v8558, %v9796
    %v9798 = vsel %vm2091, %v9797, %v9793
    %v9799 = vlaneseq
    %v9800 = vshrl.u32 %v9799, 7
    %v9801 = vsub.s32 %v2093, %v9800
    %v9802 = vrot.slane %v8561, %v9801
    %v9803 = vsel %vm2098, %v9802, %v9798
    %v9804 = vlaneseq
    %v9805 = vshrl.u32 %v9804, 7
    %v9806 = vsub.s32 %v2100, %v9805
    %v9807 = vrot.slane %v8564, %v9806
    %v9808 = vsel %vm2105, %v9807, %v9803
    %v9809 = vlaneseq
    %v9810 = vshrl.u32 %v9809, 7
    %v9811 = vsub.s32 %v2107, %v9810
    %v9812 = vrot.slane %v8567, %v9811
    %v9813 = vsel %vm2112, %v9812, %v9808
    %v9814 = vlaneseq
    %v9815 = vshrl.u32 %v9814, 7
    %v9816 = vsub.s32 %v2114, %v9815
    %v9817 = vrot.slane %v8570, %v9816
    %v9818 = vsel %vm2119, %v9817, %v9813
    %v9819 = vlaneseq
    %v9820 = vshrl.u32 %v9819, 7
    %v9821 = vsub.s32 %v2121, %v9820
    %v9822 = vrot.slane %v8573, %v9821
    %v9823 = vsel %vm2126, %v9822, %v9818
    %v9824 = vlaneseq
    %v9825 = vshrl.u32 %v9824, 7
    %v9826 = vsub.s32 %v2128, %v9825
    %v9827 = vrot.slane %v8576, %v9826
    %v9828 = vsel %vm2133, %v9827, %v9823
    %v9829 = vlaneseq
    %v9830 = vshrl.u32 %v9829, 7
    %v9831 = vsub.s32 %v2135, %v9830
    %v9832 = vrot.slane %v8579, %v9831
    %v9833 = vsel %vm2140, %v9832, %v9828
    %v9834 = vlaneseq
    %v9835 = vshrl.u32 %v9834, 7
    %v9836 = vsub.s32 %v2142, %v9835
    %v9837 = vrot.slane %v8582, %v9836
    %v9838 = vsel %vm2147, %v9837, %v9833
    %v9839 = vlaneseq
    %v9840 = vshrl.u32 %v9839, 7
    %v9841 = vsub.s32 %v2149, %v9840
    %v9842 = vrot.slane %v8585, %v9841
    %v9843 = vsel %vm2154, %v9842, %v9838
    %v9844 = vlaneseq
    %v9845 = vshrl.u32 %v9844, 7
    %v9846 = vsub.s32 %v2156, %v9845
    %v9847 = vrot.slane %v8588, %v9846
    %v9848 = vsel %vm2161, %v9847, %v9843
    %v9849 = vlaneseq
    %v9850 = vshrl.u32 %v9849, 7
    %v9851 = vsub.s32 %v2163, %v9850
    %v9852 = vrot.slane %v8591, %v9851
    %v9853 = vsel %vm2168, %v9852, %v9848
    %v9854 = vlaneseq
    %v9855 = vshrl.u32 %v9854, 7
    %v9856 = vsub.s32 %v2170, %v9855
    %v9857 = vrot.slane %v8594, %v9856
    %v9858 = vsel %vm2175, %v9857, %v9853
    %v9859 = vsel %vm3362, %v9305, %v8673
    %v9860 = vsel %vm3362, %v9384, %v8752
    %v9861 = vsel %vm3362, %v9463, %v8831
    %v9862 = vsel %vm3362, %v9542, %v8910
    %v9863 = vsel %vm3362, %v9621, %v8989
    %v9864 = vsel %vm3362, %v9700, %v9068
    %v9865 = vsel %vm3362, %v9779, %v9147
    %v9866 = vsel %vm3362, %v9858, %v9226
    %v9875 = vadd.f32 %v6627, %v9859
    %v9876 = vadd.f32 %v6628, %v9860
    %v9877 = vadd.f32 %v6629, %v9861
    %v9878 = vadd.f32 %v6630, %v9862
    %v9879 = vadd.f32 %v6631, %v9863
    %v9880 = vadd.f32 %v6632, %v9864
    %v9881 = vadd.f32 %v6633, %v9865
    %v9882 = vadd.f32 %v6634, %v9866
    %v9883 = vlaneseq
    %v9884 = vshrl.u32 %v9883, 7
    %v9885 = vsub.s32 3, %v9884
    %v9886 = vrot.slane %v72, %v9885
    %v9887 = vlaneseq
    %v9888 = vshrl.u32 %v9887, 7
    %v9889 = vsub.s32 3, %v9888
    %v9890 = vrot.slane %v73, %v9889
    %v9891 = vlaneseq
    %v9892 = vshrl.u32 %v9891, 7
    %v9893 = vsub.s32 3, %v9892
    %v9894 = vrot.slane %v40, %v9893
    %v9895 = vlaneseq
    %v9896 = vshrl.u32 %v9895, 7
    %v9897 = vsub.s32 3, %v9896
    %v9898 = vrot.slane %v41, %v9897
    %v9899 = vlaneseq
    %v9900 = vshrl.u32 %v9899, 7
    %v9901 = vsub.s32 3, %v9900
    %v9902 = vrot.slane %v42, %v9901
    %v9903 = vlaneseq
    %v9904 = vshrl.u32 %v9903, 7
    %v9905 = vsub.s32 3, %v9904
    %v9906 = vrot.slane %v43, %v9905
    %v9907 = vlaneseq
    %v9908 = vshrl.u32 %v9907, 7
    %v9909 = vsub.s32 3, %v9908
    %v9910 = vrot.slane %v44, %v9909
    %v9911 = vlaneseq
    %v9912 = vshrl.u32 %v9911, 7
    %v9913 = vsub.s32 3, %v9912
    %v9914 = vrot.slane %v45, %v9913
    %v9915 = vlaneseq
    %v9916 = vshrl.u32 %v9915, 7
    %v9917 = vsub.s32 3, %v9916
    %v9918 = vrot.slane %v46, %v9917
    %v9919 = vlaneseq
    %v9920 = vshrl.u32 %v9919, 7
    %v9921 = vsub.s32 3, %v9920
    %v9922 = vrot.slane %v47, %v9921
    %9932 = vbcast.lane.b32.xlu0 %v9894, 256
    %v9933 = vpop.permute.xlu0 %9932
    %s9935 = sor.u32 256, 8
    %9936 = vbcast.lane.b32.xlu0 %v9894, %s9935
    %v9937 = vpop.permute.xlu0 %9936
    %s9939 = sor.u32 256, 16
    %9940 = vbcast.lane.b32.xlu0 %v9894, %s9939
    %v9941 = vpop.permute.xlu0 %9940
    %s9943 = sor.u32 256, 24
    %9944 = vbcast.lane.b32.xlu0 %v9894, %s9943
    %v9945 = vpop.permute.xlu0 %9944
    %s9947 = sor.u32 256, 32
    %9948 = vbcast.lane.b32.xlu0 %v9894, %s9947
    %v9949 = vpop.permute.xlu0 %9948
    %s9951 = sor.u32 256, 40
    %9952 = vbcast.lane.b32.xlu0 %v9894, %s9951
    %v9953 = vpop.permute.xlu0 %9952
    %s9955 = sor.u32 256, 48
    %9956 = vbcast.lane.b32.xlu0 %v9894, %s9955
    %v9957 = vpop.permute.xlu0 %9956
    %s9959 = sor.u32 256, 56
    %9960 = vbcast.lane.b32.xlu0 %v9894, %s9959
    %v9961 = vpop.permute.xlu0 %9960
    %s9963 = sor.u32 256, 64
    %9964 = vbcast.lane.b32.xlu0 %v9894, %s9963
    %v9965 = vpop.permute.xlu0 %9964
    %s9967 = sor.u32 256, 72
    %9968 = vbcast.lane.b32.xlu0 %v9894, %s9967
    %v9969 = vpop.permute.xlu0 %9968
    %s9971 = sor.u32 256, 80
    %9972 = vbcast.lane.b32.xlu0 %v9894, %s9971
    %v9973 = vpop.permute.xlu0 %9972
    %s9975 = sor.u32 256, 88
    %9976 = vbcast.lane.b32.xlu0 %v9894, %s9975
    %v9977 = vpop.permute.xlu0 %9976
    %s9979 = sor.u32 256, 96
    %9980 = vbcast.lane.b32.xlu0 %v9894, %s9979
    %v9981 = vpop.permute.xlu0 %9980
    %s9983 = sor.u32 256, 104
    %9984 = vbcast.lane.b32.xlu0 %v9894, %s9983
    %v9985 = vpop.permute.xlu0 %9984
    %s9987 = sor.u32 256, 112
    %9988 = vbcast.lane.b32.xlu0 %v9894, %s9987
    %v9989 = vpop.permute.xlu0 %9988
    %s9991 = sor.u32 256, 120
    %9992 = vbcast.lane.b32.xlu0 %v9894, %s9991
    %v9993 = vpop.permute.xlu0 %9992
    %9995 = vbcast.lane.b32.xlu0 %v9898, 256
    %v9996 = vpop.permute.xlu0 %9995
    %s9998 = sor.u32 256, 8
    %9999 = vbcast.lane.b32.xlu0 %v9898, %s9998
    %v10000 = vpop.permute.xlu0 %9999
    %s10002 = sor.u32 256, 16
    %10003 = vbcast.lane.b32.xlu0 %v9898, %s10002
    %v10004 = vpop.permute.xlu0 %10003
    %s10006 = sor.u32 256, 24
    %10007 = vbcast.lane.b32.xlu0 %v9898, %s10006
    %v10008 = vpop.permute.xlu0 %10007
    %s10010 = sor.u32 256, 32
    %10011 = vbcast.lane.b32.xlu0 %v9898, %s10010
    %v10012 = vpop.permute.xlu0 %10011
    %s10014 = sor.u32 256, 40
    %10015 = vbcast.lane.b32.xlu0 %v9898, %s10014
    %v10016 = vpop.permute.xlu0 %10015
    %s10018 = sor.u32 256, 48
    %10019 = vbcast.lane.b32.xlu0 %v9898, %s10018
    %v10020 = vpop.permute.xlu0 %10019
    %s10022 = sor.u32 256, 56
    %10023 = vbcast.lane.b32.xlu0 %v9898, %s10022
    %v10024 = vpop.permute.xlu0 %10023
    %s10026 = sor.u32 256, 64
    %10027 = vbcast.lane.b32.xlu0 %v9898, %s10026
    %v10028 = vpop.permute.xlu0 %10027
    %s10030 = sor.u32 256, 72
    %10031 = vbcast.lane.b32.xlu0 %v9898, %s10030
    %v10032 = vpop.permute.xlu0 %10031
    %s10034 = sor.u32 256, 80
    %10035 = vbcast.lane.b32.xlu0 %v9898, %s10034
    %v10036 = vpop.permute.xlu0 %10035
    %s10038 = sor.u32 256, 88
    %10039 = vbcast.lane.b32.xlu0 %v9898, %s10038
    %v10040 = vpop.permute.xlu0 %10039
    %s10042 = sor.u32 256, 96
    %10043 = vbcast.lane.b32.xlu0 %v9898, %s10042
    %v10044 = vpop.permute.xlu0 %10043
    %s10046 = sor.u32 256, 104
    %10047 = vbcast.lane.b32.xlu0 %v9898, %s10046
    %v10048 = vpop.permute.xlu0 %10047
    %s10050 = sor.u32 256, 112
    %10051 = vbcast.lane.b32.xlu0 %v9898, %s10050
    %v10052 = vpop.permute.xlu0 %10051
    %s10054 = sor.u32 256, 120
    %10055 = vbcast.lane.b32.xlu0 %v9898, %s10054
    %v10056 = vpop.permute.xlu0 %10055
    %10058 = vbcast.lane.b32.xlu0 %v9902, 256
    %v10059 = vpop.permute.xlu0 %10058
    %s10061 = sor.u32 256, 8
    %10062 = vbcast.lane.b32.xlu0 %v9902, %s10061
    %v10063 = vpop.permute.xlu0 %10062
    %s10065 = sor.u32 256, 16
    %10066 = vbcast.lane.b32.xlu0 %v9902, %s10065
    %v10067 = vpop.permute.xlu0 %10066
    %s10069 = sor.u32 256, 24
    %10070 = vbcast.lane.b32.xlu0 %v9902, %s10069
    %v10071 = vpop.permute.xlu0 %10070
    %s10073 = sor.u32 256, 32
    %10074 = vbcast.lane.b32.xlu0 %v9902, %s10073
    %v10075 = vpop.permute.xlu0 %10074
    %s10077 = sor.u32 256, 40
    %10078 = vbcast.lane.b32.xlu0 %v9902, %s10077
    %v10079 = vpop.permute.xlu0 %10078
    %s10081 = sor.u32 256, 48
    %10082 = vbcast.lane.b32.xlu0 %v9902, %s10081
    %v10083 = vpop.permute.xlu0 %10082
    %s10085 = sor.u32 256, 56
    %10086 = vbcast.lane.b32.xlu0 %v9902, %s10085
    %v10087 = vpop.permute.xlu0 %10086
    %s10089 = sor.u32 256, 64
    %10090 = vbcast.lane.b32.xlu0 %v9902, %s10089
    %v10091 = vpop.permute.xlu0 %10090
    %s10093 = sor.u32 256, 72
    %10094 = vbcast.lane.b32.xlu0 %v9902, %s10093
    %v10095 = vpop.permute.xlu0 %10094
    %s10097 = sor.u32 256, 80
    %10098 = vbcast.lane.b32.xlu0 %v9902, %s10097
    %v10099 = vpop.permute.xlu0 %10098
    %s10101 = sor.u32 256, 88
    %10102 = vbcast.lane.b32.xlu0 %v9902, %s10101
    %v10103 = vpop.permute.xlu0 %10102
    %s10105 = sor.u32 256, 96
    %10106 = vbcast.lane.b32.xlu0 %v9902, %s10105
    %v10107 = vpop.permute.xlu0 %10106
    %s10109 = sor.u32 256, 104
    %10110 = vbcast.lane.b32.xlu0 %v9902, %s10109
    %v10111 = vpop.permute.xlu0 %10110
    %s10113 = sor.u32 256, 112
    %10114 = vbcast.lane.b32.xlu0 %v9902, %s10113
    %v10115 = vpop.permute.xlu0 %10114
    %s10117 = sor.u32 256, 120
    %10118 = vbcast.lane.b32.xlu0 %v9902, %s10117
    %v10119 = vpop.permute.xlu0 %10118
    %10121 = vbcast.lane.b32.xlu0 %v9906, 256
    %v10122 = vpop.permute.xlu0 %10121
    %s10124 = sor.u32 256, 8
    %10125 = vbcast.lane.b32.xlu0 %v9906, %s10124
    %v10126 = vpop.permute.xlu0 %10125
    %s10128 = sor.u32 256, 16
    %10129 = vbcast.lane.b32.xlu0 %v9906, %s10128
    %v10130 = vpop.permute.xlu0 %10129
    %s10132 = sor.u32 256, 24
    %10133 = vbcast.lane.b32.xlu0 %v9906, %s10132
    %v10134 = vpop.permute.xlu0 %10133
    %s10136 = sor.u32 256, 32
    %10137 = vbcast.lane.b32.xlu0 %v9906, %s10136
    %v10138 = vpop.permute.xlu0 %10137
    %s10140 = sor.u32 256, 40
    %10141 = vbcast.lane.b32.xlu0 %v9906, %s10140
    %v10142 = vpop.permute.xlu0 %10141
    %s10144 = sor.u32 256, 48
    %10145 = vbcast.lane.b32.xlu0 %v9906, %s10144
    %v10146 = vpop.permute.xlu0 %10145
    %s10148 = sor.u32 256, 56
    %10149 = vbcast.lane.b32.xlu0 %v9906, %s10148
    %v10150 = vpop.permute.xlu0 %10149
    %s10152 = sor.u32 256, 64
    %10153 = vbcast.lane.b32.xlu0 %v9906, %s10152
    %v10154 = vpop.permute.xlu0 %10153
    %s10156 = sor.u32 256, 72
    %10157 = vbcast.lane.b32.xlu0 %v9906, %s10156
    %v10158 = vpop.permute.xlu0 %10157
    %s10160 = sor.u32 256, 80
    %10161 = vbcast.lane.b32.xlu0 %v9906, %s10160
    %v10162 = vpop.permute.xlu0 %10161
    %s10164 = sor.u32 256, 88
    %10165 = vbcast.lane.b32.xlu0 %v9906, %s10164
    %v10166 = vpop.permute.xlu0 %10165
    %s10168 = sor.u32 256, 96
    %10169 = vbcast.lane.b32.xlu0 %v9906, %s10168
    %v10170 = vpop.permute.xlu0 %10169
    %s10172 = sor.u32 256, 104
    %10173 = vbcast.lane.b32.xlu0 %v9906, %s10172
    %v10174 = vpop.permute.xlu0 %10173
    %s10176 = sor.u32 256, 112
    %10177 = vbcast.lane.b32.xlu0 %v9906, %s10176
    %v10178 = vpop.permute.xlu0 %10177
    %s10180 = sor.u32 256, 120
    %10181 = vbcast.lane.b32.xlu0 %v9906, %s10180
    %v10182 = vpop.permute.xlu0 %10181
    %10184 = vbcast.lane.b32.xlu0 %v9910, 256
    %v10185 = vpop.permute.xlu0 %10184
    %s10187 = sor.u32 256, 8
    %10188 = vbcast.lane.b32.xlu0 %v9910, %s10187
    %v10189 = vpop.permute.xlu0 %10188
    %s10191 = sor.u32 256, 16
    %10192 = vbcast.lane.b32.xlu0 %v9910, %s10191
    %v10193 = vpop.permute.xlu0 %10192
    %s10195 = sor.u32 256, 24
    %10196 = vbcast.lane.b32.xlu0 %v9910, %s10195
    %v10197 = vpop.permute.xlu0 %10196
    %s10199 = sor.u32 256, 32
    %10200 = vbcast.lane.b32.xlu0 %v9910, %s10199
    %v10201 = vpop.permute.xlu0 %10200
    %s10203 = sor.u32 256, 40
    %10204 = vbcast.lane.b32.xlu0 %v9910, %s10203
    %v10205 = vpop.permute.xlu0 %10204
    %s10207 = sor.u32 256, 48
    %10208 = vbcast.lane.b32.xlu0 %v9910, %s10207
    %v10209 = vpop.permute.xlu0 %10208
    %s10211 = sor.u32 256, 56
    %10212 = vbcast.lane.b32.xlu0 %v9910, %s10211
    %v10213 = vpop.permute.xlu0 %10212
    %s10215 = sor.u32 256, 64
    %10216 = vbcast.lane.b32.xlu0 %v9910, %s10215
    %v10217 = vpop.permute.xlu0 %10216
    %s10219 = sor.u32 256, 72
    %10220 = vbcast.lane.b32.xlu0 %v9910, %s10219
    %v10221 = vpop.permute.xlu0 %10220
    %s10223 = sor.u32 256, 80
    %10224 = vbcast.lane.b32.xlu0 %v9910, %s10223
    %v10225 = vpop.permute.xlu0 %10224
    %s10227 = sor.u32 256, 88
    %10228 = vbcast.lane.b32.xlu0 %v9910, %s10227
    %v10229 = vpop.permute.xlu0 %10228
    %s10231 = sor.u32 256, 96
    %10232 = vbcast.lane.b32.xlu0 %v9910, %s10231
    %v10233 = vpop.permute.xlu0 %10232
    %s10235 = sor.u32 256, 104
    %10236 = vbcast.lane.b32.xlu0 %v9910, %s10235
    %v10237 = vpop.permute.xlu0 %10236
    %s10239 = sor.u32 256, 112
    %10240 = vbcast.lane.b32.xlu0 %v9910, %s10239
    %v10241 = vpop.permute.xlu0 %10240
    %s10243 = sor.u32 256, 120
    %10244 = vbcast.lane.b32.xlu0 %v9910, %s10243
    %v10245 = vpop.permute.xlu0 %10244
    %10247 = vbcast.lane.b32.xlu0 %v9914, 256
    %v10248 = vpop.permute.xlu0 %10247
    %s10250 = sor.u32 256, 8
    %10251 = vbcast.lane.b32.xlu0 %v9914, %s10250
    %v10252 = vpop.permute.xlu0 %10251
    %s10254 = sor.u32 256, 16
    %10255 = vbcast.lane.b32.xlu0 %v9914, %s10254
    %v10256 = vpop.permute.xlu0 %10255
    %s10258 = sor.u32 256, 24
    %10259 = vbcast.lane.b32.xlu0 %v9914, %s10258
    %v10260 = vpop.permute.xlu0 %10259
    %s10262 = sor.u32 256, 32
    %10263 = vbcast.lane.b32.xlu0 %v9914, %s10262
    %v10264 = vpop.permute.xlu0 %10263
    %s10266 = sor.u32 256, 40
    %10267 = vbcast.lane.b32.xlu0 %v9914, %s10266
    %v10268 = vpop.permute.xlu0 %10267
    %s10270 = sor.u32 256, 48
    %10271 = vbcast.lane.b32.xlu0 %v9914, %s10270
    %v10272 = vpop.permute.xlu0 %10271
    %s10274 = sor.u32 256, 56
    %10275 = vbcast.lane.b32.xlu0 %v9914, %s10274
    %v10276 = vpop.permute.xlu0 %10275
    %s10278 = sor.u32 256, 64
    %10279 = vbcast.lane.b32.xlu0 %v9914, %s10278
    %v10280 = vpop.permute.xlu0 %10279
    %s10282 = sor.u32 256, 72
    %10283 = vbcast.lane.b32.xlu0 %v9914, %s10282
    %v10284 = vpop.permute.xlu0 %10283
    %s10286 = sor.u32 256, 80
    %10287 = vbcast.lane.b32.xlu0 %v9914, %s10286
    %v10288 = vpop.permute.xlu0 %10287
    %s10290 = sor.u32 256, 88
    %10291 = vbcast.lane.b32.xlu0 %v9914, %s10290
    %v10292 = vpop.permute.xlu0 %10291
    %s10294 = sor.u32 256, 96
    %10295 = vbcast.lane.b32.xlu0 %v9914, %s10294
    %v10296 = vpop.permute.xlu0 %10295
    %s10298 = sor.u32 256, 104
    %10299 = vbcast.lane.b32.xlu0 %v9914, %s10298
    %v10300 = vpop.permute.xlu0 %10299
    %s10302 = sor.u32 256, 112
    %10303 = vbcast.lane.b32.xlu0 %v9914, %s10302
    %v10304 = vpop.permute.xlu0 %10303
    %s10306 = sor.u32 256, 120
    %10307 = vbcast.lane.b32.xlu0 %v9914, %s10306
    %v10308 = vpop.permute.xlu0 %10307
    %10310 = vbcast.lane.b32.xlu0 %v9918, 256
    %v10311 = vpop.permute.xlu0 %10310
    %s10313 = sor.u32 256, 8
    %10314 = vbcast.lane.b32.xlu0 %v9918, %s10313
    %v10315 = vpop.permute.xlu0 %10314
    %s10317 = sor.u32 256, 16
    %10318 = vbcast.lane.b32.xlu0 %v9918, %s10317
    %v10319 = vpop.permute.xlu0 %10318
    %s10321 = sor.u32 256, 24
    %10322 = vbcast.lane.b32.xlu0 %v9918, %s10321
    %v10323 = vpop.permute.xlu0 %10322
    %s10325 = sor.u32 256, 32
    %10326 = vbcast.lane.b32.xlu0 %v9918, %s10325
    %v10327 = vpop.permute.xlu0 %10326
    %s10329 = sor.u32 256, 40
    %10330 = vbcast.lane.b32.xlu0 %v9918, %s10329
    %v10331 = vpop.permute.xlu0 %10330
    %s10333 = sor.u32 256, 48
    %10334 = vbcast.lane.b32.xlu0 %v9918, %s10333
    %v10335 = vpop.permute.xlu0 %10334
    %s10337 = sor.u32 256, 56
    %10338 = vbcast.lane.b32.xlu0 %v9918, %s10337
    %v10339 = vpop.permute.xlu0 %10338
    %s10341 = sor.u32 256, 64
    %10342 = vbcast.lane.b32.xlu0 %v9918, %s10341
    %v10343 = vpop.permute.xlu0 %10342
    %s10345 = sor.u32 256, 72
    %10346 = vbcast.lane.b32.xlu0 %v9918, %s10345
    %v10347 = vpop.permute.xlu0 %10346
    %s10349 = sor.u32 256, 80
    %10350 = vbcast.lane.b32.xlu0 %v9918, %s10349
    %v10351 = vpop.permute.xlu0 %10350
    %s10353 = sor.u32 256, 88
    %10354 = vbcast.lane.b32.xlu0 %v9918, %s10353
    %v10355 = vpop.permute.xlu0 %10354
    %s10357 = sor.u32 256, 96
    %10358 = vbcast.lane.b32.xlu0 %v9918, %s10357
    %v10359 = vpop.permute.xlu0 %10358
    %s10361 = sor.u32 256, 104
    %10362 = vbcast.lane.b32.xlu0 %v9918, %s10361
    %v10363 = vpop.permute.xlu0 %10362
    %s10365 = sor.u32 256, 112
    %10366 = vbcast.lane.b32.xlu0 %v9918, %s10365
    %v10367 = vpop.permute.xlu0 %10366
    %s10369 = sor.u32 256, 120
    %10370 = vbcast.lane.b32.xlu0 %v9918, %s10369
    %v10371 = vpop.permute.xlu0 %10370
    %10373 = vbcast.lane.b32.xlu0 %v9922, 256
    %v10374 = vpop.permute.xlu0 %10373
    %s10376 = sor.u32 256, 8
    %10377 = vbcast.lane.b32.xlu0 %v9922, %s10376
    %v10378 = vpop.permute.xlu0 %10377
    %s10380 = sor.u32 256, 16
    %10381 = vbcast.lane.b32.xlu0 %v9922, %s10380
    %v10382 = vpop.permute.xlu0 %10381
    %s10384 = sor.u32 256, 24
    %10385 = vbcast.lane.b32.xlu0 %v9922, %s10384
    %v10386 = vpop.permute.xlu0 %10385
    %s10388 = sor.u32 256, 32
    %10389 = vbcast.lane.b32.xlu0 %v9922, %s10388
    %v10390 = vpop.permute.xlu0 %10389
    %s10392 = sor.u32 256, 40
    %10393 = vbcast.lane.b32.xlu0 %v9922, %s10392
    %v10394 = vpop.permute.xlu0 %10393
    %s10396 = sor.u32 256, 48
    %10397 = vbcast.lane.b32.xlu0 %v9922, %s10396
    %v10398 = vpop.permute.xlu0 %10397
    %s10400 = sor.u32 256, 56
    %10401 = vbcast.lane.b32.xlu0 %v9922, %s10400
    %v10402 = vpop.permute.xlu0 %10401
    %s10404 = sor.u32 256, 64
    %10405 = vbcast.lane.b32.xlu0 %v9922, %s10404
    %v10406 = vpop.permute.xlu0 %10405
    %s10408 = sor.u32 256, 72
    %10409 = vbcast.lane.b32.xlu0 %v9922, %s10408
    %v10410 = vpop.permute.xlu0 %10409
    %s10412 = sor.u32 256, 80
    %10413 = vbcast.lane.b32.xlu0 %v9922, %s10412
    %v10414 = vpop.permute.xlu0 %10413
    %s10416 = sor.u32 256, 88
    %10417 = vbcast.lane.b32.xlu0 %v9922, %s10416
    %v10418 = vpop.permute.xlu0 %10417
    %s10420 = sor.u32 256, 96
    %10421 = vbcast.lane.b32.xlu0 %v9922, %s10420
    %v10422 = vpop.permute.xlu0 %10421
    %s10424 = sor.u32 256, 104
    %10425 = vbcast.lane.b32.xlu0 %v9922, %s10424
    %v10426 = vpop.permute.xlu0 %10425
    %s10428 = sor.u32 256, 112
    %10429 = vbcast.lane.b32.xlu0 %v9922, %s10428
    %v10430 = vpop.permute.xlu0 %10429
    %s10432 = sor.u32 256, 120
    %10433 = vbcast.lane.b32.xlu0 %v9922, %s10432
    %v10434 = vpop.permute.xlu0 %10433
    %v10563 = vmul.f32 %v9886, %v9933
    %v10564 = vmul.f32 %v9886, %v9937
    %v10565 = vmul.f32 %v9886, %v9941
    %v10566 = vmul.f32 %v9886, %v9945
    %v10567 = vmul.f32 %v9886, %v9949
    %v10568 = vmul.f32 %v9886, %v9953
    %v10569 = vmul.f32 %v9886, %v9957
    %v10570 = vmul.f32 %v9886, %v9961
    %v10571 = vmul.f32 %v9886, %v9965
    %v10572 = vmul.f32 %v9886, %v9969
    %v10573 = vmul.f32 %v9886, %v9973
    %v10574 = vmul.f32 %v9886, %v9977
    %v10575 = vmul.f32 %v9886, %v9981
    %v10576 = vmul.f32 %v9886, %v9985
    %v10577 = vmul.f32 %v9886, %v9989
    %v10578 = vmul.f32 %v9886, %v9993
    %v10579 = vmul.f32 %v9886, %v9996
    %v10580 = vmul.f32 %v9886, %v10000
    %v10581 = vmul.f32 %v9886, %v10004
    %v10582 = vmul.f32 %v9886, %v10008
    %v10583 = vmul.f32 %v9886, %v10012
    %v10584 = vmul.f32 %v9886, %v10016
    %v10585 = vmul.f32 %v9886, %v10020
    %v10586 = vmul.f32 %v9886, %v10024
    %v10587 = vmul.f32 %v9886, %v10028
    %v10588 = vmul.f32 %v9886, %v10032
    %v10589 = vmul.f32 %v9886, %v10036
    %v10590 = vmul.f32 %v9886, %v10040
    %v10591 = vmul.f32 %v9886, %v10044
    %v10592 = vmul.f32 %v9886, %v10048
    %v10593 = vmul.f32 %v9886, %v10052
    %v10594 = vmul.f32 %v9886, %v10056
    %v10595 = vmul.f32 %v9886, %v10059
    %v10596 = vmul.f32 %v9886, %v10063
    %v10597 = vmul.f32 %v9886, %v10067
    %v10598 = vmul.f32 %v9886, %v10071
    %v10599 = vmul.f32 %v9886, %v10075
    %v10600 = vmul.f32 %v9886, %v10079
    %v10601 = vmul.f32 %v9886, %v10083
    %v10602 = vmul.f32 %v9886, %v10087
    %v10603 = vmul.f32 %v9886, %v10091
    %v10604 = vmul.f32 %v9886, %v10095
    %v10605 = vmul.f32 %v9886, %v10099
    %v10606 = vmul.f32 %v9886, %v10103
    %v10607 = vmul.f32 %v9886, %v10107
    %v10608 = vmul.f32 %v9886, %v10111
    %v10609 = vmul.f32 %v9886, %v10115
    %v10610 = vmul.f32 %v9886, %v10119
    %v10611 = vmul.f32 %v9886, %v10122
    %v10612 = vmul.f32 %v9886, %v10126
    %v10613 = vmul.f32 %v9886, %v10130
    %v10614 = vmul.f32 %v9886, %v10134
    %v10615 = vmul.f32 %v9886, %v10138
    %v10616 = vmul.f32 %v9886, %v10142
    %v10617 = vmul.f32 %v9886, %v10146
    %v10618 = vmul.f32 %v9886, %v10150
    %v10619 = vmul.f32 %v9886, %v10154
    %v10620 = vmul.f32 %v9886, %v10158
    %v10621 = vmul.f32 %v9886, %v10162
    %v10622 = vmul.f32 %v9886, %v10166
    %v10623 = vmul.f32 %v9886, %v10170
    %v10624 = vmul.f32 %v9886, %v10174
    %v10625 = vmul.f32 %v9886, %v10178
    %v10626 = vmul.f32 %v9886, %v10182
    %v10627 = vmul.f32 %v9886, %v10185
    %v10628 = vmul.f32 %v9886, %v10189
    %v10629 = vmul.f32 %v9886, %v10193
    %v10630 = vmul.f32 %v9886, %v10197
    %v10631 = vmul.f32 %v9886, %v10201
    %v10632 = vmul.f32 %v9886, %v10205
    %v10633 = vmul.f32 %v9886, %v10209
    %v10634 = vmul.f32 %v9886, %v10213
    %v10635 = vmul.f32 %v9886, %v10217
    %v10636 = vmul.f32 %v9886, %v10221
    %v10637 = vmul.f32 %v9886, %v10225
    %v10638 = vmul.f32 %v9886, %v10229
    %v10639 = vmul.f32 %v9886, %v10233
    %v10640 = vmul.f32 %v9886, %v10237
    %v10641 = vmul.f32 %v9886, %v10241
    %v10642 = vmul.f32 %v9886, %v10245
    %v10643 = vmul.f32 %v9886, %v10248
    %v10644 = vmul.f32 %v9886, %v10252
    %v10645 = vmul.f32 %v9886, %v10256
    %v10646 = vmul.f32 %v9886, %v10260
    %v10647 = vmul.f32 %v9886, %v10264
    %v10648 = vmul.f32 %v9886, %v10268
    %v10649 = vmul.f32 %v9886, %v10272
    %v10650 = vmul.f32 %v9886, %v10276
    %v10651 = vmul.f32 %v9886, %v10280
    %v10652 = vmul.f32 %v9886, %v10284
    %v10653 = vmul.f32 %v9886, %v10288
    %v10654 = vmul.f32 %v9886, %v10292
    %v10655 = vmul.f32 %v9886, %v10296
    %v10656 = vmul.f32 %v9886, %v10300
    %v10657 = vmul.f32 %v9886, %v10304
    %v10658 = vmul.f32 %v9886, %v10308
    %v10659 = vmul.f32 %v9886, %v10311
    %v10660 = vmul.f32 %v9886, %v10315
    %v10661 = vmul.f32 %v9886, %v10319
    %v10662 = vmul.f32 %v9886, %v10323
    %v10663 = vmul.f32 %v9886, %v10327
    %v10664 = vmul.f32 %v9886, %v10331
    %v10665 = vmul.f32 %v9886, %v10335
    %v10666 = vmul.f32 %v9886, %v10339
    %v10667 = vmul.f32 %v9886, %v10343
    %v10668 = vmul.f32 %v9886, %v10347
    %v10669 = vmul.f32 %v9886, %v10351
    %v10670 = vmul.f32 %v9886, %v10355
    %v10671 = vmul.f32 %v9886, %v10359
    %v10672 = vmul.f32 %v9886, %v10363
    %v10673 = vmul.f32 %v9886, %v10367
    %v10674 = vmul.f32 %v9886, %v10371
    %v10675 = vmul.f32 %v9886, %v10374
    %v10676 = vmul.f32 %v9886, %v10378
    %v10677 = vmul.f32 %v9886, %v10382
    %v10678 = vmul.f32 %v9886, %v10386
    %v10679 = vmul.f32 %v9886, %v10390
    %v10680 = vmul.f32 %v9886, %v10394
    %v10681 = vmul.f32 %v9886, %v10398
    %v10682 = vmul.f32 %v9886, %v10402
    %v10683 = vmul.f32 %v9886, %v10406
    %v10684 = vmul.f32 %v9886, %v10410
    %v10685 = vmul.f32 %v9886, %v10414
    %v10686 = vmul.f32 %v9886, %v10418
    %v10687 = vmul.f32 %v9886, %v10422
    %v10688 = vmul.f32 %v9886, %v10426
    %v10689 = vmul.f32 %v9886, %v10430
    %v10690 = vmul.f32 %v9886, %v10434
    %v10691 = vmul.f32 %v9890, %v9933
    %v10692 = vmul.f32 %v9890, %v9937
    %v10693 = vmul.f32 %v9890, %v9941
    %v10694 = vmul.f32 %v9890, %v9945
    %v10695 = vmul.f32 %v9890, %v9949
    %v10696 = vmul.f32 %v9890, %v9953
    %v10697 = vmul.f32 %v9890, %v9957
    %v10698 = vmul.f32 %v9890, %v9961
    %v10699 = vmul.f32 %v9890, %v9965
    %v10700 = vmul.f32 %v9890, %v9969
    %v10701 = vmul.f32 %v9890, %v9973
    %v10702 = vmul.f32 %v9890, %v9977
    %v10703 = vmul.f32 %v9890, %v9981
    %v10704 = vmul.f32 %v9890, %v9985
    %v10705 = vmul.f32 %v9890, %v9989
    %v10706 = vmul.f32 %v9890, %v9993
    %v10707 = vmul.f32 %v9890, %v9996
    %v10708 = vmul.f32 %v9890, %v10000
    %v10709 = vmul.f32 %v9890, %v10004
    %v10710 = vmul.f32 %v9890, %v10008
    %v10711 = vmul.f32 %v9890, %v10012
    %v10712 = vmul.f32 %v9890, %v10016
    %v10713 = vmul.f32 %v9890, %v10020
    %v10714 = vmul.f32 %v9890, %v10024
    %v10715 = vmul.f32 %v9890, %v10028
    %v10716 = vmul.f32 %v9890, %v10032
    %v10717 = vmul.f32 %v9890, %v10036
    %v10718 = vmul.f32 %v9890, %v10040
    %v10719 = vmul.f32 %v9890, %v10044
    %v10720 = vmul.f32 %v9890, %v10048
    %v10721 = vmul.f32 %v9890, %v10052
    %v10722 = vmul.f32 %v9890, %v10056
    %v10723 = vmul.f32 %v9890, %v10059
    %v10724 = vmul.f32 %v9890, %v10063
    %v10725 = vmul.f32 %v9890, %v10067
    %v10726 = vmul.f32 %v9890, %v10071
    %v10727 = vmul.f32 %v9890, %v10075
    %v10728 = vmul.f32 %v9890, %v10079
    %v10729 = vmul.f32 %v9890, %v10083
    %v10730 = vmul.f32 %v9890, %v10087
    %v10731 = vmul.f32 %v9890, %v10091
    %v10732 = vmul.f32 %v9890, %v10095
    %v10733 = vmul.f32 %v9890, %v10099
    %v10734 = vmul.f32 %v9890, %v10103
    %v10735 = vmul.f32 %v9890, %v10107
    %v10736 = vmul.f32 %v9890, %v10111
    %v10737 = vmul.f32 %v9890, %v10115
    %v10738 = vmul.f32 %v9890, %v10119
    %v10739 = vmul.f32 %v9890, %v10122
    %v10740 = vmul.f32 %v9890, %v10126
    %v10741 = vmul.f32 %v9890, %v10130
    %v10742 = vmul.f32 %v9890, %v10134
    %v10743 = vmul.f32 %v9890, %v10138
    %v10744 = vmul.f32 %v9890, %v10142
    %v10745 = vmul.f32 %v9890, %v10146
    %v10746 = vmul.f32 %v9890, %v10150
    %v10747 = vmul.f32 %v9890, %v10154
    %v10748 = vmul.f32 %v9890, %v10158
    %v10749 = vmul.f32 %v9890, %v10162
    %v10750 = vmul.f32 %v9890, %v10166
    %v10751 = vmul.f32 %v9890, %v10170
    %v10752 = vmul.f32 %v9890, %v10174
    %v10753 = vmul.f32 %v9890, %v10178
    %v10754 = vmul.f32 %v9890, %v10182
    %v10755 = vmul.f32 %v9890, %v10185
    %v10756 = vmul.f32 %v9890, %v10189
    %v10757 = vmul.f32 %v9890, %v10193
    %v10758 = vmul.f32 %v9890, %v10197
    %v10759 = vmul.f32 %v9890, %v10201
    %v10760 = vmul.f32 %v9890, %v10205
    %v10761 = vmul.f32 %v9890, %v10209
    %v10762 = vmul.f32 %v9890, %v10213
    %v10763 = vmul.f32 %v9890, %v10217
    %v10764 = vmul.f32 %v9890, %v10221
    %v10765 = vmul.f32 %v9890, %v10225
    %v10766 = vmul.f32 %v9890, %v10229
    %v10767 = vmul.f32 %v9890, %v10233
    %v10768 = vmul.f32 %v9890, %v10237
    %v10769 = vmul.f32 %v9890, %v10241
    %v10770 = vmul.f32 %v9890, %v10245
    %v10771 = vmul.f32 %v9890, %v10248
    %v10772 = vmul.f32 %v9890, %v10252
    %v10773 = vmul.f32 %v9890, %v10256
    %v10774 = vmul.f32 %v9890, %v10260
    %v10775 = vmul.f32 %v9890, %v10264
    %v10776 = vmul.f32 %v9890, %v10268
    %v10777 = vmul.f32 %v9890, %v10272
    %v10778 = vmul.f32 %v9890, %v10276
    %v10779 = vmul.f32 %v9890, %v10280
    %v10780 = vmul.f32 %v9890, %v10284
    %v10781 = vmul.f32 %v9890, %v10288
    %v10782 = vmul.f32 %v9890, %v10292
    %v10783 = vmul.f32 %v9890, %v10296
    %v10784 = vmul.f32 %v9890, %v10300
    %v10785 = vmul.f32 %v9890, %v10304
    %v10786 = vmul.f32 %v9890, %v10308
    %v10787 = vmul.f32 %v9890, %v10311
    %v10788 = vmul.f32 %v9890, %v10315
    %v10789 = vmul.f32 %v9890, %v10319
    %v10790 = vmul.f32 %v9890, %v10323
    %v10791 = vmul.f32 %v9890, %v10327
    %v10792 = vmul.f32 %v9890, %v10331
    %v10793 = vmul.f32 %v9890, %v10335
    %v10794 = vmul.f32 %v9890, %v10339
    %v10795 = vmul.f32 %v9890, %v10343
    %v10796 = vmul.f32 %v9890, %v10347
    %v10797 = vmul.f32 %v9890, %v10351
    %v10798 = vmul.f32 %v9890, %v10355
    %v10799 = vmul.f32 %v9890, %v10359
    %v10800 = vmul.f32 %v9890, %v10363
    %v10801 = vmul.f32 %v9890, %v10367
    %v10802 = vmul.f32 %v9890, %v10371
    %v10803 = vmul.f32 %v9890, %v10374
    %v10804 = vmul.f32 %v9890, %v10378
    %v10805 = vmul.f32 %v9890, %v10382
    %v10806 = vmul.f32 %v9890, %v10386
    %v10807 = vmul.f32 %v9890, %v10390
    %v10808 = vmul.f32 %v9890, %v10394
    %v10809 = vmul.f32 %v9890, %v10398
    %v10810 = vmul.f32 %v9890, %v10402
    %v10811 = vmul.f32 %v9890, %v10406
    %v10812 = vmul.f32 %v9890, %v10410
    %v10813 = vmul.f32 %v9890, %v10414
    %v10814 = vmul.f32 %v9890, %v10418
    %v10815 = vmul.f32 %v9890, %v10422
    %v10816 = vmul.f32 %v9890, %v10426
    %v10817 = vmul.f32 %v9890, %v10430
    %v10818 = vmul.f32 %v9890, %v10434
    %11075 = vset.pattern.permute.xlu0 0
    %11076 = vperm.xlu0 %11075, %v10563
    %v11077 = vpop.permute.xlu0 %11076
    %11078 = vset.pattern.permute.xlu0 0
    %11079 = vperm.xlu0 %11078, %v10564
    %v11080 = vpop.permute.xlu0 %11079
    %11081 = vset.pattern.permute.xlu0 0
    %11082 = vperm.xlu0 %11081, %v10565
    %v11083 = vpop.permute.xlu0 %11082
    %11084 = vset.pattern.permute.xlu0 0
    %11085 = vperm.xlu0 %11084, %v10566
    %v11086 = vpop.permute.xlu0 %11085
    %11087 = vset.pattern.permute.xlu0 0
    %11088 = vperm.xlu0 %11087, %v10567
    %v11089 = vpop.permute.xlu0 %11088
    %11090 = vset.pattern.permute.xlu0 0
    %11091 = vperm.xlu0 %11090, %v10568
    %v11092 = vpop.permute.xlu0 %11091
    %11093 = vset.pattern.permute.xlu0 0
    %11094 = vperm.xlu0 %11093, %v10569
    %v11095 = vpop.permute.xlu0 %11094
    %11096 = vset.pattern.permute.xlu0 0
    %11097 = vperm.xlu0 %11096, %v10570
    %v11098 = vpop.permute.xlu0 %11097
    %11099 = vset.pattern.permute.xlu0 0
    %11100 = vperm.xlu0 %11099, %v10571
    %v11101 = vpop.permute.xlu0 %11100
    %11102 = vset.pattern.permute.xlu0 0
    %11103 = vperm.xlu0 %11102, %v10572
    %v11104 = vpop.permute.xlu0 %11103
    %11105 = vset.pattern.permute.xlu0 0
    %11106 = vperm.xlu0 %11105, %v10573
    %v11107 = vpop.permute.xlu0 %11106
    %11108 = vset.pattern.permute.xlu0 0
    %11109 = vperm.xlu0 %11108, %v10574
    %v11110 = vpop.permute.xlu0 %11109
    %11111 = vset.pattern.permute.xlu0 0
    %11112 = vperm.xlu0 %11111, %v10575
    %v11113 = vpop.permute.xlu0 %11112
    %11114 = vset.pattern.permute.xlu0 0
    %11115 = vperm.xlu0 %11114, %v10576
    %v11116 = vpop.permute.xlu0 %11115
    %11117 = vset.pattern.permute.xlu0 0
    %11118 = vperm.xlu0 %11117, %v10577
    %v11119 = vpop.permute.xlu0 %11118
    %11120 = vset.pattern.permute.xlu0 0
    %11121 = vperm.xlu0 %11120, %v10578
    %v11122 = vpop.permute.xlu0 %11121
    %11123 = vset.pattern.permute.xlu0 0
    %11124 = vperm.xlu0 %11123, %v10579
    %v11125 = vpop.permute.xlu0 %11124
    %11126 = vset.pattern.permute.xlu0 0
    %11127 = vperm.xlu0 %11126, %v10580
    %v11128 = vpop.permute.xlu0 %11127
    %11129 = vset.pattern.permute.xlu0 0
    %11130 = vperm.xlu0 %11129, %v10581
    %v11131 = vpop.permute.xlu0 %11130
    %11132 = vset.pattern.permute.xlu0 0
    %11133 = vperm.xlu0 %11132, %v10582
    %v11134 = vpop.permute.xlu0 %11133
    %11135 = vset.pattern.permute.xlu0 0
    %11136 = vperm.xlu0 %11135, %v10583
    %v11137 = vpop.permute.xlu0 %11136
    %11138 = vset.pattern.permute.xlu0 0
    %11139 = vperm.xlu0 %11138, %v10584
    %v11140 = vpop.permute.xlu0 %11139
    %11141 = vset.pattern.permute.xlu0 0
    %11142 = vperm.xlu0 %11141, %v10585
    %v11143 = vpop.permute.xlu0 %11142
    %11144 = vset.pattern.permute.xlu0 0
    %11145 = vperm.xlu0 %11144, %v10586
    %v11146 = vpop.permute.xlu0 %11145
    %11147 = vset.pattern.permute.xlu0 0
    %11148 = vperm.xlu0 %11147, %v10587
    %v11149 = vpop.permute.xlu0 %11148
    %11150 = vset.pattern.permute.xlu0 0
    %11151 = vperm.xlu0 %11150, %v10588
    %v11152 = vpop.permute.xlu0 %11151
    %11153 = vset.pattern.permute.xlu0 0
    %11154 = vperm.xlu0 %11153, %v10589
    %v11155 = vpop.permute.xlu0 %11154
    %11156 = vset.pattern.permute.xlu0 0
    %11157 = vperm.xlu0 %11156, %v10590
    %v11158 = vpop.permute.xlu0 %11157
    %11159 = vset.pattern.permute.xlu0 0
    %11160 = vperm.xlu0 %11159, %v10591
    %v11161 = vpop.permute.xlu0 %11160
    %11162 = vset.pattern.permute.xlu0 0
    %11163 = vperm.xlu0 %11162, %v10592
    %v11164 = vpop.permute.xlu0 %11163
    %11165 = vset.pattern.permute.xlu0 0
    %11166 = vperm.xlu0 %11165, %v10593
    %v11167 = vpop.permute.xlu0 %11166
    %11168 = vset.pattern.permute.xlu0 0
    %11169 = vperm.xlu0 %11168, %v10594
    %v11170 = vpop.permute.xlu0 %11169
    %11171 = vset.pattern.permute.xlu0 0
    %11172 = vperm.xlu0 %11171, %v10595
    %v11173 = vpop.permute.xlu0 %11172
    %11174 = vset.pattern.permute.xlu0 0
    %11175 = vperm.xlu0 %11174, %v10596
    %v11176 = vpop.permute.xlu0 %11175
    %11177 = vset.pattern.permute.xlu0 0
    %11178 = vperm.xlu0 %11177, %v10597
    %v11179 = vpop.permute.xlu0 %11178
    %11180 = vset.pattern.permute.xlu0 0
    %11181 = vperm.xlu0 %11180, %v10598
    %v11182 = vpop.permute.xlu0 %11181
    %11183 = vset.pattern.permute.xlu0 0
    %11184 = vperm.xlu0 %11183, %v10599
    %v11185 = vpop.permute.xlu0 %11184
    %11186 = vset.pattern.permute.xlu0 0
    %11187 = vperm.xlu0 %11186, %v10600
    %v11188 = vpop.permute.xlu0 %11187
    %11189 = vset.pattern.permute.xlu0 0
    %11190 = vperm.xlu0 %11189, %v10601
    %v11191 = vpop.permute.xlu0 %11190
    %11192 = vset.pattern.permute.xlu0 0
    %11193 = vperm.xlu0 %11192, %v10602
    %v11194 = vpop.permute.xlu0 %11193
    %11195 = vset.pattern.permute.xlu0 0
    %11196 = vperm.xlu0 %11195, %v10603
    %v11197 = vpop.permute.xlu0 %11196
    %11198 = vset.pattern.permute.xlu0 0
    %11199 = vperm.xlu0 %11198, %v10604
    %v11200 = vpop.permute.xlu0 %11199
    %11201 = vset.pattern.permute.xlu0 0
    %11202 = vperm.xlu0 %11201, %v10605
    %v11203 = vpop.permute.xlu0 %11202
    %11204 = vset.pattern.permute.xlu0 0
    %11205 = vperm.xlu0 %11204, %v10606
    %v11206 = vpop.permute.xlu0 %11205
    %11207 = vset.pattern.permute.xlu0 0
    %11208 = vperm.xlu0 %11207, %v10607
    %v11209 = vpop.permute.xlu0 %11208
    %11210 = vset.pattern.permute.xlu0 0
    %11211 = vperm.xlu0 %11210, %v10608
    %v11212 = vpop.permute.xlu0 %11211
    %11213 = vset.pattern.permute.xlu0 0
    %11214 = vperm.xlu0 %11213, %v10609
    %v11215 = vpop.permute.xlu0 %11214
    %11216 = vset.pattern.permute.xlu0 0
    %11217 = vperm.xlu0 %11216, %v10610
    %v11218 = vpop.permute.xlu0 %11217
    %11219 = vset.pattern.permute.xlu0 0
    %11220 = vperm.xlu0 %11219, %v10611
    %v11221 = vpop.permute.xlu0 %11220
    %11222 = vset.pattern.permute.xlu0 0
    %11223 = vperm.xlu0 %11222, %v10612
    %v11224 = vpop.permute.xlu0 %11223
    %11225 = vset.pattern.permute.xlu0 0
    %11226 = vperm.xlu0 %11225, %v10613
    %v11227 = vpop.permute.xlu0 %11226
    %11228 = vset.pattern.permute.xlu0 0
    %11229 = vperm.xlu0 %11228, %v10614
    %v11230 = vpop.permute.xlu0 %11229
    %11231 = vset.pattern.permute.xlu0 0
    %11232 = vperm.xlu0 %11231, %v10615
    %v11233 = vpop.permute.xlu0 %11232
    %11234 = vset.pattern.permute.xlu0 0
    %11235 = vperm.xlu0 %11234, %v10616
    %v11236 = vpop.permute.xlu0 %11235
    %11237 = vset.pattern.permute.xlu0 0
    %11238 = vperm.xlu0 %11237, %v10617
    %v11239 = vpop.permute.xlu0 %11238
    %11240 = vset.pattern.permute.xlu0 0
    %11241 = vperm.xlu0 %11240, %v10618
    %v11242 = vpop.permute.xlu0 %11241
    %11243 = vset.pattern.permute.xlu0 0
    %11244 = vperm.xlu0 %11243, %v10619
    %v11245 = vpop.permute.xlu0 %11244
    %11246 = vset.pattern.permute.xlu0 0
    %11247 = vperm.xlu0 %11246, %v10620
    %v11248 = vpop.permute.xlu0 %11247
    %11249 = vset.pattern.permute.xlu0 0
    %11250 = vperm.xlu0 %11249, %v10621
    %v11251 = vpop.permute.xlu0 %11250
    %11252 = vset.pattern.permute.xlu0 0
    %11253 = vperm.xlu0 %11252, %v10622
    %v11254 = vpop.permute.xlu0 %11253
    %11255 = vset.pattern.permute.xlu0 0
    %11256 = vperm.xlu0 %11255, %v10623
    %v11257 = vpop.permute.xlu0 %11256
    %11258 = vset.pattern.permute.xlu0 0
    %11259 = vperm.xlu0 %11258, %v10624
    %v11260 = vpop.permute.xlu0 %11259
    %11261 = vset.pattern.permute.xlu0 0
    %11262 = vperm.xlu0 %11261, %v10625
    %v11263 = vpop.permute.xlu0 %11262
    %11264 = vset.pattern.permute.xlu0 0
    %11265 = vperm.xlu0 %11264, %v10626
    %v11266 = vpop.permute.xlu0 %11265
    %11267 = vset.pattern.permute.xlu0 0
    %11268 = vperm.xlu0 %11267, %v10627
    %v11269 = vpop.permute.xlu0 %11268
    %11270 = vset.pattern.permute.xlu0 0
    %11271 = vperm.xlu0 %11270, %v10628
    %v11272 = vpop.permute.xlu0 %11271
    %11273 = vset.pattern.permute.xlu0 0
    %11274 = vperm.xlu0 %11273, %v10629
    %v11275 = vpop.permute.xlu0 %11274
    %11276 = vset.pattern.permute.xlu0 0
    %11277 = vperm.xlu0 %11276, %v10630
    %v11278 = vpop.permute.xlu0 %11277
    %11279 = vset.pattern.permute.xlu0 0
    %11280 = vperm.xlu0 %11279, %v10631
    %v11281 = vpop.permute.xlu0 %11280
    %11282 = vset.pattern.permute.xlu0 0
    %11283 = vperm.xlu0 %11282, %v10632
    %v11284 = vpop.permute.xlu0 %11283
    %11285 = vset.pattern.permute.xlu0 0
    %11286 = vperm.xlu0 %11285, %v10633
    %v11287 = vpop.permute.xlu0 %11286
    %11288 = vset.pattern.permute.xlu0 0
    %11289 = vperm.xlu0 %11288, %v10634
    %v11290 = vpop.permute.xlu0 %11289
    %11291 = vset.pattern.permute.xlu0 0
    %11292 = vperm.xlu0 %11291, %v10635
    %v11293 = vpop.permute.xlu0 %11292
    %11294 = vset.pattern.permute.xlu0 0
    %11295 = vperm.xlu0 %11294, %v10636
    %v11296 = vpop.permute.xlu0 %11295
    %11297 = vset.pattern.permute.xlu0 0
    %11298 = vperm.xlu0 %11297, %v10637
    %v11299 = vpop.permute.xlu0 %11298
    %11300 = vset.pattern.permute.xlu0 0
    %11301 = vperm.xlu0 %11300, %v10638
    %v11302 = vpop.permute.xlu0 %11301
    %11303 = vset.pattern.permute.xlu0 0
    %11304 = vperm.xlu0 %11303, %v10639
    %v11305 = vpop.permute.xlu0 %11304
    %11306 = vset.pattern.permute.xlu0 0
    %11307 = vperm.xlu0 %11306, %v10640
    %v11308 = vpop.permute.xlu0 %11307
    %11309 = vset.pattern.permute.xlu0 0
    %11310 = vperm.xlu0 %11309, %v10641
    %v11311 = vpop.permute.xlu0 %11310
    %11312 = vset.pattern.permute.xlu0 0
    %11313 = vperm.xlu0 %11312, %v10642
    %v11314 = vpop.permute.xlu0 %11313
    %11315 = vset.pattern.permute.xlu0 0
    %11316 = vperm.xlu0 %11315, %v10643
    %v11317 = vpop.permute.xlu0 %11316
    %11318 = vset.pattern.permute.xlu0 0
    %11319 = vperm.xlu0 %11318, %v10644
    %v11320 = vpop.permute.xlu0 %11319
    %11321 = vset.pattern.permute.xlu0 0
    %11322 = vperm.xlu0 %11321, %v10645
    %v11323 = vpop.permute.xlu0 %11322
    %11324 = vset.pattern.permute.xlu0 0
    %11325 = vperm.xlu0 %11324, %v10646
    %v11326 = vpop.permute.xlu0 %11325
    %11327 = vset.pattern.permute.xlu0 0
    %11328 = vperm.xlu0 %11327, %v10647
    %v11329 = vpop.permute.xlu0 %11328
    %11330 = vset.pattern.permute.xlu0 0
    %11331 = vperm.xlu0 %11330, %v10648
    %v11332 = vpop.permute.xlu0 %11331
    %11333 = vset.pattern.permute.xlu0 0
    %11334 = vperm.xlu0 %11333, %v10649
    %v11335 = vpop.permute.xlu0 %11334
    %11336 = vset.pattern.permute.xlu0 0
    %11337 = vperm.xlu0 %11336, %v10650
    %v11338 = vpop.permute.xlu0 %11337
    %11339 = vset.pattern.permute.xlu0 0
    %11340 = vperm.xlu0 %11339, %v10651
    %v11341 = vpop.permute.xlu0 %11340
    %11342 = vset.pattern.permute.xlu0 0
    %11343 = vperm.xlu0 %11342, %v10652
    %v11344 = vpop.permute.xlu0 %11343
    %11345 = vset.pattern.permute.xlu0 0
    %11346 = vperm.xlu0 %11345, %v10653
    %v11347 = vpop.permute.xlu0 %11346
    %11348 = vset.pattern.permute.xlu0 0
    %11349 = vperm.xlu0 %11348, %v10654
    %v11350 = vpop.permute.xlu0 %11349
    %11351 = vset.pattern.permute.xlu0 0
    %11352 = vperm.xlu0 %11351, %v10655
    %v11353 = vpop.permute.xlu0 %11352
    %11354 = vset.pattern.permute.xlu0 0
    %11355 = vperm.xlu0 %11354, %v10656
    %v11356 = vpop.permute.xlu0 %11355
    %11357 = vset.pattern.permute.xlu0 0
    %11358 = vperm.xlu0 %11357, %v10657
    %v11359 = vpop.permute.xlu0 %11358
    %11360 = vset.pattern.permute.xlu0 0
    %11361 = vperm.xlu0 %11360, %v10658
    %v11362 = vpop.permute.xlu0 %11361
    %11363 = vset.pattern.permute.xlu0 0
    %11364 = vperm.xlu0 %11363, %v10659
    %v11365 = vpop.permute.xlu0 %11364
    %11366 = vset.pattern.permute.xlu0 0
    %11367 = vperm.xlu0 %11366, %v10660
    %v11368 = vpop.permute.xlu0 %11367
    %11369 = vset.pattern.permute.xlu0 0
    %11370 = vperm.xlu0 %11369, %v10661
    %v11371 = vpop.permute.xlu0 %11370
    %11372 = vset.pattern.permute.xlu0 0
    %11373 = vperm.xlu0 %11372, %v10662
    %v11374 = vpop.permute.xlu0 %11373
    %11375 = vset.pattern.permute.xlu0 0
    %11376 = vperm.xlu0 %11375, %v10663
    %v11377 = vpop.permute.xlu0 %11376
    %11378 = vset.pattern.permute.xlu0 0
    %11379 = vperm.xlu0 %11378, %v10664
    %v11380 = vpop.permute.xlu0 %11379
    %11381 = vset.pattern.permute.xlu0 0
    %11382 = vperm.xlu0 %11381, %v10665
    %v11383 = vpop.permute.xlu0 %11382
    %11384 = vset.pattern.permute.xlu0 0
    %11385 = vperm.xlu0 %11384, %v10666
    %v11386 = vpop.permute.xlu0 %11385
    %11387 = vset.pattern.permute.xlu0 0
    %11388 = vperm.xlu0 %11387, %v10667
    %v11389 = vpop.permute.xlu0 %11388
    %11390 = vset.pattern.permute.xlu0 0
    %11391 = vperm.xlu0 %11390, %v10668
    %v11392 = vpop.permute.xlu0 %11391
    %11393 = vset.pattern.permute.xlu0 0
    %11394 = vperm.xlu0 %11393, %v10669
    %v11395 = vpop.permute.xlu0 %11394
    %11396 = vset.pattern.permute.xlu0 0
    %11397 = vperm.xlu0 %11396, %v10670
    %v11398 = vpop.permute.xlu0 %11397
    %11399 = vset.pattern.permute.xlu0 0
    %11400 = vperm.xlu0 %11399, %v10671
    %v11401 = vpop.permute.xlu0 %11400
    %11402 = vset.pattern.permute.xlu0 0
    %11403 = vperm.xlu0 %11402, %v10672
    %v11404 = vpop.permute.xlu0 %11403
    %11405 = vset.pattern.permute.xlu0 0
    %11406 = vperm.xlu0 %11405, %v10673
    %v11407 = vpop.permute.xlu0 %11406
    %11408 = vset.pattern.permute.xlu0 0
    %11409 = vperm.xlu0 %11408, %v10674
    %v11410 = vpop.permute.xlu0 %11409
    %11411 = vset.pattern.permute.xlu0 0
    %11412 = vperm.xlu0 %11411, %v10675
    %v11413 = vpop.permute.xlu0 %11412
    %11414 = vset.pattern.permute.xlu0 0
    %11415 = vperm.xlu0 %11414, %v10676
    %v11416 = vpop.permute.xlu0 %11415
    %11417 = vset.pattern.permute.xlu0 0
    %11418 = vperm.xlu0 %11417, %v10677
    %v11419 = vpop.permute.xlu0 %11418
    %11420 = vset.pattern.permute.xlu0 0
    %11421 = vperm.xlu0 %11420, %v10678
    %v11422 = vpop.permute.xlu0 %11421
    %11423 = vset.pattern.permute.xlu0 0
    %11424 = vperm.xlu0 %11423, %v10679
    %v11425 = vpop.permute.xlu0 %11424
    %11426 = vset.pattern.permute.xlu0 0
    %11427 = vperm.xlu0 %11426, %v10680
    %v11428 = vpop.permute.xlu0 %11427
    %11429 = vset.pattern.permute.xlu0 0
    %11430 = vperm.xlu0 %11429, %v10681
    %v11431 = vpop.permute.xlu0 %11430
    %11432 = vset.pattern.permute.xlu0 0
    %11433 = vperm.xlu0 %11432, %v10682
    %v11434 = vpop.permute.xlu0 %11433
    %11435 = vset.pattern.permute.xlu0 0
    %11436 = vperm.xlu0 %11435, %v10683
    %v11437 = vpop.permute.xlu0 %11436
    %11438 = vset.pattern.permute.xlu0 0
    %11439 = vperm.xlu0 %11438, %v10684
    %v11440 = vpop.permute.xlu0 %11439
    %11441 = vset.pattern.permute.xlu0 0
    %11442 = vperm.xlu0 %11441, %v10685
    %v11443 = vpop.permute.xlu0 %11442
    %11444 = vset.pattern.permute.xlu0 0
    %11445 = vperm.xlu0 %11444, %v10686
    %v11446 = vpop.permute.xlu0 %11445
    %11447 = vset.pattern.permute.xlu0 0
    %11448 = vperm.xlu0 %11447, %v10687
    %v11449 = vpop.permute.xlu0 %11448
    %11450 = vset.pattern.permute.xlu0 0
    %11451 = vperm.xlu0 %11450, %v10688
    %v11452 = vpop.permute.xlu0 %11451
    %11453 = vset.pattern.permute.xlu0 0
    %11454 = vperm.xlu0 %11453, %v10689
    %v11455 = vpop.permute.xlu0 %11454
    %11456 = vset.pattern.permute.xlu0 0
    %11457 = vperm.xlu0 %11456, %v10690
    %v11458 = vpop.permute.xlu0 %11457
    %11459 = vset.pattern.permute.xlu0 0
    %11460 = vperm.xlu0 %11459, %v10691
    %v11461 = vpop.permute.xlu0 %11460
    %11462 = vset.pattern.permute.xlu0 0
    %11463 = vperm.xlu0 %11462, %v10692
    %v11464 = vpop.permute.xlu0 %11463
    %11465 = vset.pattern.permute.xlu0 0
    %11466 = vperm.xlu0 %11465, %v10693
    %v11467 = vpop.permute.xlu0 %11466
    %11468 = vset.pattern.permute.xlu0 0
    %11469 = vperm.xlu0 %11468, %v10694
    %v11470 = vpop.permute.xlu0 %11469
    %11471 = vset.pattern.permute.xlu0 0
    %11472 = vperm.xlu0 %11471, %v10695
    %v11473 = vpop.permute.xlu0 %11472
    %11474 = vset.pattern.permute.xlu0 0
    %11475 = vperm.xlu0 %11474, %v10696
    %v11476 = vpop.permute.xlu0 %11475
    %11477 = vset.pattern.permute.xlu0 0
    %11478 = vperm.xlu0 %11477, %v10697
    %v11479 = vpop.permute.xlu0 %11478
    %11480 = vset.pattern.permute.xlu0 0
    %11481 = vperm.xlu0 %11480, %v10698
    %v11482 = vpop.permute.xlu0 %11481
    %11483 = vset.pattern.permute.xlu0 0
    %11484 = vperm.xlu0 %11483, %v10699
    %v11485 = vpop.permute.xlu0 %11484
    %11486 = vset.pattern.permute.xlu0 0
    %11487 = vperm.xlu0 %11486, %v10700
    %v11488 = vpop.permute.xlu0 %11487
    %11489 = vset.pattern.permute.xlu0 0
    %11490 = vperm.xlu0 %11489, %v10701
    %v11491 = vpop.permute.xlu0 %11490
    %11492 = vset.pattern.permute.xlu0 0
    %11493 = vperm.xlu0 %11492, %v10702
    %v11494 = vpop.permute.xlu0 %11493
    %11495 = vset.pattern.permute.xlu0 0
    %11496 = vperm.xlu0 %11495, %v10703
    %v11497 = vpop.permute.xlu0 %11496
    %11498 = vset.pattern.permute.xlu0 0
    %11499 = vperm.xlu0 %11498, %v10704
    %v11500 = vpop.permute.xlu0 %11499
    %11501 = vset.pattern.permute.xlu0 0
    %11502 = vperm.xlu0 %11501, %v10705
    %v11503 = vpop.permute.xlu0 %11502
    %11504 = vset.pattern.permute.xlu0 0
    %11505 = vperm.xlu0 %11504, %v10706
    %v11506 = vpop.permute.xlu0 %11505
    %11507 = vset.pattern.permute.xlu0 0
    %11508 = vperm.xlu0 %11507, %v10707
    %v11509 = vpop.permute.xlu0 %11508
    %11510 = vset.pattern.permute.xlu0 0
    %11511 = vperm.xlu0 %11510, %v10708
    %v11512 = vpop.permute.xlu0 %11511
    %11513 = vset.pattern.permute.xlu0 0
    %11514 = vperm.xlu0 %11513, %v10709
    %v11515 = vpop.permute.xlu0 %11514
    %11516 = vset.pattern.permute.xlu0 0
    %11517 = vperm.xlu0 %11516, %v10710
    %v11518 = vpop.permute.xlu0 %11517
    %11519 = vset.pattern.permute.xlu0 0
    %11520 = vperm.xlu0 %11519, %v10711
    %v11521 = vpop.permute.xlu0 %11520
    %11522 = vset.pattern.permute.xlu0 0
    %11523 = vperm.xlu0 %11522, %v10712
    %v11524 = vpop.permute.xlu0 %11523
    %11525 = vset.pattern.permute.xlu0 0
    %11526 = vperm.xlu0 %11525, %v10713
    %v11527 = vpop.permute.xlu0 %11526
    %11528 = vset.pattern.permute.xlu0 0
    %11529 = vperm.xlu0 %11528, %v10714
    %v11530 = vpop.permute.xlu0 %11529
    %11531 = vset.pattern.permute.xlu0 0
    %11532 = vperm.xlu0 %11531, %v10715
    %v11533 = vpop.permute.xlu0 %11532
    %11534 = vset.pattern.permute.xlu0 0
    %11535 = vperm.xlu0 %11534, %v10716
    %v11536 = vpop.permute.xlu0 %11535
    %11537 = vset.pattern.permute.xlu0 0
    %11538 = vperm.xlu0 %11537, %v10717
    %v11539 = vpop.permute.xlu0 %11538
    %11540 = vset.pattern.permute.xlu0 0
    %11541 = vperm.xlu0 %11540, %v10718
    %v11542 = vpop.permute.xlu0 %11541
    %11543 = vset.pattern.permute.xlu0 0
    %11544 = vperm.xlu0 %11543, %v10719
    %v11545 = vpop.permute.xlu0 %11544
    %11546 = vset.pattern.permute.xlu0 0
    %11547 = vperm.xlu0 %11546, %v10720
    %v11548 = vpop.permute.xlu0 %11547
    %11549 = vset.pattern.permute.xlu0 0
    %11550 = vperm.xlu0 %11549, %v10721
    %v11551 = vpop.permute.xlu0 %11550
    %11552 = vset.pattern.permute.xlu0 0
    %11553 = vperm.xlu0 %11552, %v10722
    %v11554 = vpop.permute.xlu0 %11553
    %11555 = vset.pattern.permute.xlu0 0
    %11556 = vperm.xlu0 %11555, %v10723
    %v11557 = vpop.permute.xlu0 %11556
    %11558 = vset.pattern.permute.xlu0 0
    %11559 = vperm.xlu0 %11558, %v10724
    %v11560 = vpop.permute.xlu0 %11559
    %11561 = vset.pattern.permute.xlu0 0
    %11562 = vperm.xlu0 %11561, %v10725
    %v11563 = vpop.permute.xlu0 %11562
    %11564 = vset.pattern.permute.xlu0 0
    %11565 = vperm.xlu0 %11564, %v10726
    %v11566 = vpop.permute.xlu0 %11565
    %11567 = vset.pattern.permute.xlu0 0
    %11568 = vperm.xlu0 %11567, %v10727
    %v11569 = vpop.permute.xlu0 %11568
    %11570 = vset.pattern.permute.xlu0 0
    %11571 = vperm.xlu0 %11570, %v10728
    %v11572 = vpop.permute.xlu0 %11571
    %11573 = vset.pattern.permute.xlu0 0
    %11574 = vperm.xlu0 %11573, %v10729
    %v11575 = vpop.permute.xlu0 %11574
    %11576 = vset.pattern.permute.xlu0 0
    %11577 = vperm.xlu0 %11576, %v10730
    %v11578 = vpop.permute.xlu0 %11577
    %11579 = vset.pattern.permute.xlu0 0
    %11580 = vperm.xlu0 %11579, %v10731
    %v11581 = vpop.permute.xlu0 %11580
    %11582 = vset.pattern.permute.xlu0 0
    %11583 = vperm.xlu0 %11582, %v10732
    %v11584 = vpop.permute.xlu0 %11583
    %11585 = vset.pattern.permute.xlu0 0
    %11586 = vperm.xlu0 %11585, %v10733
    %v11587 = vpop.permute.xlu0 %11586
    %11588 = vset.pattern.permute.xlu0 0
    %11589 = vperm.xlu0 %11588, %v10734
    %v11590 = vpop.permute.xlu0 %11589
    %11591 = vset.pattern.permute.xlu0 0
    %11592 = vperm.xlu0 %11591, %v10735
    %v11593 = vpop.permute.xlu0 %11592
    %11594 = vset.pattern.permute.xlu0 0
    %11595 = vperm.xlu0 %11594, %v10736
    %v11596 = vpop.permute.xlu0 %11595
    %11597 = vset.pattern.permute.xlu0 0
    %11598 = vperm.xlu0 %11597, %v10737
    %v11599 = vpop.permute.xlu0 %11598
    %11600 = vset.pattern.permute.xlu0 0
    %11601 = vperm.xlu0 %11600, %v10738
    %v11602 = vpop.permute.xlu0 %11601
    %11603 = vset.pattern.permute.xlu0 0
    %11604 = vperm.xlu0 %11603, %v10739
    %v11605 = vpop.permute.xlu0 %11604
    %11606 = vset.pattern.permute.xlu0 0
    %11607 = vperm.xlu0 %11606, %v10740
    %v11608 = vpop.permute.xlu0 %11607
    %11609 = vset.pattern.permute.xlu0 0
    %11610 = vperm.xlu0 %11609, %v10741
    %v11611 = vpop.permute.xlu0 %11610
    %11612 = vset.pattern.permute.xlu0 0
    %11613 = vperm.xlu0 %11612, %v10742
    %v11614 = vpop.permute.xlu0 %11613
    %11615 = vset.pattern.permute.xlu0 0
    %11616 = vperm.xlu0 %11615, %v10743
    %v11617 = vpop.permute.xlu0 %11616
    %11618 = vset.pattern.permute.xlu0 0
    %11619 = vperm.xlu0 %11618, %v10744
    %v11620 = vpop.permute.xlu0 %11619
    %11621 = vset.pattern.permute.xlu0 0
    %11622 = vperm.xlu0 %11621, %v10745
    %v11623 = vpop.permute.xlu0 %11622
    %11624 = vset.pattern.permute.xlu0 0
    %11625 = vperm.xlu0 %11624, %v10746
    %v11626 = vpop.permute.xlu0 %11625
    %11627 = vset.pattern.permute.xlu0 0
    %11628 = vperm.xlu0 %11627, %v10747
    %v11629 = vpop.permute.xlu0 %11628
    %11630 = vset.pattern.permute.xlu0 0
    %11631 = vperm.xlu0 %11630, %v10748
    %v11632 = vpop.permute.xlu0 %11631
    %11633 = vset.pattern.permute.xlu0 0
    %11634 = vperm.xlu0 %11633, %v10749
    %v11635 = vpop.permute.xlu0 %11634
    %11636 = vset.pattern.permute.xlu0 0
    %11637 = vperm.xlu0 %11636, %v10750
    %v11638 = vpop.permute.xlu0 %11637
    %11639 = vset.pattern.permute.xlu0 0
    %11640 = vperm.xlu0 %11639, %v10751
    %v11641 = vpop.permute.xlu0 %11640
    %11642 = vset.pattern.permute.xlu0 0
    %11643 = vperm.xlu0 %11642, %v10752
    %v11644 = vpop.permute.xlu0 %11643
    %11645 = vset.pattern.permute.xlu0 0
    %11646 = vperm.xlu0 %11645, %v10753
    %v11647 = vpop.permute.xlu0 %11646
    %11648 = vset.pattern.permute.xlu0 0
    %11649 = vperm.xlu0 %11648, %v10754
    %v11650 = vpop.permute.xlu0 %11649
    %11651 = vset.pattern.permute.xlu0 0
    %11652 = vperm.xlu0 %11651, %v10755
    %v11653 = vpop.permute.xlu0 %11652
    %11654 = vset.pattern.permute.xlu0 0
    %11655 = vperm.xlu0 %11654, %v10756
    %v11656 = vpop.permute.xlu0 %11655
    %11657 = vset.pattern.permute.xlu0 0
    %11658 = vperm.xlu0 %11657, %v10757
    %v11659 = vpop.permute.xlu0 %11658
    %11660 = vset.pattern.permute.xlu0 0
    %11661 = vperm.xlu0 %11660, %v10758
    %v11662 = vpop.permute.xlu0 %11661
    %11663 = vset.pattern.permute.xlu0 0
    %11664 = vperm.xlu0 %11663, %v10759
    %v11665 = vpop.permute.xlu0 %11664
    %11666 = vset.pattern.permute.xlu0 0
    %11667 = vperm.xlu0 %11666, %v10760
    %v11668 = vpop.permute.xlu0 %11667
    %11669 = vset.pattern.permute.xlu0 0
    %11670 = vperm.xlu0 %11669, %v10761
    %v11671 = vpop.permute.xlu0 %11670
    %11672 = vset.pattern.permute.xlu0 0
    %11673 = vperm.xlu0 %11672, %v10762
    %v11674 = vpop.permute.xlu0 %11673
    %11675 = vset.pattern.permute.xlu0 0
    %11676 = vperm.xlu0 %11675, %v10763
    %v11677 = vpop.permute.xlu0 %11676
    %11678 = vset.pattern.permute.xlu0 0
    %11679 = vperm.xlu0 %11678, %v10764
    %v11680 = vpop.permute.xlu0 %11679
    %11681 = vset.pattern.permute.xlu0 0
    %11682 = vperm.xlu0 %11681, %v10765
    %v11683 = vpop.permute.xlu0 %11682
    %11684 = vset.pattern.permute.xlu0 0
    %11685 = vperm.xlu0 %11684, %v10766
    %v11686 = vpop.permute.xlu0 %11685
    %11687 = vset.pattern.permute.xlu0 0
    %11688 = vperm.xlu0 %11687, %v10767
    %v11689 = vpop.permute.xlu0 %11688
    %11690 = vset.pattern.permute.xlu0 0
    %11691 = vperm.xlu0 %11690, %v10768
    %v11692 = vpop.permute.xlu0 %11691
    %11693 = vset.pattern.permute.xlu0 0
    %11694 = vperm.xlu0 %11693, %v10769
    %v11695 = vpop.permute.xlu0 %11694
    %11696 = vset.pattern.permute.xlu0 0
    %11697 = vperm.xlu0 %11696, %v10770
    %v11698 = vpop.permute.xlu0 %11697
    %11699 = vset.pattern.permute.xlu0 0
    %11700 = vperm.xlu0 %11699, %v10771
    %v11701 = vpop.permute.xlu0 %11700
    %11702 = vset.pattern.permute.xlu0 0
    %11703 = vperm.xlu0 %11702, %v10772
    %v11704 = vpop.permute.xlu0 %11703
    %11705 = vset.pattern.permute.xlu0 0
    %11706 = vperm.xlu0 %11705, %v10773
    %v11707 = vpop.permute.xlu0 %11706
    %11708 = vset.pattern.permute.xlu0 0
    %11709 = vperm.xlu0 %11708, %v10774
    %v11710 = vpop.permute.xlu0 %11709
    %11711 = vset.pattern.permute.xlu0 0
    %11712 = vperm.xlu0 %11711, %v10775
    %v11713 = vpop.permute.xlu0 %11712
    %11714 = vset.pattern.permute.xlu0 0
    %11715 = vperm.xlu0 %11714, %v10776
    %v11716 = vpop.permute.xlu0 %11715
    %11717 = vset.pattern.permute.xlu0 0
    %11718 = vperm.xlu0 %11717, %v10777
    %v11719 = vpop.permute.xlu0 %11718
    %11720 = vset.pattern.permute.xlu0 0
    %11721 = vperm.xlu0 %11720, %v10778
    %v11722 = vpop.permute.xlu0 %11721
    %11723 = vset.pattern.permute.xlu0 0
    %11724 = vperm.xlu0 %11723, %v10779
    %v11725 = vpop.permute.xlu0 %11724
    %11726 = vset.pattern.permute.xlu0 0
    %11727 = vperm.xlu0 %11726, %v10780
    %v11728 = vpop.permute.xlu0 %11727
    %11729 = vset.pattern.permute.xlu0 0
    %11730 = vperm.xlu0 %11729, %v10781
    %v11731 = vpop.permute.xlu0 %11730
    %11732 = vset.pattern.permute.xlu0 0
    %11733 = vperm.xlu0 %11732, %v10782
    %v11734 = vpop.permute.xlu0 %11733
    %11735 = vset.pattern.permute.xlu0 0
    %11736 = vperm.xlu0 %11735, %v10783
    %v11737 = vpop.permute.xlu0 %11736
    %11738 = vset.pattern.permute.xlu0 0
    %11739 = vperm.xlu0 %11738, %v10784
    %v11740 = vpop.permute.xlu0 %11739
    %11741 = vset.pattern.permute.xlu0 0
    %11742 = vperm.xlu0 %11741, %v10785
    %v11743 = vpop.permute.xlu0 %11742
    %11744 = vset.pattern.permute.xlu0 0
    %11745 = vperm.xlu0 %11744, %v10786
    %v11746 = vpop.permute.xlu0 %11745
    %11747 = vset.pattern.permute.xlu0 0
    %11748 = vperm.xlu0 %11747, %v10787
    %v11749 = vpop.permute.xlu0 %11748
    %11750 = vset.pattern.permute.xlu0 0
    %11751 = vperm.xlu0 %11750, %v10788
    %v11752 = vpop.permute.xlu0 %11751
    %11753 = vset.pattern.permute.xlu0 0
    %11754 = vperm.xlu0 %11753, %v10789
    %v11755 = vpop.permute.xlu0 %11754
    %11756 = vset.pattern.permute.xlu0 0
    %11757 = vperm.xlu0 %11756, %v10790
    %v11758 = vpop.permute.xlu0 %11757
    %11759 = vset.pattern.permute.xlu0 0
    %11760 = vperm.xlu0 %11759, %v10791
    %v11761 = vpop.permute.xlu0 %11760
    %11762 = vset.pattern.permute.xlu0 0
    %11763 = vperm.xlu0 %11762, %v10792
    %v11764 = vpop.permute.xlu0 %11763
    %11765 = vset.pattern.permute.xlu0 0
    %11766 = vperm.xlu0 %11765, %v10793
    %v11767 = vpop.permute.xlu0 %11766
    %11768 = vset.pattern.permute.xlu0 0
    %11769 = vperm.xlu0 %11768, %v10794
    %v11770 = vpop.permute.xlu0 %11769
    %11771 = vset.pattern.permute.xlu0 0
    %11772 = vperm.xlu0 %11771, %v10795
    %v11773 = vpop.permute.xlu0 %11772
    %11774 = vset.pattern.permute.xlu0 0
    %11775 = vperm.xlu0 %11774, %v10796
    %v11776 = vpop.permute.xlu0 %11775
    %11777 = vset.pattern.permute.xlu0 0
    %11778 = vperm.xlu0 %11777, %v10797
    %v11779 = vpop.permute.xlu0 %11778
    %11780 = vset.pattern.permute.xlu0 0
    %11781 = vperm.xlu0 %11780, %v10798
    %v11782 = vpop.permute.xlu0 %11781
    %11783 = vset.pattern.permute.xlu0 0
    %11784 = vperm.xlu0 %11783, %v10799
    %v11785 = vpop.permute.xlu0 %11784
    %11786 = vset.pattern.permute.xlu0 0
    %11787 = vperm.xlu0 %11786, %v10800
    %v11788 = vpop.permute.xlu0 %11787
    %11789 = vset.pattern.permute.xlu0 0
    %11790 = vperm.xlu0 %11789, %v10801
    %v11791 = vpop.permute.xlu0 %11790
    %11792 = vset.pattern.permute.xlu0 0
    %11793 = vperm.xlu0 %11792, %v10802
    %v11794 = vpop.permute.xlu0 %11793
    %11795 = vset.pattern.permute.xlu0 0
    %11796 = vperm.xlu0 %11795, %v10803
    %v11797 = vpop.permute.xlu0 %11796
    %11798 = vset.pattern.permute.xlu0 0
    %11799 = vperm.xlu0 %11798, %v10804
    %v11800 = vpop.permute.xlu0 %11799
    %11801 = vset.pattern.permute.xlu0 0
    %11802 = vperm.xlu0 %11801, %v10805
    %v11803 = vpop.permute.xlu0 %11802
    %11804 = vset.pattern.permute.xlu0 0
    %11805 = vperm.xlu0 %11804, %v10806
    %v11806 = vpop.permute.xlu0 %11805
    %11807 = vset.pattern.permute.xlu0 0
    %11808 = vperm.xlu0 %11807, %v10807
    %v11809 = vpop.permute.xlu0 %11808
    %11810 = vset.pattern.permute.xlu0 0
    %11811 = vperm.xlu0 %11810, %v10808
    %v11812 = vpop.permute.xlu0 %11811
    %11813 = vset.pattern.permute.xlu0 0
    %11814 = vperm.xlu0 %11813, %v10809
    %v11815 = vpop.permute.xlu0 %11814
    %11816 = vset.pattern.permute.xlu0 0
    %11817 = vperm.xlu0 %11816, %v10810
    %v11818 = vpop.permute.xlu0 %11817
    %11819 = vset.pattern.permute.xlu0 0
    %11820 = vperm.xlu0 %11819, %v10811
    %v11821 = vpop.permute.xlu0 %11820
    %11822 = vset.pattern.permute.xlu0 0
    %11823 = vperm.xlu0 %11822, %v10812
    %v11824 = vpop.permute.xlu0 %11823
    %11825 = vset.pattern.permute.xlu0 0
    %11826 = vperm.xlu0 %11825, %v10813
    %v11827 = vpop.permute.xlu0 %11826
    %11828 = vset.pattern.permute.xlu0 0
    %11829 = vperm.xlu0 %11828, %v10814
    %v11830 = vpop.permute.xlu0 %11829
    %11831 = vset.pattern.permute.xlu0 0
    %11832 = vperm.xlu0 %11831, %v10815
    %v11833 = vpop.permute.xlu0 %11832
    %11834 = vset.pattern.permute.xlu0 0
    %11835 = vperm.xlu0 %11834, %v10816
    %v11836 = vpop.permute.xlu0 %11835
    %11837 = vset.pattern.permute.xlu0 0
    %11838 = vperm.xlu0 %11837, %v10817
    %v11839 = vpop.permute.xlu0 %11838
    %11840 = vset.pattern.permute.xlu0 0
    %11841 = vperm.xlu0 %11840, %v10818
    %v11842 = vpop.permute.xlu0 %11841
    %v11843 = vlaneseq
    %v11844 = vshrl.u32 %v11843, 7
    %v11845 = vsub.s32 %v2067, %v11844
    %v11846 = vrot.slane %v11077, %v11845
    %v11847 = vlaneseq
    %v11848 = vshrl.u32 %v11847, 7
    %v11849 = vsub.s32 %v2072, %v11848
    %v11850 = vrot.slane %v11080, %v11849
    %v11851 = vsel %vm2077, %v11850, %v11846
    %v11852 = vlaneseq
    %v11853 = vshrl.u32 %v11852, 7
    %v11854 = vsub.s32 %v2079, %v11853
    %v11855 = vrot.slane %v11083, %v11854
    %v11856 = vsel %vm2084, %v11855, %v11851
    %v11857 = vlaneseq
    %v11858 = vshrl.u32 %v11857, 7
    %v11859 = vsub.s32 %v2086, %v11858
    %v11860 = vrot.slane %v11086, %v11859
    %v11861 = vsel %vm2091, %v11860, %v11856
    %v11862 = vlaneseq
    %v11863 = vshrl.u32 %v11862, 7
    %v11864 = vsub.s32 %v2093, %v11863
    %v11865 = vrot.slane %v11089, %v11864
    %v11866 = vsel %vm2098, %v11865, %v11861
    %v11867 = vlaneseq
    %v11868 = vshrl.u32 %v11867, 7
    %v11869 = vsub.s32 %v2100, %v11868
    %v11870 = vrot.slane %v11092, %v11869
    %v11871 = vsel %vm2105, %v11870, %v11866
    %v11872 = vlaneseq
    %v11873 = vshrl.u32 %v11872, 7
    %v11874 = vsub.s32 %v2107, %v11873
    %v11875 = vrot.slane %v11095, %v11874
    %v11876 = vsel %vm2112, %v11875, %v11871
    %v11877 = vlaneseq
    %v11878 = vshrl.u32 %v11877, 7
    %v11879 = vsub.s32 %v2114, %v11878
    %v11880 = vrot.slane %v11098, %v11879
    %v11881 = vsel %vm2119, %v11880, %v11876
    %v11882 = vlaneseq
    %v11883 = vshrl.u32 %v11882, 7
    %v11884 = vsub.s32 %v2121, %v11883
    %v11885 = vrot.slane %v11101, %v11884
    %v11886 = vsel %vm2126, %v11885, %v11881
    %v11887 = vlaneseq
    %v11888 = vshrl.u32 %v11887, 7
    %v11889 = vsub.s32 %v2128, %v11888
    %v11890 = vrot.slane %v11104, %v11889
    %v11891 = vsel %vm2133, %v11890, %v11886
    %v11892 = vlaneseq
    %v11893 = vshrl.u32 %v11892, 7
    %v11894 = vsub.s32 %v2135, %v11893
    %v11895 = vrot.slane %v11107, %v11894
    %v11896 = vsel %vm2140, %v11895, %v11891
    %v11897 = vlaneseq
    %v11898 = vshrl.u32 %v11897, 7
    %v11899 = vsub.s32 %v2142, %v11898
    %v11900 = vrot.slane %v11110, %v11899
    %v11901 = vsel %vm2147, %v11900, %v11896
    %v11902 = vlaneseq
    %v11903 = vshrl.u32 %v11902, 7
    %v11904 = vsub.s32 %v2149, %v11903
    %v11905 = vrot.slane %v11113, %v11904
    %v11906 = vsel %vm2154, %v11905, %v11901
    %v11907 = vlaneseq
    %v11908 = vshrl.u32 %v11907, 7
    %v11909 = vsub.s32 %v2156, %v11908
    %v11910 = vrot.slane %v11116, %v11909
    %v11911 = vsel %vm2161, %v11910, %v11906
    %v11912 = vlaneseq
    %v11913 = vshrl.u32 %v11912, 7
    %v11914 = vsub.s32 %v2163, %v11913
    %v11915 = vrot.slane %v11119, %v11914
    %v11916 = vsel %vm2168, %v11915, %v11911
    %v11917 = vlaneseq
    %v11918 = vshrl.u32 %v11917, 7
    %v11919 = vsub.s32 %v2170, %v11918
    %v11920 = vrot.slane %v11122, %v11919
    %v11921 = vsel %vm2175, %v11920, %v11916
    %v11922 = vlaneseq
    %v11923 = vshrl.u32 %v11922, 7
    %v11924 = vsub.s32 %v2067, %v11923
    %v11925 = vrot.slane %v11125, %v11924
    %v11926 = vlaneseq
    %v11927 = vshrl.u32 %v11926, 7
    %v11928 = vsub.s32 %v2072, %v11927
    %v11929 = vrot.slane %v11128, %v11928
    %v11930 = vsel %vm2077, %v11929, %v11925
    %v11931 = vlaneseq
    %v11932 = vshrl.u32 %v11931, 7
    %v11933 = vsub.s32 %v2079, %v11932
    %v11934 = vrot.slane %v11131, %v11933
    %v11935 = vsel %vm2084, %v11934, %v11930
    %v11936 = vlaneseq
    %v11937 = vshrl.u32 %v11936, 7
    %v11938 = vsub.s32 %v2086, %v11937
    %v11939 = vrot.slane %v11134, %v11938
    %v11940 = vsel %vm2091, %v11939, %v11935
    %v11941 = vlaneseq
    %v11942 = vshrl.u32 %v11941, 7
    %v11943 = vsub.s32 %v2093, %v11942
    %v11944 = vrot.slane %v11137, %v11943
    %v11945 = vsel %vm2098, %v11944, %v11940
    %v11946 = vlaneseq
    %v11947 = vshrl.u32 %v11946, 7
    %v11948 = vsub.s32 %v2100, %v11947
    %v11949 = vrot.slane %v11140, %v11948
    %v11950 = vsel %vm2105, %v11949, %v11945
    %v11951 = vlaneseq
    %v11952 = vshrl.u32 %v11951, 7
    %v11953 = vsub.s32 %v2107, %v11952
    %v11954 = vrot.slane %v11143, %v11953
    %v11955 = vsel %vm2112, %v11954, %v11950
    %v11956 = vlaneseq
    %v11957 = vshrl.u32 %v11956, 7
    %v11958 = vsub.s32 %v2114, %v11957
    %v11959 = vrot.slane %v11146, %v11958
    %v11960 = vsel %vm2119, %v11959, %v11955
    %v11961 = vlaneseq
    %v11962 = vshrl.u32 %v11961, 7
    %v11963 = vsub.s32 %v2121, %v11962
    %v11964 = vrot.slane %v11149, %v11963
    %v11965 = vsel %vm2126, %v11964, %v11960
    %v11966 = vlaneseq
    %v11967 = vshrl.u32 %v11966, 7
    %v11968 = vsub.s32 %v2128, %v11967
    %v11969 = vrot.slane %v11152, %v11968
    %v11970 = vsel %vm2133, %v11969, %v11965
    %v11971 = vlaneseq
    %v11972 = vshrl.u32 %v11971, 7
    %v11973 = vsub.s32 %v2135, %v11972
    %v11974 = vrot.slane %v11155, %v11973
    %v11975 = vsel %vm2140, %v11974, %v11970
    %v11976 = vlaneseq
    %v11977 = vshrl.u32 %v11976, 7
    %v11978 = vsub.s32 %v2142, %v11977
    %v11979 = vrot.slane %v11158, %v11978
    %v11980 = vsel %vm2147, %v11979, %v11975
    %v11981 = vlaneseq
    %v11982 = vshrl.u32 %v11981, 7
    %v11983 = vsub.s32 %v2149, %v11982
    %v11984 = vrot.slane %v11161, %v11983
    %v11985 = vsel %vm2154, %v11984, %v11980
    %v11986 = vlaneseq
    %v11987 = vshrl.u32 %v11986, 7
    %v11988 = vsub.s32 %v2156, %v11987
    %v11989 = vrot.slane %v11164, %v11988
    %v11990 = vsel %vm2161, %v11989, %v11985
    %v11991 = vlaneseq
    %v11992 = vshrl.u32 %v11991, 7
    %v11993 = vsub.s32 %v2163, %v11992
    %v11994 = vrot.slane %v11167, %v11993
    %v11995 = vsel %vm2168, %v11994, %v11990
    %v11996 = vlaneseq
    %v11997 = vshrl.u32 %v11996, 7
    %v11998 = vsub.s32 %v2170, %v11997
    %v11999 = vrot.slane %v11170, %v11998
    %v12000 = vsel %vm2175, %v11999, %v11995
    %v12001 = vlaneseq
    %v12002 = vshrl.u32 %v12001, 7
    %v12003 = vsub.s32 %v2067, %v12002
    %v12004 = vrot.slane %v11173, %v12003
    %v12005 = vlaneseq
    %v12006 = vshrl.u32 %v12005, 7
    %v12007 = vsub.s32 %v2072, %v12006
    %v12008 = vrot.slane %v11176, %v12007
    %v12009 = vsel %vm2077, %v12008, %v12004
    %v12010 = vlaneseq
    %v12011 = vshrl.u32 %v12010, 7
    %v12012 = vsub.s32 %v2079, %v12011
    %v12013 = vrot.slane %v11179, %v12012
    %v12014 = vsel %vm2084, %v12013, %v12009
    %v12015 = vlaneseq
    %v12016 = vshrl.u32 %v12015, 7
    %v12017 = vsub.s32 %v2086, %v12016
    %v12018 = vrot.slane %v11182, %v12017
    %v12019 = vsel %vm2091, %v12018, %v12014
    %v12020 = vlaneseq
    %v12021 = vshrl.u32 %v12020, 7
    %v12022 = vsub.s32 %v2093, %v12021
    %v12023 = vrot.slane %v11185, %v12022
    %v12024 = vsel %vm2098, %v12023, %v12019
    %v12025 = vlaneseq
    %v12026 = vshrl.u32 %v12025, 7
    %v12027 = vsub.s32 %v2100, %v12026
    %v12028 = vrot.slane %v11188, %v12027
    %v12029 = vsel %vm2105, %v12028, %v12024
    %v12030 = vlaneseq
    %v12031 = vshrl.u32 %v12030, 7
    %v12032 = vsub.s32 %v2107, %v12031
    %v12033 = vrot.slane %v11191, %v12032
    %v12034 = vsel %vm2112, %v12033, %v12029
    %v12035 = vlaneseq
    %v12036 = vshrl.u32 %v12035, 7
    %v12037 = vsub.s32 %v2114, %v12036
    %v12038 = vrot.slane %v11194, %v12037
    %v12039 = vsel %vm2119, %v12038, %v12034
    %v12040 = vlaneseq
    %v12041 = vshrl.u32 %v12040, 7
    %v12042 = vsub.s32 %v2121, %v12041
    %v12043 = vrot.slane %v11197, %v12042
    %v12044 = vsel %vm2126, %v12043, %v12039
    %v12045 = vlaneseq
    %v12046 = vshrl.u32 %v12045, 7
    %v12047 = vsub.s32 %v2128, %v12046
    %v12048 = vrot.slane %v11200, %v12047
    %v12049 = vsel %vm2133, %v12048, %v12044
    %v12050 = vlaneseq
    %v12051 = vshrl.u32 %v12050, 7
    %v12052 = vsub.s32 %v2135, %v12051
    %v12053 = vrot.slane %v11203, %v12052
    %v12054 = vsel %vm2140, %v12053, %v12049
    %v12055 = vlaneseq
    %v12056 = vshrl.u32 %v12055, 7
    %v12057 = vsub.s32 %v2142, %v12056
    %v12058 = vrot.slane %v11206, %v12057
    %v12059 = vsel %vm2147, %v12058, %v12054
    %v12060 = vlaneseq
    %v12061 = vshrl.u32 %v12060, 7
    %v12062 = vsub.s32 %v2149, %v12061
    %v12063 = vrot.slane %v11209, %v12062
    %v12064 = vsel %vm2154, %v12063, %v12059
    %v12065 = vlaneseq
    %v12066 = vshrl.u32 %v12065, 7
    %v12067 = vsub.s32 %v2156, %v12066
    %v12068 = vrot.slane %v11212, %v12067
    %v12069 = vsel %vm2161, %v12068, %v12064
    %v12070 = vlaneseq
    %v12071 = vshrl.u32 %v12070, 7
    %v12072 = vsub.s32 %v2163, %v12071
    %v12073 = vrot.slane %v11215, %v12072
    %v12074 = vsel %vm2168, %v12073, %v12069
    %v12075 = vlaneseq
    %v12076 = vshrl.u32 %v12075, 7
    %v12077 = vsub.s32 %v2170, %v12076
    %v12078 = vrot.slane %v11218, %v12077
    %v12079 = vsel %vm2175, %v12078, %v12074
    %v12080 = vlaneseq
    %v12081 = vshrl.u32 %v12080, 7
    %v12082 = vsub.s32 %v2067, %v12081
    %v12083 = vrot.slane %v11221, %v12082
    %v12084 = vlaneseq
    %v12085 = vshrl.u32 %v12084, 7
    %v12086 = vsub.s32 %v2072, %v12085
    %v12087 = vrot.slane %v11224, %v12086
    %v12088 = vsel %vm2077, %v12087, %v12083
    %v12089 = vlaneseq
    %v12090 = vshrl.u32 %v12089, 7
    %v12091 = vsub.s32 %v2079, %v12090
    %v12092 = vrot.slane %v11227, %v12091
    %v12093 = vsel %vm2084, %v12092, %v12088
    %v12094 = vlaneseq
    %v12095 = vshrl.u32 %v12094, 7
    %v12096 = vsub.s32 %v2086, %v12095
    %v12097 = vrot.slane %v11230, %v12096
    %v12098 = vsel %vm2091, %v12097, %v12093
    %v12099 = vlaneseq
    %v12100 = vshrl.u32 %v12099, 7
    %v12101 = vsub.s32 %v2093, %v12100
    %v12102 = vrot.slane %v11233, %v12101
    %v12103 = vsel %vm2098, %v12102, %v12098
    %v12104 = vlaneseq
    %v12105 = vshrl.u32 %v12104, 7
    %v12106 = vsub.s32 %v2100, %v12105
    %v12107 = vrot.slane %v11236, %v12106
    %v12108 = vsel %vm2105, %v12107, %v12103
    %v12109 = vlaneseq
    %v12110 = vshrl.u32 %v12109, 7
    %v12111 = vsub.s32 %v2107, %v12110
    %v12112 = vrot.slane %v11239, %v12111
    %v12113 = vsel %vm2112, %v12112, %v12108
    %v12114 = vlaneseq
    %v12115 = vshrl.u32 %v12114, 7
    %v12116 = vsub.s32 %v2114, %v12115
    %v12117 = vrot.slane %v11242, %v12116
    %v12118 = vsel %vm2119, %v12117, %v12113
    %v12119 = vlaneseq
    %v12120 = vshrl.u32 %v12119, 7
    %v12121 = vsub.s32 %v2121, %v12120
    %v12122 = vrot.slane %v11245, %v12121
    %v12123 = vsel %vm2126, %v12122, %v12118
    %v12124 = vlaneseq
    %v12125 = vshrl.u32 %v12124, 7
    %v12126 = vsub.s32 %v2128, %v12125
    %v12127 = vrot.slane %v11248, %v12126
    %v12128 = vsel %vm2133, %v12127, %v12123
    %v12129 = vlaneseq
    %v12130 = vshrl.u32 %v12129, 7
    %v12131 = vsub.s32 %v2135, %v12130
    %v12132 = vrot.slane %v11251, %v12131
    %v12133 = vsel %vm2140, %v12132, %v12128
    %v12134 = vlaneseq
    %v12135 = vshrl.u32 %v12134, 7
    %v12136 = vsub.s32 %v2142, %v12135
    %v12137 = vrot.slane %v11254, %v12136
    %v12138 = vsel %vm2147, %v12137, %v12133
    %v12139 = vlaneseq
    %v12140 = vshrl.u32 %v12139, 7
    %v12141 = vsub.s32 %v2149, %v12140
    %v12142 = vrot.slane %v11257, %v12141
    %v12143 = vsel %vm2154, %v12142, %v12138
    %v12144 = vlaneseq
    %v12145 = vshrl.u32 %v12144, 7
    %v12146 = vsub.s32 %v2156, %v12145
    %v12147 = vrot.slane %v11260, %v12146
    %v12148 = vsel %vm2161, %v12147, %v12143
    %v12149 = vlaneseq
    %v12150 = vshrl.u32 %v12149, 7
    %v12151 = vsub.s32 %v2163, %v12150
    %v12152 = vrot.slane %v11263, %v12151
    %v12153 = vsel %vm2168, %v12152, %v12148
    %v12154 = vlaneseq
    %v12155 = vshrl.u32 %v12154, 7
    %v12156 = vsub.s32 %v2170, %v12155
    %v12157 = vrot.slane %v11266, %v12156
    %v12158 = vsel %vm2175, %v12157, %v12153
    %v12159 = vlaneseq
    %v12160 = vshrl.u32 %v12159, 7
    %v12161 = vsub.s32 %v2067, %v12160
    %v12162 = vrot.slane %v11269, %v12161
    %v12163 = vlaneseq
    %v12164 = vshrl.u32 %v12163, 7
    %v12165 = vsub.s32 %v2072, %v12164
    %v12166 = vrot.slane %v11272, %v12165
    %v12167 = vsel %vm2077, %v12166, %v12162
    %v12168 = vlaneseq
    %v12169 = vshrl.u32 %v12168, 7
    %v12170 = vsub.s32 %v2079, %v12169
    %v12171 = vrot.slane %v11275, %v12170
    %v12172 = vsel %vm2084, %v12171, %v12167
    %v12173 = vlaneseq
    %v12174 = vshrl.u32 %v12173, 7
    %v12175 = vsub.s32 %v2086, %v12174
    %v12176 = vrot.slane %v11278, %v12175
    %v12177 = vsel %vm2091, %v12176, %v12172
    %v12178 = vlaneseq
    %v12179 = vshrl.u32 %v12178, 7
    %v12180 = vsub.s32 %v2093, %v12179
    %v12181 = vrot.slane %v11281, %v12180
    %v12182 = vsel %vm2098, %v12181, %v12177
    %v12183 = vlaneseq
    %v12184 = vshrl.u32 %v12183, 7
    %v12185 = vsub.s32 %v2100, %v12184
    %v12186 = vrot.slane %v11284, %v12185
    %v12187 = vsel %vm2105, %v12186, %v12182
    %v12188 = vlaneseq
    %v12189 = vshrl.u32 %v12188, 7
    %v12190 = vsub.s32 %v2107, %v12189
    %v12191 = vrot.slane %v11287, %v12190
    %v12192 = vsel %vm2112, %v12191, %v12187
    %v12193 = vlaneseq
    %v12194 = vshrl.u32 %v12193, 7
    %v12195 = vsub.s32 %v2114, %v12194
    %v12196 = vrot.slane %v11290, %v12195
    %v12197 = vsel %vm2119, %v12196, %v12192
    %v12198 = vlaneseq
    %v12199 = vshrl.u32 %v12198, 7
    %v12200 = vsub.s32 %v2121, %v12199
    %v12201 = vrot.slane %v11293, %v12200
    %v12202 = vsel %vm2126, %v12201, %v12197
    %v12203 = vlaneseq
    %v12204 = vshrl.u32 %v12203, 7
    %v12205 = vsub.s32 %v2128, %v12204
    %v12206 = vrot.slane %v11296, %v12205
    %v12207 = vsel %vm2133, %v12206, %v12202
    %v12208 = vlaneseq
    %v12209 = vshrl.u32 %v12208, 7
    %v12210 = vsub.s32 %v2135, %v12209
    %v12211 = vrot.slane %v11299, %v12210
    %v12212 = vsel %vm2140, %v12211, %v12207
    %v12213 = vlaneseq
    %v12214 = vshrl.u32 %v12213, 7
    %v12215 = vsub.s32 %v2142, %v12214
    %v12216 = vrot.slane %v11302, %v12215
    %v12217 = vsel %vm2147, %v12216, %v12212
    %v12218 = vlaneseq
    %v12219 = vshrl.u32 %v12218, 7
    %v12220 = vsub.s32 %v2149, %v12219
    %v12221 = vrot.slane %v11305, %v12220
    %v12222 = vsel %vm2154, %v12221, %v12217
    %v12223 = vlaneseq
    %v12224 = vshrl.u32 %v12223, 7
    %v12225 = vsub.s32 %v2156, %v12224
    %v12226 = vrot.slane %v11308, %v12225
    %v12227 = vsel %vm2161, %v12226, %v12222
    %v12228 = vlaneseq
    %v12229 = vshrl.u32 %v12228, 7
    %v12230 = vsub.s32 %v2163, %v12229
    %v12231 = vrot.slane %v11311, %v12230
    %v12232 = vsel %vm2168, %v12231, %v12227
    %v12233 = vlaneseq
    %v12234 = vshrl.u32 %v12233, 7
    %v12235 = vsub.s32 %v2170, %v12234
    %v12236 = vrot.slane %v11314, %v12235
    %v12237 = vsel %vm2175, %v12236, %v12232
    %v12238 = vlaneseq
    %v12239 = vshrl.u32 %v12238, 7
    %v12240 = vsub.s32 %v2067, %v12239
    %v12241 = vrot.slane %v11317, %v12240
    %v12242 = vlaneseq
    %v12243 = vshrl.u32 %v12242, 7
    %v12244 = vsub.s32 %v2072, %v12243
    %v12245 = vrot.slane %v11320, %v12244
    %v12246 = vsel %vm2077, %v12245, %v12241
    %v12247 = vlaneseq
    %v12248 = vshrl.u32 %v12247, 7
    %v12249 = vsub.s32 %v2079, %v12248
    %v12250 = vrot.slane %v11323, %v12249
    %v12251 = vsel %vm2084, %v12250, %v12246
    %v12252 = vlaneseq
    %v12253 = vshrl.u32 %v12252, 7
    %v12254 = vsub.s32 %v2086, %v12253
    %v12255 = vrot.slane %v11326, %v12254
    %v12256 = vsel %vm2091, %v12255, %v12251
    %v12257 = vlaneseq
    %v12258 = vshrl.u32 %v12257, 7
    %v12259 = vsub.s32 %v2093, %v12258
    %v12260 = vrot.slane %v11329, %v12259
    %v12261 = vsel %vm2098, %v12260, %v12256
    %v12262 = vlaneseq
    %v12263 = vshrl.u32 %v12262, 7
    %v12264 = vsub.s32 %v2100, %v12263
    %v12265 = vrot.slane %v11332, %v12264
    %v12266 = vsel %vm2105, %v12265, %v12261
    %v12267 = vlaneseq
    %v12268 = vshrl.u32 %v12267, 7
    %v12269 = vsub.s32 %v2107, %v12268
    %v12270 = vrot.slane %v11335, %v12269
    %v12271 = vsel %vm2112, %v12270, %v12266
    %v12272 = vlaneseq
    %v12273 = vshrl.u32 %v12272, 7
    %v12274 = vsub.s32 %v2114, %v12273
    %v12275 = vrot.slane %v11338, %v12274
    %v12276 = vsel %vm2119, %v12275, %v12271
    %v12277 = vlaneseq
    %v12278 = vshrl.u32 %v12277, 7
    %v12279 = vsub.s32 %v2121, %v12278
    %v12280 = vrot.slane %v11341, %v12279
    %v12281 = vsel %vm2126, %v12280, %v12276
    %v12282 = vlaneseq
    %v12283 = vshrl.u32 %v12282, 7
    %v12284 = vsub.s32 %v2128, %v12283
    %v12285 = vrot.slane %v11344, %v12284
    %v12286 = vsel %vm2133, %v12285, %v12281
    %v12287 = vlaneseq
    %v12288 = vshrl.u32 %v12287, 7
    %v12289 = vsub.s32 %v2135, %v12288
    %v12290 = vrot.slane %v11347, %v12289
    %v12291 = vsel %vm2140, %v12290, %v12286
    %v12292 = vlaneseq
    %v12293 = vshrl.u32 %v12292, 7
    %v12294 = vsub.s32 %v2142, %v12293
    %v12295 = vrot.slane %v11350, %v12294
    %v12296 = vsel %vm2147, %v12295, %v12291
    %v12297 = vlaneseq
    %v12298 = vshrl.u32 %v12297, 7
    %v12299 = vsub.s32 %v2149, %v12298
    %v12300 = vrot.slane %v11353, %v12299
    %v12301 = vsel %vm2154, %v12300, %v12296
    %v12302 = vlaneseq
    %v12303 = vshrl.u32 %v12302, 7
    %v12304 = vsub.s32 %v2156, %v12303
    %v12305 = vrot.slane %v11356, %v12304
    %v12306 = vsel %vm2161, %v12305, %v12301
    %v12307 = vlaneseq
    %v12308 = vshrl.u32 %v12307, 7
    %v12309 = vsub.s32 %v2163, %v12308
    %v12310 = vrot.slane %v11359, %v12309
    %v12311 = vsel %vm2168, %v12310, %v12306
    %v12312 = vlaneseq
    %v12313 = vshrl.u32 %v12312, 7
    %v12314 = vsub.s32 %v2170, %v12313
    %v12315 = vrot.slane %v11362, %v12314
    %v12316 = vsel %vm2175, %v12315, %v12311
    %v12317 = vlaneseq
    %v12318 = vshrl.u32 %v12317, 7
    %v12319 = vsub.s32 %v2067, %v12318
    %v12320 = vrot.slane %v11365, %v12319
    %v12321 = vlaneseq
    %v12322 = vshrl.u32 %v12321, 7
    %v12323 = vsub.s32 %v2072, %v12322
    %v12324 = vrot.slane %v11368, %v12323
    %v12325 = vsel %vm2077, %v12324, %v12320
    %v12326 = vlaneseq
    %v12327 = vshrl.u32 %v12326, 7
    %v12328 = vsub.s32 %v2079, %v12327
    %v12329 = vrot.slane %v11371, %v12328
    %v12330 = vsel %vm2084, %v12329, %v12325
    %v12331 = vlaneseq
    %v12332 = vshrl.u32 %v12331, 7
    %v12333 = vsub.s32 %v2086, %v12332
    %v12334 = vrot.slane %v11374, %v12333
    %v12335 = vsel %vm2091, %v12334, %v12330
    %v12336 = vlaneseq
    %v12337 = vshrl.u32 %v12336, 7
    %v12338 = vsub.s32 %v2093, %v12337
    %v12339 = vrot.slane %v11377, %v12338
    %v12340 = vsel %vm2098, %v12339, %v12335
    %v12341 = vlaneseq
    %v12342 = vshrl.u32 %v12341, 7
    %v12343 = vsub.s32 %v2100, %v12342
    %v12344 = vrot.slane %v11380, %v12343
    %v12345 = vsel %vm2105, %v12344, %v12340
    %v12346 = vlaneseq
    %v12347 = vshrl.u32 %v12346, 7
    %v12348 = vsub.s32 %v2107, %v12347
    %v12349 = vrot.slane %v11383, %v12348
    %v12350 = vsel %vm2112, %v12349, %v12345
    %v12351 = vlaneseq
    %v12352 = vshrl.u32 %v12351, 7
    %v12353 = vsub.s32 %v2114, %v12352
    %v12354 = vrot.slane %v11386, %v12353
    %v12355 = vsel %vm2119, %v12354, %v12350
    %v12356 = vlaneseq
    %v12357 = vshrl.u32 %v12356, 7
    %v12358 = vsub.s32 %v2121, %v12357
    %v12359 = vrot.slane %v11389, %v12358
    %v12360 = vsel %vm2126, %v12359, %v12355
    %v12361 = vlaneseq
    %v12362 = vshrl.u32 %v12361, 7
    %v12363 = vsub.s32 %v2128, %v12362
    %v12364 = vrot.slane %v11392, %v12363
    %v12365 = vsel %vm2133, %v12364, %v12360
    %v12366 = vlaneseq
    %v12367 = vshrl.u32 %v12366, 7
    %v12368 = vsub.s32 %v2135, %v12367
    %v12369 = vrot.slane %v11395, %v12368
    %v12370 = vsel %vm2140, %v12369, %v12365
    %v12371 = vlaneseq
    %v12372 = vshrl.u32 %v12371, 7
    %v12373 = vsub.s32 %v2142, %v12372
    %v12374 = vrot.slane %v11398, %v12373
    %v12375 = vsel %vm2147, %v12374, %v12370
    %v12376 = vlaneseq
    %v12377 = vshrl.u32 %v12376, 7
    %v12378 = vsub.s32 %v2149, %v12377
    %v12379 = vrot.slane %v11401, %v12378
    %v12380 = vsel %vm2154, %v12379, %v12375
    %v12381 = vlaneseq
    %v12382 = vshrl.u32 %v12381, 7
    %v12383 = vsub.s32 %v2156, %v12382
    %v12384 = vrot.slane %v11404, %v12383
    %v12385 = vsel %vm2161, %v12384, %v12380
    %v12386 = vlaneseq
    %v12387 = vshrl.u32 %v12386, 7
    %v12388 = vsub.s32 %v2163, %v12387
    %v12389 = vrot.slane %v11407, %v12388
    %v12390 = vsel %vm2168, %v12389, %v12385
    %v12391 = vlaneseq
    %v12392 = vshrl.u32 %v12391, 7
    %v12393 = vsub.s32 %v2170, %v12392
    %v12394 = vrot.slane %v11410, %v12393
    %v12395 = vsel %vm2175, %v12394, %v12390
    %v12396 = vlaneseq
    %v12397 = vshrl.u32 %v12396, 7
    %v12398 = vsub.s32 %v2067, %v12397
    %v12399 = vrot.slane %v11413, %v12398
    %v12400 = vlaneseq
    %v12401 = vshrl.u32 %v12400, 7
    %v12402 = vsub.s32 %v2072, %v12401
    %v12403 = vrot.slane %v11416, %v12402
    %v12404 = vsel %vm2077, %v12403, %v12399
    %v12405 = vlaneseq
    %v12406 = vshrl.u32 %v12405, 7
    %v12407 = vsub.s32 %v2079, %v12406
    %v12408 = vrot.slane %v11419, %v12407
    %v12409 = vsel %vm2084, %v12408, %v12404
    %v12410 = vlaneseq
    %v12411 = vshrl.u32 %v12410, 7
    %v12412 = vsub.s32 %v2086, %v12411
    %v12413 = vrot.slane %v11422, %v12412
    %v12414 = vsel %vm2091, %v12413, %v12409
    %v12415 = vlaneseq
    %v12416 = vshrl.u32 %v12415, 7
    %v12417 = vsub.s32 %v2093, %v12416
    %v12418 = vrot.slane %v11425, %v12417
    %v12419 = vsel %vm2098, %v12418, %v12414
    %v12420 = vlaneseq
    %v12421 = vshrl.u32 %v12420, 7
    %v12422 = vsub.s32 %v2100, %v12421
    %v12423 = vrot.slane %v11428, %v12422
    %v12424 = vsel %vm2105, %v12423, %v12419
    %v12425 = vlaneseq
    %v12426 = vshrl.u32 %v12425, 7
    %v12427 = vsub.s32 %v2107, %v12426
    %v12428 = vrot.slane %v11431, %v12427
    %v12429 = vsel %vm2112, %v12428, %v12424
    %v12430 = vlaneseq
    %v12431 = vshrl.u32 %v12430, 7
    %v12432 = vsub.s32 %v2114, %v12431
    %v12433 = vrot.slane %v11434, %v12432
    %v12434 = vsel %vm2119, %v12433, %v12429
    %v12435 = vlaneseq
    %v12436 = vshrl.u32 %v12435, 7
    %v12437 = vsub.s32 %v2121, %v12436
    %v12438 = vrot.slane %v11437, %v12437
    %v12439 = vsel %vm2126, %v12438, %v12434
    %v12440 = vlaneseq
    %v12441 = vshrl.u32 %v12440, 7
    %v12442 = vsub.s32 %v2128, %v12441
    %v12443 = vrot.slane %v11440, %v12442
    %v12444 = vsel %vm2133, %v12443, %v12439
    %v12445 = vlaneseq
    %v12446 = vshrl.u32 %v12445, 7
    %v12447 = vsub.s32 %v2135, %v12446
    %v12448 = vrot.slane %v11443, %v12447
    %v12449 = vsel %vm2140, %v12448, %v12444
    %v12450 = vlaneseq
    %v12451 = vshrl.u32 %v12450, 7
    %v12452 = vsub.s32 %v2142, %v12451
    %v12453 = vrot.slane %v11446, %v12452
    %v12454 = vsel %vm2147, %v12453, %v12449
    %v12455 = vlaneseq
    %v12456 = vshrl.u32 %v12455, 7
    %v12457 = vsub.s32 %v2149, %v12456
    %v12458 = vrot.slane %v11449, %v12457
    %v12459 = vsel %vm2154, %v12458, %v12454
    %v12460 = vlaneseq
    %v12461 = vshrl.u32 %v12460, 7
    %v12462 = vsub.s32 %v2156, %v12461
    %v12463 = vrot.slane %v11452, %v12462
    %v12464 = vsel %vm2161, %v12463, %v12459
    %v12465 = vlaneseq
    %v12466 = vshrl.u32 %v12465, 7
    %v12467 = vsub.s32 %v2163, %v12466
    %v12468 = vrot.slane %v11455, %v12467
    %v12469 = vsel %vm2168, %v12468, %v12464
    %v12470 = vlaneseq
    %v12471 = vshrl.u32 %v12470, 7
    %v12472 = vsub.s32 %v2170, %v12471
    %v12473 = vrot.slane %v11458, %v12472
    %v12474 = vsel %vm2175, %v12473, %v12469
    %v12475 = vlaneseq
    %v12476 = vshrl.u32 %v12475, 7
    %v12477 = vsub.s32 %v2067, %v12476
    %v12478 = vrot.slane %v11461, %v12477
    %v12479 = vlaneseq
    %v12480 = vshrl.u32 %v12479, 7
    %v12481 = vsub.s32 %v2072, %v12480
    %v12482 = vrot.slane %v11464, %v12481
    %v12483 = vsel %vm2077, %v12482, %v12478
    %v12484 = vlaneseq
    %v12485 = vshrl.u32 %v12484, 7
    %v12486 = vsub.s32 %v2079, %v12485
    %v12487 = vrot.slane %v11467, %v12486
    %v12488 = vsel %vm2084, %v12487, %v12483
    %v12489 = vlaneseq
    %v12490 = vshrl.u32 %v12489, 7
    %v12491 = vsub.s32 %v2086, %v12490
    %v12492 = vrot.slane %v11470, %v12491
    %v12493 = vsel %vm2091, %v12492, %v12488
    %v12494 = vlaneseq
    %v12495 = vshrl.u32 %v12494, 7
    %v12496 = vsub.s32 %v2093, %v12495
    %v12497 = vrot.slane %v11473, %v12496
    %v12498 = vsel %vm2098, %v12497, %v12493
    %v12499 = vlaneseq
    %v12500 = vshrl.u32 %v12499, 7
    %v12501 = vsub.s32 %v2100, %v12500
    %v12502 = vrot.slane %v11476, %v12501
    %v12503 = vsel %vm2105, %v12502, %v12498
    %v12504 = vlaneseq
    %v12505 = vshrl.u32 %v12504, 7
    %v12506 = vsub.s32 %v2107, %v12505
    %v12507 = vrot.slane %v11479, %v12506
    %v12508 = vsel %vm2112, %v12507, %v12503
    %v12509 = vlaneseq
    %v12510 = vshrl.u32 %v12509, 7
    %v12511 = vsub.s32 %v2114, %v12510
    %v12512 = vrot.slane %v11482, %v12511
    %v12513 = vsel %vm2119, %v12512, %v12508
    %v12514 = vlaneseq
    %v12515 = vshrl.u32 %v12514, 7
    %v12516 = vsub.s32 %v2121, %v12515
    %v12517 = vrot.slane %v11485, %v12516
    %v12518 = vsel %vm2126, %v12517, %v12513
    %v12519 = vlaneseq
    %v12520 = vshrl.u32 %v12519, 7
    %v12521 = vsub.s32 %v2128, %v12520
    %v12522 = vrot.slane %v11488, %v12521
    %v12523 = vsel %vm2133, %v12522, %v12518
    %v12524 = vlaneseq
    %v12525 = vshrl.u32 %v12524, 7
    %v12526 = vsub.s32 %v2135, %v12525
    %v12527 = vrot.slane %v11491, %v12526
    %v12528 = vsel %vm2140, %v12527, %v12523
    %v12529 = vlaneseq
    %v12530 = vshrl.u32 %v12529, 7
    %v12531 = vsub.s32 %v2142, %v12530
    %v12532 = vrot.slane %v11494, %v12531
    %v12533 = vsel %vm2147, %v12532, %v12528
    %v12534 = vlaneseq
    %v12535 = vshrl.u32 %v12534, 7
    %v12536 = vsub.s32 %v2149, %v12535
    %v12537 = vrot.slane %v11497, %v12536
    %v12538 = vsel %vm2154, %v12537, %v12533
    %v12539 = vlaneseq
    %v12540 = vshrl.u32 %v12539, 7
    %v12541 = vsub.s32 %v2156, %v12540
    %v12542 = vrot.slane %v11500, %v12541
    %v12543 = vsel %vm2161, %v12542, %v12538
    %v12544 = vlaneseq
    %v12545 = vshrl.u32 %v12544, 7
    %v12546 = vsub.s32 %v2163, %v12545
    %v12547 = vrot.slane %v11503, %v12546
    %v12548 = vsel %vm2168, %v12547, %v12543
    %v12549 = vlaneseq
    %v12550 = vshrl.u32 %v12549, 7
    %v12551 = vsub.s32 %v2170, %v12550
    %v12552 = vrot.slane %v11506, %v12551
    %v12553 = vsel %vm2175, %v12552, %v12548
    %v12554 = vlaneseq
    %v12555 = vshrl.u32 %v12554, 7
    %v12556 = vsub.s32 %v2067, %v12555
    %v12557 = vrot.slane %v11509, %v12556
    %v12558 = vlaneseq
    %v12559 = vshrl.u32 %v12558, 7
    %v12560 = vsub.s32 %v2072, %v12559
    %v12561 = vrot.slane %v11512, %v12560
    %v12562 = vsel %vm2077, %v12561, %v12557
    %v12563 = vlaneseq
    %v12564 = vshrl.u32 %v12563, 7
    %v12565 = vsub.s32 %v2079, %v12564
    %v12566 = vrot.slane %v11515, %v12565
    %v12567 = vsel %vm2084, %v12566, %v12562
    %v12568 = vlaneseq
    %v12569 = vshrl.u32 %v12568, 7
    %v12570 = vsub.s32 %v2086, %v12569
    %v12571 = vrot.slane %v11518, %v12570
    %v12572 = vsel %vm2091, %v12571, %v12567
    %v12573 = vlaneseq
    %v12574 = vshrl.u32 %v12573, 7
    %v12575 = vsub.s32 %v2093, %v12574
    %v12576 = vrot.slane %v11521, %v12575
    %v12577 = vsel %vm2098, %v12576, %v12572
    %v12578 = vlaneseq
    %v12579 = vshrl.u32 %v12578, 7
    %v12580 = vsub.s32 %v2100, %v12579
    %v12581 = vrot.slane %v11524, %v12580
    %v12582 = vsel %vm2105, %v12581, %v12577
    %v12583 = vlaneseq
    %v12584 = vshrl.u32 %v12583, 7
    %v12585 = vsub.s32 %v2107, %v12584
    %v12586 = vrot.slane %v11527, %v12585
    %v12587 = vsel %vm2112, %v12586, %v12582
    %v12588 = vlaneseq
    %v12589 = vshrl.u32 %v12588, 7
    %v12590 = vsub.s32 %v2114, %v12589
    %v12591 = vrot.slane %v11530, %v12590
    %v12592 = vsel %vm2119, %v12591, %v12587
    %v12593 = vlaneseq
    %v12594 = vshrl.u32 %v12593, 7
    %v12595 = vsub.s32 %v2121, %v12594
    %v12596 = vrot.slane %v11533, %v12595
    %v12597 = vsel %vm2126, %v12596, %v12592
    %v12598 = vlaneseq
    %v12599 = vshrl.u32 %v12598, 7
    %v12600 = vsub.s32 %v2128, %v12599
    %v12601 = vrot.slane %v11536, %v12600
    %v12602 = vsel %vm2133, %v12601, %v12597
    %v12603 = vlaneseq
    %v12604 = vshrl.u32 %v12603, 7
    %v12605 = vsub.s32 %v2135, %v12604
    %v12606 = vrot.slane %v11539, %v12605
    %v12607 = vsel %vm2140, %v12606, %v12602
    %v12608 = vlaneseq
    %v12609 = vshrl.u32 %v12608, 7
    %v12610 = vsub.s32 %v2142, %v12609
    %v12611 = vrot.slane %v11542, %v12610
    %v12612 = vsel %vm2147, %v12611, %v12607
    %v12613 = vlaneseq
    %v12614 = vshrl.u32 %v12613, 7
    %v12615 = vsub.s32 %v2149, %v12614
    %v12616 = vrot.slane %v11545, %v12615
    %v12617 = vsel %vm2154, %v12616, %v12612
    %v12618 = vlaneseq
    %v12619 = vshrl.u32 %v12618, 7
    %v12620 = vsub.s32 %v2156, %v12619
    %v12621 = vrot.slane %v11548, %v12620
    %v12622 = vsel %vm2161, %v12621, %v12617
    %v12623 = vlaneseq
    %v12624 = vshrl.u32 %v12623, 7
    %v12625 = vsub.s32 %v2163, %v12624
    %v12626 = vrot.slane %v11551, %v12625
    %v12627 = vsel %vm2168, %v12626, %v12622
    %v12628 = vlaneseq
    %v12629 = vshrl.u32 %v12628, 7
    %v12630 = vsub.s32 %v2170, %v12629
    %v12631 = vrot.slane %v11554, %v12630
    %v12632 = vsel %vm2175, %v12631, %v12627
    %v12633 = vlaneseq
    %v12634 = vshrl.u32 %v12633, 7
    %v12635 = vsub.s32 %v2067, %v12634
    %v12636 = vrot.slane %v11557, %v12635
    %v12637 = vlaneseq
    %v12638 = vshrl.u32 %v12637, 7
    %v12639 = vsub.s32 %v2072, %v12638
    %v12640 = vrot.slane %v11560, %v12639
    %v12641 = vsel %vm2077, %v12640, %v12636
    %v12642 = vlaneseq
    %v12643 = vshrl.u32 %v12642, 7
    %v12644 = vsub.s32 %v2079, %v12643
    %v12645 = vrot.slane %v11563, %v12644
    %v12646 = vsel %vm2084, %v12645, %v12641
    %v12647 = vlaneseq
    %v12648 = vshrl.u32 %v12647, 7
    %v12649 = vsub.s32 %v2086, %v12648
    %v12650 = vrot.slane %v11566, %v12649
    %v12651 = vsel %vm2091, %v12650, %v12646
    %v12652 = vlaneseq
    %v12653 = vshrl.u32 %v12652, 7
    %v12654 = vsub.s32 %v2093, %v12653
    %v12655 = vrot.slane %v11569, %v12654
    %v12656 = vsel %vm2098, %v12655, %v12651
    %v12657 = vlaneseq
    %v12658 = vshrl.u32 %v12657, 7
    %v12659 = vsub.s32 %v2100, %v12658
    %v12660 = vrot.slane %v11572, %v12659
    %v12661 = vsel %vm2105, %v12660, %v12656
    %v12662 = vlaneseq
    %v12663 = vshrl.u32 %v12662, 7
    %v12664 = vsub.s32 %v2107, %v12663
    %v12665 = vrot.slane %v11575, %v12664
    %v12666 = vsel %vm2112, %v12665, %v12661
    %v12667 = vlaneseq
    %v12668 = vshrl.u32 %v12667, 7
    %v12669 = vsub.s32 %v2114, %v12668
    %v12670 = vrot.slane %v11578, %v12669
    %v12671 = vsel %vm2119, %v12670, %v12666
    %v12672 = vlaneseq
    %v12673 = vshrl.u32 %v12672, 7
    %v12674 = vsub.s32 %v2121, %v12673
    %v12675 = vrot.slane %v11581, %v12674
    %v12676 = vsel %vm2126, %v12675, %v12671
    %v12677 = vlaneseq
    %v12678 = vshrl.u32 %v12677, 7
    %v12679 = vsub.s32 %v2128, %v12678
    %v12680 = vrot.slane %v11584, %v12679
    %v12681 = vsel %vm2133, %v12680, %v12676
    %v12682 = vlaneseq
    %v12683 = vshrl.u32 %v12682, 7
    %v12684 = vsub.s32 %v2135, %v12683
    %v12685 = vrot.slane %v11587, %v12684
    %v12686 = vsel %vm2140, %v12685, %v12681
    %v12687 = vlaneseq
    %v12688 = vshrl.u32 %v12687, 7
    %v12689 = vsub.s32 %v2142, %v12688
    %v12690 = vrot.slane %v11590, %v12689
    %v12691 = vsel %vm2147, %v12690, %v12686
    %v12692 = vlaneseq
    %v12693 = vshrl.u32 %v12692, 7
    %v12694 = vsub.s32 %v2149, %v12693
    %v12695 = vrot.slane %v11593, %v12694
    %v12696 = vsel %vm2154, %v12695, %v12691
    %v12697 = vlaneseq
    %v12698 = vshrl.u32 %v12697, 7
    %v12699 = vsub.s32 %v2156, %v12698
    %v12700 = vrot.slane %v11596, %v12699
    %v12701 = vsel %vm2161, %v12700, %v12696
    %v12702 = vlaneseq
    %v12703 = vshrl.u32 %v12702, 7
    %v12704 = vsub.s32 %v2163, %v12703
    %v12705 = vrot.slane %v11599, %v12704
    %v12706 = vsel %vm2168, %v12705, %v12701
    %v12707 = vlaneseq
    %v12708 = vshrl.u32 %v12707, 7
    %v12709 = vsub.s32 %v2170, %v12708
    %v12710 = vrot.slane %v11602, %v12709
    %v12711 = vsel %vm2175, %v12710, %v12706
    %v12712 = vlaneseq
    %v12713 = vshrl.u32 %v12712, 7
    %v12714 = vsub.s32 %v2067, %v12713
    %v12715 = vrot.slane %v11605, %v12714
    %v12716 = vlaneseq
    %v12717 = vshrl.u32 %v12716, 7
    %v12718 = vsub.s32 %v2072, %v12717
    %v12719 = vrot.slane %v11608, %v12718
    %v12720 = vsel %vm2077, %v12719, %v12715
    %v12721 = vlaneseq
    %v12722 = vshrl.u32 %v12721, 7
    %v12723 = vsub.s32 %v2079, %v12722
    %v12724 = vrot.slane %v11611, %v12723
    %v12725 = vsel %vm2084, %v12724, %v12720
    %v12726 = vlaneseq
    %v12727 = vshrl.u32 %v12726, 7
    %v12728 = vsub.s32 %v2086, %v12727
    %v12729 = vrot.slane %v11614, %v12728
    %v12730 = vsel %vm2091, %v12729, %v12725
    %v12731 = vlaneseq
    %v12732 = vshrl.u32 %v12731, 7
    %v12733 = vsub.s32 %v2093, %v12732
    %v12734 = vrot.slane %v11617, %v12733
    %v12735 = vsel %vm2098, %v12734, %v12730
    %v12736 = vlaneseq
    %v12737 = vshrl.u32 %v12736, 7
    %v12738 = vsub.s32 %v2100, %v12737
    %v12739 = vrot.slane %v11620, %v12738
    %v12740 = vsel %vm2105, %v12739, %v12735
    %v12741 = vlaneseq
    %v12742 = vshrl.u32 %v12741, 7
    %v12743 = vsub.s32 %v2107, %v12742
    %v12744 = vrot.slane %v11623, %v12743
    %v12745 = vsel %vm2112, %v12744, %v12740
    %v12746 = vlaneseq
    %v12747 = vshrl.u32 %v12746, 7
    %v12748 = vsub.s32 %v2114, %v12747
    %v12749 = vrot.slane %v11626, %v12748
    %v12750 = vsel %vm2119, %v12749, %v12745
    %v12751 = vlaneseq
    %v12752 = vshrl.u32 %v12751, 7
    %v12753 = vsub.s32 %v2121, %v12752
    %v12754 = vrot.slane %v11629, %v12753
    %v12755 = vsel %vm2126, %v12754, %v12750
    %v12756 = vlaneseq
    %v12757 = vshrl.u32 %v12756, 7
    %v12758 = vsub.s32 %v2128, %v12757
    %v12759 = vrot.slane %v11632, %v12758
    %v12760 = vsel %vm2133, %v12759, %v12755
    %v12761 = vlaneseq
    %v12762 = vshrl.u32 %v12761, 7
    %v12763 = vsub.s32 %v2135, %v12762
    %v12764 = vrot.slane %v11635, %v12763
    %v12765 = vsel %vm2140, %v12764, %v12760
    %v12766 = vlaneseq
    %v12767 = vshrl.u32 %v12766, 7
    %v12768 = vsub.s32 %v2142, %v12767
    %v12769 = vrot.slane %v11638, %v12768
    %v12770 = vsel %vm2147, %v12769, %v12765
    %v12771 = vlaneseq
    %v12772 = vshrl.u32 %v12771, 7
    %v12773 = vsub.s32 %v2149, %v12772
    %v12774 = vrot.slane %v11641, %v12773
    %v12775 = vsel %vm2154, %v12774, %v12770
    %v12776 = vlaneseq
    %v12777 = vshrl.u32 %v12776, 7
    %v12778 = vsub.s32 %v2156, %v12777
    %v12779 = vrot.slane %v11644, %v12778
    %v12780 = vsel %vm2161, %v12779, %v12775
    %v12781 = vlaneseq
    %v12782 = vshrl.u32 %v12781, 7
    %v12783 = vsub.s32 %v2163, %v12782
    %v12784 = vrot.slane %v11647, %v12783
    %v12785 = vsel %vm2168, %v12784, %v12780
    %v12786 = vlaneseq
    %v12787 = vshrl.u32 %v12786, 7
    %v12788 = vsub.s32 %v2170, %v12787
    %v12789 = vrot.slane %v11650, %v12788
    %v12790 = vsel %vm2175, %v12789, %v12785
    %v12791 = vlaneseq
    %v12792 = vshrl.u32 %v12791, 7
    %v12793 = vsub.s32 %v2067, %v12792
    %v12794 = vrot.slane %v11653, %v12793
    %v12795 = vlaneseq
    %v12796 = vshrl.u32 %v12795, 7
    %v12797 = vsub.s32 %v2072, %v12796
    %v12798 = vrot.slane %v11656, %v12797
    %v12799 = vsel %vm2077, %v12798, %v12794
    %v12800 = vlaneseq
    %v12801 = vshrl.u32 %v12800, 7
    %v12802 = vsub.s32 %v2079, %v12801
    %v12803 = vrot.slane %v11659, %v12802
    %v12804 = vsel %vm2084, %v12803, %v12799
    %v12805 = vlaneseq
    %v12806 = vshrl.u32 %v12805, 7
    %v12807 = vsub.s32 %v2086, %v12806
    %v12808 = vrot.slane %v11662, %v12807
    %v12809 = vsel %vm2091, %v12808, %v12804
    %v12810 = vlaneseq
    %v12811 = vshrl.u32 %v12810, 7
    %v12812 = vsub.s32 %v2093, %v12811
    %v12813 = vrot.slane %v11665, %v12812
    %v12814 = vsel %vm2098, %v12813, %v12809
    %v12815 = vlaneseq
    %v12816 = vshrl.u32 %v12815, 7
    %v12817 = vsub.s32 %v2100, %v12816
    %v12818 = vrot.slane %v11668, %v12817
    %v12819 = vsel %vm2105, %v12818, %v12814
    %v12820 = vlaneseq
    %v12821 = vshrl.u32 %v12820, 7
    %v12822 = vsub.s32 %v2107, %v12821
    %v12823 = vrot.slane %v11671, %v12822
    %v12824 = vsel %vm2112, %v12823, %v12819
    %v12825 = vlaneseq
    %v12826 = vshrl.u32 %v12825, 7
    %v12827 = vsub.s32 %v2114, %v12826
    %v12828 = vrot.slane %v11674, %v12827
    %v12829 = vsel %vm2119, %v12828, %v12824
    %v12830 = vlaneseq
    %v12831 = vshrl.u32 %v12830, 7
    %v12832 = vsub.s32 %v2121, %v12831
    %v12833 = vrot.slane %v11677, %v12832
    %v12834 = vsel %vm2126, %v12833, %v12829
    %v12835 = vlaneseq
    %v12836 = vshrl.u32 %v12835, 7
    %v12837 = vsub.s32 %v2128, %v12836
    %v12838 = vrot.slane %v11680, %v12837
    %v12839 = vsel %vm2133, %v12838, %v12834
    %v12840 = vlaneseq
    %v12841 = vshrl.u32 %v12840, 7
    %v12842 = vsub.s32 %v2135, %v12841
    %v12843 = vrot.slane %v11683, %v12842
    %v12844 = vsel %vm2140, %v12843, %v12839
    %v12845 = vlaneseq
    %v12846 = vshrl.u32 %v12845, 7
    %v12847 = vsub.s32 %v2142, %v12846
    %v12848 = vrot.slane %v11686, %v12847
    %v12849 = vsel %vm2147, %v12848, %v12844
    %v12850 = vlaneseq
    %v12851 = vshrl.u32 %v12850, 7
    %v12852 = vsub.s32 %v2149, %v12851
    %v12853 = vrot.slane %v11689, %v12852
    %v12854 = vsel %vm2154, %v12853, %v12849
    %v12855 = vlaneseq
    %v12856 = vshrl.u32 %v12855, 7
    %v12857 = vsub.s32 %v2156, %v12856
    %v12858 = vrot.slane %v11692, %v12857
    %v12859 = vsel %vm2161, %v12858, %v12854
    %v12860 = vlaneseq
    %v12861 = vshrl.u32 %v12860, 7
    %v12862 = vsub.s32 %v2163, %v12861
    %v12863 = vrot.slane %v11695, %v12862
    %v12864 = vsel %vm2168, %v12863, %v12859
    %v12865 = vlaneseq
    %v12866 = vshrl.u32 %v12865, 7
    %v12867 = vsub.s32 %v2170, %v12866
    %v12868 = vrot.slane %v11698, %v12867
    %v12869 = vsel %vm2175, %v12868, %v12864
    %v12870 = vlaneseq
    %v12871 = vshrl.u32 %v12870, 7
    %v12872 = vsub.s32 %v2067, %v12871
    %v12873 = vrot.slane %v11701, %v12872
    %v12874 = vlaneseq
    %v12875 = vshrl.u32 %v12874, 7
    %v12876 = vsub.s32 %v2072, %v12875
    %v12877 = vrot.slane %v11704, %v12876
    %v12878 = vsel %vm2077, %v12877, %v12873
    %v12879 = vlaneseq
    %v12880 = vshrl.u32 %v12879, 7
    %v12881 = vsub.s32 %v2079, %v12880
    %v12882 = vrot.slane %v11707, %v12881
    %v12883 = vsel %vm2084, %v12882, %v12878
    %v12884 = vlaneseq
    %v12885 = vshrl.u32 %v12884, 7
    %v12886 = vsub.s32 %v2086, %v12885
    %v12887 = vrot.slane %v11710, %v12886
    %v12888 = vsel %vm2091, %v12887, %v12883
    %v12889 = vlaneseq
    %v12890 = vshrl.u32 %v12889, 7
    %v12891 = vsub.s32 %v2093, %v12890
    %v12892 = vrot.slane %v11713, %v12891
    %v12893 = vsel %vm2098, %v12892, %v12888
    %v12894 = vlaneseq
    %v12895 = vshrl.u32 %v12894, 7
    %v12896 = vsub.s32 %v2100, %v12895
    %v12897 = vrot.slane %v11716, %v12896
    %v12898 = vsel %vm2105, %v12897, %v12893
    %v12899 = vlaneseq
    %v12900 = vshrl.u32 %v12899, 7
    %v12901 = vsub.s32 %v2107, %v12900
    %v12902 = vrot.slane %v11719, %v12901
    %v12903 = vsel %vm2112, %v12902, %v12898
    %v12904 = vlaneseq
    %v12905 = vshrl.u32 %v12904, 7
    %v12906 = vsub.s32 %v2114, %v12905
    %v12907 = vrot.slane %v11722, %v12906
    %v12908 = vsel %vm2119, %v12907, %v12903
    %v12909 = vlaneseq
    %v12910 = vshrl.u32 %v12909, 7
    %v12911 = vsub.s32 %v2121, %v12910
    %v12912 = vrot.slane %v11725, %v12911
    %v12913 = vsel %vm2126, %v12912, %v12908
    %v12914 = vlaneseq
    %v12915 = vshrl.u32 %v12914, 7
    %v12916 = vsub.s32 %v2128, %v12915
    %v12917 = vrot.slane %v11728, %v12916
    %v12918 = vsel %vm2133, %v12917, %v12913
    %v12919 = vlaneseq
    %v12920 = vshrl.u32 %v12919, 7
    %v12921 = vsub.s32 %v2135, %v12920
    %v12922 = vrot.slane %v11731, %v12921
    %v12923 = vsel %vm2140, %v12922, %v12918
    %v12924 = vlaneseq
    %v12925 = vshrl.u32 %v12924, 7
    %v12926 = vsub.s32 %v2142, %v12925
    %v12927 = vrot.slane %v11734, %v12926
    %v12928 = vsel %vm2147, %v12927, %v12923
    %v12929 = vlaneseq
    %v12930 = vshrl.u32 %v12929, 7
    %v12931 = vsub.s32 %v2149, %v12930
    %v12932 = vrot.slane %v11737, %v12931
    %v12933 = vsel %vm2154, %v12932, %v12928
    %v12934 = vlaneseq
    %v12935 = vshrl.u32 %v12934, 7
    %v12936 = vsub.s32 %v2156, %v12935
    %v12937 = vrot.slane %v11740, %v12936
    %v12938 = vsel %vm2161, %v12937, %v12933
    %v12939 = vlaneseq
    %v12940 = vshrl.u32 %v12939, 7
    %v12941 = vsub.s32 %v2163, %v12940
    %v12942 = vrot.slane %v11743, %v12941
    %v12943 = vsel %vm2168, %v12942, %v12938
    %v12944 = vlaneseq
    %v12945 = vshrl.u32 %v12944, 7
    %v12946 = vsub.s32 %v2170, %v12945
    %v12947 = vrot.slane %v11746, %v12946
    %v12948 = vsel %vm2175, %v12947, %v12943
    %v12949 = vlaneseq
    %v12950 = vshrl.u32 %v12949, 7
    %v12951 = vsub.s32 %v2067, %v12950
    %v12952 = vrot.slane %v11749, %v12951
    %v12953 = vlaneseq
    %v12954 = vshrl.u32 %v12953, 7
    %v12955 = vsub.s32 %v2072, %v12954
    %v12956 = vrot.slane %v11752, %v12955
    %v12957 = vsel %vm2077, %v12956, %v12952
    %v12958 = vlaneseq
    %v12959 = vshrl.u32 %v12958, 7
    %v12960 = vsub.s32 %v2079, %v12959
    %v12961 = vrot.slane %v11755, %v12960
    %v12962 = vsel %vm2084, %v12961, %v12957
    %v12963 = vlaneseq
    %v12964 = vshrl.u32 %v12963, 7
    %v12965 = vsub.s32 %v2086, %v12964
    %v12966 = vrot.slane %v11758, %v12965
    %v12967 = vsel %vm2091, %v12966, %v12962
    %v12968 = vlaneseq
    %v12969 = vshrl.u32 %v12968, 7
    %v12970 = vsub.s32 %v2093, %v12969
    %v12971 = vrot.slane %v11761, %v12970
    %v12972 = vsel %vm2098, %v12971, %v12967
    %v12973 = vlaneseq
    %v12974 = vshrl.u32 %v12973, 7
    %v12975 = vsub.s32 %v2100, %v12974
    %v12976 = vrot.slane %v11764, %v12975
    %v12977 = vsel %vm2105, %v12976, %v12972
    %v12978 = vlaneseq
    %v12979 = vshrl.u32 %v12978, 7
    %v12980 = vsub.s32 %v2107, %v12979
    %v12981 = vrot.slane %v11767, %v12980
    %v12982 = vsel %vm2112, %v12981, %v12977
    %v12983 = vlaneseq
    %v12984 = vshrl.u32 %v12983, 7
    %v12985 = vsub.s32 %v2114, %v12984
    %v12986 = vrot.slane %v11770, %v12985
    %v12987 = vsel %vm2119, %v12986, %v12982
    %v12988 = vlaneseq
    %v12989 = vshrl.u32 %v12988, 7
    %v12990 = vsub.s32 %v2121, %v12989
    %v12991 = vrot.slane %v11773, %v12990
    %v12992 = vsel %vm2126, %v12991, %v12987
    %v12993 = vlaneseq
    %v12994 = vshrl.u32 %v12993, 7
    %v12995 = vsub.s32 %v2128, %v12994
    %v12996 = vrot.slane %v11776, %v12995
    %v12997 = vsel %vm2133, %v12996, %v12992
    %v12998 = vlaneseq
    %v12999 = vshrl.u32 %v12998, 7
    %v13000 = vsub.s32 %v2135, %v12999
    %v13001 = vrot.slane %v11779, %v13000
    %v13002 = vsel %vm2140, %v13001, %v12997
    %v13003 = vlaneseq
    %v13004 = vshrl.u32 %v13003, 7
    %v13005 = vsub.s32 %v2142, %v13004
    %v13006 = vrot.slane %v11782, %v13005
    %v13007 = vsel %vm2147, %v13006, %v13002
    %v13008 = vlaneseq
    %v13009 = vshrl.u32 %v13008, 7
    %v13010 = vsub.s32 %v2149, %v13009
    %v13011 = vrot.slane %v11785, %v13010
    %v13012 = vsel %vm2154, %v13011, %v13007
    %v13013 = vlaneseq
    %v13014 = vshrl.u32 %v13013, 7
    %v13015 = vsub.s32 %v2156, %v13014
    %v13016 = vrot.slane %v11788, %v13015
    %v13017 = vsel %vm2161, %v13016, %v13012
    %v13018 = vlaneseq
    %v13019 = vshrl.u32 %v13018, 7
    %v13020 = vsub.s32 %v2163, %v13019
    %v13021 = vrot.slane %v11791, %v13020
    %v13022 = vsel %vm2168, %v13021, %v13017
    %v13023 = vlaneseq
    %v13024 = vshrl.u32 %v13023, 7
    %v13025 = vsub.s32 %v2170, %v13024
    %v13026 = vrot.slane %v11794, %v13025
    %v13027 = vsel %vm2175, %v13026, %v13022
    %v13028 = vlaneseq
    %v13029 = vshrl.u32 %v13028, 7
    %v13030 = vsub.s32 %v2067, %v13029
    %v13031 = vrot.slane %v11797, %v13030
    %v13032 = vlaneseq
    %v13033 = vshrl.u32 %v13032, 7
    %v13034 = vsub.s32 %v2072, %v13033
    %v13035 = vrot.slane %v11800, %v13034
    %v13036 = vsel %vm2077, %v13035, %v13031
    %v13037 = vlaneseq
    %v13038 = vshrl.u32 %v13037, 7
    %v13039 = vsub.s32 %v2079, %v13038
    %v13040 = vrot.slane %v11803, %v13039
    %v13041 = vsel %vm2084, %v13040, %v13036
    %v13042 = vlaneseq
    %v13043 = vshrl.u32 %v13042, 7
    %v13044 = vsub.s32 %v2086, %v13043
    %v13045 = vrot.slane %v11806, %v13044
    %v13046 = vsel %vm2091, %v13045, %v13041
    %v13047 = vlaneseq
    %v13048 = vshrl.u32 %v13047, 7
    %v13049 = vsub.s32 %v2093, %v13048
    %v13050 = vrot.slane %v11809, %v13049
    %v13051 = vsel %vm2098, %v13050, %v13046
    %v13052 = vlaneseq
    %v13053 = vshrl.u32 %v13052, 7
    %v13054 = vsub.s32 %v2100, %v13053
    %v13055 = vrot.slane %v11812, %v13054
    %v13056 = vsel %vm2105, %v13055, %v13051
    %v13057 = vlaneseq
    %v13058 = vshrl.u32 %v13057, 7
    %v13059 = vsub.s32 %v2107, %v13058
    %v13060 = vrot.slane %v11815, %v13059
    %v13061 = vsel %vm2112, %v13060, %v13056
    %v13062 = vlaneseq
    %v13063 = vshrl.u32 %v13062, 7
    %v13064 = vsub.s32 %v2114, %v13063
    %v13065 = vrot.slane %v11818, %v13064
    %v13066 = vsel %vm2119, %v13065, %v13061
    %v13067 = vlaneseq
    %v13068 = vshrl.u32 %v13067, 7
    %v13069 = vsub.s32 %v2121, %v13068
    %v13070 = vrot.slane %v11821, %v13069
    %v13071 = vsel %vm2126, %v13070, %v13066
    %v13072 = vlaneseq
    %v13073 = vshrl.u32 %v13072, 7
    %v13074 = vsub.s32 %v2128, %v13073
    %v13075 = vrot.slane %v11824, %v13074
    %v13076 = vsel %vm2133, %v13075, %v13071
    %v13077 = vlaneseq
    %v13078 = vshrl.u32 %v13077, 7
    %v13079 = vsub.s32 %v2135, %v13078
    %v13080 = vrot.slane %v11827, %v13079
    %v13081 = vsel %vm2140, %v13080, %v13076
    %v13082 = vlaneseq
    %v13083 = vshrl.u32 %v13082, 7
    %v13084 = vsub.s32 %v2142, %v13083
    %v13085 = vrot.slane %v11830, %v13084
    %v13086 = vsel %vm2147, %v13085, %v13081
    %v13087 = vlaneseq
    %v13088 = vshrl.u32 %v13087, 7
    %v13089 = vsub.s32 %v2149, %v13088
    %v13090 = vrot.slane %v11833, %v13089
    %v13091 = vsel %vm2154, %v13090, %v13086
    %v13092 = vlaneseq
    %v13093 = vshrl.u32 %v13092, 7
    %v13094 = vsub.s32 %v2156, %v13093
    %v13095 = vrot.slane %v11836, %v13094
    %v13096 = vsel %vm2161, %v13095, %v13091
    %v13097 = vlaneseq
    %v13098 = vshrl.u32 %v13097, 7
    %v13099 = vsub.s32 %v2163, %v13098
    %v13100 = vrot.slane %v11839, %v13099
    %v13101 = vsel %vm2168, %v13100, %v13096
    %v13102 = vlaneseq
    %v13103 = vshrl.u32 %v13102, 7
    %v13104 = vsub.s32 %v2170, %v13103
    %v13105 = vrot.slane %v11842, %v13104
    %v13106 = vsel %vm2175, %v13105, %v13101
    %v13107 = vsel %vm3362, %v12553, %v11921
    %v13108 = vsel %vm3362, %v12632, %v12000
    %v13109 = vsel %vm3362, %v12711, %v12079
    %v13110 = vsel %vm3362, %v12790, %v12158
    %v13111 = vsel %vm3362, %v12869, %v12237
    %v13112 = vsel %vm3362, %v12948, %v12316
    %v13113 = vsel %vm3362, %v13027, %v12395
    %v13114 = vsel %vm3362, %v13106, %v12474
    %v13123 = vadd.f32 %v9875, %v13107
    %v13124 = vadd.f32 %v9876, %v13108
    %v13125 = vadd.f32 %v9877, %v13109
    %v13126 = vadd.f32 %v9878, %v13110
    %v13127 = vadd.f32 %v9879, %v13111
    %v13128 = vadd.f32 %v9880, %v13112
    %v13129 = vadd.f32 %v9881, %v13113
    %v13130 = vadd.f32 %v9882, %v13114
    %v13131 = vmul.f32 %v13123, %v13123
    %v13132 = vmul.f32 %v13124, %v13124
    %v13133 = vmul.f32 %v13125, %v13125
    %v13134 = vmul.f32 %v13126, %v13126
    %v13135 = vmul.f32 %v13127, %v13127
    %v13136 = vmul.f32 %v13128, %v13128
    %v13137 = vmul.f32 %v13129, %v13129
    %v13138 = vmul.f32 %v13130, %v13130
    %vm13139 = vcmask 1041408
    %v13140 = vsel %vm13139, %v13131, 0.0
    %v13141 = vsel %vm13139, %v13132, 0.0
    %v13142 = vadd.f32 %v13140, %v13141
    %v13143 = vsel %vm13139, %v13133, 0.0
    %v13144 = vadd.f32 %v13142, %v13143
    %v13145 = vsel %vm13139, %v13134, 0.0
    %v13146 = vadd.f32 %v13144, %v13145
    %v13147 = vsel %vm13139, %v13135, 0.0
    %v13148 = vadd.f32 %v13146, %v13147
    %v13149 = vsel %vm13139, %v13136, 0.0
    %v13150 = vadd.f32 %v13148, %v13149
    %v13151 = vsel %vm13139, %v13137, 0.0
    %v13152 = vadd.f32 %v13150, %v13151
    %v13153 = vsel %vm13139, %v13138, 0.0
    %v13154 = vadd.f32 %v13152, %v13153
    %13155 = vadd.xlane.f32.xlu0 %v13154
    %v13156 = vpop.xlane.xlu0 %13155
    %v13157 = vadd.f32 %v13156, 1.0
    %v13158 = vrcp.pop %v13157
    %v13159 = vmul.f32 %v13157, %v13158
    %v13160 = vsub.f32 2.0, %v13159
    %v13161 = vmul.f32 %v13158, %v13160
    %v13162 = vmul.f32 %v13161, 2.0
    %v13163 = vmul.f32 %v13123, %v13162
    %v13164 = vmul.f32 %v13124, %v13162
    %v13165 = vmul.f32 %v13125, %v13162
    %v13166 = vmul.f32 %v13126, %v13162
    %v13167 = vmul.f32 %v13127, %v13162
    %v13168 = vmul.f32 %v13128, %v13162
    %v13169 = vmul.f32 %v13129, %v13162
    %v13170 = vmul.f32 %v13130, %v13162
    %v13179 = vcombine.low %v13163, %v13164
    %v13180 = vcombine.low %v13165, %v13166
    %v13182 = vunpack.c.l.s4 1983009808
    %v13183 = vunpack.c.0.s8 %v13182
    %v13184 = vlaneseq
    %v13185 = vshrl.u32 %v13184, 7
    %v13186 = vsub.s32 %v13183, %v13185
    %v13187 = vrot.slane %v13179, %v13186
    %v13189 = vunpack.c.l.s4 1983009808
    %v13190 = vunpack.c.0.s8 %v13189
    %v13191 = vlaneseq
    %v13192 = vshrl.u32 %v13191, 7
    %v13193 = vsub.s32 %v13190, %v13192
    %v13194 = vrot.slane %v13180, %v13193
    %v13195 = vcombine.low %v13187, %v13194
    %v13196 = vcombine.low %v13167, %v13168
    %v13197 = vcombine.low %v13169, %v13170
    %v13199 = vunpack.c.l.s4 1983009808
    %v13200 = vunpack.c.0.s8 %v13199
    %v13201 = vlaneseq
    %v13202 = vshrl.u32 %v13201, 7
    %v13203 = vsub.s32 %v13200, %v13202
    %v13204 = vrot.slane %v13196, %v13203
    %v13206 = vunpack.c.l.s4 1983009808
    %v13207 = vunpack.c.0.s8 %v13206
    %v13208 = vlaneseq
    %v13209 = vshrl.u32 %v13208, 7
    %v13210 = vsub.s32 %v13207, %v13209
    %v13211 = vrot.slane %v13197, %v13210
    %v13212 = vcombine.low %v13204, %v13211
    %13215 = vst [vmem:[#allocation7] sm:$0xff] %v13195
    %13216 = vst [vmem:[#allocation7 + $0x8] sm:$0xff] %v13212
    %v13217 = vsub.f32 %v13156, 1.0
    %v13218 = vmul.f32 %v13217, %v13161
    %vm13219 = vcmask 1024
    %13220 = vst.msk [vmem:[#allocation7 + $0x10] sm:$0x3] %vm13219, %v13218
    // Predicated region
    $region18: #{tpu_custom_call.1} parent=1 // pred_check
      _
    $region19: #{tpu_custom_call.1} parent=1 // pred_check_branch
      %13222 = sbr.rel (0) target = $region21
    $region20: #{tpu_custom_call.1} parent=1 // pred_region
      %s13224 = ssub.s32 288, 288
      %13225 = vsyncadd [#allocation4], %s13224
      %s13227 = sshll.u32 [#allocation7], 4
      %s13228 = int_to_ptr.vmem [resolvable:$true] %s13227
      %13230 = dma.vmem_to_hbm [thread:$0]  %s13228, 288, %s2, [#allocation4]
    $region21: #{tpu_custom_call.1} parent=1 // pred_fallthru
      _
    // Predicated region
    $region22: #{tpu_custom_call.1} parent=1 // pred_check
      _
    $region23: #{tpu_custom_call.1} parent=1 // pred_check_branch
      %13232 = sbr.rel (0) target = $region25
    $region24: #{tpu_custom_call.1} parent=1 // pred_region
      %13233 = dma.done [#allocation4], 288
    $region25: #{tpu_custom_call.1} parent=1 // pred_fallthru
      _
    %13234 = vsyncpa [#allocation3], 1
    %13235 = vsyncpa [#allocation6], 1
    %13236 = vsyncpa [#allocation4], 1

</llo_original>
